<compile_context>
chip_gen: v6e
topology: v6e:2x2x1
jax: 0.10.0
libtpu: 0.0.40
codegen_flags: <defaults>
</compile_context>

<pallas_src>
import jax
import jax.numpy as jnp
from jax import lax
from jax.experimental import pallas as pl
from jax.experimental.pallas import tpu as pltpu

H = W = 224
N_PIX = H * W                   # 50176
NB, R, LS = 4, 98, 128          # 4 * 98 * 128 == 50176 ; lane-dense, 4 pipelined grid steps
LN_EPS = 1e-5
BN_EPS = 1e-5


def partial_quant_kernel(s_ref, x_ref, w_ref, out_ref, s1_ref, s2_ref, s3_ref):
    # s_ref : (7,)        SMEM  folded scalars [A0, A1, A2, B, P, S_w, FB]
    # x_ref : (3, R, LS)  VMEM  current row-slab of the 3 input channels
    # w_ref : (R, LS)     VMEM  folded weight slab  w = conv2_w * ln_w * lin_w
    # out_ref:(1, 1)      VMEM  final output (written on last grid step)
    # s*_ref:(1, 1)       VMEM  accumulators: sum(yc), sum(yc*yc), sum(yc*w)
    i = pl.program_id(0)

    @pl.when(i == 0)
    def _init():
        s1_ref[...] = jnp.zeros_like(s1_ref)
        s2_ref[...] = jnp.zeros_like(s2_ref)
        s3_ref[...] = jnp.zeros_like(s3_ref)

    # Hoist SMEM scalar reads once (avoid repeated sld + scalar->vreg broadcasts).
    a0 = s_ref[0]
    a1 = s_ref[1]
    a2 = s_ref[2]
    b = s_ref[3]
    p = s_ref[4]

    x0 = x_ref[0]
    x1 = x_ref[1]
    x2 = x_ref[2]

    # Folded conv(3->1)+bn+conv1+bn1+sub.conv+sub.bn -> relu -> folded (sub.conv1 ; x+x).
    # The post-ReLU bias Q is intentionally NOT added: yc = y - Q keeps the single-pass
    # variance centered; Q cancels out of the final folded dot.
    yc = jnp.maximum(x0 * a0 + x1 * a1 + x2 * a2 + b, 0.0) * p

    w = w_ref[...]
    s1_ref[...] += jnp.sum(yc, keepdims=True)
    s2_ref[...] += jnp.sum(yc * yc, keepdims=True)
    s3_ref[...] += jnp.sum(yc * w, keepdims=True)

    @pl.when(i == pl.num_programs(0) - 1)
    def _finalize():
        n_inv = jnp.float32(1.0 / N_PIX)
        s_w = s_ref[5]
        fb = s_ref[6]
        mean_c = s1_ref[...] * n_inv                                   # mean(y) - Q
        var = jnp.maximum(s2_ref[...] * n_inv - mean_c * mean_c, 0.0)  # biased (torch LN)
        inv_std = lax.rsqrt(var + LN_EPS)
        # LayerNorm + conv2 + view + Linear fully folded.
        out_ref[...] = inv_std * (s3_ref[...] - mean_c * s_w) + fb


def _bn_fold(gamma, beta, running_mean, running_var, eps=BN_EPS):
    scale = gamma / jnp.sqrt(running_var + eps)
    shift = beta - running_mean * scale
    return scale, shift


def _affine_compose(pairs):
    """Compose y -> a*y + b affines applied in order. Returns (S, T): y -> S*y + T."""
    S = jnp.float32(1.0)
    T = jnp.float32(0.0)
    for a, b in pairs:
        S = a * S
        T = a * T + b
    return S, T


@jax.jit
def partial_quant_forward(x_nchw, params):
    """x_nchw: (1, 3, 224, 224) float32. Returns (1, 1) float32 (same as torch output)."""
    # ---- scalar parameter folding (scalar-on-scalar math; free glue) ----
    bn_s, bn_b = _bn_fold(*params["bn"])
    bn1_s, bn1_b = _bn_fold(*params["bn1"])
    sbn_s, sbn_b = _bn_fold(*params["sub_bn"])

    c1w = params["conv1_w"].reshape(())
    c1b = params["conv1_b"][0]
    scw = params["sub_conv_w"].reshape(())
    scb = params["sub_conv_b"][0]
    sc1w = params["sub_conv1_w"].reshape(())
    c2w = params["conv2_w"].reshape(())
    c2b = params["conv2_b"][0]

    # Pre-ReLU affine chain applied after the 3->1 channel mix.
    S, T = _affine_compose(
        [(bn_s, bn_b), (c1w, c1b), (bn1_s, bn1_b), (scw, scb), (sbn_s, sbn_b)]
    )
    cw = params["conv_w"].reshape(3)
    A = S * cw                                  # (3,) folded channel-mix weights
    B = S * params["conv_b"][0] + T             # folded pre-ReLU bias
    P = 2.0 * sc1w                              # post-ReLU scale (sub.conv1 then x+x)
    # Q = 2.0 * sub_conv1_b is only the centering shift; it cancels algebraically.

    # LayerNorm + conv2 + Linear fold: one weight slab + two scalars.
    ln_w = params["ln_w"].reshape(-1)
    ln_b = params["ln_b"].reshape(-1)
    lin_w = params["lin_w"].reshape(-1)
    w_slab = (c2w * ln_w * lin_w).reshape(NB, R, LS)        # row-major == x.view(1,-1) order
    S_w = jnp.sum(w_slab)
    FB = c2w * jnp.sum(ln_b * lin_w) + c2b * jnp.sum(lin_w) + params["lin_b"][0]

    scal = jnp.stack([A[0], A[1], A[2], B, P, S_w, FB]).astype(jnp.float32)

    # Lane-dense slabs: 224*224 == 4*98*128, full 128-lane vregs, 4-step grid on axis 1.
    x_slab = x_nchw[0].reshape(3, NB, R, LS)

    cost = pl.CostEstimate(
        flops=int(N_PIX * 14),
        transcendentals=1,
        bytes_accessed=int((3 * N_PIX + N_PIX) * 4 + 7 * 4 + 4),
    )

    out = pl.pallas_call(
        partial_quant_kernel,
        out_shape=jax.ShapeDtypeStruct((1, 1), jnp.float32),
        grid=(NB,),
        in_specs=[
            pl.BlockSpec(memory_space=pltpu.MemorySpace.SMEM),        # scal (7,)
            pl.BlockSpec((3, None, R, LS), lambda i: (0, i, 0, 0)),   # x row-slab
            pl.BlockSpec((None, R, LS), lambda i: (i, 0, 0)),         # w row-slab
        ],
        out_specs=pl.BlockSpec((1, 1), lambda i: (0, 0)),
        scratch_shapes=[
            pltpu.VMEM((1, 1), jnp.float32),   # s1 = sum(yc)
            pltpu.VMEM((1, 1), jnp.float32),   # s2 = sum(yc*yc)
            pltpu.VMEM((1, 1), jnp.float32),   # s3 = sum(yc*w)
        ],
        compiler_params=pltpu.CompilerParams(dimension_semantics=("arbitrary",)),
        cost_estimate=cost,
    )(scal, x_slab, w_slab)
    return out


def reference_forward(x_nchw, params):
    """Pure-JAX fp32 reference with the original (unfused) op ordering."""
    bn_s, bn_b = _bn_fold(*params["bn"])
    bn1_s, bn1_b = _bn_fold(*params["bn1"])
    sbn_s, sbn_b = _bn_fold(*params["sub_bn"])
    x = x_nchw[0]                                             # (3,H,W)
    cw = params["conv_w"].reshape(3)
    y = x[0] * cw[0] + x[1] * cw[1] + x[2] * cw[2] + params["conv_b"][0]
    y = y * bn_s + bn_b
    y = y * params["conv1_w"].reshape(()) + params["conv1_b"][0]
    y = y * bn1_s + bn1_b
    y = y * params["sub_conv_w"].reshape(()) + params["sub_conv_b"][0]
    y = y * sbn_s + sbn_b
    y = jnp.maximum(y, 0.0)
    y = y * params["sub_conv1_w"].reshape(()) + params["sub_conv1_b"][0]
    y = y + y                                                 # FP32Model, channel dim == 1
    mean = jnp.mean(y)
    var = jnp.mean((y - mean) ** 2)
    y = (y - mean) * lax.rsqrt(var + LN_EPS)
    y = y * params["ln_w"].reshape(H, W) + params["ln_b"].reshape(H, W)
    y = y * params["conv2_w"].reshape(()) + params["conv2_b"][0]
    out = jnp.sum(y * params["lin_w"].reshape(H, W)) + params["lin_b"][0]
    return out.reshape(1, 1)


if __name__ == "__main__":
    key = jax.random.PRNGKey(0)
    ks = jax.random.split(key, 16)

    # Shape is structurally fixed by LayerNorm([1,224,224]) / view(1,-1) / Linear(224*224,1).
    x = jax.random.normal(ks[0], (1, 3, H, W), dtype=jnp.float32)

    def u(k, shape, scale):
        return jax.random.uniform(k, shape, jnp.float32, -scale, scale)

    params = {
        # Conv2d(3,1,1): weight (1,3,1,1), bias (1,)
        "conv_w": u(ks[1], (1, 3, 1, 1), 0.5), "conv_b": u(ks[2], (1,), 0.5),
        # Conv2d(1,1,1) x4
        "conv1_w": u(ks[3], (1, 1, 1, 1), 0.9), "conv1_b": u(ks[4], (1,), 0.5),
        "conv2_w": u(ks[5], (1, 1, 1, 1), 0.9), "conv2_b": u(ks[6], (1,), 0.5),
        "sub_conv_w": u(ks[7], (1, 1, 1, 1), 0.9), "sub_conv_b": u(ks[8], (1,), 0.5),
        "sub_conv1_w": u(ks[9], (1, 1, 1, 1), 0.9), "sub_conv1_b": u(ks[10], (1,), 0.5),
        # BatchNorm2d(1), eval mode (running stats); fresh-module defaults.
        "bn": (jnp.float32(1.0), jnp.float32(0.0), jnp.float32(0.0), jnp.float32(1.0)),
        "bn1": (jnp.float32(1.0), jnp.float32(0.0), jnp.float32(0.0), jnp.float32(1.0)),
        "sub_bn": (jnp.float32(1.0), jnp.float32(0.0), jnp.float32(0.0), jnp.float32(1.0)),
        # LayerNorm([1,224,224]) affine params (randomized to exercise the S_w / FB folds).
        "ln_w": 1.0 + 0.1 * jax.random.normal(ks[13], (1, H, W), jnp.float32),
        "ln_b": 0.1 * jax.random.normal(ks[14], (1, H, W), jnp.float32),
        # Linear(224*224, 1): weight (1, 224*224), bias (1,)
        "lin_w": u(ks[11], (1, H * W), 1.0 / (H * W) ** 0.5),
        "lin_b": u(ks[12], (1,), 1.0 / (H * W) ** 0.5),
    }

    out = partial_quant_forward(x, params)
    out = jax.block_until_ready(out)

    ref = reference_forward(x, params)
    assert out.shape == (1, 1)
    assert jnp.allclose(out, ref, rtol=1e-3, atol=1e-3), (out, ref)

    print("KERNEL_OK")
</pallas_src>

<mosaic_0001>
module attributes {stable_mosaic.version = 11 : i64} {
  func.func @partial_quant_kernel(%arg0: i32, %arg1: memref<7xf32, #tpu.memory_space<smem>>, %arg2: memref<3x1x98x128xf32, #tpu.memory_space<vmem>>, %arg3: memref<1x98x128xf32, #tpu.memory_space<vmem>>, %arg4: memref<1x1xf32, #tpu.memory_space<vmem>>, %arg5: memref<1x1xf32, #tpu.memory_space<vmem>>, %arg6: memref<1x1xf32, #tpu.memory_space<vmem>>, %arg7: memref<1x1xf32, #tpu.memory_space<vmem>>) attributes {dimension_semantics = [#tpu.dimension_semantics<arbitrary>], iteration_bounds = array<i64: 4>, scalar_prefetch = 0 : i64, scratch_operands = 3 : i64, tpu.core_type = #tpu.core_type<tc>, window_params = [{transform_indices = @transform_0, window_bounds = array<i64: 7>}, {transform_indices = @transform_1, window_bounds = array<i64: 3, 1, 98, 128>}, {transform_indices = @transform_2, window_bounds = array<i64: 1, 98, 128>}, {pipeline_mode = #tpu.pipeline_mode<synchronous>, transform_indices = @transform_3, window_bounds = array<i64: 1, 1>}]} {
    %c0_i32 = arith.constant 0 : i32
    %0 = arith.cmpi eq, %arg0, %c0_i32 : i32
    %1 = arith.extui %0 : i1 to i32
    %c0_i32_0 = arith.constant 0 : i32
    %2 = arith.cmpi ne, %1, %c0_i32_0 : i32
    scf.if %2 {
      %cst_32 = arith.constant 0.000000e+00 : f32
      %59 = vector.broadcast %cst_32 : f32 to vector<1x1xf32>
      %c0_33 = arith.constant 0 : index
      %c0_34 = arith.constant 0 : index
      %60 = vector.load %arg5[%c0_33, %c0_34] : memref<1x1xf32, #tpu.memory_space<vmem>>, vector<1x1xf32>
      tpu.vector_store %arg5[%c0_33, %c0_34], %59 {strides = array<i32>} : memref<1x1xf32, #tpu.memory_space<vmem>>, vector<1x1xf32>,
      %cst_35 = arith.constant 0.000000e+00 : f32
      %61 = vector.broadcast %cst_35 : f32 to vector<1x1xf32>
      %c0_36 = arith.constant 0 : index
      %c0_37 = arith.constant 0 : index
      %62 = vector.load %arg6[%c0_36, %c0_37] : memref<1x1xf32, #tpu.memory_space<vmem>>, vector<1x1xf32>
      tpu.vector_store %arg6[%c0_36, %c0_37], %61 {strides = array<i32>} : memref<1x1xf32, #tpu.memory_space<vmem>>, vector<1x1xf32>,
      %cst_38 = arith.constant 0.000000e+00 : f32
      %63 = vector.broadcast %cst_38 : f32 to vector<1x1xf32>
      %c0_39 = arith.constant 0 : index
      %c0_40 = arith.constant 0 : index
      %64 = vector.load %arg7[%c0_39, %c0_40] : memref<1x1xf32, #tpu.memory_space<vmem>>, vector<1x1xf32>
      tpu.vector_store %arg7[%c0_39, %c0_40], %63 {strides = array<i32>} : memref<1x1xf32, #tpu.memory_space<vmem>>, vector<1x1xf32>,
    } else {
    }
    %c0 = arith.constant 0 : index
    %3 = memref.load %arg1[%c0] : memref<7xf32, #tpu.memory_space<smem>>
    %c1 = arith.constant 1 : index
    %4 = memref.load %arg1[%c1] : memref<7xf32, #tpu.memory_space<smem>>
    %c2 = arith.constant 2 : index
    %5 = memref.load %arg1[%c2] : memref<7xf32, #tpu.memory_space<smem>>
    %c3 = arith.constant 3 : index
    %6 = memref.load %arg1[%c3] : memref<7xf32, #tpu.memory_space<smem>>
    %c4 = arith.constant 4 : index
    %7 = memref.load %arg1[%c4] : memref<7xf32, #tpu.memory_space<smem>>
    %c0_1 = arith.constant 0 : index
    %c0_2 = arith.constant 0 : index
    %c0_3 = arith.constant 0 : index
    %c0_4 = arith.constant 0 : index
    %8 = vector.load %arg2[%c0_1, %c0_2, %c0_3, %c0_4] : memref<3x1x98x128xf32, #tpu.memory_space<vmem>>, vector<1x1x98x128xf32>
    %9 = vector.shape_cast %8 : vector<1x1x98x128xf32> to vector<98x128xf32>
    %c1_5 = arith.constant 1 : index
    %c0_6 = arith.constant 0 : index
    %c0_7 = arith.constant 0 : index
    %c0_8 = arith.constant 0 : index
    %10 = vector.load %arg2[%c1_5, %c0_6, %c0_7, %c0_8] : memref<3x1x98x128xf32, #tpu.memory_space<vmem>>, vector<1x1x98x128xf32>
    %11 = vector.shape_cast %10 : vector<1x1x98x128xf32> to vector<98x128xf32>
    %c2_9 = arith.constant 2 : index
    %c0_10 = arith.constant 0 : index
    %c0_11 = arith.constant 0 : index
    %c0_12 = arith.constant 0 : index
    %12 = vector.load %arg2[%c2_9, %c0_10, %c0_11, %c0_12] : memref<3x1x98x128xf32, #tpu.memory_space<vmem>>, vector<1x1x98x128xf32>
    %13 = vector.shape_cast %12 : vector<1x1x98x128xf32> to vector<98x128xf32>
    %14 = vector.broadcast %3 : f32 to vector<98x128xf32>
    %15 = arith.mulf %9, %14 : vector<98x128xf32>
    %16 = vector.broadcast %4 : f32 to vector<98x128xf32>
    %17 = arith.mulf %11, %16 : vector<98x128xf32>
    %18 = arith.addf %15, %17 : vector<98x128xf32>
    %19 = vector.broadcast %5 : f32 to vector<98x128xf32>
    %20 = arith.mulf %13, %19 : vector<98x128xf32>
    %21 = arith.addf %18, %20 : vector<98x128xf32>
    %22 = vector.broadcast %6 : f32 to vector<98x128xf32>
    %23 = arith.addf %21, %22 : vector<98x128xf32>
    %cst = arith.constant 0.000000e+00 : f32
    %24 = vector.broadcast %cst : f32 to vector<98x128xf32>
    %25 = arith.maximumf %23, %24 : vector<98x128xf32>
    %26 = vector.broadcast %7 : f32 to vector<98x128xf32>
    %27 = arith.mulf %25, %26 : vector<98x128xf32>
    %c0_13 = arith.constant 0 : index
    %c0_14 = arith.constant 0 : index
    %c0_15 = arith.constant 0 : index
    %28 = vector.load %arg3[%c0_13, %c0_14, %c0_15] : memref<1x98x128xf32, #tpu.memory_space<vmem>>, vector<1x98x128xf32>
    %29 = vector.shape_cast %28 : vector<1x98x128xf32> to vector<98x128xf32>
    %c0_16 = arith.constant 0 : index
    %c0_17 = arith.constant 0 : index
    %30 = vector.load %arg5[%c0_16, %c0_17] : memref<1x1xf32, #tpu.memory_space<vmem>>, vector<1x1xf32>
    %31 = vector.shape_cast %27 : vector<98x128xf32> to vector<1x98x128xf32>
    %cst_18 = arith.constant dense<0.000000e+00> : vector<1xf32>
    %32 = vector.multi_reduction <add>, %31, %cst_18 [1, 2] : vector<1x98x128xf32> to vector<1xf32>
    %33 = vector.shape_cast %32 : vector<1xf32> to vector<1x1x1xf32>
    %34 = vector.extract %33[0, 0, 0] : f32 from vector<1x1x1xf32>
    %35 = vector.broadcast %34 : f32 to vector<1x1xf32>
    %36 = arith.addf %30, %35 : vector<1x1xf32>
    %c0_19 = arith.constant 0 : index
    %c0_20 = arith.constant 0 : index
    %37 = vector.load %arg5[%c0_19, %c0_20] : memref<1x1xf32, #tpu.memory_space<vmem>>, vector<1x1xf32>
    tpu.vector_store %arg5[%c0_19, %c0_20], %36 {strides = array<i32>} : memref<1x1xf32, #tpu.memory_space<vmem>>, vector<1x1xf32>,
    %c0_21 = arith.constant 0 : index
    %c0_22 = arith.constant 0 : index
    %38 = vector.load %arg6[%c0_21, %c0_22] : memref<1x1xf32, #tpu.memory_space<vmem>>, vector<1x1xf32>
    %39 = arith.mulf %27, %27 : vector<98x128xf32>
    %40 = vector.shape_cast %39 : vector<98x128xf32> to vector<1x98x128xf32>
    %cst_23 = arith.constant dense<0.000000e+00> : vector<1xf32>
    %41 = vector.multi_reduction <add>, %40, %cst_23 [1, 2] : vector<1x98x128xf32> to vector<1xf32>
    %42 = vector.shape_cast %41 : vector<1xf32> to vector<1x1x1xf32>
    %43 = vector.extract %42[0, 0, 0] : f32 from vector<1x1x1xf32>
    %44 = vector.broadcast %43 : f32 to vector<1x1xf32>
    %45 = arith.addf %38, %44 : vector<1x1xf32>
    %c0_24 = arith.constant 0 : index
    %c0_25 = arith.constant 0 : index
    %46 = vector.load %arg6[%c0_24, %c0_25] : memref<1x1xf32, #tpu.memory_space<vmem>>, vector<1x1xf32>
    tpu.vector_store %arg6[%c0_24, %c0_25], %45 {strides = array<i32>} : memref<1x1xf32, #tpu.memory_space<vmem>>, vector<1x1xf32>,
    %c0_26 = arith.constant 0 : index
    %c0_27 = arith.constant 0 : index
    %47 = vector.load %arg7[%c0_26, %c0_27] : memref<1x1xf32, #tpu.memory_space<vmem>>, vector<1x1xf32>
    %48 = arith.mulf %27, %29 : vector<98x128xf32>
    %49 = vector.shape_cast %48 : vector<98x128xf32> to vector<1x98x128xf32>
    %cst_28 = arith.constant dense<0.000000e+00> : vector<1xf32>
    %50 = vector.multi_reduction <add>, %49, %cst_28 [1, 2] : vector<1x98x128xf32> to vector<1xf32>
    %51 = vector.shape_cast %50 : vector<1xf32> to vector<1x1x1xf32>
    %52 = vector.extract %51[0, 0, 0] : f32 from vector<1x1x1xf32>
    %53 = vector.broadcast %52 : f32 to vector<1x1xf32>
    %54 = arith.addf %47, %53 : vector<1x1xf32>
    %c0_29 = arith.constant 0 : index
    %c0_30 = arith.constant 0 : index
    %55 = vector.load %arg7[%c0_29, %c0_30] : memref<1x1xf32, #tpu.memory_space<vmem>>, vector<1x1xf32>
    tpu.vector_store %arg7[%c0_29, %c0_30], %54 {strides = array<i32>} : memref<1x1xf32, #tpu.memory_space<vmem>>, vector<1x1xf32>,
    %c3_i32 = arith.constant 3 : i32
    %56 = arith.cmpi eq, %arg0, %c3_i32 : i32
    %57 = arith.extui %56 : i1 to i32
    %c0_i32_31 = arith.constant 0 : i32
    %58 = arith.cmpi ne, %57, %c0_i32_31 : i32
    scf.if %58 {
      %c5 = arith.constant 5 : index
      %59 = memref.load %arg1[%c5] : memref<7xf32, #tpu.memory_space<smem>>
      %c6 = arith.constant 6 : index
      %60 = memref.load %arg1[%c6] : memref<7xf32, #tpu.memory_space<smem>>
      %c0_32 = arith.constant 0 : index
      %c0_33 = arith.constant 0 : index
      %61 = vector.load %arg5[%c0_32, %c0_33] : memref<1x1xf32, #tpu.memory_space<vmem>>, vector<1x1xf32>
      %cst_34 = arith.constant 1.99298465E-5 : f32
      %62 = vector.broadcast %cst_34 : f32 to vector<1x1xf32>
      %63 = arith.mulf %61, %62 : vector<1x1xf32>
      %c0_35 = arith.constant 0 : index
      %c0_36 = arith.constant 0 : index
      %64 = vector.load %arg6[%c0_35, %c0_36] : memref<1x1xf32, #tpu.memory_space<vmem>>, vector<1x1xf32>
      %cst_37 = arith.constant 1.99298465E-5 : f32
      %65 = vector.broadcast %cst_37 : f32 to vector<1x1xf32>
      %66 = arith.mulf %64, %65 : vector<1x1xf32>
      %67 = arith.mulf %63, %63 : vector<1x1xf32>
      %68 = arith.subf %66, %67 : vector<1x1xf32>
      %cst_38 = arith.constant 0.000000e+00 : f32
      %69 = vector.broadcast %cst_38 : f32 to vector<1x1xf32>
      %70 = arith.maximumf %68, %69 : vector<1x1xf32>
      %cst_39 = arith.constant 9.99999974E-6 : f32
      %71 = vector.broadcast %cst_39 : f32 to vector<1x1xf32>
      %72 = arith.addf %70, %71 : vector<1x1xf32>
      %73 = math.rsqrt %72 : vector<1x1xf32>
      %c0_40 = arith.constant 0 : index
      %c0_41 = arith.constant 0 : index
      %74 = vector.load %arg7[%c0_40, %c0_41] : memref<1x1xf32, #tpu.memory_space<vmem>>, vector<1x1xf32>
      %75 = vector.broadcast %59 : f32 to vector<1x1xf32>
      %76 = arith.mulf %63, %75 : vector<1x1xf32>
      %77 = arith.subf %74, %76 : vector<1x1xf32>
      %78 = arith.mulf %73, %77 : vector<1x1xf32>
      %79 = vector.broadcast %60 : f32 to vector<1x1xf32>
      %80 = arith.addf %78, %79 : vector<1x1xf32>
      %c0_42 = arith.constant 0 : index
      %c0_43 = arith.constant 0 : index
      %81 = vector.load %arg4[%c0_42, %c0_43] : memref<1x1xf32, #tpu.memory_space<vmem>>, vector<1x1xf32>
      tpu.vector_store %arg4[%c0_42, %c0_43], %80 {strides = array<i32>} : memref<1x1xf32, #tpu.memory_space<vmem>>, vector<1x1xf32>,
    } else {
    }
    return
  }
  func.func @transform_0(%arg0: i32) -> i32 {
    %c0_i32 = arith.constant 0 : i32
    %c0_i32_0 = arith.constant 0 : i32
    return %c0_i32 : i32
  }
  func.func @transform_1(%arg0: i32) -> (i32, i32, i32, i32) {
    %c0_i32 = arith.constant 0 : i32
    %c0_i32_0 = arith.constant 0 : i32
    %c0_i32_1 = arith.constant 0 : i32
    %c0_i32_2 = arith.constant 0 : i32
    return %c0_i32, %arg0, %c0_i32_0, %c0_i32_1 : i32, i32, i32, i32
  }
  func.func @transform_2(%arg0: i32) -> (i32, i32, i32) {
    %c0_i32 = arith.constant 0 : i32
    %c0_i32_0 = arith.constant 0 : i32
    %c0_i32_1 = arith.constant 0 : i32
    return %arg0, %c0_i32, %c0_i32_0 : i32, i32, i32
  }
  func.func @transform_3(%arg0: i32) -> (i32, i32) {
    %c0_i32 = arith.constant 0 : i32
    %c0_i32_0 = arith.constant 0 : i32
    %c0_i32_1 = arith.constant 0 : i32
    return %c0_i32, %c0_i32_0 : i32, i32
  }
}

</mosaic_0001>

<llo_original>
// kernel: mul.1
$region0: #{mul.1}
  #allocation0 [shape = 's32[1]{0}', space=sflag, size = 0x4, scoped, tag = 'scoped memory for mul.1']
  %s0 = inlined_call_operand.vmem [shape: f32[4,98,128], index: 0, kind: input, shape index: {}]
  %s1 = inlined_call_operand.vmem [shape: f32[4,98,128], index: 1, kind: input, shape index: {}]
  %s2 = inlined_call_operand.vmem [shape: f32[4,98,128], index: 2, kind: output, shape index: {}]
  %v3 = vld [vmem:[%s0] sm:$0xff]
  %v4 = vld [vmem:[%s1] sm:$0xff]
  %5 = xla_tuple %v3, %v4
  %6 = xla_tuple %5
  %v7 = vmul.f32 %v3, %v4
  %8 = xla_tuple %v7
  %9 = vst [vmem:[%s2] sm:$0xff] %v7
  %s10 = scalar_lea.vmem %s0, 104
  %v11 = vld [vmem:[%s10] sm:$0xff]
  %s12 = scalar_lea.vmem %s1, 104
  %v13 = vld [vmem:[%s12] sm:$0xff]
  %14 = xla_tuple %v11, %v13
  %15 = xla_tuple %14
  %v16 = vmul.f32 %v11, %v13
  %17 = xla_tuple %v16
  %s18 = scalar_lea.vmem %s2, 104
  %19 = vst [vmem:[%s18] sm:$0xff] %v16
  %s20 = scalar_lea.vmem %s0, 208
  %v21 = vld [vmem:[%s20] sm:$0xff]
  %s22 = scalar_lea.vmem %s1, 208
  %v23 = vld [vmem:[%s22] sm:$0xff]
  %24 = xla_tuple %v21, %v23
  %25 = xla_tuple %24
  %v26 = vmul.f32 %v21, %v23
  %27 = xla_tuple %v26
  %s28 = scalar_lea.vmem %s2, 208
  %29 = vst [vmem:[%s28] sm:$0xff] %v26
  %s30 = scalar_lea.vmem %s0, 312
  %v31 = vld [vmem:[%s30] sm:$0xff]
  %s32 = scalar_lea.vmem %s1, 312
  %v33 = vld [vmem:[%s32] sm:$0xff]
  %34 = xla_tuple %v31, %v33
  %35 = xla_tuple %34
  %v36 = vmul.f32 %v31, %v33
  %37 = xla_tuple %v36
  %s38 = scalar_lea.vmem %s2, 312
  %39 = vst [vmem:[%s38] sm:$0xff] %v36
  %s40 = scalar_lea.vmem %s0, 8
  %v41 = vld [vmem:[%s40] sm:$0xff]
  %s42 = scalar_lea.vmem %s1, 8
  %v43 = vld [vmem:[%s42] sm:$0xff]
  %44 = xla_tuple %v41, %v43
  %45 = xla_tuple %44
  %v46 = vmul.f32 %v41, %v43
  %47 = xla_tuple %v46
  %s48 = scalar_lea.vmem %s2, 8
  %49 = vst [vmem:[%s48] sm:$0xff] %v46
  %s50 = scalar_lea.vmem %s0, 112
  %v51 = vld [vmem:[%s50] sm:$0xff]
  %s52 = scalar_lea.vmem %s1, 112
  %v53 = vld [vmem:[%s52] sm:$0xff]
  %54 = xla_tuple %v51, %v53
  %55 = xla_tuple %54
  %v56 = vmul.f32 %v51, %v53
  %57 = xla_tuple %v56
  %s58 = scalar_lea.vmem %s2, 112
  %59 = vst [vmem:[%s58] sm:$0xff] %v56
  %s60 = scalar_lea.vmem %s0, 216
  %v61 = vld [vmem:[%s60] sm:$0xff]
  %s62 = scalar_lea.vmem %s1, 216
  %v63 = vld [vmem:[%s62] sm:$0xff]
  %64 = xla_tuple %v61, %v63
  %65 = xla_tuple %64
  %v66 = vmul.f32 %v61, %v63
  %67 = xla_tuple %v66
  %s68 = scalar_lea.vmem %s2, 216
  %69 = vst [vmem:[%s68] sm:$0xff] %v66
  %s70 = scalar_lea.vmem %s0, 320
  %v71 = vld [vmem:[%s70] sm:$0xff]
  %s72 = scalar_lea.vmem %s1, 320
  %v73 = vld [vmem:[%s72] sm:$0xff]
  %74 = xla_tuple %v71, %v73
  %75 = xla_tuple %74
  %v76 = vmul.f32 %v71, %v73
  %77 = xla_tuple %v76
  %s78 = scalar_lea.vmem %s2, 320
  %79 = vst [vmem:[%s78] sm:$0xff] %v76
  %s80 = scalar_lea.vmem %s0, 16
  %v81 = vld [vmem:[%s80] sm:$0xff]
  %s82 = scalar_lea.vmem %s1, 16
  %v83 = vld [vmem:[%s82] sm:$0xff]
  %84 = xla_tuple %v81, %v83
  %85 = xla_tuple %84
  %v86 = vmul.f32 %v81, %v83
  %87 = xla_tuple %v86
  %s88 = scalar_lea.vmem %s2, 16
  %89 = vst [vmem:[%s88] sm:$0xff] %v86
  %s90 = scalar_lea.vmem %s0, 120
  %v91 = vld [vmem:[%s90] sm:$0xff]
  %s92 = scalar_lea.vmem %s1, 120
  %v93 = vld [vmem:[%s92] sm:$0xff]
  %94 = xla_tuple %v91, %v93
  %95 = xla_tuple %94
  %v96 = vmul.f32 %v91, %v93
  %97 = xla_tuple %v96
  %s98 = scalar_lea.vmem %s2, 120
  %99 = vst [vmem:[%s98] sm:$0xff] %v96
  %s100 = scalar_lea.vmem %s0, 224
  %v101 = vld [vmem:[%s100] sm:$0xff]
  %s102 = scalar_lea.vmem %s1, 224
  %v103 = vld [vmem:[%s102] sm:$0xff]
  %104 = xla_tuple %v101, %v103
  %105 = xla_tuple %104
  %v106 = vmul.f32 %v101, %v103
  %107 = xla_tuple %v106
  %s108 = scalar_lea.vmem %s2, 224
  %109 = vst [vmem:[%s108] sm:$0xff] %v106
  %s110 = scalar_lea.vmem %s0, 328
  %v111 = vld [vmem:[%s110] sm:$0xff]
  %s112 = scalar_lea.vmem %s1, 328
  %v113 = vld [vmem:[%s112] sm:$0xff]
  %114 = xla_tuple %v111, %v113
  %115 = xla_tuple %114
  %v116 = vmul.f32 %v111, %v113
  %117 = xla_tuple %v116
  %s118 = scalar_lea.vmem %s2, 328
  %119 = vst [vmem:[%s118] sm:$0xff] %v116
  %s120 = scalar_lea.vmem %s0, 24
  %v121 = vld [vmem:[%s120] sm:$0xff]
  %s122 = scalar_lea.vmem %s1, 24
  %v123 = vld [vmem:[%s122] sm:$0xff]
  %124 = xla_tuple %v121, %v123
  %125 = xla_tuple %124
  %v126 = vmul.f32 %v121, %v123
  %127 = xla_tuple %v126
  %s128 = scalar_lea.vmem %s2, 24
  %129 = vst [vmem:[%s128] sm:$0xff] %v126
  %s130 = scalar_lea.vmem %s0, 128
  %v131 = vld [vmem:[%s130] sm:$0xff]
  %s132 = scalar_lea.vmem %s1, 128
  %v133 = vld [vmem:[%s132] sm:$0xff]
  %134 = xla_tuple %v131, %v133
  %135 = xla_tuple %134
  %v136 = vmul.f32 %v131, %v133
  %137 = xla_tuple %v136
  %s138 = scalar_lea.vmem %s2, 128
  %139 = vst [vmem:[%s138] sm:$0xff] %v136
  %s140 = scalar_lea.vmem %s0, 232
  %v141 = vld [vmem:[%s140] sm:$0xff]
  %s142 = scalar_lea.vmem %s1, 232
  %v143 = vld [vmem:[%s142] sm:$0xff]
  %144 = xla_tuple %v141, %v143
  %145 = xla_tuple %144
  %v146 = vmul.f32 %v141, %v143
  %147 = xla_tuple %v146
  %s148 = scalar_lea.vmem %s2, 232
  %149 = vst [vmem:[%s148] sm:$0xff] %v146
  %s150 = scalar_lea.vmem %s0, 336
  %v151 = vld [vmem:[%s150] sm:$0xff]
  %s152 = scalar_lea.vmem %s1, 336
  %v153 = vld [vmem:[%s152] sm:$0xff]
  %154 = xla_tuple %v151, %v153
  %155 = xla_tuple %154
  %v156 = vmul.f32 %v151, %v153
  %157 = xla_tuple %v156
  %s158 = scalar_lea.vmem %s2, 336
  %159 = vst [vmem:[%s158] sm:$0xff] %v156
  %s160 = scalar_lea.vmem %s0, 32
  %v161 = vld [vmem:[%s160] sm:$0xff]
  %s162 = scalar_lea.vmem %s1, 32
  %v163 = vld [vmem:[%s162] sm:$0xff]
  %164 = xla_tuple %v161, %v163
  %165 = xla_tuple %164
  %v166 = vmul.f32 %v161, %v163
  %167 = xla_tuple %v166
  %s168 = scalar_lea.vmem %s2, 32
  %169 = vst [vmem:[%s168] sm:$0xff] %v166
  %s170 = scalar_lea.vmem %s0, 136
  %v171 = vld [vmem:[%s170] sm:$0xff]
  %s172 = scalar_lea.vmem %s1, 136
  %v173 = vld [vmem:[%s172] sm:$0xff]
  %174 = xla_tuple %v171, %v173
  %175 = xla_tuple %174
  %v176 = vmul.f32 %v171, %v173
  %177 = xla_tuple %v176
  %s178 = scalar_lea.vmem %s2, 136
  %179 = vst [vmem:[%s178] sm:$0xff] %v176
  %s180 = scalar_lea.vmem %s0, 240
  %v181 = vld [vmem:[%s180] sm:$0xff]
  %s182 = scalar_lea.vmem %s1, 240
  %v183 = vld [vmem:[%s182] sm:$0xff]
  %184 = xla_tuple %v181, %v183
  %185 = xla_tuple %184
  %v186 = vmul.f32 %v181, %v183
  %187 = xla_tuple %v186
  %s188 = scalar_lea.vmem %s2, 240
  %189 = vst [vmem:[%s188] sm:$0xff] %v186
  %s190 = scalar_lea.vmem %s0, 344
  %v191 = vld [vmem:[%s190] sm:$0xff]
  %s192 = scalar_lea.vmem %s1, 344
  %v193 = vld [vmem:[%s192] sm:$0xff]
  %194 = xla_tuple %v191, %v193
  %195 = xla_tuple %194
  %v196 = vmul.f32 %v191, %v193
  %197 = xla_tuple %v196
  %s198 = scalar_lea.vmem %s2, 344
  %199 = vst [vmem:[%s198] sm:$0xff] %v196
  %s200 = scalar_lea.vmem %s0, 40
  %v201 = vld [vmem:[%s200] sm:$0xff]
  %s202 = scalar_lea.vmem %s1, 40
  %v203 = vld [vmem:[%s202] sm:$0xff]
  %204 = xla_tuple %v201, %v203
  %205 = xla_tuple %204
  %v206 = vmul.f32 %v201, %v203
  %207 = xla_tuple %v206
  %s208 = scalar_lea.vmem %s2, 40
  %209 = vst [vmem:[%s208] sm:$0xff] %v206
  %s210 = scalar_lea.vmem %s0, 144
  %v211 = vld [vmem:[%s210] sm:$0xff]
  %s212 = scalar_lea.vmem %s1, 144
  %v213 = vld [vmem:[%s212] sm:$0xff]
  %214 = xla_tuple %v211, %v213
  %215 = xla_tuple %214
  %v216 = vmul.f32 %v211, %v213
  %217 = xla_tuple %v216
  %s218 = scalar_lea.vmem %s2, 144
  %219 = vst [vmem:[%s218] sm:$0xff] %v216
  %s220 = scalar_lea.vmem %s0, 248
  %v221 = vld [vmem:[%s220] sm:$0xff]
  %s222 = scalar_lea.vmem %s1, 248
  %v223 = vld [vmem:[%s222] sm:$0xff]
  %224 = xla_tuple %v221, %v223
  %225 = xla_tuple %224
  %v226 = vmul.f32 %v221, %v223
  %227 = xla_tuple %v226
  %s228 = scalar_lea.vmem %s2, 248
  %229 = vst [vmem:[%s228] sm:$0xff] %v226
  %s230 = scalar_lea.vmem %s0, 352
  %v231 = vld [vmem:[%s230] sm:$0xff]
  %s232 = scalar_lea.vmem %s1, 352
  %v233 = vld [vmem:[%s232] sm:$0xff]
  %234 = xla_tuple %v231, %v233
  %235 = xla_tuple %234
  %v236 = vmul.f32 %v231, %v233
  %237 = xla_tuple %v236
  %s238 = scalar_lea.vmem %s2, 352
  %239 = vst [vmem:[%s238] sm:$0xff] %v236
  %s240 = scalar_lea.vmem %s0, 48
  %v241 = vld [vmem:[%s240] sm:$0xff]
  %s242 = scalar_lea.vmem %s1, 48
  %v243 = vld [vmem:[%s242] sm:$0xff]
  %244 = xla_tuple %v241, %v243
  %245 = xla_tuple %244
  %v246 = vmul.f32 %v241, %v243
  %247 = xla_tuple %v246
  %s248 = scalar_lea.vmem %s2, 48
  %249 = vst [vmem:[%s248] sm:$0xff] %v246
  %s250 = scalar_lea.vmem %s0, 152
  %v251 = vld [vmem:[%s250] sm:$0xff]
  %s252 = scalar_lea.vmem %s1, 152
  %v253 = vld [vmem:[%s252] sm:$0xff]
  %254 = xla_tuple %v251, %v253
  %255 = xla_tuple %254
  %v256 = vmul.f32 %v251, %v253
  %257 = xla_tuple %v256
  %s258 = scalar_lea.vmem %s2, 152
  %259 = vst [vmem:[%s258] sm:$0xff] %v256
  %s260 = scalar_lea.vmem %s0, 256
  %v261 = vld [vmem:[%s260] sm:$0xff]
  %s262 = scalar_lea.vmem %s1, 256
  %v263 = vld [vmem:[%s262] sm:$0xff]
  %264 = xla_tuple %v261, %v263
  %265 = xla_tuple %264
  %v266 = vmul.f32 %v261, %v263
  %267 = xla_tuple %v266
  %s268 = scalar_lea.vmem %s2, 256
  %269 = vst [vmem:[%s268] sm:$0xff] %v266
  %s270 = scalar_lea.vmem %s0, 360
  %v271 = vld [vmem:[%s270] sm:$0xff]
  %s272 = scalar_lea.vmem %s1, 360
  %v273 = vld [vmem:[%s272] sm:$0xff]
  %274 = xla_tuple %v271, %v273
  %275 = xla_tuple %274
  %v276 = vmul.f32 %v271, %v273
  %277 = xla_tuple %v276
  %s278 = scalar_lea.vmem %s2, 360
  %279 = vst [vmem:[%s278] sm:$0xff] %v276
  %s280 = scalar_lea.vmem %s0, 56
  %v281 = vld [vmem:[%s280] sm:$0xff]
  %s282 = scalar_lea.vmem %s1, 56
  %v283 = vld [vmem:[%s282] sm:$0xff]
  %284 = xla_tuple %v281, %v283
  %285 = xla_tuple %284
  %v286 = vmul.f32 %v281, %v283
  %287 = xla_tuple %v286
  %s288 = scalar_lea.vmem %s2, 56
  %289 = vst [vmem:[%s288] sm:$0xff] %v286
  %s290 = scalar_lea.vmem %s0, 160
  %v291 = vld [vmem:[%s290] sm:$0xff]
  %s292 = scalar_lea.vmem %s1, 160
  %v293 = vld [vmem:[%s292] sm:$0xff]
  %294 = xla_tuple %v291, %v293
  %295 = xla_tuple %294
  %v296 = vmul.f32 %v291, %v293
  %297 = xla_tuple %v296
  %s298 = scalar_lea.vmem %s2, 160
  %299 = vst [vmem:[%s298] sm:$0xff] %v296
  %s300 = scalar_lea.vmem %s0, 264
  %v301 = vld [vmem:[%s300] sm:$0xff]
  %s302 = scalar_lea.vmem %s1, 264
  %v303 = vld [vmem:[%s302] sm:$0xff]
  %304 = xla_tuple %v301, %v303
  %305 = xla_tuple %304
  %v306 = vmul.f32 %v301, %v303
  %307 = xla_tuple %v306
  %s308 = scalar_lea.vmem %s2, 264
  %309 = vst [vmem:[%s308] sm:$0xff] %v306
  %s310 = scalar_lea.vmem %s0, 368
  %v311 = vld [vmem:[%s310] sm:$0xff]
  %s312 = scalar_lea.vmem %s1, 368
  %v313 = vld [vmem:[%s312] sm:$0xff]
  %314 = xla_tuple %v311, %v313
  %315 = xla_tuple %314
  %v316 = vmul.f32 %v311, %v313
  %317 = xla_tuple %v316
  %s318 = scalar_lea.vmem %s2, 368
  %319 = vst [vmem:[%s318] sm:$0xff] %v316
  %s320 = scalar_lea.vmem %s0, 64
  %v321 = vld [vmem:[%s320] sm:$0xff]
  %s322 = scalar_lea.vmem %s1, 64
  %v323 = vld [vmem:[%s322] sm:$0xff]
  %324 = xla_tuple %v321, %v323
  %325 = xla_tuple %324
  %v326 = vmul.f32 %v321, %v323
  %327 = xla_tuple %v326
  %s328 = scalar_lea.vmem %s2, 64
  %329 = vst [vmem:[%s328] sm:$0xff] %v326
  %s330 = scalar_lea.vmem %s0, 168
  %v331 = vld [vmem:[%s330] sm:$0xff]
  %s332 = scalar_lea.vmem %s1, 168
  %v333 = vld [vmem:[%s332] sm:$0xff]
  %334 = xla_tuple %v331, %v333
  %335 = xla_tuple %334
  %v336 = vmul.f32 %v331, %v333
  %337 = xla_tuple %v336
  %s338 = scalar_lea.vmem %s2, 168
  %339 = vst [vmem:[%s338] sm:$0xff] %v336
  %s340 = scalar_lea.vmem %s0, 272
  %v341 = vld [vmem:[%s340] sm:$0xff]
  %s342 = scalar_lea.vmem %s1, 272
  %v343 = vld [vmem:[%s342] sm:$0xff]
  %344 = xla_tuple %v341, %v343
  %345 = xla_tuple %344
  %v346 = vmul.f32 %v341, %v343
  %347 = xla_tuple %v346
  %s348 = scalar_lea.vmem %s2, 272
  %349 = vst [vmem:[%s348] sm:$0xff] %v346
  %s350 = scalar_lea.vmem %s0, 376
  %v351 = vld [vmem:[%s350] sm:$0xff]
  %s352 = scalar_lea.vmem %s1, 376
  %v353 = vld [vmem:[%s352] sm:$0xff]
  %354 = xla_tuple %v351, %v353
  %355 = xla_tuple %354
  %v356 = vmul.f32 %v351, %v353
  %357 = xla_tuple %v356
  %s358 = scalar_lea.vmem %s2, 376
  %359 = vst [vmem:[%s358] sm:$0xff] %v356
  %s360 = scalar_lea.vmem %s0, 72
  %v361 = vld [vmem:[%s360] sm:$0xff]
  %s362 = scalar_lea.vmem %s1, 72
  %v363 = vld [vmem:[%s362] sm:$0xff]
  %364 = xla_tuple %v361, %v363
  %365 = xla_tuple %364
  %v366 = vmul.f32 %v361, %v363
  %367 = xla_tuple %v366
  %s368 = scalar_lea.vmem %s2, 72
  %369 = vst [vmem:[%s368] sm:$0xff] %v366
  %s370 = scalar_lea.vmem %s0, 176
  %v371 = vld [vmem:[%s370] sm:$0xff]
  %s372 = scalar_lea.vmem %s1, 176
  %v373 = vld [vmem:[%s372] sm:$0xff]
  %374 = xla_tuple %v371, %v373
  %375 = xla_tuple %374
  %v376 = vmul.f32 %v371, %v373
  %377 = xla_tuple %v376
  %s378 = scalar_lea.vmem %s2, 176
  %379 = vst [vmem:[%s378] sm:$0xff] %v376
  %s380 = scalar_lea.vmem %s0, 280
  %v381 = vld [vmem:[%s380] sm:$0xff]
  %s382 = scalar_lea.vmem %s1, 280
  %v383 = vld [vmem:[%s382] sm:$0xff]
  %384 = xla_tuple %v381, %v383
  %385 = xla_tuple %384
  %v386 = vmul.f32 %v381, %v383
  %387 = xla_tuple %v386
  %s388 = scalar_lea.vmem %s2, 280
  %389 = vst [vmem:[%s388] sm:$0xff] %v386
  %s390 = scalar_lea.vmem %s0, 384
  %v391 = vld [vmem:[%s390] sm:$0xff]
  %s392 = scalar_lea.vmem %s1, 384
  %v393 = vld [vmem:[%s392] sm:$0xff]
  %394 = xla_tuple %v391, %v393
  %395 = xla_tuple %394
  %v396 = vmul.f32 %v391, %v393
  %397 = xla_tuple %v396
  %s398 = scalar_lea.vmem %s2, 384
  %399 = vst [vmem:[%s398] sm:$0xff] %v396
  %s400 = scalar_lea.vmem %s0, 80
  %v401 = vld [vmem:[%s400] sm:$0xff]
  %s402 = scalar_lea.vmem %s1, 80
  %v403 = vld [vmem:[%s402] sm:$0xff]
  %404 = xla_tuple %v401, %v403
  %405 = xla_tuple %404
  %v406 = vmul.f32 %v401, %v403
  %407 = xla_tuple %v406
  %s408 = scalar_lea.vmem %s2, 80
  %409 = vst [vmem:[%s408] sm:$0xff] %v406
  %s410 = scalar_lea.vmem %s0, 184
  %v411 = vld [vmem:[%s410] sm:$0xff]
  %s412 = scalar_lea.vmem %s1, 184
  %v413 = vld [vmem:[%s412] sm:$0xff]
  %414 = xla_tuple %v411, %v413
  %415 = xla_tuple %414
  %v416 = vmul.f32 %v411, %v413
  %417 = xla_tuple %v416
  %s418 = scalar_lea.vmem %s2, 184
  %419 = vst [vmem:[%s418] sm:$0xff] %v416
  %s420 = scalar_lea.vmem %s0, 288
  %v421 = vld [vmem:[%s420] sm:$0xff]
  %s422 = scalar_lea.vmem %s1, 288
  %v423 = vld [vmem:[%s422] sm:$0xff]
  %424 = xla_tuple %v421, %v423
  %425 = xla_tuple %424
  %v426 = vmul.f32 %v421, %v423
  %427 = xla_tuple %v426
  %s428 = scalar_lea.vmem %s2, 288
  %429 = vst [vmem:[%s428] sm:$0xff] %v426
  %s430 = scalar_lea.vmem %s0, 392
  %v431 = vld [vmem:[%s430] sm:$0xff]
  %s432 = scalar_lea.vmem %s1, 392
  %v433 = vld [vmem:[%s432] sm:$0xff]
  %434 = xla_tuple %v431, %v433
  %435 = xla_tuple %434
  %v436 = vmul.f32 %v431, %v433
  %437 = xla_tuple %v436
  %s438 = scalar_lea.vmem %s2, 392
  %439 = vst [vmem:[%s438] sm:$0xff] %v436
  %s440 = scalar_lea.vmem %s0, 88
  %v441 = vld [vmem:[%s440] sm:$0xff]
  %s442 = scalar_lea.vmem %s1, 88
  %v443 = vld [vmem:[%s442] sm:$0xff]
  %444 = xla_tuple %v441, %v443
  %445 = xla_tuple %444
  %v446 = vmul.f32 %v441, %v443
  %447 = xla_tuple %v446
  %s448 = scalar_lea.vmem %s2, 88
  %449 = vst [vmem:[%s448] sm:$0xff] %v446
  %s450 = scalar_lea.vmem %s0, 192
  %v451 = vld [vmem:[%s450] sm:$0xff]
  %s452 = scalar_lea.vmem %s1, 192
  %v453 = vld [vmem:[%s452] sm:$0xff]
  %454 = xla_tuple %v451, %v453
  %455 = xla_tuple %454
  %v456 = vmul.f32 %v451, %v453
  %457 = xla_tuple %v456
  %s458 = scalar_lea.vmem %s2, 192
  %459 = vst [vmem:[%s458] sm:$0xff] %v456
  %s460 = scalar_lea.vmem %s0, 296
  %v461 = vld [vmem:[%s460] sm:$0xff]
  %s462 = scalar_lea.vmem %s1, 296
  %v463 = vld [vmem:[%s462] sm:$0xff]
  %464 = xla_tuple %v461, %v463
  %465 = xla_tuple %464
  %v466 = vmul.f32 %v461, %v463
  %467 = xla_tuple %v466
  %s468 = scalar_lea.vmem %s2, 296
  %469 = vst [vmem:[%s468] sm:$0xff] %v466
  %s470 = scalar_lea.vmem %s0, 400
  %v471 = vld [vmem:[%s470] sm:$0xff]
  %s472 = scalar_lea.vmem %s1, 400
  %v473 = vld [vmem:[%s472] sm:$0xff]
  %474 = xla_tuple %v471, %v473
  %475 = xla_tuple %474
  %v476 = vmul.f32 %v471, %v473
  %477 = xla_tuple %v476
  %s478 = scalar_lea.vmem %s2, 400
  %479 = vst [vmem:[%s478] sm:$0xff] %v476
  %s480 = scalar_lea.vmem %s0, 96
  %v481 = vld [vmem:[%s480] sm:$0xff]
  %s482 = scalar_lea.vmem %s1, 96
  %v483 = vld [vmem:[%s482] sm:$0xff]
  %484 = xla_tuple %v481, %v483
  %485 = xla_tuple %484
  %v486 = vmul.f32 %v481, %v483
  %487 = xla_tuple %v486
  %s488 = scalar_lea.vmem %s2, 96
  %489 = vst [vmem:[%s488] sm:$0xff] %v486
  %s490 = scalar_lea.vmem %s0, 200
  %v491 = vld [vmem:[%s490] sm:$0xff]
  %s492 = scalar_lea.vmem %s1, 200
  %v493 = vld [vmem:[%s492] sm:$0xff]
  %494 = xla_tuple %v491, %v493
  %495 = xla_tuple %494
  %v496 = vmul.f32 %v491, %v493
  %497 = xla_tuple %v496
  %s498 = scalar_lea.vmem %s2, 200
  %499 = vst [vmem:[%s498] sm:$0xff] %v496
  %s500 = scalar_lea.vmem %s0, 304
  %v501 = vld [vmem:[%s500] sm:$0xff]
  %s502 = scalar_lea.vmem %s1, 304
  %v503 = vld [vmem:[%s502] sm:$0xff]
  %504 = xla_tuple %v501, %v503
  %505 = xla_tuple %504
  %v506 = vmul.f32 %v501, %v503
  %507 = xla_tuple %v506
  %s508 = scalar_lea.vmem %s2, 304
  %509 = vst [vmem:[%s508] sm:$0xff] %v506
  %s510 = scalar_lea.vmem %s0, 408
  %v511 = vld [vmem:[%s510] sm:$0xff]
  %s512 = scalar_lea.vmem %s1, 408
  %v513 = vld [vmem:[%s512] sm:$0xff]
  %514 = xla_tuple %v511, %v513
  %515 = xla_tuple %514
  %v516 = vmul.f32 %v511, %v513
  %517 = xla_tuple %v516
  %s518 = scalar_lea.vmem %s2, 408
  %519 = vst [vmem:[%s518] sm:$0xff] %v516

// kernel: squeeze.11
$region0: #{squeeze.11}
  %s0 = inlined_call_operand.vmem [shape: f32[1,3,224,224], index: 0, kind: input, shape index: {}]
  %s1 = inlined_call_operand.vmem [shape: f32[3,4,98,128], index: 1, kind: output, shape index: {}]
  %s2 = scalar_lea.vmem %s0, 8
  %s3 = smov 3
  %v4 = vld [vmem:[%s2] ss:$4 sm:%s3]
  %vm5 = vcmask 785408
  %s6 = scalar_lea.vmem %s1, 1
  %7 = vst.msk [vmem:[%s6] ss:$7 sm:$0x3] %vm5, %v4
  %s8 = scalar_lea.vmem %s0, 24
  %s9 = smov 3
  %v10 = vld [vmem:[%s8] ss:$4 sm:%s9]
  %vm11 = vcmask 785408
  %s12 = scalar_lea.vmem %s1, 15
  %13 = vst.msk [vmem:[%s12] ss:$7 sm:$0x3] %vm11, %v10
  %s14 = scalar_lea.vmem %s0, 40
  %s15 = smov 3
  %v16 = vld [vmem:[%s14] ss:$4 sm:%s15]
  %vm17 = vcmask 785408
  %s18 = scalar_lea.vmem %s1, 29
  %19 = vst.msk [vmem:[%s18] ss:$7 sm:$0x3] %vm17, %v16
  %s20 = scalar_lea.vmem %s0, 56
  %s21 = smov 3
  %v22 = vld [vmem:[%s20] ss:$4 sm:%s21]
  %vm23 = vcmask 785408
  %s24 = scalar_lea.vmem %s1, 43
  %25 = vst.msk [vmem:[%s24] ss:$7 sm:$0x3] %vm23, %v22
  %s26 = scalar_lea.vmem %s0, 72
  %s27 = smov 3
  %v28 = vld [vmem:[%s26] ss:$4 sm:%s27]
  %vm29 = vcmask 785408
  %s30 = scalar_lea.vmem %s1, 57
  %31 = vst.msk [vmem:[%s30] ss:$7 sm:$0x3] %vm29, %v28
  %s32 = scalar_lea.vmem %s0, 88
  %s33 = smov 3
  %v34 = vld [vmem:[%s32] ss:$4 sm:%s33]
  %vm35 = vcmask 785408
  %s36 = scalar_lea.vmem %s1, 71
  %37 = vst.msk [vmem:[%s36] ss:$7 sm:$0x3] %vm35, %v34
  %s38 = scalar_lea.vmem %s0, 104
  %s39 = smov 3
  %v40 = vld [vmem:[%s38] ss:$4 sm:%s39]
  %vm41 = vcmask 785408
  %s42 = scalar_lea.vmem %s1, 85
  %43 = vst.msk [vmem:[%s42] ss:$7 sm:$0x3] %vm41, %v40
  %s44 = scalar_lea.vmem %s0, 120
  %s45 = smov 3
  %v46 = vld [vmem:[%s44] ss:$4 sm:%s45]
  %vm47 = vcmask 785408
  %s48 = scalar_lea.vmem %s1, 105
  %49 = vst.msk [vmem:[%s48] ss:$7 sm:$0x3] %vm47, %v46
  %s50 = scalar_lea.vmem %s0, 136
  %s51 = smov 3
  %v52 = vld [vmem:[%s50] ss:$4 sm:%s51]
  %vm53 = vcmask 785408
  %s54 = scalar_lea.vmem %s1, 119
  %55 = vst.msk [vmem:[%s54] ss:$7 sm:$0x3] %vm53, %v52
  %s56 = scalar_lea.vmem %s0, 152
  %s57 = smov 3
  %v58 = vld [vmem:[%s56] ss:$4 sm:%s57]
  %vm59 = vcmask 785408
  %s60 = scalar_lea.vmem %s1, 133
  %61 = vst.msk [vmem:[%s60] ss:$7 sm:$0x3] %vm59, %v58
  %s62 = scalar_lea.vmem %s0, 168
  %s63 = smov 3
  %v64 = vld [vmem:[%s62] ss:$4 sm:%s63]
  %vm65 = vcmask 785408
  %s66 = scalar_lea.vmem %s1, 147
  %67 = vst.msk [vmem:[%s66] ss:$7 sm:$0x3] %vm65, %v64
  %s68 = scalar_lea.vmem %s0, 184
  %s69 = smov 3
  %v70 = vld [vmem:[%s68] ss:$4 sm:%s69]
  %vm71 = vcmask 785408
  %s72 = scalar_lea.vmem %s1, 161
  %73 = vst.msk [vmem:[%s72] ss:$7 sm:$0x3] %vm71, %v70
  %s74 = scalar_lea.vmem %s0, 200
  %s75 = smov 3
  %v76 = vld [vmem:[%s74] ss:$4 sm:%s75]
  %vm77 = vcmask 785408
  %s78 = scalar_lea.vmem %s1, 175
  %79 = vst.msk [vmem:[%s78] ss:$7 sm:$0x3] %vm77, %v76
  %s80 = scalar_lea.vmem %s0, 216
  %s81 = smov 3
  %v82 = vld [vmem:[%s80] ss:$4 sm:%s81]
  %vm83 = vcmask 785408
  %s84 = scalar_lea.vmem %s1, 189
  %85 = vst.msk [vmem:[%s84] ss:$7 sm:$0x3] %vm83, %v82
  %s86 = scalar_lea.vmem %s0, 232
  %s87 = smov 3
  %v88 = vld [vmem:[%s86] ss:$4 sm:%s87]
  %vm89 = vcmask 785408
  %s90 = scalar_lea.vmem %s1, 209
  %91 = vst.msk [vmem:[%s90] ss:$7 sm:$0x3] %vm89, %v88
  %s92 = scalar_lea.vmem %s0, 248
  %s93 = smov 3
  %v94 = vld [vmem:[%s92] ss:$4 sm:%s93]
  %vm95 = vcmask 785408
  %s96 = scalar_lea.vmem %s1, 223
  %97 = vst.msk [vmem:[%s96] ss:$7 sm:$0x3] %vm95, %v94
  %s98 = scalar_lea.vmem %s0, 264
  %s99 = smov 3
  %v100 = vld [vmem:[%s98] ss:$4 sm:%s99]
  %vm101 = vcmask 785408
  %s102 = scalar_lea.vmem %s1, 237
  %103 = vst.msk [vmem:[%s102] ss:$7 sm:$0x3] %vm101, %v100
  %s104 = scalar_lea.vmem %s0, 280
  %s105 = smov 3
  %v106 = vld [vmem:[%s104] ss:$4 sm:%s105]
  %vm107 = vcmask 785408
  %s108 = scalar_lea.vmem %s1, 251
  %109 = vst.msk [vmem:[%s108] ss:$7 sm:$0x3] %vm107, %v106
  %s110 = scalar_lea.vmem %s0, 296
  %s111 = smov 3
  %v112 = vld [vmem:[%s110] ss:$4 sm:%s111]
  %vm113 = vcmask 785408
  %s114 = scalar_lea.vmem %s1, 265
  %115 = vst.msk [vmem:[%s114] ss:$7 sm:$0x3] %vm113, %v112
  %s116 = scalar_lea.vmem %s0, 312
  %s117 = smov 3
  %v118 = vld [vmem:[%s116] ss:$4 sm:%s117]
  %vm119 = vcmask 785408
  %s120 = scalar_lea.vmem %s1, 279
  %121 = vst.msk [vmem:[%s120] ss:$7 sm:$0x3] %vm119, %v118
  %s122 = scalar_lea.vmem %s0, 328
  %s123 = smov 3
  %v124 = vld [vmem:[%s122] ss:$4 sm:%s123]
  %vm125 = vcmask 785408
  %s126 = scalar_lea.vmem %s1, 293
  %127 = vst.msk [vmem:[%s126] ss:$7 sm:$0x3] %vm125, %v124
  %s128 = scalar_lea.vmem %s0, 344
  %s129 = smov 3
  %v130 = vld [vmem:[%s128] ss:$4 sm:%s129]
  %vm131 = vcmask 785408
  %s132 = scalar_lea.vmem %s1, 313
  %133 = vst.msk [vmem:[%s132] ss:$7 sm:$0x3] %vm131, %v130
  %s134 = scalar_lea.vmem %s0, 360
  %s135 = smov 3
  %v136 = vld [vmem:[%s134] ss:$4 sm:%s135]
  %vm137 = vcmask 785408
  %s138 = scalar_lea.vmem %s1, 327
  %139 = vst.msk [vmem:[%s138] ss:$7 sm:$0x3] %vm137, %v136
  %s140 = scalar_lea.vmem %s0, 376
  %s141 = smov 3
  %v142 = vld [vmem:[%s140] ss:$4 sm:%s141]
  %vm143 = vcmask 785408
  %s144 = scalar_lea.vmem %s1, 341
  %145 = vst.msk [vmem:[%s144] ss:$7 sm:$0x3] %vm143, %v142
  %s146 = scalar_lea.vmem %s0, 392
  %s147 = smov 3
  %v148 = vld [vmem:[%s146] ss:$4 sm:%s147]
  %vm149 = vcmask 785408
  %s150 = scalar_lea.vmem %s1, 355
  %151 = vst.msk [vmem:[%s150] ss:$7 sm:$0x3] %vm149, %v148
  %s152 = scalar_lea.vmem %s0, 408
  %s153 = smov 3
  %v154 = vld [vmem:[%s152] ss:$4 sm:%s153]
  %vm155 = vcmask 785408
  %s156 = scalar_lea.vmem %s1, 369
  %157 = vst.msk [vmem:[%s156] ss:$7 sm:$0x3] %vm155, %v154
  %s158 = scalar_lea.vmem %s0, 424
  %s159 = smov 3
  %v160 = vld [vmem:[%s158] ss:$4 sm:%s159]
  %vm161 = vcmask 785408
  %s162 = scalar_lea.vmem %s1, 383
  %163 = vst.msk [vmem:[%s162] ss:$7 sm:$0x3] %vm161, %v160
  %s164 = scalar_lea.vmem %s0, 440
  %s165 = smov 3
  %v166 = vld [vmem:[%s164] ss:$4 sm:%s165]
  %vm167 = vcmask 785408
  %s168 = scalar_lea.vmem %s1, 397
  %169 = vst.msk [vmem:[%s168] ss:$7 sm:$0x3] %vm167, %v166
  %s170 = scalar_lea.vmem %s0, 456
  %s171 = smov 3
  %v172 = vld [vmem:[%s170] ss:$4 sm:%s171]
  %vm173 = vcmask 785408
  %s174 = scalar_lea.vmem %s1, 417
  %175 = vst.msk [vmem:[%s174] ss:$7 sm:$0x3] %vm173, %v172
  %s176 = scalar_lea.vmem %s0, 472
  %s177 = smov 3
  %v178 = vld [vmem:[%s176] ss:$4 sm:%s177]
  %vm179 = vcmask 785408
  %s180 = scalar_lea.vmem %s1, 431
  %181 = vst.msk [vmem:[%s180] ss:$7 sm:$0x3] %vm179, %v178
  %s182 = scalar_lea.vmem %s0, 488
  %s183 = smov 3
  %v184 = vld [vmem:[%s182] ss:$4 sm:%s183]
  %vm185 = vcmask 785408
  %s186 = scalar_lea.vmem %s1, 445
  %187 = vst.msk [vmem:[%s186] ss:$7 sm:$0x3] %vm185, %v184
  %s188 = scalar_lea.vmem %s0, 504
  %s189 = smov 3
  %v190 = vld [vmem:[%s188] ss:$4 sm:%s189]
  %vm191 = vcmask 785408
  %s192 = scalar_lea.vmem %s1, 459
  %193 = vst.msk [vmem:[%s192] ss:$7 sm:$0x3] %vm191, %v190
  %s194 = scalar_lea.vmem %s0, 520
  %s195 = smov 3
  %v196 = vld [vmem:[%s194] ss:$4 sm:%s195]
  %vm197 = vcmask 785408
  %s198 = scalar_lea.vmem %s1, 473
  %199 = vst.msk [vmem:[%s198] ss:$7 sm:$0x3] %vm197, %v196
  %s200 = scalar_lea.vmem %s0, 536
  %s201 = smov 3
  %v202 = vld [vmem:[%s200] ss:$4 sm:%s201]
  %vm203 = vcmask 785408
  %s204 = scalar_lea.vmem %s1, 487
  %205 = vst.msk [vmem:[%s204] ss:$7 sm:$0x3] %vm203, %v202
  %s206 = scalar_lea.vmem %s0, 552
  %s207 = smov 3
  %v208 = vld [vmem:[%s206] ss:$4 sm:%s207]
  %vm209 = vcmask 785408
  %s210 = scalar_lea.vmem %s1, 501
  %211 = vst.msk [vmem:[%s210] ss:$7 sm:$0x3] %vm209, %v208
  %s212 = scalar_lea.vmem %s0, 568
  %s213 = smov 3
  %v214 = vld [vmem:[%s212] ss:$4 sm:%s213]
  %vm215 = vcmask 785408
  %s216 = scalar_lea.vmem %s1, 521
  %217 = vst.msk [vmem:[%s216] ss:$7 sm:$0x3] %vm215, %v214
  %s218 = scalar_lea.vmem %s0, 584
  %s219 = smov 3
  %v220 = vld [vmem:[%s218] ss:$4 sm:%s219]
  %vm221 = vcmask 785408
  %s222 = scalar_lea.vmem %s1, 535
  %223 = vst.msk [vmem:[%s222] ss:$7 sm:$0x3] %vm221, %v220
  %s224 = scalar_lea.vmem %s0, 600
  %s225 = smov 3
  %v226 = vld [vmem:[%s224] ss:$4 sm:%s225]
  %vm227 = vcmask 785408
  %s228 = scalar_lea.vmem %s1, 549
  %229 = vst.msk [vmem:[%s228] ss:$7 sm:$0x3] %vm227, %v226
  %s230 = scalar_lea.vmem %s0, 616
  %s231 = smov 3
  %v232 = vld [vmem:[%s230] ss:$4 sm:%s231]
  %vm233 = vcmask 785408
  %s234 = scalar_lea.vmem %s1, 563
  %235 = vst.msk [vmem:[%s234] ss:$7 sm:$0x3] %vm233, %v232
  %s236 = scalar_lea.vmem %s0, 632
  %s237 = smov 3
  %v238 = vld [vmem:[%s236] ss:$4 sm:%s237]
  %vm239 = vcmask 785408
  %s240 = scalar_lea.vmem %s1, 577
  %241 = vst.msk [vmem:[%s240] ss:$7 sm:$0x3] %vm239, %v238
  %s242 = scalar_lea.vmem %s0, 648
  %s243 = smov 3
  %v244 = vld [vmem:[%s242] ss:$4 sm:%s243]
  %vm245 = vcmask 785408
  %s246 = scalar_lea.vmem %s1, 591
  %247 = vst.msk [vmem:[%s246] ss:$7 sm:$0x3] %vm245, %v244
  %s248 = scalar_lea.vmem %s0, 664
  %s249 = smov 3
  %v250 = vld [vmem:[%s248] ss:$4 sm:%s249]
  %vm251 = vcmask 785408
  %s252 = scalar_lea.vmem %s1, 605
  %253 = vst.msk [vmem:[%s252] ss:$7 sm:$0x3] %vm251, %v250
  %s254 = scalar_lea.vmem %s0, 680
  %s255 = smov 3
  %v256 = vld [vmem:[%s254] ss:$4 sm:%s255]
  %vm257 = vcmask 785408
  %s258 = scalar_lea.vmem %s1, 625
  %259 = vst.msk [vmem:[%s258] ss:$7 sm:$0x3] %vm257, %v256
  %s260 = scalar_lea.vmem %s0, 696
  %s261 = smov 3
  %v262 = vld [vmem:[%s260] ss:$4 sm:%s261]
  %vm263 = vcmask 785408
  %s264 = scalar_lea.vmem %s1, 639
  %265 = vst.msk [vmem:[%s264] ss:$7 sm:$0x3] %vm263, %v262
  %s266 = scalar_lea.vmem %s0, 712
  %s267 = smov 3
  %v268 = vld [vmem:[%s266] ss:$4 sm:%s267]
  %vm269 = vcmask 785408
  %s270 = scalar_lea.vmem %s1, 653
  %271 = vst.msk [vmem:[%s270] ss:$7 sm:$0x3] %vm269, %v268
  %s272 = scalar_lea.vmem %s0, 728
  %s273 = smov 3
  %v274 = vld [vmem:[%s272] ss:$4 sm:%s273]
  %vm275 = vcmask 785408
  %s276 = scalar_lea.vmem %s1, 667
  %277 = vst.msk [vmem:[%s276] ss:$7 sm:$0x3] %vm275, %v274
  %s278 = scalar_lea.vmem %s0, 744
  %s279 = smov 3
  %v280 = vld [vmem:[%s278] ss:$4 sm:%s279]
  %vm281 = vcmask 785408
  %s282 = scalar_lea.vmem %s1, 681
  %283 = vst.msk [vmem:[%s282] ss:$7 sm:$0x3] %vm281, %v280
  %s284 = scalar_lea.vmem %s0, 760
  %s285 = smov 3
  %v286 = vld [vmem:[%s284] ss:$4 sm:%s285]
  %vm287 = vcmask 785408
  %s288 = scalar_lea.vmem %s1, 695
  %289 = vst.msk [vmem:[%s288] ss:$7 sm:$0x3] %vm287, %v286
  %s290 = scalar_lea.vmem %s0, 776
  %s291 = smov 3
  %v292 = vld [vmem:[%s290] ss:$4 sm:%s291]
  %vm293 = vcmask 785408
  %s294 = scalar_lea.vmem %s1, 709
  %295 = vst.msk [vmem:[%s294] ss:$7 sm:$0x3] %vm293, %v292
  %s296 = scalar_lea.vmem %s0, 792
  %s297 = smov 3
  %v298 = vld [vmem:[%s296] ss:$4 sm:%s297]
  %vm299 = vcmask 785408
  %s300 = scalar_lea.vmem %s1, 729
  %301 = vst.msk [vmem:[%s300] ss:$7 sm:$0x3] %vm299, %v298
  %s302 = scalar_lea.vmem %s0, 808
  %s303 = smov 3
  %v304 = vld [vmem:[%s302] ss:$4 sm:%s303]
  %vm305 = vcmask 785408
  %s306 = scalar_lea.vmem %s1, 743
  %307 = vst.msk [vmem:[%s306] ss:$7 sm:$0x3] %vm305, %v304
  %s308 = scalar_lea.vmem %s0, 824
  %s309 = smov 3
  %v310 = vld [vmem:[%s308] ss:$4 sm:%s309]
  %vm311 = vcmask 785408
  %s312 = scalar_lea.vmem %s1, 757
  %313 = vst.msk [vmem:[%s312] ss:$7 sm:$0x3] %vm311, %v310
  %s314 = scalar_lea.vmem %s0, 840
  %s315 = smov 3
  %v316 = vld [vmem:[%s314] ss:$4 sm:%s315]
  %vm317 = vcmask 785408
  %s318 = scalar_lea.vmem %s1, 771
  %319 = vst.msk [vmem:[%s318] ss:$7 sm:$0x3] %vm317, %v316
  %s320 = scalar_lea.vmem %s0, 856
  %s321 = smov 3
  %v322 = vld [vmem:[%s320] ss:$4 sm:%s321]
  %vm323 = vcmask 785408
  %s324 = scalar_lea.vmem %s1, 785
  %325 = vst.msk [vmem:[%s324] ss:$7 sm:$0x3] %vm323, %v322
  %s326 = scalar_lea.vmem %s0, 872
  %s327 = smov 3
  %v328 = vld [vmem:[%s326] ss:$4 sm:%s327]
  %vm329 = vcmask 785408
  %s330 = scalar_lea.vmem %s1, 799
  %331 = vst.msk [vmem:[%s330] ss:$7 sm:$0x3] %vm329, %v328
  %s332 = scalar_lea.vmem %s0, 888
  %s333 = smov 3
  %v334 = vld [vmem:[%s332] ss:$4 sm:%s333]
  %vm335 = vcmask 785408
  %s336 = scalar_lea.vmem %s1, 813
  %337 = vst.msk [vmem:[%s336] ss:$7 sm:$0x3] %vm335, %v334
  %s338 = scalar_lea.vmem %s0, 904
  %s339 = smov 3
  %v340 = vld [vmem:[%s338] ss:$4 sm:%s339]
  %vm341 = vcmask 785408
  %s342 = scalar_lea.vmem %s1, 833
  %343 = vst.msk [vmem:[%s342] ss:$7 sm:$0x3] %vm341, %v340
  %s344 = scalar_lea.vmem %s0, 920
  %s345 = smov 3
  %v346 = vld [vmem:[%s344] ss:$4 sm:%s345]
  %vm347 = vcmask 785408
  %s348 = scalar_lea.vmem %s1, 847
  %349 = vst.msk [vmem:[%s348] ss:$7 sm:$0x3] %vm347, %v346
  %s350 = scalar_lea.vmem %s0, 936
  %s351 = smov 3
  %v352 = vld [vmem:[%s350] ss:$4 sm:%s351]
  %vm353 = vcmask 785408
  %s354 = scalar_lea.vmem %s1, 861
  %355 = vst.msk [vmem:[%s354] ss:$7 sm:$0x3] %vm353, %v352
  %s356 = scalar_lea.vmem %s0, 952
  %s357 = smov 3
  %v358 = vld [vmem:[%s356] ss:$4 sm:%s357]
  %vm359 = vcmask 785408
  %s360 = scalar_lea.vmem %s1, 875
  %361 = vst.msk [vmem:[%s360] ss:$7 sm:$0x3] %vm359, %v358
  %s362 = scalar_lea.vmem %s0, 968
  %s363 = smov 3
  %v364 = vld [vmem:[%s362] ss:$4 sm:%s363]
  %vm365 = vcmask 785408
  %s366 = scalar_lea.vmem %s1, 889
  %367 = vst.msk [vmem:[%s366] ss:$7 sm:$0x3] %vm365, %v364
  %s368 = scalar_lea.vmem %s0, 984
  %s369 = smov 3
  %v370 = vld [vmem:[%s368] ss:$4 sm:%s369]
  %vm371 = vcmask 785408
  %s372 = scalar_lea.vmem %s1, 903
  %373 = vst.msk [vmem:[%s372] ss:$7 sm:$0x3] %vm371, %v370
  %s374 = scalar_lea.vmem %s0, 1000
  %s375 = smov 3
  %v376 = vld [vmem:[%s374] ss:$4 sm:%s375]
  %vm377 = vcmask 785408
  %s378 = scalar_lea.vmem %s1, 917
  %379 = vst.msk [vmem:[%s378] ss:$7 sm:$0x3] %vm377, %v376
  %s380 = scalar_lea.vmem %s0, 1016
  %s381 = smov 3
  %v382 = vld [vmem:[%s380] ss:$4 sm:%s381]
  %vm383 = vcmask 785408
  %s384 = scalar_lea.vmem %s1, 937
  %385 = vst.msk [vmem:[%s384] ss:$7 sm:$0x3] %vm383, %v382
  %s386 = scalar_lea.vmem %s0, 1032
  %s387 = smov 3
  %v388 = vld [vmem:[%s386] ss:$4 sm:%s387]
  %vm389 = vcmask 785408
  %s390 = scalar_lea.vmem %s1, 951
  %391 = vst.msk [vmem:[%s390] ss:$7 sm:$0x3] %vm389, %v388
  %s392 = scalar_lea.vmem %s0, 1048
  %s393 = smov 3
  %v394 = vld [vmem:[%s392] ss:$4 sm:%s393]
  %vm395 = vcmask 785408
  %s396 = scalar_lea.vmem %s1, 965
  %397 = vst.msk [vmem:[%s396] ss:$7 sm:$0x3] %vm395, %v394
  %s398 = scalar_lea.vmem %s0, 1064
  %s399 = smov 3
  %v400 = vld [vmem:[%s398] ss:$4 sm:%s399]
  %vm401 = vcmask 785408
  %s402 = scalar_lea.vmem %s1, 979
  %403 = vst.msk [vmem:[%s402] ss:$7 sm:$0x3] %vm401, %v400
  %s404 = scalar_lea.vmem %s0, 1080
  %s405 = smov 3
  %v406 = vld [vmem:[%s404] ss:$4 sm:%s405]
  %vm407 = vcmask 785408
  %s408 = scalar_lea.vmem %s1, 993
  %409 = vst.msk [vmem:[%s408] ss:$7 sm:$0x3] %vm407, %v406
  %s410 = scalar_lea.vmem %s0, 1096
  %s411 = smov 3
  %v412 = vld [vmem:[%s410] ss:$4 sm:%s411]
  %vm413 = vcmask 785408
  %s414 = scalar_lea.vmem %s1, 1007
  %415 = vst.msk [vmem:[%s414] ss:$7 sm:$0x3] %vm413, %v412
  %s416 = scalar_lea.vmem %s0, 1112
  %s417 = smov 3
  %v418 = vld [vmem:[%s416] ss:$4 sm:%s417]
  %vm419 = vcmask 785408
  %s420 = scalar_lea.vmem %s1, 1021
  %421 = vst.msk [vmem:[%s420] ss:$7 sm:$0x3] %vm419, %v418
  %s422 = scalar_lea.vmem %s0, 1128
  %s423 = smov 3
  %v424 = vld [vmem:[%s422] ss:$4 sm:%s423]
  %vm425 = vcmask 785408
  %s426 = scalar_lea.vmem %s1, 1041
  %427 = vst.msk [vmem:[%s426] ss:$7 sm:$0x3] %vm425, %v424
  %s428 = scalar_lea.vmem %s0, 1144
  %s429 = smov 3
  %v430 = vld [vmem:[%s428] ss:$4 sm:%s429]
  %vm431 = vcmask 785408
  %s432 = scalar_lea.vmem %s1, 1055
  %433 = vst.msk [vmem:[%s432] ss:$7 sm:$0x3] %vm431, %v430
  %s434 = scalar_lea.vmem %s0, 1160
  %s435 = smov 3
  %v436 = vld [vmem:[%s434] ss:$4 sm:%s435]
  %vm437 = vcmask 785408
  %s438 = scalar_lea.vmem %s1, 1069
  %439 = vst.msk [vmem:[%s438] ss:$7 sm:$0x3] %vm437, %v436
  %s440 = scalar_lea.vmem %s0, 1176
  %s441 = smov 3
  %v442 = vld [vmem:[%s440] ss:$4 sm:%s441]
  %vm443 = vcmask 785408
  %s444 = scalar_lea.vmem %s1, 1083
  %445 = vst.msk [vmem:[%s444] ss:$7 sm:$0x3] %vm443, %v442
  %s446 = scalar_lea.vmem %s0, 1192
  %s447 = smov 3
  %v448 = vld [vmem:[%s446] ss:$4 sm:%s447]
  %vm449 = vcmask 785408
  %s450 = scalar_lea.vmem %s1, 1097
  %451 = vst.msk [vmem:[%s450] ss:$7 sm:$0x3] %vm449, %v448
  %s452 = scalar_lea.vmem %s0, 1208
  %s453 = smov 3
  %v454 = vld [vmem:[%s452] ss:$4 sm:%s453]
  %vm455 = vcmask 785408
  %s456 = scalar_lea.vmem %s1, 1111
  %457 = vst.msk [vmem:[%s456] ss:$7 sm:$0x3] %vm455, %v454
  %s458 = scalar_lea.vmem %s0, 1224
  %s459 = smov 3
  %v460 = vld [vmem:[%s458] ss:$4 sm:%s459]
  %vm461 = vcmask 785408
  %s462 = scalar_lea.vmem %s1, 1125
  %463 = vst.msk [vmem:[%s462] ss:$7 sm:$0x3] %vm461, %v460
  %s464 = scalar_lea.vmem %s0, 1240
  %s465 = smov 3
  %v466 = vld [vmem:[%s464] ss:$4 sm:%s465]
  %vm467 = vcmask 785408
  %s468 = scalar_lea.vmem %s1, 1145
  %469 = vst.msk [vmem:[%s468] ss:$7 sm:$0x3] %vm467, %v466
  %s470 = scalar_lea.vmem %s0, 1256
  %s471 = smov 3
  %v472 = vld [vmem:[%s470] ss:$4 sm:%s471]
  %vm473 = vcmask 785408
  %s474 = scalar_lea.vmem %s1, 1159
  %475 = vst.msk [vmem:[%s474] ss:$7 sm:$0x3] %vm473, %v472
  %s476 = scalar_lea.vmem %s0, 1272
  %s477 = smov 3
  %v478 = vld [vmem:[%s476] ss:$4 sm:%s477]
  %vm479 = vcmask 785408
  %s480 = scalar_lea.vmem %s1, 1173
  %481 = vst.msk [vmem:[%s480] ss:$7 sm:$0x3] %vm479, %v478
  %s482 = scalar_lea.vmem %s0, 1288
  %s483 = smov 3
  %v484 = vld [vmem:[%s482] ss:$4 sm:%s483]
  %vm485 = vcmask 785408
  %s486 = scalar_lea.vmem %s1, 1187
  %487 = vst.msk [vmem:[%s486] ss:$7 sm:$0x3] %vm485, %v484
  %s488 = scalar_lea.vmem %s0, 1304
  %s489 = smov 3
  %v490 = vld [vmem:[%s488] ss:$4 sm:%s489]
  %vm491 = vcmask 785408
  %s492 = scalar_lea.vmem %s1, 1201
  %493 = vst.msk [vmem:[%s492] ss:$7 sm:$0x3] %vm491, %v490
  %s494 = scalar_lea.vmem %s0, 1320
  %s495 = smov 3
  %v496 = vld [vmem:[%s494] ss:$4 sm:%s495]
  %vm497 = vcmask 785408
  %s498 = scalar_lea.vmem %s1, 1215
  %499 = vst.msk [vmem:[%s498] ss:$7 sm:$0x3] %vm497, %v496
  %s500 = scalar_lea.vmem %s0, 1336
  %s501 = smov 3
  %v502 = vld [vmem:[%s500] ss:$4 sm:%s501]
  %vm503 = vcmask 785408
  %s504 = scalar_lea.vmem %s1, 1229
  %505 = vst.msk [vmem:[%s504] ss:$7 sm:$0x3] %vm503, %v502
  %s506 = smov 3
  %v507 = vld [vmem:[%s0] ss:$4 sm:%s506]
  %508 = vst [vmem:[%s1] ss:$7 sm:$0x3] %v507
  %s509 = scalar_lea.vmem %s0, 16
  %s510 = smov 3
  %v511 = vld [vmem:[%s509] ss:$4 sm:%s510]
  %s512 = scalar_lea.vmem %s1, 14
  %513 = vst [vmem:[%s512] ss:$7 sm:$0x3] %v511
  %s514 = scalar_lea.vmem %s0, 32
  %s515 = smov 3
  %v516 = vld [vmem:[%s514] ss:$4 sm:%s515]
  %s517 = scalar_lea.vmem %s1, 28
  %518 = vst [vmem:[%s517] ss:$7 sm:$0x3] %v516
  %s519 = scalar_lea.vmem %s0, 48
  %s520 = smov 3
  %v521 = vld [vmem:[%s519] ss:$4 sm:%s520]
  %s522 = scalar_lea.vmem %s1, 42
  %523 = vst [vmem:[%s522] ss:$7 sm:$0x3] %v521
  %s524 = scalar_lea.vmem %s0, 64
  %s525 = smov 3
  %v526 = vld [vmem:[%s524] ss:$4 sm:%s525]
  %s527 = scalar_lea.vmem %s1, 56
  %528 = vst [vmem:[%s527] ss:$7 sm:$0x3] %v526
  %s529 = scalar_lea.vmem %s0, 80
  %s530 = smov 3
  %v531 = vld [vmem:[%s529] ss:$4 sm:%s530]
  %s532 = scalar_lea.vmem %s1, 70
  %533 = vst [vmem:[%s532] ss:$7 sm:$0x3] %v531
  %s534 = scalar_lea.vmem %s0, 96
  %s535 = smov 3
  %v536 = vld [vmem:[%s534] ss:$4 sm:%s535]
  %s537 = scalar_lea.vmem %s1, 84
  %538 = vst [vmem:[%s537] ss:$7 sm:$0x3] %v536
  %s539 = scalar_lea.vmem %s0, 112
  %s540 = smov 3
  %v541 = vld [vmem:[%s539] ss:$4 sm:%s540]
  %s542 = scalar_lea.vmem %s1, 104
  %543 = vst [vmem:[%s542] ss:$7 sm:$0x3] %v541
  %s544 = scalar_lea.vmem %s0, 128
  %s545 = smov 3
  %v546 = vld [vmem:[%s544] ss:$4 sm:%s545]
  %s547 = scalar_lea.vmem %s1, 118
  %548 = vst [vmem:[%s547] ss:$7 sm:$0x3] %v546
  %s549 = scalar_lea.vmem %s0, 144
  %s550 = smov 3
  %v551 = vld [vmem:[%s549] ss:$4 sm:%s550]
  %s552 = scalar_lea.vmem %s1, 132
  %553 = vst [vmem:[%s552] ss:$7 sm:$0x3] %v551
  %s554 = scalar_lea.vmem %s0, 160
  %s555 = smov 3
  %v556 = vld [vmem:[%s554] ss:$4 sm:%s555]
  %s557 = scalar_lea.vmem %s1, 146
  %558 = vst [vmem:[%s557] ss:$7 sm:$0x3] %v556
  %s559 = scalar_lea.vmem %s0, 176
  %s560 = smov 3
  %v561 = vld [vmem:[%s559] ss:$4 sm:%s560]
  %s562 = scalar_lea.vmem %s1, 160
  %563 = vst [vmem:[%s562] ss:$7 sm:$0x3] %v561
  %s564 = scalar_lea.vmem %s0, 192
  %s565 = smov 3
  %v566 = vld [vmem:[%s564] ss:$4 sm:%s565]
  %s567 = scalar_lea.vmem %s1, 174
  %568 = vst [vmem:[%s567] ss:$7 sm:$0x3] %v566
  %s569 = scalar_lea.vmem %s0, 208
  %s570 = smov 3
  %v571 = vld [vmem:[%s569] ss:$4 sm:%s570]
  %s572 = scalar_lea.vmem %s1, 188
  %573 = vst [vmem:[%s572] ss:$7 sm:$0x3] %v571
  %s574 = scalar_lea.vmem %s0, 224
  %s575 = smov 3
  %v576 = vld [vmem:[%s574] ss:$4 sm:%s575]
  %s577 = scalar_lea.vmem %s1, 208
  %578 = vst [vmem:[%s577] ss:$7 sm:$0x3] %v576
  %s579 = scalar_lea.vmem %s0, 240
  %s580 = smov 3
  %v581 = vld [vmem:[%s579] ss:$4 sm:%s580]
  %s582 = scalar_lea.vmem %s1, 222
  %583 = vst [vmem:[%s582] ss:$7 sm:$0x3] %v581
  %s584 = scalar_lea.vmem %s0, 256
  %s585 = smov 3
  %v586 = vld [vmem:[%s584] ss:$4 sm:%s585]
  %s587 = scalar_lea.vmem %s1, 236
  %588 = vst [vmem:[%s587] ss:$7 sm:$0x3] %v586
  %s589 = scalar_lea.vmem %s0, 272
  %s590 = smov 3
  %v591 = vld [vmem:[%s589] ss:$4 sm:%s590]
  %s592 = scalar_lea.vmem %s1, 250
  %593 = vst [vmem:[%s592] ss:$7 sm:$0x3] %v591
  %s594 = scalar_lea.vmem %s0, 288
  %s595 = smov 3
  %v596 = vld [vmem:[%s594] ss:$4 sm:%s595]
  %s597 = scalar_lea.vmem %s1, 264
  %598 = vst [vmem:[%s597] ss:$7 sm:$0x3] %v596
  %s599 = scalar_lea.vmem %s0, 304
  %s600 = smov 3
  %v601 = vld [vmem:[%s599] ss:$4 sm:%s600]
  %s602 = scalar_lea.vmem %s1, 278
  %603 = vst [vmem:[%s602] ss:$7 sm:$0x3] %v601
  %s604 = scalar_lea.vmem %s0, 320
  %s605 = smov 3
  %v606 = vld [vmem:[%s604] ss:$4 sm:%s605]
  %s607 = scalar_lea.vmem %s1, 292
  %608 = vst [vmem:[%s607] ss:$7 sm:$0x3] %v606
  %s609 = scalar_lea.vmem %s0, 336
  %s610 = smov 3
  %v611 = vld [vmem:[%s609] ss:$4 sm:%s610]
  %s612 = scalar_lea.vmem %s1, 312
  %613 = vst [vmem:[%s612] ss:$7 sm:$0x3] %v611
  %s614 = scalar_lea.vmem %s0, 352
  %s615 = smov 3
  %v616 = vld [vmem:[%s614] ss:$4 sm:%s615]
  %s617 = scalar_lea.vmem %s1, 326
  %618 = vst [vmem:[%s617] ss:$7 sm:$0x3] %v616
  %s619 = scalar_lea.vmem %s0, 368
  %s620 = smov 3
  %v621 = vld [vmem:[%s619] ss:$4 sm:%s620]
  %s622 = scalar_lea.vmem %s1, 340
  %623 = vst [vmem:[%s622] ss:$7 sm:$0x3] %v621
  %s624 = scalar_lea.vmem %s0, 384
  %s625 = smov 3
  %v626 = vld [vmem:[%s624] ss:$4 sm:%s625]
  %s627 = scalar_lea.vmem %s1, 354
  %628 = vst [vmem:[%s627] ss:$7 sm:$0x3] %v626
  %s629 = scalar_lea.vmem %s0, 400
  %s630 = smov 3
  %v631 = vld [vmem:[%s629] ss:$4 sm:%s630]
  %s632 = scalar_lea.vmem %s1, 368
  %633 = vst [vmem:[%s632] ss:$7 sm:$0x3] %v631
  %s634 = scalar_lea.vmem %s0, 416
  %s635 = smov 3
  %v636 = vld [vmem:[%s634] ss:$4 sm:%s635]
  %s637 = scalar_lea.vmem %s1, 382
  %638 = vst [vmem:[%s637] ss:$7 sm:$0x3] %v636
  %s639 = scalar_lea.vmem %s0, 432
  %s640 = smov 3
  %v641 = vld [vmem:[%s639] ss:$4 sm:%s640]
  %s642 = scalar_lea.vmem %s1, 396
  %643 = vst [vmem:[%s642] ss:$7 sm:$0x3] %v641
  %s644 = scalar_lea.vmem %s0, 448
  %s645 = smov 3
  %v646 = vld [vmem:[%s644] ss:$4 sm:%s645]
  %s647 = scalar_lea.vmem %s1, 416
  %648 = vst [vmem:[%s647] ss:$7 sm:$0x3] %v646
  %s649 = scalar_lea.vmem %s0, 464
  %s650 = smov 3
  %v651 = vld [vmem:[%s649] ss:$4 sm:%s650]
  %s652 = scalar_lea.vmem %s1, 430
  %653 = vst [vmem:[%s652] ss:$7 sm:$0x3] %v651
  %s654 = scalar_lea.vmem %s0, 480
  %s655 = smov 3
  %v656 = vld [vmem:[%s654] ss:$4 sm:%s655]
  %s657 = scalar_lea.vmem %s1, 444
  %658 = vst [vmem:[%s657] ss:$7 sm:$0x3] %v656
  %s659 = scalar_lea.vmem %s0, 496
  %s660 = smov 3
  %v661 = vld [vmem:[%s659] ss:$4 sm:%s660]
  %s662 = scalar_lea.vmem %s1, 458
  %663 = vst [vmem:[%s662] ss:$7 sm:$0x3] %v661
  %s664 = scalar_lea.vmem %s0, 512
  %s665 = smov 3
  %v666 = vld [vmem:[%s664] ss:$4 sm:%s665]
  %s667 = scalar_lea.vmem %s1, 472
  %668 = vst [vmem:[%s667] ss:$7 sm:$0x3] %v666
  %s669 = scalar_lea.vmem %s0, 528
  %s670 = smov 3
  %v671 = vld [vmem:[%s669] ss:$4 sm:%s670]
  %s672 = scalar_lea.vmem %s1, 486
  %673 = vst [vmem:[%s672] ss:$7 sm:$0x3] %v671
  %s674 = scalar_lea.vmem %s0, 544
  %s675 = smov 3
  %v676 = vld [vmem:[%s674] ss:$4 sm:%s675]
  %s677 = scalar_lea.vmem %s1, 500
  %678 = vst [vmem:[%s677] ss:$7 sm:$0x3] %v676
  %s679 = scalar_lea.vmem %s0, 560
  %s680 = smov 3
  %v681 = vld [vmem:[%s679] ss:$4 sm:%s680]
  %s682 = scalar_lea.vmem %s1, 520
  %683 = vst [vmem:[%s682] ss:$7 sm:$0x3] %v681
  %s684 = scalar_lea.vmem %s0, 576
  %s685 = smov 3
  %v686 = vld [vmem:[%s684] ss:$4 sm:%s685]
  %s687 = scalar_lea.vmem %s1, 534
  %688 = vst [vmem:[%s687] ss:$7 sm:$0x3] %v686
  %s689 = scalar_lea.vmem %s0, 592
  %s690 = smov 3
  %v691 = vld [vmem:[%s689] ss:$4 sm:%s690]
  %s692 = scalar_lea.vmem %s1, 548
  %693 = vst [vmem:[%s692] ss:$7 sm:$0x3] %v691
  %s694 = scalar_lea.vmem %s0, 608
  %s695 = smov 3
  %v696 = vld [vmem:[%s694] ss:$4 sm:%s695]
  %s697 = scalar_lea.vmem %s1, 562
  %698 = vst [vmem:[%s697] ss:$7 sm:$0x3] %v696
  %s699 = scalar_lea.vmem %s0, 624
  %s700 = smov 3
  %v701 = vld [vmem:[%s699] ss:$4 sm:%s700]
  %s702 = scalar_lea.vmem %s1, 576
  %703 = vst [vmem:[%s702] ss:$7 sm:$0x3] %v701
  %s704 = scalar_lea.vmem %s0, 640
  %s705 = smov 3
  %v706 = vld [vmem:[%s704] ss:$4 sm:%s705]
  %s707 = scalar_lea.vmem %s1, 590
  %708 = vst [vmem:[%s707] ss:$7 sm:$0x3] %v706
  %s709 = scalar_lea.vmem %s0, 656
  %s710 = smov 3
  %v711 = vld [vmem:[%s709] ss:$4 sm:%s710]
  %s712 = scalar_lea.vmem %s1, 604
  %713 = vst [vmem:[%s712] ss:$7 sm:$0x3] %v711
  %s714 = scalar_lea.vmem %s0, 672
  %s715 = smov 3
  %v716 = vld [vmem:[%s714] ss:$4 sm:%s715]
  %s717 = scalar_lea.vmem %s1, 624
  %718 = vst [vmem:[%s717] ss:$7 sm:$0x3] %v716
  %s719 = scalar_lea.vmem %s0, 688
  %s720 = smov 3
  %v721 = vld [vmem:[%s719] ss:$4 sm:%s720]
  %s722 = scalar_lea.vmem %s1, 638
  %723 = vst [vmem:[%s722] ss:$7 sm:$0x3] %v721
  %s724 = scalar_lea.vmem %s0, 704
  %s725 = smov 3
  %v726 = vld [vmem:[%s724] ss:$4 sm:%s725]
  %s727 = scalar_lea.vmem %s1, 652
  %728 = vst [vmem:[%s727] ss:$7 sm:$0x3] %v726
  %s729 = scalar_lea.vmem %s0, 720
  %s730 = smov 3
  %v731 = vld [vmem:[%s729] ss:$4 sm:%s730]
  %s732 = scalar_lea.vmem %s1, 666
  %733 = vst [vmem:[%s732] ss:$7 sm:$0x3] %v731
  %s734 = scalar_lea.vmem %s0, 736
  %s735 = smov 3
  %v736 = vld [vmem:[%s734] ss:$4 sm:%s735]
  %s737 = scalar_lea.vmem %s1, 680
  %738 = vst [vmem:[%s737] ss:$7 sm:$0x3] %v736
  %s739 = scalar_lea.vmem %s0, 752
  %s740 = smov 3
  %v741 = vld [vmem:[%s739] ss:$4 sm:%s740]
  %s742 = scalar_lea.vmem %s1, 694
  %743 = vst [vmem:[%s742] ss:$7 sm:$0x3] %v741
  %s744 = scalar_lea.vmem %s0, 768
  %s745 = smov 3
  %v746 = vld [vmem:[%s744] ss:$4 sm:%s745]
  %s747 = scalar_lea.vmem %s1, 708
  %748 = vst [vmem:[%s747] ss:$7 sm:$0x3] %v746
  %s749 = scalar_lea.vmem %s0, 784
  %s750 = smov 3
  %v751 = vld [vmem:[%s749] ss:$4 sm:%s750]
  %s752 = scalar_lea.vmem %s1, 728
  %753 = vst [vmem:[%s752] ss:$7 sm:$0x3] %v751
  %s754 = scalar_lea.vmem %s0, 800
  %s755 = smov 3
  %v756 = vld [vmem:[%s754] ss:$4 sm:%s755]
  %s757 = scalar_lea.vmem %s1, 742
  %758 = vst [vmem:[%s757] ss:$7 sm:$0x3] %v756
  %s759 = scalar_lea.vmem %s0, 816
  %s760 = smov 3
  %v761 = vld [vmem:[%s759] ss:$4 sm:%s760]
  %s762 = scalar_lea.vmem %s1, 756
  %763 = vst [vmem:[%s762] ss:$7 sm:$0x3] %v761
  %s764 = scalar_lea.vmem %s0, 832
  %s765 = smov 3
  %v766 = vld [vmem:[%s764] ss:$4 sm:%s765]
  %s767 = scalar_lea.vmem %s1, 770
  %768 = vst [vmem:[%s767] ss:$7 sm:$0x3] %v766
  %s769 = scalar_lea.vmem %s0, 848
  %s770 = smov 3
  %v771 = vld [vmem:[%s769] ss:$4 sm:%s770]
  %s772 = scalar_lea.vmem %s1, 784
  %773 = vst [vmem:[%s772] ss:$7 sm:$0x3] %v771
  %s774 = scalar_lea.vmem %s0, 864
  %s775 = smov 3
  %v776 = vld [vmem:[%s774] ss:$4 sm:%s775]
  %s777 = scalar_lea.vmem %s1, 798
  %778 = vst [vmem:[%s777] ss:$7 sm:$0x3] %v776
  %s779 = scalar_lea.vmem %s0, 880
  %s780 = smov 3
  %v781 = vld [vmem:[%s779] ss:$4 sm:%s780]
  %s782 = scalar_lea.vmem %s1, 812
  %783 = vst [vmem:[%s782] ss:$7 sm:$0x3] %v781
  %s784 = scalar_lea.vmem %s0, 896
  %s785 = smov 3
  %v786 = vld [vmem:[%s784] ss:$4 sm:%s785]
  %s787 = scalar_lea.vmem %s1, 832
  %788 = vst [vmem:[%s787] ss:$7 sm:$0x3] %v786
  %s789 = scalar_lea.vmem %s0, 912
  %s790 = smov 3
  %v791 = vld [vmem:[%s789] ss:$4 sm:%s790]
  %s792 = scalar_lea.vmem %s1, 846
  %793 = vst [vmem:[%s792] ss:$7 sm:$0x3] %v791
  %s794 = scalar_lea.vmem %s0, 928
  %s795 = smov 3
  %v796 = vld [vmem:[%s794] ss:$4 sm:%s795]
  %s797 = scalar_lea.vmem %s1, 860
  %798 = vst [vmem:[%s797] ss:$7 sm:$0x3] %v796
  %s799 = scalar_lea.vmem %s0, 944
  %s800 = smov 3
  %v801 = vld [vmem:[%s799] ss:$4 sm:%s800]
  %s802 = scalar_lea.vmem %s1, 874
  %803 = vst [vmem:[%s802] ss:$7 sm:$0x3] %v801
  %s804 = scalar_lea.vmem %s0, 960
  %s805 = smov 3
  %v806 = vld [vmem:[%s804] ss:$4 sm:%s805]
  %s807 = scalar_lea.vmem %s1, 888
  %808 = vst [vmem:[%s807] ss:$7 sm:$0x3] %v806
  %s809 = scalar_lea.vmem %s0, 976
  %s810 = smov 3
  %v811 = vld [vmem:[%s809] ss:$4 sm:%s810]
  %s812 = scalar_lea.vmem %s1, 902
  %813 = vst [vmem:[%s812] ss:$7 sm:$0x3] %v811
  %s814 = scalar_lea.vmem %s0, 992
  %s815 = smov 3
  %v816 = vld [vmem:[%s814] ss:$4 sm:%s815]
  %s817 = scalar_lea.vmem %s1, 916
  %818 = vst [vmem:[%s817] ss:$7 sm:$0x3] %v816
  %s819 = scalar_lea.vmem %s0, 1008
  %s820 = smov 3
  %v821 = vld [vmem:[%s819] ss:$4 sm:%s820]
  %s822 = scalar_lea.vmem %s1, 936
  %823 = vst [vmem:[%s822] ss:$7 sm:$0x3] %v821
  %s824 = scalar_lea.vmem %s0, 1024
  %s825 = smov 3
  %v826 = vld [vmem:[%s824] ss:$4 sm:%s825]
  %s827 = scalar_lea.vmem %s1, 950
  %828 = vst [vmem:[%s827] ss:$7 sm:$0x3] %v826
  %s829 = scalar_lea.vmem %s0, 1040
  %s830 = smov 3
  %v831 = vld [vmem:[%s829] ss:$4 sm:%s830]
  %s832 = scalar_lea.vmem %s1, 964
  %833 = vst [vmem:[%s832] ss:$7 sm:$0x3] %v831
  %s834 = scalar_lea.vmem %s0, 1056
  %s835 = smov 3
  %v836 = vld [vmem:[%s834] ss:$4 sm:%s835]
  %s837 = scalar_lea.vmem %s1, 978
  %838 = vst [vmem:[%s837] ss:$7 sm:$0x3] %v836
  %s839 = scalar_lea.vmem %s0, 1072
  %s840 = smov 3
  %v841 = vld [vmem:[%s839] ss:$4 sm:%s840]
  %s842 = scalar_lea.vmem %s1, 992
  %843 = vst [vmem:[%s842] ss:$7 sm:$0x3] %v841
  %s844 = scalar_lea.vmem %s0, 1088
  %s845 = smov 3
  %v846 = vld [vmem:[%s844] ss:$4 sm:%s845]
  %s847 = scalar_lea.vmem %s1, 1006
  %848 = vst [vmem:[%s847] ss:$7 sm:$0x3] %v846
  %s849 = scalar_lea.vmem %s0, 1104
  %s850 = smov 3
  %v851 = vld [vmem:[%s849] ss:$4 sm:%s850]
  %s852 = scalar_lea.vmem %s1, 1020
  %853 = vst [vmem:[%s852] ss:$7 sm:$0x3] %v851
  %s854 = scalar_lea.vmem %s0, 1120
  %s855 = smov 3
  %v856 = vld [vmem:[%s854] ss:$4 sm:%s855]
  %s857 = scalar_lea.vmem %s1, 1040
  %858 = vst [vmem:[%s857] ss:$7 sm:$0x3] %v856
  %s859 = scalar_lea.vmem %s0, 1136
  %s860 = smov 3
  %v861 = vld [vmem:[%s859] ss:$4 sm:%s860]
  %s862 = scalar_lea.vmem %s1, 1054
  %863 = vst [vmem:[%s862] ss:$7 sm:$0x3] %v861
  %s864 = scalar_lea.vmem %s0, 1152
  %s865 = smov 3
  %v866 = vld [vmem:[%s864] ss:$4 sm:%s865]
  %s867 = scalar_lea.vmem %s1, 1068
  %868 = vst [vmem:[%s867] ss:$7 sm:$0x3] %v866
  %s869 = scalar_lea.vmem %s0, 1168
  %s870 = smov 3
  %v871 = vld [vmem:[%s869] ss:$4 sm:%s870]
  %s872 = scalar_lea.vmem %s1, 1082
  %873 = vst [vmem:[%s872] ss:$7 sm:$0x3] %v871
  %s874 = scalar_lea.vmem %s0, 1184
  %s875 = smov 3
  %v876 = vld [vmem:[%s874] ss:$4 sm:%s875]
  %s877 = scalar_lea.vmem %s1, 1096
  %878 = vst [vmem:[%s877] ss:$7 sm:$0x3] %v876
  %s879 = scalar_lea.vmem %s0, 1200
  %s880 = smov 3
  %v881 = vld [vmem:[%s879] ss:$4 sm:%s880]
  %s882 = scalar_lea.vmem %s1, 1110
  %883 = vst [vmem:[%s882] ss:$7 sm:$0x3] %v881
  %s884 = scalar_lea.vmem %s0, 1216
  %s885 = smov 3
  %v886 = vld [vmem:[%s884] ss:$4 sm:%s885]
  %s887 = scalar_lea.vmem %s1, 1124
  %888 = vst [vmem:[%s887] ss:$7 sm:$0x3] %v886
  %s889 = scalar_lea.vmem %s0, 1232
  %s890 = smov 3
  %v891 = vld [vmem:[%s889] ss:$4 sm:%s890]
  %s892 = scalar_lea.vmem %s1, 1144
  %893 = vst [vmem:[%s892] ss:$7 sm:$0x3] %v891
  %s894 = scalar_lea.vmem %s0, 1248
  %s895 = smov 3
  %v896 = vld [vmem:[%s894] ss:$4 sm:%s895]
  %s897 = scalar_lea.vmem %s1, 1158
  %898 = vst [vmem:[%s897] ss:$7 sm:$0x3] %v896
  %s899 = scalar_lea.vmem %s0, 1264
  %s900 = smov 3
  %v901 = vld [vmem:[%s899] ss:$4 sm:%s900]
  %s902 = scalar_lea.vmem %s1, 1172
  %903 = vst [vmem:[%s902] ss:$7 sm:$0x3] %v901
  %s904 = scalar_lea.vmem %s0, 1280
  %s905 = smov 3
  %v906 = vld [vmem:[%s904] ss:$4 sm:%s905]
  %s907 = scalar_lea.vmem %s1, 1186
  %908 = vst [vmem:[%s907] ss:$7 sm:$0x3] %v906
  %s909 = scalar_lea.vmem %s0, 1296
  %s910 = smov 3
  %v911 = vld [vmem:[%s909] ss:$4 sm:%s910]
  %s912 = scalar_lea.vmem %s1, 1200
  %913 = vst [vmem:[%s912] ss:$7 sm:$0x3] %v911
  %s914 = scalar_lea.vmem %s0, 1312
  %s915 = smov 3
  %v916 = vld [vmem:[%s914] ss:$4 sm:%s915]
  %s917 = scalar_lea.vmem %s1, 1214
  %918 = vst [vmem:[%s917] ss:$7 sm:$0x3] %v916
  %s919 = scalar_lea.vmem %s0, 1328
  %s920 = smov 3
  %v921 = vld [vmem:[%s919] ss:$4 sm:%s920]
  %s922 = scalar_lea.vmem %s1, 1228
  %923 = vst [vmem:[%s922] ss:$7 sm:$0x3] %v921
  %s924 = scalar_lea.vmem %s0, 141
  %s925 = smov 3
  %v926 = vld [vmem:[%s924] ss:$108 sm:%s925]
  %s927 = scalar_lea.vmem %s0, 213
  %s928 = smov 12
  %v929 = vld [vmem:[%s927] ss:$-68 sm:%s928]
  %vm930 = vcmask 1043458
  %v931 = vsel %vm930, %v929, %v926
  %s932 = scalar_lea.vmem %s0, 4294967149
  %s933 = smov 48
  %v934 = vld [vmem:[%s932] ss:$108 sm:%s933]
  %vm935 = vcmask 1045508
  %v936 = vsel %vm935, %v934, %v931
  %s937 = scalar_lea.vmem %s0, 4294966693
  %s938 = smov 192
  %v939 = vld [vmem:[%s937] ss:$108 sm:%s938]
  %vm940 = vcmask 1047558
  %v941 = vsel %vm940, %v939, %v936
  %s942 = scalar_lea.vmem %s0, 69
  %s943 = smov 3
  %v944 = vld [vmem:[%s942] ss:$-68 sm:%s943]
  %s945 = scalar_lea.vmem %s0, 4294966753
  %s946 = smov 12
  %v947 = vld [vmem:[%s945] ss:$276 sm:%s946]
  %vm948 = vcmask 1043458
  %v949 = vsel %vm948, %v947, %v944
  %s950 = scalar_lea.vmem %s0, 5
  %s951 = smov 48
  %v952 = vld [vmem:[%s950] ss:$8 sm:%s951]
  %vm953 = vcmask 1045508
  %v954 = vsel %vm953, %v952, %v949
  %s955 = scalar_lea.vmem %s0, 585
  %s956 = smov 192
  %v957 = vld [vmem:[%s955] ss:$-72 sm:%s956]
  %vm958 = vcmask 1047558
  %v959 = vsel %vm958, %v957, %v954
  %vm960 = vcmask 261120
  %v961 = vsel %vm960, %v959, %v941
  %962 = vrot.lane.b32.xlu0 %v961, 96
  %v963 = vpop.permute.xlu0 %962
  %vm964 = vcmask 523264
  %s965 = scalar_lea.vmem %s1, 128
  %966 = vst.msk [vmem:[%s965] ss:$97 sm:$0x3] %vm964, %v963
  %s967 = scalar_lea.vmem %s1, 192
  %968 = vst.msk [vmem:[%s967] ss:$-63 sm:$0xc] %vm964, %v963
  %s969 = scalar_lea.vmem %s1, 4294967168
  %970 = vst.msk [vmem:[%s969] ss:$97 sm:$0x30] %vm964, %v963
  %s971 = scalar_lea.vmem %s1, 4294966752
  %972 = vst.msk [vmem:[%s971] ss:$97 sm:$0xc0] %vm964, %v963
  %vm973 = vcmask 1048320
  %s974 = scalar_lea.vmem %s1, 64
  %975 = vst.msk [vmem:[%s974] ss:$-63 sm:$0x3] %vm973, %v963
  %s976 = scalar_lea.vmem %s1, 4294966784
  %977 = vst.msk [vmem:[%s976] ss:$257 sm:$0xc] %vm973, %v963
  %s978 = scalar_lea.vmem %s1, 32
  %979 = vst.msk [vmem:[%s978] sm:$0x30] %vm973, %v963
  %s980 = scalar_lea.vmem %s1, 512
  %981 = vst.msk [vmem:[%s980] ss:$-63 sm:$0xc0] %vm973, %v963
  %s982 = scalar_lea.vmem %s0, 317
  %s983 = smov 3
  %v984 = vld [vmem:[%s982] ss:$108 sm:%s983]
  %s985 = scalar_lea.vmem %s0, 677
  %s986 = smov 12
  %v987 = vld [vmem:[%s985] ss:$-164 sm:%s986]
  %vm988 = vcmask 1043458
  %v989 = vsel %vm988, %v987, %v984
  %s990 = scalar_lea.vmem %s0, 301
  %s991 = smov 48
  %v992 = vld [vmem:[%s990] ss:$108 sm:%s991]
  %vm993 = vcmask 1045508
  %v994 = vsel %vm993, %v992, %v989
  %s995 = scalar_lea.vmem %s0, 4294966869
  %s996 = smov 192
  %v997 = vld [vmem:[%s995] ss:$108 sm:%s996]
  %vm998 = vcmask 1047558
  %v999 = vsel %vm998, %v997, %v994
  %s1000 = scalar_lea.vmem %s0, 249
  %s1001 = smov 3
  %v1002 = vld [vmem:[%s1000] ss:$-172 sm:%s1001]
  %s1003 = scalar_lea.vmem %s0, 4294967081
  %s1004 = smov 12
  %v1005 = vld [vmem:[%s1003] ss:$200 sm:%s1004]
  %vm1006 = vcmask 1043458
  %v1007 = vsel %vm1006, %v1005, %v1002
  %s1008 = scalar_lea.vmem %s0, 485
  %s1009 = smov 48
  %v1010 = vld [vmem:[%s1008] ss:$-68 sm:%s1009]
  %vm1011 = vcmask 1045508
  %v1012 = vsel %vm1011, %v1010, %v1007
  %s1013 = scalar_lea.vmem %s0, 197
  %s1014 = smov 192
  %v1015 = vld [vmem:[%s1013] ss:$8 sm:%s1014]
  %vm1016 = vcmask 1047558
  %v1017 = vsel %vm1016, %v1015, %v1012
  %vm1018 = vcmask 261120
  %v1019 = vsel %vm1018, %v1017, %v999
  %1020 = vrot.lane.b32.xlu0 %v1019, 96
  %v1021 = vpop.permute.xlu0 %1020
  %vm1022 = vcmask 523264
  %s1023 = scalar_lea.vmem %s1, 288
  %1024 = vst.msk [vmem:[%s1023] ss:$97 sm:$0x3] %vm1022, %v1021
  %s1025 = scalar_lea.vmem %s1, 640
  %1026 = vst.msk [vmem:[%s1025] ss:$-159 sm:$0xc] %vm1022, %v1021
  %s1027 = scalar_lea.vmem %s1, 288
  %1028 = vst.msk [vmem:[%s1027] ss:$97 sm:$0x30] %vm1022, %v1021
  %s1029 = scalar_lea.vmem %s1, 4294966912
  %1030 = vst.msk [vmem:[%s1029] ss:$97 sm:$0xc0] %vm1022, %v1021
  %vm1031 = vcmask 1048320
  %s1032 = scalar_lea.vmem %s1, 224
  %1033 = vst.msk [vmem:[%s1032] ss:$-159 sm:$0x3] %vm1031, %v1021
  %s1034 = scalar_lea.vmem %s1, 4294967072
  %1035 = vst.msk [vmem:[%s1034] ss:$193 sm:$0xc] %vm1031, %v1021
  %s1036 = scalar_lea.vmem %s1, 448
  %1037 = vst.msk [vmem:[%s1036] ss:$-63 sm:$0x30] %vm1031, %v1021
  %s1038 = scalar_lea.vmem %s1, 224
  %1039 = vst.msk [vmem:[%s1038] sm:$0xc0] %vm1031, %v1021
  %s1040 = scalar_lea.vmem %s0, 589
  %s1041 = smov 3
  %v1042 = vld [vmem:[%s1040] ss:$108 sm:%s1041]
  %s1043 = scalar_lea.vmem %s0, 661
  %s1044 = smov 12
  %v1045 = vld [vmem:[%s1043] ss:$-68 sm:%s1044]
  %vm1046 = vcmask 1043458
  %v1047 = vsel %vm1046, %v1045, %v1042
  %s1048 = scalar_lea.vmem %s0, 749
  %s1049 = smov 48
  %v1050 = vld [vmem:[%s1048] ss:$108 sm:%s1049]
  %vm1051 = vcmask 1045508
  %v1052 = vsel %vm1051, %v1050, %v1047
  %s1053 = scalar_lea.vmem %s0, 4294967141
  %s1054 = smov 192
  %v1055 = vld [vmem:[%s1053] ss:$108 sm:%s1054]
  %vm1056 = vcmask 1047558
  %v1057 = vsel %vm1056, %v1055, %v1052
  %s1058 = scalar_lea.vmem %s0, 341
  %s1059 = smov 3
  %v1060 = vld [vmem:[%s1058] ss:$-164 sm:%s1059]
  %s1061 = scalar_lea.vmem %s0, 4294966661
  %s1062 = smov 12
  %v1063 = vld [vmem:[%s1061] ss:$456 sm:%s1062]
  %vm1064 = vcmask 1043458
  %v1065 = vsel %vm1064, %v1063, %v1060
  %s1066 = scalar_lea.vmem %s0, 1081
  %s1067 = smov 48
  %v1068 = vld [vmem:[%s1066] ss:$-172 sm:%s1067]
  %vm1069 = vcmask 1045508
  %v1070 = vsel %vm1069, %v1068, %v1065
  %s1071 = scalar_lea.vmem %s0, 185
  %s1072 = smov 192
  %v1073 = vld [vmem:[%s1071] ss:$24 sm:%s1072]
  %vm1074 = vcmask 1047558
  %v1075 = vsel %vm1074, %v1073, %v1070
  %vm1076 = vcmask 261120
  %v1077 = vsel %vm1076, %v1075, %v1057
  %1078 = vrot.lane.b32.xlu0 %v1077, 96
  %v1079 = vpop.permute.xlu0 %1078
  %vm1080 = vcmask 523264
  %s1081 = scalar_lea.vmem %s1, 544
  %1082 = vst.msk [vmem:[%s1081] ss:$97 sm:$0x3] %vm1080, %v1079
  %s1083 = scalar_lea.vmem %s1, 608
  %1084 = vst.msk [vmem:[%s1083] ss:$-63 sm:$0xc] %vm1080, %v1079
  %s1085 = scalar_lea.vmem %s1, 704
  %1086 = vst.msk [vmem:[%s1085] ss:$97 sm:$0x30] %vm1080, %v1079
  %s1087 = scalar_lea.vmem %s1, 4294967168
  %1088 = vst.msk [vmem:[%s1087] ss:$97 sm:$0xc0] %vm1080, %v1079
  %vm1089 = vcmask 1048320
  %s1090 = scalar_lea.vmem %s1, 320
  %1091 = vst.msk [vmem:[%s1090] ss:$-159 sm:$0x3] %vm1089, %v1079
  %s1092 = scalar_lea.vmem %s1, 4294966720
  %1093 = vst.msk [vmem:[%s1092] ss:$417 sm:$0xc] %vm1089, %v1079
  %s1094 = scalar_lea.vmem %s1, 992
  %1095 = vst.msk [vmem:[%s1094] ss:$-159 sm:$0x30] %vm1089, %v1079
  %s1096 = scalar_lea.vmem %s1, 96
  %1097 = vst.msk [vmem:[%s1096] ss:$33 sm:$0xc0] %vm1089, %v1079
  %s1098 = scalar_lea.vmem %s0, 765
  %s1099 = smov 3
  %v1100 = vld [vmem:[%s1098] ss:$108 sm:%s1099]
  %s1101 = scalar_lea.vmem %s0, 1125
  %s1102 = smov 12
  %v1103 = vld [vmem:[%s1101] ss:$-164 sm:%s1102]
  %vm1104 = vcmask 1043458
  %v1105 = vsel %vm1104, %v1103, %v1100
  %s1106 = scalar_lea.vmem %s0, 237
  %s1107 = smov 48
  %v1108 = vld [vmem:[%s1106] ss:$108 sm:%s1107]
  %vm1109 = vcmask 1045508
  %v1110 = vsel %vm1109, %v1108, %v1105
  %s1111 = scalar_lea.vmem %s0, 1237
  %s1112 = smov 192
  %v1113 = vld [vmem:[%s1111] ss:$-164 sm:%s1112]
  %vm1114 = vcmask 1047558
  %v1115 = vsel %vm1114, %v1113, %v1110
  %s1116 = scalar_lea.vmem %s0, 425
  %s1117 = smov 3
  %v1118 = vld [vmem:[%s1116] ss:$-76 sm:%s1117]
  %s1119 = scalar_lea.vmem %s0, 4294967001
  %s1120 = smov 12
  %v1121 = vld [vmem:[%s1119] ss:$376 sm:%s1120]
  %vm1122 = vcmask 1043458
  %v1123 = vsel %vm1122, %v1121, %v1118
  %s1124 = scalar_lea.vmem %s0, 1141
  %s1125 = smov 48
  %v1126 = vld [vmem:[%s1124] ss:$-164 sm:%s1125]
  %vm1127 = vcmask 1045508
  %v1128 = vsel %vm1127, %v1126, %v1123
  %s1129 = scalar_lea.vmem %s0, 373
  %s1130 = smov 192
  %v1131 = vld [vmem:[%s1129] ss:$8 sm:%s1130]
  %vm1132 = vcmask 1047558
  %v1133 = vsel %vm1132, %v1131, %v1128
  %vm1134 = vcmask 261120
  %v1135 = vsel %vm1134, %v1133, %v1115
  %1136 = vrot.lane.b32.xlu0 %v1135, 96
  %v1137 = vpop.permute.xlu0 %1136
  %vm1138 = vcmask 523264
  %s1139 = scalar_lea.vmem %s1, 704
  %1140 = vst.msk [vmem:[%s1139] ss:$97 sm:$0x3] %vm1138, %v1137
  %s1141 = scalar_lea.vmem %s1, 1056
  %1142 = vst.msk [vmem:[%s1141] ss:$-159 sm:$0xc] %vm1138, %v1137
  %s1143 = scalar_lea.vmem %s1, 226
  %1144 = vst.msk [vmem:[%s1143] ss:$97 sm:$0x30] %vm1138, %v1137
  %s1145 = scalar_lea.vmem %s1, 1186
  %1146 = vst.msk [vmem:[%s1145] ss:$-159 sm:$0xc0] %vm1138, %v1137
  %vm1147 = vcmask 1048320
  %s1148 = scalar_lea.vmem %s1, 384
  %1149 = vst.msk [vmem:[%s1148] ss:$-63 sm:$0x3] %vm1147, %v1137
  %s1150 = scalar_lea.vmem %s1, 4294967008
  %1151 = vst.msk [vmem:[%s1150] ss:$353 sm:$0xc] %vm1147, %v1137
  %s1152 = scalar_lea.vmem %s1, 1088
  %1153 = vst.msk [vmem:[%s1152] ss:$-159 sm:$0x30] %vm1147, %v1137
  %s1154 = scalar_lea.vmem %s1, 384
  %1155 = vst.msk [vmem:[%s1154] sm:$0xc0] %vm1147, %v1137
  %s1156 = scalar_lea.vmem %s0, 1037
  %s1157 = smov 3
  %v1158 = vld [vmem:[%s1156] ss:$108 sm:%s1157]
  %s1159 = scalar_lea.vmem %s0, 1109
  %s1160 = smov 12
  %v1161 = vld [vmem:[%s1159] ss:$-68 sm:%s1160]
  %vm1162 = vcmask 1043458
  %v1163 = vsel %vm1162, %v1161, %v1158
  %s1164 = scalar_lea.vmem %s0, 509
  %s1165 = smov 48
  %v1166 = vld [vmem:[%s1164] ss:$108 sm:%s1165]
  %vm1167 = vcmask 1045508
  %v1168 = vsel %vm1167, %v1166, %v1163
  %s1169 = scalar_lea.vmem %s0, 837
  %s1170 = smov 192
  %v1171 = vld [vmem:[%s1169] ss:$-68 sm:%s1170]
  %vm1172 = vcmask 1047558
  %v1173 = vsel %vm1172, %v1171, %v1168
  %s1174 = scalar_lea.vmem %s0, 517
  %s1175 = smov 3
  %v1176 = vld [vmem:[%s1174] ss:$-68 sm:%s1175]
  %s1177 = scalar_lea.vmem %s0, 4294966833
  %s1178 = smov 12
  %v1179 = vld [vmem:[%s1177] ss:$548 sm:%s1178]
  %vm1180 = vcmask 1043458
  %v1181 = vsel %vm1180, %v1179, %v1176
  %s1182 = scalar_lea.vmem %s0, 1333
  %s1183 = smov 48
  %v1184 = vld [vmem:[%s1182] ss:$-168 sm:%s1183]
  %vm1185 = vcmask 1045508
  %v1186 = vsel %vm1185, %v1184, %v1181
  %s1187 = scalar_lea.vmem %s0, 1033
  %s1188 = smov 192
  %v1189 = vld [vmem:[%s1187] ss:$-72 sm:%s1188]
  %vm1190 = vcmask 1047558
  %v1191 = vsel %vm1190, %v1189, %v1186
  %vm1192 = vcmask 261120
  %v1193 = vsel %vm1192, %v1191, %v1173
  %1194 = vrot.lane.b32.xlu0 %v1193, 96
  %v1195 = vpop.permute.xlu0 %1194
  %vm1196 = vcmask 523264
  %s1197 = scalar_lea.vmem %s1, 960
  %1198 = vst.msk [vmem:[%s1197] ss:$97 sm:$0x3] %vm1196, %v1195
  %s1199 = scalar_lea.vmem %s1, 1024
  %1200 = vst.msk [vmem:[%s1199] ss:$-63 sm:$0xc] %vm1196, %v1195
  %s1201 = scalar_lea.vmem %s1, 482
  %1202 = vst.msk [vmem:[%s1201] ss:$97 sm:$0x30] %vm1196, %v1195
  %s1203 = scalar_lea.vmem %s1, 770
  %1204 = vst.msk [vmem:[%s1203] ss:$-63 sm:$0xc0] %vm1196, %v1195
  %vm1205 = vcmask 1048320
  %s1206 = scalar_lea.vmem %s1, 480
  %1207 = vst.msk [vmem:[%s1206] ss:$-63 sm:$0x3] %vm1205, %v1195
  %s1208 = scalar_lea.vmem %s1, 4294966848
  %1209 = vst.msk [vmem:[%s1208] ss:$513 sm:$0xc] %vm1205, %v1195
  %s1210 = scalar_lea.vmem %s1, 1248
  %1211 = vst.msk [vmem:[%s1210] ss:$-159 sm:$0x30] %vm1205, %v1195
  %s1212 = scalar_lea.vmem %s1, 928
  %1213 = vst.msk [vmem:[%s1212] ss:$-63 sm:$0xc0] %vm1205, %v1195
  %s1214 = scalar_lea.vmem %s0, 1213
  %s1215 = smov 3
  %v1216 = vld [vmem:[%s1214] ss:$108 sm:%s1215]
  %s1217 = scalar_lea.vmem %s0, 1573
  %s1218 = smov 12
  %v1219 = vld [vmem:[%s1217] ss:$-164 sm:%s1218]
  %vm1220 = vcmask 1043458
  %v1221 = vsel %vm1220, %v1219, %v1216
  %s1222 = scalar_lea.vmem %s0, 685
  %s1223 = smov 48
  %v1224 = vld [vmem:[%s1222] ss:$108 sm:%s1223]
  %vm1225 = vcmask 1045508
  %v1226 = vsel %vm1225, %v1224, %v1221
  %s1227 = scalar_lea.vmem %s0, 1685
  %s1228 = smov 192
  %v1229 = vld [vmem:[%s1227] ss:$-164 sm:%s1228]
  %vm1230 = vcmask 1047558
  %v1231 = vsel %vm1230, %v1229, %v1226
  %s1232 = scalar_lea.vmem %s0, 697
  %s1233 = smov 3
  %v1234 = vld [vmem:[%s1232] ss:$-172 sm:%s1233]
  %s1235 = scalar_lea.vmem %s0, 4294966909
  %s1236 = smov 12
  %v1237 = vld [vmem:[%s1235] ss:$556 sm:%s1236]
  %vm1238 = vcmask 1043458
  %v1239 = vsel %vm1238, %v1237, %v1234
  %s1240 = scalar_lea.vmem %s0, 1833
  %s1241 = smov 48
  %v1242 = vld [vmem:[%s1240] ss:$-248 sm:%s1241]
  %vm1243 = vcmask 1045508
  %v1244 = vsel %vm1243, %v1242, %v1239
  %s1245 = scalar_lea.vmem %s0, 645
  %s1246 = smov 192
  %v1247 = vld [vmem:[%s1245] ss:$8 sm:%s1246]
  %vm1248 = vcmask 1047558
  %v1249 = vsel %vm1248, %v1247, %v1244
  %vm1250 = vcmask 261120
  %v1251 = vsel %vm1250, %v1249, %v1231
  %1252 = vrot.lane.b32.xlu0 %v1251, 96
  %v1253 = vpop.permute.xlu0 %1252
  %vm1254 = vcmask 523264
  %s1255 = scalar_lea.vmem %s1, 1120
  %1256 = vst.msk [vmem:[%s1255] ss:$97 sm:$0x3] %vm1254, %v1253
  %s1257 = scalar_lea.vmem %s1, 1472
  %1258 = vst.msk [vmem:[%s1257] ss:$-159 sm:$0xc] %vm1254, %v1253
  %s1259 = scalar_lea.vmem %s1, 642
  %1260 = vst.msk [vmem:[%s1259] ss:$97 sm:$0x30] %vm1254, %v1253
  %s1261 = scalar_lea.vmem %s1, 1602
  %1262 = vst.msk [vmem:[%s1261] ss:$-159 sm:$0xc0] %vm1254, %v1253
  %vm1263 = vcmask 1048320
  %s1264 = scalar_lea.vmem %s1, 640
  %1265 = vst.msk [vmem:[%s1264] ss:$-159 sm:$0x3] %vm1263, %v1253
  %s1266 = scalar_lea.vmem %s1, 4294966944
  %1267 = vst.msk [vmem:[%s1266] ss:$513 sm:$0xc] %vm1263, %v1253
  %s1268 = scalar_lea.vmem %s1, 1664
  %1269 = vst.msk [vmem:[%s1268] ss:$-223 sm:$0x30] %vm1263, %v1253
  %s1270 = scalar_lea.vmem %s1, 640
  %1271 = vst.msk [vmem:[%s1270] sm:$0xc0] %vm1263, %v1253
  %s1272 = scalar_lea.vmem %s0, 877
  %s1273 = smov 3
  %v1274 = vld [vmem:[%s1272] ss:$-68 sm:%s1273]
  %s1275 = scalar_lea.vmem %s0, 4294967093
  %s1276 = smov 12
  %v1277 = vld [vmem:[%s1275] ss:$108 sm:%s1276]
  %vm1278 = vcmask 1043458
  %v1279 = vsel %vm1278, %v1277, %v1274
  %s1280 = scalar_lea.vmem %s0, 1757
  %s1281 = smov 48
  %v1282 = vld [vmem:[%s1280] ss:$-340 sm:%s1281]
  %vm1283 = vcmask 1045508
  %v1284 = vsel %vm1283, %v1282, %v1279
  %s1285 = scalar_lea.vmem %s0, 4294966805
  %s1286 = smov 192
  %v1287 = vld [vmem:[%s1285] ss:$108 sm:%s1286]
  %vm1288 = vcmask 1047558
  %v1289 = vsel %vm1288, %v1287, %v1284
  %s1290 = scalar_lea.vmem %s0, 789
  %s1291 = smov 3
  %v1292 = vld [vmem:[%s1290] ss:$-164 sm:%s1291]
  %s1293 = scalar_lea.vmem %s0, 849
  %s1294 = smov 12
  %v1295 = vld [vmem:[%s1293] ss:$28 sm:%s1294]
  %vm1296 = vcmask 1043458
  %v1297 = vsel %vm1296, %v1295, %v1292
  %s1298 = scalar_lea.vmem %s0, 237
  %s1299 = smov 48
  %v1300 = vld [vmem:[%s1298] ss:$108 sm:%s1299]
  %vm1301 = vcmask 1045508
  %v1302 = vsel %vm1301, %v1300, %v1297
  %s1303 = scalar_lea.vmem %s0, 5577
  %s1304 = smov 192
  %v1305 = vld [vmem:[%s1303] ss:$-796 sm:%s1304]
  %vm1306 = vcmask 1047558
  %v1307 = vsel %vm1306, %v1305, %v1302
  %vm1308 = vcmask 261120
  %v1309 = vsel %vm1308, %v1307, %v1289
  %1310 = vrot.lane.b32.xlu0 %v1309, 96
  %v1311 = vpop.permute.xlu0 %1310
  %vm1312 = vcmask 523264
  %s1313 = scalar_lea.vmem %s1, 808
  %1314 = vst.msk [vmem:[%s1313] ss:$-63 sm:$0x3] %vm1312, %v1311
  %s1315 = scalar_lea.vmem %s1, 4294967112
  %1316 = vst.msk [vmem:[%s1315] ss:$97 sm:$0xc] %vm1312, %v1311
  %s1317 = scalar_lea.vmem %s1, 1640
  %1318 = vst.msk [vmem:[%s1317] ss:$-319 sm:$0x30] %vm1312, %v1311
  %s1319 = scalar_lea.vmem %s1, 4294966856
  %1320 = vst.msk [vmem:[%s1319] ss:$97 sm:$0xc0] %vm1312, %v1311
  %vm1321 = vcmask 1048320
  %s1322 = scalar_lea.vmem %s1, 736
  %1323 = vst.msk [vmem:[%s1322] ss:$-159 sm:$0x3] %vm1321, %v1311
  %s1324 = scalar_lea.vmem %s1, 766
  %1325 = vst.msk [vmem:[%s1324] ss:$34 sm:$0xc] %vm1321, %v1311
  %s1326 = scalar_lea.vmem %s1, 225
  %1327 = vst.msk [vmem:[%s1326] ss:$97 sm:$0x30] %vm1321, %v1311
  %s1328 = scalar_lea.vmem %s1, 5153
  %1329 = vst.msk [vmem:[%s1328] ss:$-735 sm:$0xc0] %vm1321, %v1311
  %s1330 = scalar_lea.vmem %s0, 1149
  %s1331 = smov 3
  %v1332 = vld [vmem:[%s1330] ss:$-164 sm:%s1331]
  %s1333 = scalar_lea.vmem %s0, 4294967269
  %s1334 = smov 12
  %v1335 = vld [vmem:[%s1333] ss:$108 sm:%s1334]
  %vm1336 = vcmask 1043458
  %v1337 = vsel %vm1336, %v1335, %v1332
  %s1338 = scalar_lea.vmem %s0, 2205
  %s1339 = smov 48
  %v1340 = vld [vmem:[%s1338] ss:$-340 sm:%s1339]
  %vm1341 = vcmask 1045508
  %v1342 = vsel %vm1341, %v1340, %v1337
  %s1343 = scalar_lea.vmem %s0, 4294966981
  %s1344 = smov 192
  %v1345 = vld [vmem:[%s1343] ss:$108 sm:%s1344]
  %vm1346 = vcmask 1047558
  %v1347 = vsel %vm1346, %v1345, %v1342
  %s1348 = scalar_lea.vmem %s0, 873
  %s1349 = smov 3
  %v1350 = vld [vmem:[%s1348] ss:$-76 sm:%s1349]
  %s1351 = scalar_lea.vmem %s0, 1025
  %s1352 = smov 12
  %v1353 = vld [vmem:[%s1351] ss:$28 sm:%s1352]
  %vm1354 = vcmask 1043458
  %v1355 = vsel %vm1354, %v1353, %v1350
  %s1356 = scalar_lea.vmem %s0, 369
  %s1357 = smov 48
  %v1358 = vld [vmem:[%s1356] ss:$100 sm:%s1357]
  %vm1359 = vcmask 1045508
  %v1360 = vsel %vm1359, %v1358, %v1355
  %s1361 = scalar_lea.vmem %s0, 5605
  %s1362 = smov 192
  %v1363 = vld [vmem:[%s1361] ss:$-788 sm:%s1362]
  %vm1364 = vcmask 1047558
  %v1365 = vsel %vm1364, %v1363, %v1360
  %vm1366 = vcmask 261120
  %v1367 = vsel %vm1366, %v1365, %v1347
  %1368 = vrot.lane.b32.xlu0 %v1367, 96
  %v1369 = vpop.permute.xlu0 %1368
  %vm1370 = vcmask 523264
  %s1371 = scalar_lea.vmem %s1, 1064
  %1372 = vst.msk [vmem:[%s1371] ss:$-159 sm:$0x3] %vm1370, %v1369
  %s1373 = scalar_lea.vmem %s1, 4294967272
  %1374 = vst.msk [vmem:[%s1373] ss:$97 sm:$0xc] %vm1370, %v1369
  %s1375 = scalar_lea.vmem %s1, 2056
  %1376 = vst.msk [vmem:[%s1375] ss:$-319 sm:$0x30] %vm1370, %v1369
  %s1377 = scalar_lea.vmem %s1, 4294967016
  %1378 = vst.msk [vmem:[%s1377] ss:$97 sm:$0xc0] %vm1370, %v1369
  %vm1379 = vcmask 1048320
  %s1380 = scalar_lea.vmem %s1, 800
  %1381 = vst.msk [vmem:[%s1380] ss:$-63 sm:$0x3] %vm1379, %v1369
  %s1382 = scalar_lea.vmem %s1, 926
  %1383 = vst.msk [vmem:[%s1382] ss:$34 sm:$0xc] %vm1379, %v1369
  %s1384 = scalar_lea.vmem %s1, 321
  %1385 = vst.msk [vmem:[%s1384] ss:$97 sm:$0x30] %vm1379, %v1369
  %s1386 = scalar_lea.vmem %s1, 5217
  %1387 = vst.msk [vmem:[%s1386] ss:$-735 sm:$0xc0] %vm1379, %v1369
  %s1388 = scalar_lea.vmem %s0, 1325
  %s1389 = smov 3
  %v1390 = vld [vmem:[%s1388] ss:$-68 sm:%s1389]
  %s1391 = scalar_lea.vmem %s0, 245
  %s1392 = smov 12
  %v1393 = vld [vmem:[%s1391] ss:$108 sm:%s1392]
  %vm1394 = vcmask 1043458
  %v1395 = vsel %vm1394, %v1393, %v1390
  %s1396 = scalar_lea.vmem %s0, 2653
  %s1397 = smov 48
  %v1398 = vld [vmem:[%s1396] ss:$-340 sm:%s1397]
  %vm1399 = vcmask 1045508
  %v1400 = vsel %vm1399, %v1398, %v1395
  %s1401 = scalar_lea.vmem %s0, 4294967253
  %s1402 = smov 192
  %v1403 = vld [vmem:[%s1401] ss:$108 sm:%s1402]
  %vm1404 = vcmask 1047558
  %v1405 = vsel %vm1404, %v1403, %v1400
  %s1406 = scalar_lea.vmem %s0, 965
  %s1407 = smov 3
  %v1408 = vld [vmem:[%s1406] ss:$-68 sm:%s1407]
  %s1409 = scalar_lea.vmem %s0, 941
  %s1410 = smov 12
  %v1411 = vld [vmem:[%s1409] ss:$116 sm:%s1410]
  %vm1412 = vcmask 1043458
  %v1413 = vsel %vm1412, %v1411, %v1408
  %s1414 = scalar_lea.vmem %s0, 509
  %s1415 = smov 48
  %v1416 = vld [vmem:[%s1414] ss:$108 sm:%s1415]
  %vm1417 = vcmask 1045508
  %v1418 = vsel %vm1417, %v1416, %v1413
  %s1419 = scalar_lea.vmem %s0, 5753
  %s1420 = smov 192
  %v1421 = vld [vmem:[%s1419] ss:$-796 sm:%s1420]
  %vm1422 = vcmask 1047558
  %v1423 = vsel %vm1422, %v1421, %v1418
  %vm1424 = vcmask 261120
  %v1425 = vsel %vm1424, %v1423, %v1405
  %1426 = vrot.lane.b32.xlu0 %v1425, 96
  %v1427 = vpop.permute.xlu0 %1426
  %vm1428 = vcmask 523264
  %s1429 = scalar_lea.vmem %s1, 1224
  %1430 = vst.msk [vmem:[%s1429] ss:$-63 sm:$0x3] %vm1428, %v1427
  %s1431 = scalar_lea.vmem %s1, 232
  %1432 = vst.msk [vmem:[%s1431] ss:$97 sm:$0xc] %vm1428, %v1427
  %s1433 = scalar_lea.vmem %s1, 2472
  %1434 = vst.msk [vmem:[%s1433] ss:$-319 sm:$0x70] %vm1428, %v1427
  %s1435 = scalar_lea.vmem %s1, 648
  %1436 = vst.msk [vmem:[%s1435] sm:$0x80] %vm1428, %v1427
  %vm1437 = vcmask 1048320
  %s1438 = scalar_lea.vmem %s1, 896
  %1439 = vst.msk [vmem:[%s1438] ss:$-63 sm:$0x3] %vm1437, %v1427
  %s1440 = scalar_lea.vmem %s1, 894
  %1441 = vst.msk [vmem:[%s1440] ss:$98 sm:$0xc] %vm1437, %v1427
  %s1442 = scalar_lea.vmem %s1, 481
  %1443 = vst.msk [vmem:[%s1442] ss:$97 sm:$0x30] %vm1437, %v1427
  %s1444 = scalar_lea.vmem %s1, 5313
  %1445 = vst.msk [vmem:[%s1444] ss:$-735 sm:$0xc0] %vm1437, %v1427
  %s1446 = scalar_lea.vmem %s0, 637
  %s1447 = smov 3
  %v1448 = vld [vmem:[%s1446] ss:$108 sm:%s1447]
  %s1449 = scalar_lea.vmem %s0, 565
  %s1450 = smov 12
  %v1451 = vld [vmem:[%s1449] ss:$108 sm:%s1450]
  %vm1452 = vcmask 1043458
  %v1453 = vsel %vm1452, %v1451, %v1448
  %s1454 = scalar_lea.vmem %s0, 365
  %s1455 = smov 48
  %v1456 = vld [vmem:[%s1454] ss:$-68 sm:%s1455]
  %vm1457 = vcmask 1045508
  %v1458 = vsel %vm1457, %v1456, %v1453
  %s1459 = scalar_lea.vmem %s0, 4294966773
  %s1460 = smov 192
  %v1461 = vld [vmem:[%s1459] ss:$108 sm:%s1460]
  %vm1462 = vcmask 1047558
  %v1463 = vsel %vm1462, %v1461, %v1458
  %s1464 = scalar_lea.vmem %s0, 1145
  %s1465 = smov 3
  %v1466 = vld [vmem:[%s1464] ss:$-172 sm:%s1465]
  %s1467 = scalar_lea.vmem %s0, 841
  %s1468 = smov 12
  %v1469 = vld [vmem:[%s1467] ss:$100 sm:%s1468]
  %vm1470 = vcmask 1043458
  %v1471 = vsel %vm1470, %v1469, %v1466
  %s1472 = scalar_lea.vmem %s0, 4301
  %s1473 = smov 48
  %v1474 = vld [vmem:[%s1472] ss:$-788 sm:%s1473]
  %vm1475 = vcmask 1045508
  %v1476 = vsel %vm1475, %v1474, %v1471
  %s1477 = scalar_lea.vmem %s0, 4294966661
  %s1478 = smov 192
  %v1479 = vld [vmem:[%s1477] ss:$108 sm:%s1478]
  %vm1480 = vcmask 1047558
  %v1481 = vsel %vm1480, %v1479, %v1476
  %vm1482 = vcmask 261120
  %v1483 = vsel %vm1482, %v1481, %v1463
  %1484 = vrot.lane.b32.xlu0 %v1483, 96
  %v1485 = vpop.permute.xlu0 %1484
  %vm1486 = vcmask 523264
  %s1487 = scalar_lea.vmem %s1, 586
  %1488 = vst.msk [vmem:[%s1487] ss:$97 sm:$0x3] %vm1486, %v1485
  %s1489 = scalar_lea.vmem %s1, 524
  %1490 = vst.msk [vmem:[%s1489] ss:$97 sm:$0xc] %vm1486, %v1485
  %s1491 = scalar_lea.vmem %s1, 332
  %1492 = vst.msk [vmem:[%s1491] ss:$-63 sm:$0x30] %vm1486, %v1485
  %s1493 = scalar_lea.vmem %s1, 4294966828
  %1494 = vst.msk [vmem:[%s1493] ss:$97 sm:$0xc0] %vm1486, %v1485
  %vm1495 = vcmask 1048320
  %s1496 = scalar_lea.vmem %s1, 1056
  %1497 = vst.msk [vmem:[%s1496] ss:$-159 sm:$0x3] %vm1495, %v1485
  %s1498 = scalar_lea.vmem %s1, 771
  %1499 = vst.msk [vmem:[%s1498] ss:$97 sm:$0xc] %vm1495, %v1485
  %s1500 = scalar_lea.vmem %s1, 4003
  %1501 = vst.msk [vmem:[%s1500] ss:$-735 sm:$0x30] %vm1495, %v1485
  %s1502 = scalar_lea.vmem %s1, 4294966723
  %1503 = vst.msk [vmem:[%s1502] ss:$97 sm:$0xc0] %vm1495, %v1485
  %s1504 = scalar_lea.vmem %s0, 909
  %s1505 = smov 3
  %v1506 = vld [vmem:[%s1504] ss:$108 sm:%s1505]
  %s1507 = scalar_lea.vmem %s0, 837
  %s1508 = smov 12
  %v1509 = vld [vmem:[%s1507] ss:$108 sm:%s1508]
  %vm1510 = vcmask 1043458
  %v1511 = vsel %vm1510, %v1509, %v1506
  %s1512 = scalar_lea.vmem %s0, 1021
  %s1513 = smov 48
  %v1514 = vld [vmem:[%s1512] ss:$-164 sm:%s1513]
  %vm1515 = vcmask 1045508
  %v1516 = vsel %vm1515, %v1514, %v1511
  %s1517 = scalar_lea.vmem %s0, 4294966949
  %s1518 = smov 192
  %v1519 = vld [vmem:[%s1517] ss:$108 sm:%s1518]
  %vm1520 = vcmask 1047558
  %v1521 = vsel %vm1520, %v1519, %v1516
  %s1522 = scalar_lea.vmem %s0, 1237
  %s1523 = smov 3
  %v1524 = vld [vmem:[%s1522] ss:$-164 sm:%s1523]
  %s1525 = scalar_lea.vmem %s0, 901
  %s1526 = smov 12
  %v1527 = vld [vmem:[%s1525] ss:$108 sm:%s1526]
  %vm1528 = vcmask 1043458
  %v1529 = vsel %vm1528, %v1527, %v1524
  %s1530 = scalar_lea.vmem %s0, 4433
  %s1531 = smov 48
  %v1532 = vld [vmem:[%s1530] ss:$-796 sm:%s1531]
  %vm1533 = vcmask 1045508
  %v1534 = vsel %vm1533, %v1532, %v1529
  %s1535 = scalar_lea.vmem %s0, 4294966305
  %s1536 = smov 192
  %v1537 = vld [vmem:[%s1535] ss:$184 sm:%s1536]
  %vm1538 = vcmask 1047558
  %v1539 = vsel %vm1538, %v1537, %v1534
  %vm1540 = vcmask 261120
  %v1541 = vsel %vm1540, %v1539, %v1521
  %1542 = vrot.lane.b32.xlu0 %v1541, 96
  %v1543 = vpop.permute.xlu0 %1542
  %vm1544 = vcmask 523264
  %s1545 = scalar_lea.vmem %s1, 842
  %1546 = vst.msk [vmem:[%s1545] ss:$97 sm:$0x3] %vm1544, %v1543
  %s1547 = scalar_lea.vmem %s1, 780
  %1548 = vst.msk [vmem:[%s1547] ss:$97 sm:$0xc] %vm1544, %v1543
  %s1549 = scalar_lea.vmem %s1, 972
  %1550 = vst.msk [vmem:[%s1549] ss:$-159 sm:$0x30] %vm1544, %v1543
  %s1551 = scalar_lea.vmem %s1, 4294966988
  %1552 = vst.msk [vmem:[%s1551] ss:$97 sm:$0xc0] %vm1544, %v1543
  %vm1553 = vcmask 1048320
  %s1554 = scalar_lea.vmem %s1, 1152
  %1555 = vst.msk [vmem:[%s1554] ss:$-159 sm:$0x3] %vm1553, %v1543
  %s1556 = scalar_lea.vmem %s1, 835
  %1557 = vst.msk [vmem:[%s1556] ss:$97 sm:$0xc] %vm1553, %v1543
  %s1558 = scalar_lea.vmem %s1, 4099
  %1559 = vst.msk [vmem:[%s1558] ss:$-735 sm:$0x30] %vm1553, %v1543
  %s1560 = scalar_lea.vmem %s1, 4294966435
  %1561 = vst.msk [vmem:[%s1560] ss:$161 sm:$0xc0] %vm1553, %v1543
  %s1562 = scalar_lea.vmem %s0, 1085
  %s1563 = smov 3
  %v1564 = vld [vmem:[%s1562] ss:$108 sm:%s1563]
  %s1565 = scalar_lea.vmem %s0, 1013
  %s1566 = smov 12
  %v1567 = vld [vmem:[%s1565] ss:$108 sm:%s1566]
  %vm1568 = vcmask 1043458
  %v1569 = vsel %vm1568, %v1567, %v1564
  %s1570 = scalar_lea.vmem %s0, 813
  %s1571 = smov 48
  %v1572 = vld [vmem:[%s1570] ss:$-68 sm:%s1571]
  %vm1573 = vcmask 1045508
  %v1574 = vsel %vm1573, %v1572, %v1569
  %s1575 = scalar_lea.vmem %s0, 4294967221
  %s1576 = smov 192
  %v1577 = vld [vmem:[%s1575] ss:$108 sm:%s1576]
  %vm1578 = vcmask 1047558
  %v1579 = vsel %vm1578, %v1577, %v1574
  %s1580 = scalar_lea.vmem %s0, 1321
  %s1581 = smov 3
  %v1582 = vld [vmem:[%s1580] ss:$-76 sm:%s1581]
  %s1583 = scalar_lea.vmem %s0, 1017
  %s1584 = smov 12
  %v1585 = vld [vmem:[%s1583] ss:$100 sm:%s1584]
  %vm1586 = vcmask 1043458
  %v1587 = vsel %vm1586, %v1585, %v1582
  %s1588 = scalar_lea.vmem %s0, 4477
  %s1589 = smov 48
  %v1590 = vld [vmem:[%s1588] ss:$-788 sm:%s1589]
  %vm1591 = vcmask 1045508
  %v1592 = vsel %vm1591, %v1590, %v1587
  %s1593 = scalar_lea.vmem %s0, 4294966285
  %s1594 = smov 192
  %v1595 = vld [vmem:[%s1593] ss:$200 sm:%s1594]
  %vm1596 = vcmask 1047558
  %v1597 = vsel %vm1596, %v1595, %v1592
  %vm1598 = vcmask 261120
  %v1599 = vsel %vm1598, %v1597, %v1579
  %1600 = vrot.lane.b32.xlu0 %v1599, 96
  %v1601 = vpop.permute.xlu0 %1600
  %vm1602 = vcmask 523264
  %s1603 = scalar_lea.vmem %s1, 1002
  %1604 = vst.msk [vmem:[%s1603] ss:$97 sm:$0x3] %vm1602, %v1601
  %s1605 = scalar_lea.vmem %s1, 940
  %1606 = vst.msk [vmem:[%s1605] ss:$97 sm:$0xc] %vm1602, %v1601
  %s1607 = scalar_lea.vmem %s1, 748
  %1608 = vst.msk [vmem:[%s1607] ss:$-63 sm:$0x30] %vm1602, %v1601
  %s1609 = scalar_lea.vmem %s1, 4294967244
  %1610 = vst.msk [vmem:[%s1609] ss:$97 sm:$0xc0] %vm1602, %v1601
  %vm1611 = vcmask 1048320
  %s1612 = scalar_lea.vmem %s1, 1216
  %1613 = vst.msk [vmem:[%s1612] ss:$-63 sm:$0x3] %vm1611, %v1601
  %s1614 = scalar_lea.vmem %s1, 931
  %1615 = vst.msk [vmem:[%s1614] ss:$97 sm:$0xc] %vm1611, %v1601
  %s1616 = scalar_lea.vmem %s1, 4163
  %1617 = vst.msk [vmem:[%s1616] ss:$-735 sm:$0x30] %vm1611, %v1601
  %s1618 = scalar_lea.vmem %s1, 4294966307
  %1619 = vst.msk [vmem:[%s1618] ss:$193 sm:$0xc0] %vm1611, %v1601
  %s1620 = scalar_lea.vmem %s0, 813
  %s1621 = smov 3
  %v1622 = vld [vmem:[%s1620] ss:$-164 sm:%s1621]
  %s1623 = scalar_lea.vmem %s0, 533
  %s1624 = smov 12
  %v1625 = vld [vmem:[%s1623] ss:$108 sm:%s1624]
  %vm1626 = vcmask 1043458
  %v1627 = vsel %vm1626, %v1625, %v1622
  %s1628 = scalar_lea.vmem %s0, 4294966925
  %s1629 = smov 48
  %v1630 = vld [vmem:[%s1628] ss:$108 sm:%s1629]
  %vm1631 = vcmask 1045508
  %v1632 = vsel %vm1631, %v1630, %v1627
  %s1633 = scalar_lea.vmem %s0, 1253
  %s1634 = smov 192
  %v1635 = vld [vmem:[%s1633] ss:$-164 sm:%s1634]
  %vm1636 = vcmask 1047558
  %v1637 = vsel %vm1636, %v1635, %v1632
  %s1638 = scalar_lea.vmem %s0, 629
  %s1639 = smov 3
  %v1640 = vld [vmem:[%s1638] ss:$-340 sm:%s1639]
  %s1641 = scalar_lea.vmem %s0, 1609
  %s1642 = smov 12
  %v1643 = vld [vmem:[%s1641] ss:$-520 sm:%s1642]
  %vm1644 = vcmask 1043458
  %v1645 = vsel %vm1644, %v1643, %v1640
  %s1646 = scalar_lea.vmem %s0, 4294966953
  %s1647 = smov 48
  %v1648 = vld [vmem:[%s1646] ss:$100 sm:%s1647]
  %vm1649 = vcmask 1045508
  %v1650 = vsel %vm1649, %v1648, %v1645
  %s1651 = scalar_lea.vmem %s0, 493
  %s1652 = smov 192
  %v1653 = vld [vmem:[%s1651] ss:$-68 sm:%s1652]
  %vm1654 = vcmask 1047558
  %v1655 = vsel %vm1654, %v1653, %v1650
  %vm1656 = vcmask 261120
  %v1657 = vsel %vm1656, %v1655, %v1637
  %1658 = vrot.lane.b32.xlu0 %v1657, 96
  %v1659 = vpop.permute.xlu0 %1658
  %vm1660 = vcmask 523264
  %s1661 = scalar_lea.vmem %s1, 752
  %1662 = vst.msk [vmem:[%s1661] ss:$-159 sm:$0x3] %vm1660, %v1659
  %s1663 = scalar_lea.vmem %s1, 496
  %1664 = vst.msk [vmem:[%s1663] ss:$97 sm:$0xc] %vm1660, %v1659
  %s1665 = scalar_lea.vmem %s1, 4294966960
  %1666 = vst.msk [vmem:[%s1665] ss:$97 sm:$0x70] %vm1660, %v1659
  %s1667 = scalar_lea.vmem %s1, 80
  %1668 = vst.msk [vmem:[%s1667] sm:$0x80] %vm1660, %v1659
  %vm1669 = vcmask 1048320
  %s1670 = scalar_lea.vmem %s1, 584
  %1671 = vst.msk [vmem:[%s1670] ss:$-319 sm:$0x3] %vm1669, %v1659
  %s1672 = scalar_lea.vmem %s1, 1480
  %1673 = vst.msk [vmem:[%s1672] ss:$-479 sm:$0xc] %vm1669, %v1659
  %s1674 = scalar_lea.vmem %s1, 4294966952
  %1675 = vst.msk [vmem:[%s1674] ss:$97 sm:$0x30] %vm1669, %v1659
  %s1676 = scalar_lea.vmem %s1, 456
  %1677 = vst.msk [vmem:[%s1676] ss:$-63 sm:$0xc0] %vm1669, %v1659
  %s1678 = scalar_lea.vmem %s0, 989
  %s1679 = smov 3
  %v1680 = vld [vmem:[%s1678] ss:$-68 sm:%s1679]
  %s1681 = scalar_lea.vmem %s0, 805
  %s1682 = smov 12
  %v1683 = vld [vmem:[%s1681] ss:$108 sm:%s1682]
  %vm1684 = vcmask 1043458
  %v1685 = vsel %vm1684, %v1683, %v1680
  %s1686 = scalar_lea.vmem %s0, 77
  %s1687 = smov 48
  %v1688 = vld [vmem:[%s1686] ss:$108 sm:%s1687]
  %vm1689 = vcmask 1045508
  %v1690 = vsel %vm1689, %v1688, %v1685
  %s1691 = scalar_lea.vmem %s0, 853
  %s1692 = smov 192
  %v1693 = vld [vmem:[%s1691] ss:$-68 sm:%s1692]
  %vm1694 = vcmask 1047558
  %v1695 = vsel %vm1694, %v1693, %v1690
  %s1696 = scalar_lea.vmem %s0, 809
  %s1697 = smov 3
  %v1698 = vld [vmem:[%s1696] ss:$-348 sm:%s1697]
  %s1699 = scalar_lea.vmem %s0, 1441
  %s1700 = smov 12
  %v1701 = vld [vmem:[%s1699] ss:$-348 sm:%s1700]
  %vm1702 = vcmask 1043458
  %v1703 = vsel %vm1702, %v1701, %v1698
  %s1704 = scalar_lea.vmem %s0, 4294967013
  %s1705 = smov 48
  %v1706 = vld [vmem:[%s1704] ss:$108 sm:%s1705]
  %vm1707 = vcmask 1045508
  %v1708 = vsel %vm1707, %v1706, %v1703
  %s1709 = scalar_lea.vmem %s0, 1297
  %s1710 = smov 192
  %v1711 = vld [vmem:[%s1709] ss:$-172 sm:%s1710]
  %vm1712 = vcmask 1047558
  %v1713 = vsel %vm1712, %v1711, %v1708
  %vm1714 = vcmask 261120
  %v1715 = vsel %vm1714, %v1713, %v1695
  %1716 = vrot.lane.b32.xlu0 %v1715, 96
  %v1717 = vpop.permute.xlu0 %1716
  %vm1718 = vcmask 523264
  %s1719 = scalar_lea.vmem %s1, 912
  %1720 = vst.msk [vmem:[%s1719] ss:$-63 sm:$0x3] %vm1718, %v1717
  %s1721 = scalar_lea.vmem %s1, 752
  %1722 = vst.msk [vmem:[%s1721] ss:$97 sm:$0xc] %vm1718, %v1717
  %s1723 = scalar_lea.vmem %s1, 80
  %1724 = vst.msk [vmem:[%s1723] ss:$97 sm:$0x30] %vm1718, %v1717
  %s1725 = scalar_lea.vmem %s1, 784
  %1726 = vst.msk [vmem:[%s1725] ss:$-63 sm:$0xc0] %vm1718, %v1717
  %vm1727 = vcmask 1048320
  %s1728 = scalar_lea.vmem %s1, 744
  %1729 = vst.msk [vmem:[%s1728] ss:$-319 sm:$0x3] %vm1727, %v1717
  %s1730 = scalar_lea.vmem %s1, 1320
  %1731 = vst.msk [vmem:[%s1730] ss:$-319 sm:$0xc] %vm1727, %v1717
  %s1732 = scalar_lea.vmem %s1, 4294967048
  %1733 = vst.msk [vmem:[%s1732] ss:$97 sm:$0x30] %vm1727, %v1717
  %s1734 = scalar_lea.vmem %s1, 1192
  %1735 = vst.msk [vmem:[%s1734] ss:$-159 sm:$0xc0] %vm1727, %v1717
  %s1736 = scalar_lea.vmem %s0, 1261
  %s1737 = smov 3
  %v1738 = vld [vmem:[%s1736] ss:$-164 sm:%s1737]
  %s1739 = scalar_lea.vmem %s0, 981
  %s1740 = smov 12
  %v1741 = vld [vmem:[%s1739] ss:$108 sm:%s1740]
  %vm1742 = vcmask 1043458
  %v1743 = vsel %vm1742, %v1741, %v1738
  %s1744 = scalar_lea.vmem %s0, 525
  %s1745 = smov 48
  %v1746 = vld [vmem:[%s1744] ss:$108 sm:%s1745]
  %vm1747 = vcmask 1045508
  %v1748 = vsel %vm1747, %v1746, %v1743
  %s1749 = scalar_lea.vmem %s0, 1701
  %s1750 = smov 192
  %v1751 = vld [vmem:[%s1749] ss:$-164 sm:%s1750]
  %vm1752 = vcmask 1047558
  %v1753 = vsel %vm1752, %v1751, %v1748
  %s1754 = scalar_lea.vmem %s0, 901
  %s1755 = smov 3
  %v1756 = vld [vmem:[%s1754] ss:$-340 sm:%s1755]
  %s1757 = scalar_lea.vmem %s0, 1517
  %s1758 = smov 12
  %v1759 = vld [vmem:[%s1757] ss:$-340 sm:%s1758]
  %vm1760 = vcmask 1043458
  %v1761 = vsel %vm1760, %v1759, %v1756
  %s1762 = scalar_lea.vmem %s0, 293
  %s1763 = smov 48
  %v1764 = vld [vmem:[%s1762] ss:$8 sm:%s1763]
  %vm1765 = vcmask 1045508
  %v1766 = vsel %vm1765, %v1764, %v1761
  %s1767 = scalar_lea.vmem %s0, 1341
  %s1768 = smov 192
  %v1769 = vld [vmem:[%s1767] ss:$-164 sm:%s1768]
  %vm1770 = vcmask 1047558
  %v1771 = vsel %vm1770, %v1769, %v1766
  %vm1772 = vcmask 261120
  %v1773 = vsel %vm1772, %v1771, %v1753
  %1774 = vrot.lane.b32.xlu0 %v1773, 96
  %v1775 = vpop.permute.xlu0 %1774
  %vm1776 = vcmask 523264
  %s1777 = scalar_lea.vmem %s1, 1168
  %1778 = vst.msk [vmem:[%s1777] ss:$-159 sm:$0x3] %vm1776, %v1775
  %s1779 = scalar_lea.vmem %s1, 912
  %1780 = vst.msk [vmem:[%s1779] ss:$97 sm:$0xc] %vm1776, %v1775
  %s1781 = scalar_lea.vmem %s1, 496
  %1782 = vst.msk [vmem:[%s1781] ss:$97 sm:$0x30] %vm1776, %v1775
  %s1783 = scalar_lea.vmem %s1, 1616
  %1784 = vst.msk [vmem:[%s1783] ss:$-159 sm:$0xc0] %vm1776, %v1775
  %vm1785 = vcmask 1048320
  %s1786 = scalar_lea.vmem %s1, 840
  %1787 = vst.msk [vmem:[%s1786] ss:$-319 sm:$0x3] %vm1785, %v1775
  %s1788 = scalar_lea.vmem %s1, 1416
  %1789 = vst.msk [vmem:[%s1788] ss:$-319 sm:$0xc] %vm1785, %v1775
  %s1790 = scalar_lea.vmem %s1, 296
  %1791 = vst.msk [vmem:[%s1790] sm:$0x30] %vm1785, %v1775
  %s1792 = scalar_lea.vmem %s1, 1288
  %1793 = vst.msk [vmem:[%s1792] ss:$-159 sm:$0xc0] %vm1785, %v1775
  %s1794 = scalar_lea.vmem %s0, 893
  %s1795 = smov 3
  %v1796 = vld [vmem:[%s1794] ss:$-68 sm:%s1795]
  %s1797 = scalar_lea.vmem %s0, 4294967109
  %s1798 = smov 12
  %v1799 = vld [vmem:[%s1797] ss:$108 sm:%s1798]
  %vm1800 = vcmask 1043458
  %v1801 = vsel %vm1800, %v1799, %v1796
  %s1802 = scalar_lea.vmem %s0, 893
  %s1803 = smov 48
  %v1804 = vld [vmem:[%s1802] ss:$-164 sm:%s1803]
  %vm1805 = vcmask 1045508
  %v1806 = vsel %vm1805, %v1804, %v1801
  %s1807 = scalar_lea.vmem %s0, 4294966821
  %s1808 = smov 192
  %v1809 = vld [vmem:[%s1807] ss:$108 sm:%s1808]
  %vm1810 = vcmask 1047558
  %v1811 = vsel %vm1810, %v1809, %v1806
  %s1812 = scalar_lea.vmem %s0, 985
  %s1813 = smov 3
  %v1814 = vld [vmem:[%s1812] ss:$-348 sm:%s1813]
  %s1815 = scalar_lea.vmem %s0, 1361
  %s1816 = smov 12
  %v1817 = vld [vmem:[%s1815] ss:$-172 sm:%s1816]
  %vm1818 = vcmask 1043458
  %v1819 = vsel %vm1818, %v1817, %v1814
  %s1820 = scalar_lea.vmem %s0, 793
  %s1821 = smov 48
  %v1822 = vld [vmem:[%s1820] ss:$-72 sm:%s1821]
  %vm1823 = vcmask 1045508
  %v1824 = vsel %vm1823, %v1822, %v1819
  %s1825 = scalar_lea.vmem %s0, 897
  %s1826 = smov 192
  %v1827 = vld [vmem:[%s1825] ss:$-76 sm:%s1826]
  %vm1828 = vcmask 1047558
  %v1829 = vsel %vm1828, %v1827, %v1824
  %vm1830 = vcmask 261120
  %v1831 = vsel %vm1830, %v1829, %v1811
  %1832 = vrot.lane.b32.xlu0 %v1831, 96
  %v1833 = vpop.permute.xlu0 %1832
  %vm1834 = vcmask 523264
  %s1835 = scalar_lea.vmem %s1, 822
  %1836 = vst.msk [vmem:[%s1835] ss:$-63 sm:$0x3] %vm1834, %v1833
  %s1837 = scalar_lea.vmem %s1, 4294967126
  %1838 = vst.msk [vmem:[%s1837] ss:$97 sm:$0x1c] %vm1834, %v1833
  %s1839 = scalar_lea.vmem %s1, 4294966870
  %1840 = vst.msk [vmem:[%s1839] ss:$97 sm:$0xe0] %vm1834, %v1833
  %vm1841 = vcmask 1048320
  %s1842 = scalar_lea.vmem %s1, 904
  %1843 = vst.msk [vmem:[%s1842] ss:$-319 sm:$0x3] %vm1841, %v1833
  %s1844 = scalar_lea.vmem %s1, 1256
  %1845 = vst.msk [vmem:[%s1844] ss:$-159 sm:$0xc] %vm1841, %v1833
  %s1846 = scalar_lea.vmem %s1, 712
  %1847 = vst.msk [vmem:[%s1846] ss:$-63 sm:$0x30] %vm1841, %v1833
  %s1848 = scalar_lea.vmem %s1, 776
  %1849 = vst.msk [vmem:[%s1848] ss:$-63 sm:$0xc0] %vm1841, %v1833
  %s1850 = scalar_lea.vmem %s0, 1165
  %s1851 = smov 3
  %v1852 = vld [vmem:[%s1850] ss:$-164 sm:%s1851]
  %s1853 = scalar_lea.vmem %s0, 4294967285
  %s1854 = smov 12
  %v1855 = vld [vmem:[%s1853] ss:$108 sm:%s1854]
  %vm1856 = vcmask 1043458
  %v1857 = vsel %vm1856, %v1855, %v1852
  %s1858 = scalar_lea.vmem %s0, 685
  %s1859 = smov 48
  %v1860 = vld [vmem:[%s1858] ss:$-68 sm:%s1859]
  %vm1861 = vcmask 1045508
  %v1862 = vsel %vm1861, %v1860, %v1857
  %s1863 = scalar_lea.vmem %s0, 4294967269
  %s1864 = smov 192
  %v1865 = vld [vmem:[%s1863] ss:$108 sm:%s1864]
  %vm1866 = vcmask 1047558
  %v1867 = vsel %vm1866, %v1865, %v1862
  %s1868 = scalar_lea.vmem %s0, 1077
  %s1869 = smov 3
  %v1870 = vld [vmem:[%s1868] ss:$-340 sm:%s1869]
  %s1871 = scalar_lea.vmem %s0, 1689
  %s1872 = smov 12
  %v1873 = vld [vmem:[%s1871] ss:$-248 sm:%s1872]
  %vm1874 = vcmask 1043458
  %v1875 = vsel %vm1874, %v1873, %v1870
  %s1876 = scalar_lea.vmem %s0, 565
  %s1877 = smov 48
  %v1878 = vld [vmem:[%s1876] ss:$8 sm:%s1877]
  %vm1879 = vcmask 1045508
  %v1880 = vsel %vm1879, %v1878, %v1875
  %s1881 = scalar_lea.vmem %s0, 941
  %s1882 = smov 192
  %v1883 = vld [vmem:[%s1881] ss:$-68 sm:%s1882]
  %vm1884 = vcmask 1047558
  %v1885 = vsel %vm1884, %v1883, %v1880
  %vm1886 = vcmask 261120
  %v1887 = vsel %vm1886, %v1885, %v1867
  %1888 = vrot.lane.b32.xlu0 %v1887, 96
  %v1889 = vpop.permute.xlu0 %1888
  %vm1890 = vcmask 523264
  %s1891 = scalar_lea.vmem %s1, 1078
  %1892 = vst.msk [vmem:[%s1891] ss:$-159 sm:$0x3] %vm1890, %v1889
  %s1893 = scalar_lea.vmem %s1, 4294967286
  %1894 = vst.msk [vmem:[%s1893] ss:$97 sm:$0x1c] %vm1890, %v1889
  %s1895 = scalar_lea.vmem %s1, 4294966326
  %1896 = vst.msk [vmem:[%s1895] ss:$257 sm:$0x60] %vm1890, %v1889
  %s1897 = scalar_lea.vmem %s1, 662
  %1898 = vst.msk [vmem:[%s1897] sm:$0x80] %vm1890, %v1889
  %vm1899 = vcmask 1048320
  %s1900 = scalar_lea.vmem %s1, 1000
  %1901 = vst.msk [vmem:[%s1900] ss:$-319 sm:$0x3] %vm1899, %v1889
  %s1902 = scalar_lea.vmem %s1, 1544
  %1903 = vst.msk [vmem:[%s1902] ss:$-223 sm:$0xc] %vm1899, %v1889
  %s1904 = scalar_lea.vmem %s1, 552
  %1905 = vst.msk [vmem:[%s1904] sm:$0x30] %vm1899, %v1889
  %s1906 = scalar_lea.vmem %s1, 872
  %1907 = vst.msk [vmem:[%s1906] ss:$-63 sm:$0xc0] %vm1899, %v1889
  %s1908 = scalar_lea.vmem %s0, 1341
  %s1909 = smov 3
  %v1910 = vld [vmem:[%s1908] ss:$-68 sm:%s1909]
  %s1911 = scalar_lea.vmem %s0, 261
  %s1912 = smov 12
  %v1913 = vld [vmem:[%s1911] ss:$108 sm:%s1912]
  %vm1914 = vcmask 1043458
  %v1915 = vsel %vm1914, %v1913, %v1910
  %s1916 = scalar_lea.vmem %s0, 1341
  %s1917 = smov 48
  %v1918 = vld [vmem:[%s1916] ss:$-164 sm:%s1917]
  %vm1919 = vcmask 1045508
  %v1920 = vsel %vm1919, %v1918, %v1915
  %s1921 = scalar_lea.vmem %s0, 421
  %s1922 = smov 192
  %v1923 = vld [vmem:[%s1921] ss:$108 sm:%s1922]
  %vm1924 = vcmask 1047558
  %v1925 = vsel %vm1924, %v1923, %v1920
  %s1926 = scalar_lea.vmem %s0, 1257
  %s1927 = smov 3
  %v1928 = vld [vmem:[%s1926] ss:$-348 sm:%s1927]
  %s1929 = scalar_lea.vmem %s0, 1269
  %s1930 = smov 12
  %v1931 = vld [vmem:[%s1929] ss:$8 sm:%s1930]
  %vm1932 = vcmask 1043458
  %v1933 = vsel %vm1932, %v1931, %v1928
  %s1934 = scalar_lea.vmem %s0, 1045
  %s1935 = smov 48
  %v1936 = vld [vmem:[%s1934] ss:$-68 sm:%s1935]
  %vm1937 = vcmask 1045508
  %v1938 = vsel %vm1937, %v1936, %v1933
  %s1939 = scalar_lea.vmem %s0, 1745
  %s1940 = smov 192
  %v1941 = vld [vmem:[%s1939] ss:$-172 sm:%s1940]
  %vm1942 = vcmask 1047558
  %v1943 = vsel %vm1942, %v1941, %v1938
  %vm1944 = vcmask 261120
  %v1945 = vsel %vm1944, %v1943, %v1925
  %1946 = vrot.lane.b32.xlu0 %v1945, 96
  %v1947 = vpop.permute.xlu0 %1946
  %vm1948 = vcmask 523264
  %s1949 = scalar_lea.vmem %s1, 1238
  %1950 = vst.msk [vmem:[%s1949] ss:$-63 sm:$0x3] %vm1948, %v1947
  %s1951 = scalar_lea.vmem %s1, 246
  %1952 = vst.msk [vmem:[%s1951] ss:$97 sm:$0x1c] %vm1948, %v1947
  %s1953 = scalar_lea.vmem %s1, 4294965206
  %1954 = vst.msk [vmem:[%s1953] ss:$513 sm:$0x60] %vm1948, %v1947
  %s1955 = scalar_lea.vmem %s1, 1078
  %1956 = vst.msk [vmem:[%s1955] sm:$0x80] %vm1948, %v1947
  %vm1957 = vcmask 1048320
  %s1958 = scalar_lea.vmem %s1, 1160
  %1959 = vst.msk [vmem:[%s1958] ss:$-319 sm:$0x3] %vm1957, %v1947
  %s1960 = scalar_lea.vmem %s1, 1192
  %1961 = vst.msk [vmem:[%s1960] sm:$0xc] %vm1957, %v1947
  %s1962 = scalar_lea.vmem %s1, 968
  %1963 = vst.msk [vmem:[%s1962] ss:$-63 sm:$0x30] %vm1957, %v1947
  %s1964 = scalar_lea.vmem %s1, 1608
  %1965 = vst.msk [vmem:[%s1964] ss:$-159 sm:$0xc0] %vm1957, %v1947
  %s1966 = scalar_lea.vmem %s0, 653
  %s1967 = smov 3
  %v1968 = vld [vmem:[%s1966] ss:$108 sm:%s1967]
  %s1969 = scalar_lea.vmem %s0, 997
  %s1970 = smov 12
  %v1971 = vld [vmem:[%s1969] ss:$-68 sm:%s1970]
  %vm1972 = vcmask 1043458
  %v1973 = vsel %vm1972, %v1971, %v1968
  %s1974 = scalar_lea.vmem %s0, 381
  %s1975 = smov 48
  %v1976 = vld [vmem:[%s1974] ss:$-68 sm:%s1975]
  %vm1977 = vcmask 1045508
  %v1978 = vsel %vm1977, %v1976, %v1973
  %s1979 = scalar_lea.vmem %s0, 277
  %s1980 = smov 192
  %v1981 = vld [vmem:[%s1979] ss:$108 sm:%s1980]
  %vm1982 = vcmask 1047558
  %v1983 = vsel %vm1982, %v1981, %v1978
  %s1984 = scalar_lea.vmem %s0, 1009
  %s1985 = smov 3
  %v1986 = vld [vmem:[%s1984] ss:$-56 sm:%s1985]
  %s1987 = scalar_lea.vmem %s0, 733
  %s1988 = smov 12
  %v1989 = vld [vmem:[%s1987] ss:$24 sm:%s1988]
  %vm1990 = vcmask 1043458
  %v1991 = vsel %vm1990, %v1989, %v1986
  %s1992 = scalar_lea.vmem %s0, 3105
  %s1993 = smov 48
  %v1994 = vld [vmem:[%s1992] ss:$-616 sm:%s1993]
  %vm1995 = vcmask 1045508
  %v1996 = vsel %vm1995, %v1994, %v1991
  %s1997 = scalar_lea.vmem %s0, 557
  %s1998 = smov 192
  %v1999 = vld [vmem:[%s1997] ss:$-72 sm:%s1998]
  %vm2000 = vcmask 1047558
  %v2001 = vsel %vm2000, %v1999, %v1996
  %vm2002 = vcmask 261120
  %v2003 = vsel %vm2002, %v2001, %v1983
  %2004 = vrot.lane.b32.xlu0 %v2003, 96
  %v2005 = vpop.permute.xlu0 %2004
  %vm2006 = vcmask 523264
  %s2007 = scalar_lea.vmem %s1, 600
  %2008 = vst.msk [vmem:[%s2007] ss:$97 sm:$0x7] %vm2006, %v2005
  %s2009 = scalar_lea.vmem %s1, 2642
  %2010 = vst.msk [vmem:[%s2009] ss:$-637 sm:$0x18] %vm2006, %v2005
  %s2011 = scalar_lea.vmem %s1, 4294963202
  %2012 = vst.msk [vmem:[%s2011] ss:$825 sm:$0x60] %vm2006, %v2005
  %s2013 = scalar_lea.vmem %s1, 946
  %2014 = vst.msk [vmem:[%s2013] sm:$0x80] %vm2006, %v2005
  %vm2015 = vcmask 1048320
  %s2016 = scalar_lea.vmem %s1, 937
  %2017 = vst.msk [vmem:[%s2016] ss:$-61 sm:$0x3] %vm2015, %v2005
  %s2018 = scalar_lea.vmem %s1, 651
  %2019 = vst.msk [vmem:[%s2018] ss:$33 sm:$0xc] %vm2015, %v2005
  %s2020 = scalar_lea.vmem %s1, 2891
  %2021 = vst.msk [vmem:[%s2020] ss:$-575 sm:$0x30] %vm2015, %v2005
  %s2022 = scalar_lea.vmem %s1, 491
  %2023 = vst.msk [vmem:[%s2022] ss:$-63 sm:$0xc0] %vm2015, %v2005
  %s2024 = scalar_lea.vmem %s0, 1101
  %s2025 = smov 3
  %v2026 = vld [vmem:[%s2024] ss:$108 sm:%s2025]
  %s2027 = scalar_lea.vmem %s0, 1461
  %s2028 = smov 12
  %v2029 = vld [vmem:[%s2027] ss:$-164 sm:%s2028]
  %vm2030 = vcmask 1043458
  %v2031 = vsel %vm2030, %v2029, %v2026
  %s2032 = scalar_lea.vmem %s0, 1037
  %s2033 = smov 48
  %v2034 = vld [vmem:[%s2032] ss:$-164 sm:%s2033]
  %vm2035 = vcmask 1045508
  %v2036 = vsel %vm2035, %v2034, %v2031
  %s2037 = scalar_lea.vmem %s0, 1717
  %s2038 = smov 192
  %v2039 = vld [vmem:[%s2037] ss:$-68 sm:%s2038]
  %vm2040 = vcmask 1047558
  %v2041 = vsel %vm2040, %v2039, %v2036
  %s2042 = scalar_lea.vmem %s0, 1085
  %s2043 = smov 3
  %v2044 = vld [vmem:[%s2042] ss:$-40 sm:%s2043]
  %s2045 = scalar_lea.vmem %s0, 865
  %s2046 = smov 12
  %v2047 = vld [vmem:[%s2045] ss:$8 sm:%s2046]
  %vm2048 = vcmask 1043458
  %v2049 = vsel %vm2048, %v2047, %v2044
  %s2050 = scalar_lea.vmem %s0, 3597
  %s2051 = smov 48
  %v2052 = vld [vmem:[%s2050] ss:$-696 sm:%s2051]
  %vm2053 = vcmask 1045508
  %v2054 = vsel %vm2053, %v2052, %v2049
  %s2055 = scalar_lea.vmem %s0, 177
  %s2056 = smov 192
  %v2057 = vld [vmem:[%s2055] ss:$8 sm:%s2056]
  %vm2058 = vcmask 1047558
  %v2059 = vsel %vm2058, %v2057, %v2054
  %vm2060 = vcmask 261120
  %v2061 = vsel %vm2060, %v2059, %v2041
  %2062 = vrot.lane.b32.xlu0 %v2061, 96
  %v2063 = vpop.permute.xlu0 %2062
  %vm2064 = vcmask 523264
  %s2065 = scalar_lea.vmem %s1, 1016
  %2066 = vst.msk [vmem:[%s2065] ss:$97 sm:$0x3] %vm2064, %v2063
  %s2067 = scalar_lea.vmem %s1, 1368
  %2068 = vst.msk [vmem:[%s2067] ss:$-159 sm:$0xc] %vm2064, %v2063
  %s2069 = scalar_lea.vmem %s1, 986
  %2070 = vst.msk [vmem:[%s2069] ss:$-159 sm:$0x30] %vm2064, %v2063
  %s2071 = scalar_lea.vmem %s1, 1588
  %2072 = vst.msk [vmem:[%s2071] ss:$-63 sm:$0xc0] %vm2064, %v2063
  %vm2073 = vcmask 1048320
  %s2074 = scalar_lea.vmem %s1, 1001
  %2075 = vst.msk [vmem:[%s2074] ss:$-29 sm:$0x3] %vm2073, %v2063
  %s2076 = scalar_lea.vmem %s1, 811
  %2077 = vst.msk [vmem:[%s2076] sm:$0xc] %vm2073, %v2063
  %s2078 = scalar_lea.vmem %s1, 3307
  %2079 = vst.msk [vmem:[%s2078] ss:$-639 sm:$0x30] %vm2073, %v2063
  %s2080 = scalar_lea.vmem %s1, 203
  %2081 = vst.msk [vmem:[%s2080] sm:$0xc0] %vm2073, %v2063
  %s2082 = scalar_lea.vmem %s0, 557
  %s2083 = smov 3
  %v2084 = vld [vmem:[%s2082] ss:$-68 sm:%s2083]
  %s2085 = scalar_lea.vmem %s0, 1157
  %s2086 = smov 12
  %v2087 = vld [vmem:[%s2085] ss:$-164 sm:%s2086]
  %vm2088 = vcmask 1043458
  %v2089 = vsel %vm2088, %v2087, %v2084
  %s2090 = scalar_lea.vmem %s0, 1277
  %s2091 = smov 48
  %v2092 = vld [vmem:[%s2090] ss:$-68 sm:%s2091]
  %vm2093 = vcmask 1045508
  %v2094 = vsel %vm2093, %v2092, %v2089
  %s2095 = scalar_lea.vmem %s0, 2261
  %s2096 = smov 192
  %v2097 = vld [vmem:[%s2095] ss:$-164 sm:%s2096]
  %vm2098 = vcmask 1047558
  %v2099 = vsel %vm2098, %v2097, %v2094
  %s2100 = scalar_lea.vmem %s0, 1185
  %s2101 = smov 3
  %v2102 = vld [vmem:[%s2100] ss:$36 sm:%s2101]
  %s2103 = scalar_lea.vmem %s0, 1197
  %s2104 = smov 12
  %v2105 = vld [vmem:[%s2103] ss:$-72 sm:%s2104]
  %vm2106 = vcmask 1043458
  %v2107 = vsel %vm2106, %v2105, %v2102
  %s2108 = scalar_lea.vmem %s0, 3761
  %s2109 = smov 48
  %v2110 = vld [vmem:[%s2108] ss:$-712 sm:%s2109]
  %vm2111 = vcmask 1045508
  %v2112 = vsel %vm2111, %v2110, %v2107
  %s2113 = scalar_lea.vmem %s0, 4294966949
  %s2114 = smov 192
  %v2115 = vld [vmem:[%s2113] ss:$108 sm:%s2114]
  %vm2116 = vcmask 1047558
  %v2117 = vsel %vm2116, %v2115, %v2112
  %vm2118 = vcmask 261120
  %v2119 = vsel %vm2118, %v2117, %v2099
  %2120 = vrot.lane.b32.xlu0 %v2119, 96
  %v2121 = vpop.permute.xlu0 %2120
  %vm2122 = vcmask 523264
  %s2123 = scalar_lea.vmem %s1, 510
  %2124 = vst.msk [vmem:[%s2123] ss:$-63 sm:$0x3] %vm2122, %v2121
  %s2125 = scalar_lea.vmem %s1, 1084
  %2126 = vst.msk [vmem:[%s2125] ss:$-159 sm:$0xc] %vm2122, %v2121
  %s2127 = scalar_lea.vmem %s1, 1178
  %2128 = vst.msk [vmem:[%s2127] ss:$-63 sm:$0x30] %vm2122, %v2121
  %s2129 = scalar_lea.vmem %s1, 2136
  %2130 = vst.msk [vmem:[%s2129] ss:$-159 sm:$0xc0] %vm2122, %v2121
  %vm2131 = vcmask 1048320
  %s2132 = scalar_lea.vmem %s1, 1097
  %2133 = vst.msk [vmem:[%s2132] ss:$35 sm:$0x3] %vm2131, %v2121
  %s2134 = scalar_lea.vmem %s1, 1099
  %2135 = vst.msk [vmem:[%s2134] ss:$-63 sm:$0x1c] %vm2131, %v2121
  %s2136 = scalar_lea.vmem %s1, 4294966987
  %2137 = vst.msk [vmem:[%s2136] ss:$97 sm:$0xe0] %vm2131, %v2121
  %s2138 = scalar_lea.vmem %s0, 241
  %s2139 = smov 3
  %v2140 = vld [vmem:[%s2138] ss:$-172 sm:%s2139]
  %s2141 = scalar_lea.vmem %s0, 4294966745
  %s2142 = smov 12
  %v2143 = vld [vmem:[%s2141] ss:$276 sm:%s2142]
  %vm2144 = vcmask 1043458
  %v2145 = vsel %vm2144, %v2143, %v2140
  %s2146 = scalar_lea.vmem %s0, 1777
  %s2147 = smov 48
  %v2148 = vld [vmem:[%s2146] ss:$-348 sm:%s2147]
  %vm2149 = vcmask 1045508
  %v2150 = vsel %vm2149, %v2148, %v2145
  %s2151 = scalar_lea.vmem %s0, 4294966841
  %s2152 = smov 192
  %v2153 = vld [vmem:[%s2151] ss:$100 sm:%s2152]
  %vm2154 = vcmask 1047558
  %v2155 = vsel %vm2154, %v2153, %v2150
  %s2156 = scalar_lea.vmem %s0, 1153
  %s2157 = smov 3
  %v2158 = vld [vmem:[%s2156] ss:$8 sm:%s2157]
  %s2159 = scalar_lea.vmem %s0, 2381
  %s2160 = smov 12
  %v2161 = vld [vmem:[%s2159] ss:$-696 sm:%s2160]
  %vm2162 = vcmask 1043458
  %v2163 = vsel %vm2162, %v2161, %v2158
  %s2164 = scalar_lea.vmem %s0, 1
  %s2165 = smov 48
  %v2166 = vld [vmem:[%s2164] ss:$100 sm:%s2165]
  %vm2167 = vcmask 1045508
  %v2168 = vsel %vm2167, %v2166, %v2163
  %s2169 = scalar_lea.vmem %s0, 4294966709
  %s2170 = smov 192
  %v2171 = vld [vmem:[%s2169] ss:$108 sm:%s2170]
  %vm2172 = vcmask 1047558
  %v2173 = vsel %vm2172, %v2171, %v2168
  %vm2174 = vcmask 261120
  %v2175 = vsel %vm2174, %v2173, %v2155
  %2176 = vrot.lane.b32.xlu0 %v2175, 96
  %v2177 = vpop.permute.xlu0 %2176
  %vm2178 = vcmask 785408
  %s2179 = scalar_lea.vmem %s1, 224
  %2180 = vst.msk [vmem:[%s2179] ss:$-159 sm:$0x3] %vm2178, %v2177
  %s2181 = scalar_lea.vmem %s1, 4294966784
  %2182 = vst.msk [vmem:[%s2181] ss:$257 sm:$0xc] %vm2178, %v2177
  %s2183 = scalar_lea.vmem %s1, 1632
  %2184 = vst.msk [vmem:[%s2183] ss:$-319 sm:$0x30] %vm2178, %v2177
  %s2185 = scalar_lea.vmem %s1, 4294966848
  %2186 = vst.msk [vmem:[%s2185] ss:$97 sm:$0xc0] %vm2178, %v2177
  %vm2187 = vcmask 1048320
  %s2188 = scalar_lea.vmem %s1, 1069
  %2189 = vst.msk [vmem:[%s2188] sm:$0x3] %vm2187, %v2177
  %s2190 = scalar_lea.vmem %s1, 2189
  %2191 = vst.msk [vmem:[%s2190] ss:$-639 sm:$0xc] %vm2187, %v2177
  %s2192 = scalar_lea.vmem %s1, 4294967277
  %2193 = vst.msk [vmem:[%s2192] ss:$97 sm:$0x30] %vm2187, %v2177
  %s2194 = scalar_lea.vmem %s1, 4294966765
  %2195 = vst.msk [vmem:[%s2194] ss:$97 sm:$0xc0] %vm2187, %v2177
  %s2196 = scalar_lea.vmem %s0, 417
  %s2197 = smov 3
  %v2198 = vld [vmem:[%s2196] ss:$-76 sm:%s2197]
  %s2199 = scalar_lea.vmem %s0, 4294966377
  %s2200 = smov 12
  %v2201 = vld [vmem:[%s2199] ss:$548 sm:%s2200]
  %vm2202 = vcmask 1043458
  %v2203 = vsel %vm2202, %v2201, %v2198
  %s2204 = scalar_lea.vmem %s0, 3313
  %s2205 = smov 48
  %v2206 = vld [vmem:[%s2204] ss:$-620 sm:%s2205]
  %vm2207 = vcmask 1045508
  %v2208 = vsel %vm2207, %v2206, %v2203
  %s2209 = scalar_lea.vmem %s0, 4294967017
  %s2210 = smov 192
  %v2211 = vld [vmem:[%s2209] ss:$100 sm:%s2210]
  %vm2212 = vcmask 1047558
  %v2213 = vsel %vm2212, %v2211, %v2208
  %s2214 = scalar_lea.vmem %s0, 1229
  %s2215 = smov 3
  %v2216 = vld [vmem:[%s2214] ss:$24 sm:%s2215]
  %s2217 = scalar_lea.vmem %s0, 2321
  %s2218 = smov 12
  %v2219 = vld [vmem:[%s2217] ss:$-616 sm:%s2218]
  %vm2220 = vcmask 1043458
  %v2221 = vsel %vm2220, %v2219, %v2216
  %s2222 = scalar_lea.vmem %s0, 141
  %s2223 = smov 48
  %v2224 = vld [vmem:[%s2222] ss:$108 sm:%s2223]
  %vm2225 = vcmask 1045508
  %v2226 = vsel %vm2225, %v2224, %v2221
  %s2227 = scalar_lea.vmem %s0, 4294966857
  %s2228 = smov 192
  %v2229 = vld [vmem:[%s2227] ss:$100 sm:%s2228]
  %vm2230 = vcmask 1047558
  %v2231 = vsel %vm2230, %v2229, %v2226
  %vm2232 = vcmask 261120
  %v2233 = vsel %vm2232, %v2231, %v2213
  %2234 = vrot.lane.b32.xlu0 %v2233, 96
  %v2235 = vpop.permute.xlu0 %2234
  %vm2236 = vcmask 785408
  %s2237 = scalar_lea.vmem %s1, 384
  %2238 = vst.msk [vmem:[%s2237] ss:$-63 sm:$0x3] %vm2236, %v2235
  %s2239 = scalar_lea.vmem %s1, 4294966432
  %2240 = vst.msk [vmem:[%s2239] ss:$513 sm:$0xc] %vm2236, %v2235
  %s2241 = scalar_lea.vmem %s1, 3072
  %2242 = vst.msk [vmem:[%s2241] ss:$-575 sm:$0x30] %vm2236, %v2235
  %s2243 = scalar_lea.vmem %s1, 4294967008
  %2244 = vst.msk [vmem:[%s2243] ss:$97 sm:$0xc0] %vm2236, %v2235
  %vm2245 = vcmask 1048320
  %s2246 = scalar_lea.vmem %s1, 1133
  %2247 = vst.msk [vmem:[%s2246] ss:$33 sm:$0x3] %vm2245, %v2235
  %s2248 = scalar_lea.vmem %s1, 2157
  %2249 = vst.msk [vmem:[%s2248] ss:$-575 sm:$0xc] %vm2245, %v2235
  %s2250 = scalar_lea.vmem %s1, 141
  %2251 = vst.msk [vmem:[%s2250] ss:$97 sm:$0x30] %vm2245, %v2235
  %s2252 = scalar_lea.vmem %s1, 4294966861
  %2253 = vst.msk [vmem:[%s2252] ss:$97 sm:$0xc0] %vm2245, %v2235
  %s2254 = scalar_lea.vmem %s0, 689
  %s2255 = smov 3
  %v2256 = vld [vmem:[%s2254] ss:$-172 sm:%s2255]
  %s2257 = scalar_lea.vmem %s0, 4294966297
  %s2258 = smov 12
  %v2259 = vld [vmem:[%s2257] ss:$724 sm:%s2258]
  %vm2260 = vcmask 1043458
  %v2261 = vsel %vm2260, %v2259, %v2256
  %s2262 = scalar_lea.vmem %s0, 4465
  %s2263 = smov 48
  %v2264 = vld [vmem:[%s2262] ss:$-796 sm:%s2263]
  %vm2265 = vcmask 1045508
  %v2266 = vsel %vm2265, %v2264, %v2261
  %s2267 = scalar_lea.vmem %s0, 4294967289
  %s2268 = smov 192
  %v2269 = vld [vmem:[%s2267] ss:$100 sm:%s2268]
  %vm2270 = vcmask 1047558
  %v2271 = vsel %vm2270, %v2269, %v2266
  %s2272 = scalar_lea.vmem %s0, 1329
  %s2273 = smov 3
  %v2274 = vld [vmem:[%s2272] ss:$8 sm:%s2273]
  %s2275 = scalar_lea.vmem %s0, 2653
  %s2276 = smov 12
  %v2277 = vld [vmem:[%s2275] ss:$-696 sm:%s2276]
  %vm2278 = vcmask 1043458
  %v2279 = vsel %vm2278, %v2277, %v2274
  %s2280 = scalar_lea.vmem %s0, 4294967233
  %s2281 = smov 48
  %v2282 = vld [vmem:[%s2280] ss:$184 sm:%s2281]
  %vm2283 = vcmask 1045508
  %v2284 = vsel %vm2283, %v2282, %v2279
  %s2285 = scalar_lea.vmem %s0, 941
  %s2286 = smov 192
  %v2287 = vld [vmem:[%s2285] ss:$-72 sm:%s2286]
  %vm2288 = vcmask 1047558
  %v2289 = vsel %vm2288, %v2287, %v2284
  %vm2290 = vcmask 261120
  %v2291 = vsel %vm2290, %v2289, %v2271
  %2292 = vrot.lane.b32.xlu0 %v2291, 96
  %v2293 = vpop.permute.xlu0 %2292
  %vm2294 = vcmask 785408
  %s2295 = scalar_lea.vmem %s1, 640
  %2296 = vst.msk [vmem:[%s2295] ss:$-159 sm:$0x3] %vm2294, %v2293
  %s2297 = scalar_lea.vmem %s1, 4294966368
  %2298 = vst.msk [vmem:[%s2297] ss:$673 sm:$0xc] %vm2294, %v2293
  %s2299 = scalar_lea.vmem %s1, 4128
  %2300 = vst.msk [vmem:[%s2299] ss:$-735 sm:$0x30] %vm2294, %v2293
  %s2301 = scalar_lea.vmem %s1, 4294967264
  %2302 = vst.msk [vmem:[%s2301] ss:$97 sm:$0xc0] %vm2294, %v2293
  %vm2303 = vcmask 1048320
  %s2304 = scalar_lea.vmem %s1, 1229
  %2305 = vst.msk [vmem:[%s2304] sm:$0x3] %vm2303, %v2293
  %s2306 = scalar_lea.vmem %s1, 2445
  %2307 = vst.msk [vmem:[%s2306] ss:$-639 sm:$0xc] %vm2303, %v2293
  %s2308 = scalar_lea.vmem %s1, 4294967277
  %2309 = vst.msk [vmem:[%s2308] ss:$161 sm:$0x30] %vm2303, %v2293
  %s2310 = scalar_lea.vmem %s1, 845
  %2311 = vst.msk [vmem:[%s2310] ss:$-63 sm:$0xc0] %vm2303, %v2293
  %s2312 = scalar_lea.vmem %s0, 865
  %s2313 = smov 3
  %v2314 = vld [vmem:[%s2312] ss:$-76 sm:%s2313]
  %s2315 = scalar_lea.vmem %s0, 553
  %s2316 = smov 12
  %v2317 = vld [vmem:[%s2315] ss:$36 sm:%s2316]
  %vm2318 = vcmask 1043458
  %v2319 = vsel %vm2318, %v2317, %v2314
  %s2320 = scalar_lea.vmem %s0, 369
  %s2321 = smov 48
  %v2322 = vld [vmem:[%s2320] ss:$100 sm:%s2321]
  %vm2323 = vcmask 1045508
  %v2324 = vsel %vm2323, %v2322, %v2319
  %s2325 = scalar_lea.vmem %s0, 537
  %s2326 = smov 192
  %v2327 = vld [vmem:[%s2325] ss:$-76 sm:%s2326]
  %vm2328 = vcmask 1047558
  %v2329 = vsel %vm2328, %v2327, %v2324
  %s2330 = scalar_lea.vmem %s0, 649
  %s2331 = smov 3
  %v2332 = vld [vmem:[%s2330] ss:$100 sm:%s2331]
  %s2333 = scalar_lea.vmem %s0, 1629
  %s2334 = smov 12
  %v2335 = vld [vmem:[%s2333] ss:$-340 sm:%s2334]
  %vm2336 = vcmask 1043458
  %v2337 = vsel %vm2336, %v2335, %v2332
  %s2338 = scalar_lea.vmem %s0, 2697
  %s2339 = smov 48
  %v2340 = vld [vmem:[%s2338] ss:$-520 sm:%s2339]
  %vm2341 = vcmask 1045508
  %v2342 = vsel %vm2341, %v2340, %v2337
  %s2343 = scalar_lea.vmem %s0, 4294967269
  %s2344 = smov 192
  %v2345 = vld [vmem:[%s2343] ss:$8 sm:%s2344]
  %vm2346 = vcmask 1047558
  %v2347 = vsel %vm2346, %v2345, %v2342
  %vm2348 = vcmask 261120
  %v2349 = vsel %vm2348, %v2347, %v2329
  %2350 = vrot.lane.b32.xlu0 %v2349, 96
  %v2351 = vpop.permute.xlu0 %2350
  %vm2352 = vcmask 785408
  %s2353 = scalar_lea.vmem %s1, 800
  %2354 = vst.msk [vmem:[%s2353] ss:$-63 sm:$0x3] %vm2352, %v2351
  %s2355 = scalar_lea.vmem %s1, 508
  %2356 = vst.msk [vmem:[%s2355] ss:$35 sm:$0xc] %vm2352, %v2351
  %s2357 = scalar_lea.vmem %s1, 322
  %2358 = vst.msk [vmem:[%s2357] ss:$97 sm:$0x30] %vm2352, %v2351
  %s2359 = scalar_lea.vmem %s1, 450
  %2360 = vst.msk [vmem:[%s2359] ss:$-63 sm:$0xc0] %vm2352, %v2351
  %vm2361 = vcmask 1048320
  %s2362 = scalar_lea.vmem %s1, 592
  %2363 = vst.msk [vmem:[%s2362] ss:$97 sm:$0x3] %vm2361, %v2351
  %s2364 = scalar_lea.vmem %s1, 1520
  %2365 = vst.msk [vmem:[%s2364] ss:$-319 sm:$0xc] %vm2361, %v2351
  %s2366 = scalar_lea.vmem %s1, 2480
  %2367 = vst.msk [vmem:[%s2366] ss:$-479 sm:$0x30] %vm2361, %v2351
  %s2368 = scalar_lea.vmem %s1, 16
  %2369 = vst.msk [vmem:[%s2368] sm:$0xc0] %vm2361, %v2351
  %s2370 = scalar_lea.vmem %s0, 1137
  %s2371 = smov 3
  %v2372 = vld [vmem:[%s2370] ss:$-172 sm:%s2371]
  %s2373 = scalar_lea.vmem %s0, 825
  %s2374 = smov 12
  %v2375 = vld [vmem:[%s2373] ss:$36 sm:%s2374]
  %vm2376 = vcmask 1043458
  %v2377 = vsel %vm2376, %v2375, %v2372
  %s2378 = scalar_lea.vmem %s0, 641
  %s2379 = smov 48
  %v2380 = vld [vmem:[%s2378] ss:$100 sm:%s2379]
  %vm2381 = vcmask 1045508
  %v2382 = vsel %vm2381, %v2380, %v2377
  %s2383 = scalar_lea.vmem %s0, 1385
  %s2384 = smov 192
  %v2385 = vld [vmem:[%s2383] ss:$-172 sm:%s2384]
  %vm2386 = vcmask 1047558
  %v2387 = vsel %vm2386, %v2385, %v2382
  %s2388 = scalar_lea.vmem %s0, 741
  %s2389 = smov 3
  %v2390 = vld [vmem:[%s2388] ss:$108 sm:%s2389]
  %s2391 = scalar_lea.vmem %s0, 1473
  %s2392 = smov 12
  %v2393 = vld [vmem:[%s2391] ss:$-172 sm:%s2392]
  %vm2394 = vcmask 1043458
  %v2395 = vsel %vm2394, %v2393, %v2390
  %s2396 = scalar_lea.vmem %s0, 2469
  %s2397 = smov 48
  %v2398 = vld [vmem:[%s2396] ss:$-440 sm:%s2397]
  %vm2399 = vcmask 1045508
  %v2400 = vsel %vm2399, %v2398, %v2395
  %s2401 = scalar_lea.vmem %s0, 4294967257
  %s2402 = smov 192
  %v2403 = vld [vmem:[%s2401] ss:$24 sm:%s2402]
  %vm2404 = vcmask 1047558
  %v2405 = vsel %vm2404, %v2403, %v2400
  %vm2406 = vcmask 261120
  %v2407 = vsel %vm2406, %v2405, %v2387
  %2408 = vrot.lane.b32.xlu0 %v2407, 96
  %v2409 = vpop.permute.xlu0 %2408
  %vm2410 = vcmask 785408
  %s2411 = scalar_lea.vmem %s1, 1056
  %2412 = vst.msk [vmem:[%s2411] ss:$-159 sm:$0x3] %vm2410, %v2409
  %s2413 = scalar_lea.vmem %s1, 764
  %2414 = vst.msk [vmem:[%s2413] ss:$35 sm:$0xc] %vm2410, %v2409
  %s2415 = scalar_lea.vmem %s1, 578
  %2416 = vst.msk [vmem:[%s2415] ss:$97 sm:$0x30] %vm2410, %v2409
  %s2417 = scalar_lea.vmem %s1, 1282
  %2418 = vst.msk [vmem:[%s2417] ss:$-159 sm:$0xc0] %vm2410, %v2409
  %vm2419 = vcmask 1048320
  %s2420 = scalar_lea.vmem %s1, 688
  %2421 = vst.msk [vmem:[%s2420] ss:$97 sm:$0x3] %vm2419, %v2409
  %s2422 = scalar_lea.vmem %s1, 1360
  %2423 = vst.msk [vmem:[%s2422] ss:$-159 sm:$0xc] %vm2419, %v2409
  %s2424 = scalar_lea.vmem %s1, 2320
  %2425 = vst.msk [vmem:[%s2424] ss:$-415 sm:$0x30] %vm2419, %v2409
  %s2426 = scalar_lea.vmem %s1, 4294967184
  %2427 = vst.msk [vmem:[%s2426] ss:$33 sm:$0xc0] %vm2419, %v2409
  %s2428 = scalar_lea.vmem %s0, 1313
  %s2429 = smov 3
  %v2430 = vld [vmem:[%s2428] ss:$-76 sm:%s2429]
  %s2431 = scalar_lea.vmem %s0, 1001
  %s2432 = smov 12
  %v2433 = vld [vmem:[%s2431] ss:$36 sm:%s2432]
  %vm2434 = vcmask 1043458
  %v2435 = vsel %vm2434, %v2433, %v2430
  %s2436 = scalar_lea.vmem %s0, 817
  %s2437 = smov 48
  %v2438 = vld [vmem:[%s2436] ss:$100 sm:%s2437]
  %vm2439 = vcmask 1045508
  %v2440 = vsel %vm2439, %v2438, %v2435
  %s2441 = scalar_lea.vmem %s0, 985
  %s2442 = smov 192
  %v2443 = vld [vmem:[%s2441] ss:$-76 sm:%s2442]
  %vm2444 = vcmask 1047558
  %v2445 = vsel %vm2444, %v2443, %v2440
  %s2446 = scalar_lea.vmem %s0, 921
  %s2447 = smov 3
  %v2448 = vld [vmem:[%s2446] ss:$100 sm:%s2447]
  %s2449 = scalar_lea.vmem %s0, 1801
  %s2450 = smov 12
  %v2451 = vld [vmem:[%s2449] ss:$-248 sm:%s2450]
  %vm2452 = vcmask 1043458
  %v2453 = vsel %vm2452, %v2451, %v2448
  %s2454 = scalar_lea.vmem %s0, 2949
  %s2455 = smov 48
  %v2456 = vld [vmem:[%s2454] ss:$-516 sm:%s2455]
  %vm2457 = vcmask 1045508
  %v2458 = vsel %vm2457, %v2456, %v2453
  %s2459 = scalar_lea.vmem %s0, 149
  %s2460 = smov 192
  %v2461 = vld [vmem:[%s2459] ss:$8 sm:%s2460]
  %vm2462 = vcmask 1047558
  %v2463 = vsel %vm2462, %v2461, %v2458
  %vm2464 = vcmask 261120
  %v2465 = vsel %vm2464, %v2463, %v2445
  %2466 = vrot.lane.b32.xlu0 %v2465, 96
  %v2467 = vpop.permute.xlu0 %2466
  %vm2468 = vcmask 785408
  %s2469 = scalar_lea.vmem %s1, 1216
  %2470 = vst.msk [vmem:[%s2469] ss:$-63 sm:$0x3] %vm2468, %v2467
  %s2471 = scalar_lea.vmem %s1, 924
  %2472 = vst.msk [vmem:[%s2471] ss:$35 sm:$0xc] %vm2468, %v2467
  %s2473 = scalar_lea.vmem %s1, 738
  %2474 = vst.msk [vmem:[%s2473] ss:$97 sm:$0x30] %vm2468, %v2467
  %s2475 = scalar_lea.vmem %s1, 866
  %2476 = vst.msk [vmem:[%s2475] ss:$-63 sm:$0xc0] %vm2468, %v2467
  %vm2477 = vcmask 1048320
  %s2478 = scalar_lea.vmem %s1, 848
  %2479 = vst.msk [vmem:[%s2478] ss:$97 sm:$0x3] %vm2477, %v2467
  %s2480 = scalar_lea.vmem %s1, 1648
  %2481 = vst.msk [vmem:[%s2480] ss:$-223 sm:$0xc] %vm2477, %v2467
  %s2482 = scalar_lea.vmem %s1, 2736
  %2483 = vst.msk [vmem:[%s2482] ss:$-479 sm:$0x30] %vm2477, %v2467
  %s2484 = scalar_lea.vmem %s1, 176
  %2485 = vst.msk [vmem:[%s2484] sm:$0xc0] %vm2477, %v2467
  %s2486 = scalar_lea.vmem %s0, 801
  %s2487 = smov 3
  %v2488 = vld [vmem:[%s2486] ss:$-172 sm:%s2487]
  %s2489 = scalar_lea.vmem %s0, 4294966857
  %s2490 = smov 12
  %v2491 = vld [vmem:[%s2489] ss:$276 sm:%s2490]
  %vm2492 = vcmask 1043458
  %v2493 = vsel %vm2492, %v2491, %v2488
  %s2494 = scalar_lea.vmem %s0, 4294966945
  %s2495 = smov 48
  %v2496 = vld [vmem:[%s2494] ss:$100 sm:%s2495]
  %vm2497 = vcmask 1045508
  %v2498 = vsel %vm2497, %v2496, %v2493
  %s2499 = scalar_lea.vmem %s0, 1289
  %s2500 = smov 192
  %v2501 = vld [vmem:[%s2499] ss:$-172 sm:%s2500]
  %vm2502 = vcmask 1047558
  %v2503 = vsel %vm2502, %v2501, %v2498
  %s2504 = scalar_lea.vmem %s0, 1013
  %s2505 = smov 3
  %v2506 = vld [vmem:[%s2504] ss:$108 sm:%s2505]
  %s2507 = scalar_lea.vmem %s0, 2305
  %s2508 = smov 12
  %v2509 = vld [vmem:[%s2507] ss:$-620 sm:%s2508]
  %vm2510 = vcmask 1043458
  %v2511 = vsel %vm2510, %v2509, %v2506
  %s2512 = scalar_lea.vmem %s0, 665
  %s2513 = smov 48
  %v2514 = vld [vmem:[%s2512] ss:$-72 sm:%s2513]
  %vm2515 = vcmask 1045508
  %v2516 = vsel %vm2515, %v2514, %v2511
  %s2517 = scalar_lea.vmem %s0, 569
  %s2518 = smov 192
  %v2519 = vld [vmem:[%s2517] ss:$-72 sm:%s2518]
  %vm2520 = vcmask 1047558
  %v2521 = vsel %vm2520, %v2519, %v2516
  %vm2522 = vcmask 261120
  %v2523 = vsel %vm2522, %v2521, %v2503
  %2524 = vrot.lane.b32.xlu0 %v2523, 96
  %v2525 = vpop.permute.xlu0 %2524
  %vm2526 = vcmask 785408
  %s2527 = scalar_lea.vmem %s1, 744
  %2528 = vst.msk [vmem:[%s2527] ss:$-159 sm:$0x3] %vm2526, %v2525
  %s2529 = scalar_lea.vmem %s1, 4294966888
  %2530 = vst.msk [vmem:[%s2529] ss:$257 sm:$0xc] %vm2526, %v2525
  %s2531 = scalar_lea.vmem %s1, 4294966952
  %2532 = vst.msk [vmem:[%s2531] ss:$97 sm:$0x70] %vm2526, %v2525
  %s2533 = scalar_lea.vmem %s1, 72
  %2534 = vst.msk [vmem:[%s2533] sm:$0x80] %vm2526, %v2525
  %vm2535 = vcmask 1048320
  %s2536 = scalar_lea.vmem %s1, 944
  %2537 = vst.msk [vmem:[%s2536] ss:$97 sm:$0x3] %vm2535, %v2525
  %s2538 = scalar_lea.vmem %s1, 2130
  %2539 = vst.msk [vmem:[%s2538] ss:$-575 sm:$0xc] %vm2535, %v2525
  %s2540 = scalar_lea.vmem %s1, 594
  %2541 = vst.msk [vmem:[%s2540] ss:$-63 sm:$0x30] %vm2535, %v2525
  %s2542 = scalar_lea.vmem %s1, 498
  %2543 = vst.msk [vmem:[%s2542] ss:$-63 sm:$0xc0] %vm2535, %v2525
  %s2544 = scalar_lea.vmem %s0, 977
  %s2545 = smov 3
  %v2546 = vld [vmem:[%s2544] ss:$-76 sm:%s2545]
  %s2547 = scalar_lea.vmem %s0, 4294966489
  %s2548 = smov 12
  %v2549 = vld [vmem:[%s2547] ss:$548 sm:%s2548]
  %vm2550 = vcmask 1043458
  %v2551 = vsel %vm2550, %v2549, %v2546
  %s2552 = scalar_lea.vmem %s0, 1185
  %s2553 = smov 48
  %v2554 = vld [vmem:[%s2552] ss:$-172 sm:%s2553]
  %vm2555 = vcmask 1045508
  %v2556 = vsel %vm2555, %v2554, %v2551
  %s2557 = scalar_lea.vmem %s0, 889
  %s2558 = smov 192
  %v2559 = vld [vmem:[%s2557] ss:$-76 sm:%s2558]
  %vm2560 = vcmask 1047558
  %v2561 = vsel %vm2560, %v2559, %v2556
  %s2562 = scalar_lea.vmem %s0, 1097
  %s2563 = smov 3
  %v2564 = vld [vmem:[%s2562] ss:$100 sm:%s2563]
  %s2565 = scalar_lea.vmem %s0, 2381
  %s2566 = smov 12
  %v2567 = vld [vmem:[%s2565] ss:$-612 sm:%s2566]
  %vm2568 = vcmask 1043458
  %v2569 = vsel %vm2568, %v2567, %v2564
  %s2570 = scalar_lea.vmem %s0, 437
  %s2571 = smov 48
  %v2572 = vld [vmem:[%s2570] ss:$8 sm:%s2571]
  %vm2573 = vcmask 1045508
  %v2574 = vsel %vm2573, %v2572, %v2569
  %s2575 = scalar_lea.vmem %s0, 181
  %s2576 = smov 192
  %v2577 = vld [vmem:[%s2575] ss:$8 sm:%s2576]
  %vm2578 = vcmask 1047558
  %v2579 = vsel %vm2578, %v2577, %v2574
  %vm2580 = vcmask 261120
  %v2581 = vsel %vm2580, %v2579, %v2561
  %2582 = vrot.lane.b32.xlu0 %v2581, 96
  %v2583 = vpop.permute.xlu0 %2582
  %vm2584 = vcmask 785408
  %s2585 = scalar_lea.vmem %s1, 904
  %2586 = vst.msk [vmem:[%s2585] ss:$-63 sm:$0x3] %vm2584, %v2583
  %s2587 = scalar_lea.vmem %s1, 4294966536
  %2588 = vst.msk [vmem:[%s2587] ss:$513 sm:$0xc] %vm2584, %v2583
  %s2589 = scalar_lea.vmem %s1, 1096
  %2590 = vst.msk [vmem:[%s2589] ss:$-159 sm:$0x30] %vm2584, %v2583
  %s2591 = scalar_lea.vmem %s1, 776
  %2592 = vst.msk [vmem:[%s2591] ss:$-63 sm:$0xc0] %vm2584, %v2583
  %vm2593 = vcmask 1048320
  %s2594 = scalar_lea.vmem %s1, 1008
  %2595 = vst.msk [vmem:[%s2594] ss:$97 sm:$0x3] %vm2593, %v2583
  %s2596 = scalar_lea.vmem %s1, 2226
  %2597 = vst.msk [vmem:[%s2596] ss:$-575 sm:$0xc] %vm2593, %v2583
  %s2598 = scalar_lea.vmem %s1, 434
  %2599 = vst.msk [vmem:[%s2598] sm:$0x30] %vm2593, %v2583
  %s2600 = scalar_lea.vmem %s1, 210
  %2601 = vst.msk [vmem:[%s2600] sm:$0xc0] %vm2593, %v2583
  %s2602 = scalar_lea.vmem %s0, 1249
  %s2603 = smov 3
  %v2604 = vld [vmem:[%s2602] ss:$-172 sm:%s2603]
  %s2605 = scalar_lea.vmem %s0, 4294966409
  %s2606 = smov 12
  %v2607 = vld [vmem:[%s2605] ss:$724 sm:%s2606]
  %vm2608 = vcmask 1043458
  %v2609 = vsel %vm2608, %v2607, %v2604
  %s2610 = scalar_lea.vmem %s0, 2337
  %s2611 = smov 48
  %v2612 = vld [vmem:[%s2610] ss:$-348 sm:%s2611]
  %vm2613 = vcmask 1045508
  %v2614 = vsel %vm2613, %v2612, %v2609
  %s2615 = scalar_lea.vmem %s0, 1737
  %s2616 = smov 192
  %v2617 = vld [vmem:[%s2615] ss:$-172 sm:%s2616]
  %vm2618 = vcmask 1047558
  %v2619 = vsel %vm2618, %v2617, %v2614
  %s2620 = scalar_lea.vmem %s0, 1189
  %s2621 = smov 3
  %v2622 = vld [vmem:[%s2620] ss:$108 sm:%s2621]
  %s2623 = scalar_lea.vmem %s0, 2565
  %s2624 = smov 12
  %v2625 = vld [vmem:[%s2623] ss:$-616 sm:%s2624]
  %vm2626 = vcmask 1043458
  %v2627 = vsel %vm2626, %v2625, %v2622
  %s2628 = scalar_lea.vmem %s0, 457
  %s2629 = smov 48
  %v2630 = vld [vmem:[%s2628] ss:$24 sm:%s2629]
  %vm2631 = vcmask 1045508
  %v2632 = vsel %vm2631, %v2630, %v2627
  %s2633 = scalar_lea.vmem %s0, 169
  %s2634 = smov 192
  %v2635 = vld [vmem:[%s2633] ss:$24 sm:%s2634]
  %vm2636 = vcmask 1047558
  %v2637 = vsel %vm2636, %v2635, %v2632
  %vm2638 = vcmask 261120
  %v2639 = vsel %vm2638, %v2637, %v2619
  %2640 = vrot.lane.b32.xlu0 %v2639, 96
  %v2641 = vpop.permute.xlu0 %2640
  %vm2642 = vcmask 785408
  %s2643 = scalar_lea.vmem %s1, 1160
  %2644 = vst.msk [vmem:[%s2643] ss:$-159 sm:$0x3] %vm2642, %v2641
  %s2645 = scalar_lea.vmem %s1, 4294966472
  %2646 = vst.msk [vmem:[%s2645] ss:$673 sm:$0xc] %vm2642, %v2641
  %s2647 = scalar_lea.vmem %s1, 2152
  %2648 = vst.msk [vmem:[%s2647] ss:$-319 sm:$0x30] %vm2642, %v2641
  %s2649 = scalar_lea.vmem %s1, 1608
  %2650 = vst.msk [vmem:[%s2649] ss:$-159 sm:$0xc0] %vm2642, %v2641
  %vm2651 = vcmask 1048320
  %s2652 = scalar_lea.vmem %s1, 1104
  %2653 = vst.msk [vmem:[%s2652] ss:$97 sm:$0x3] %vm2651, %v2641
  %s2654 = scalar_lea.vmem %s1, 2386
  %2655 = vst.msk [vmem:[%s2654] ss:$-575 sm:$0xc] %vm2651, %v2641
  %s2656 = scalar_lea.vmem %s1, 370
  %2657 = vst.msk [vmem:[%s2656] ss:$33 sm:$0x30] %vm2651, %v2641
  %s2658 = scalar_lea.vmem %s1, 82
  %2659 = vst.msk [vmem:[%s2658] ss:$33 sm:$0xc0] %vm2651, %v2641
  %s2660 = scalar_lea.vmem %s0, 737
  %s2661 = smov 3
  %v2662 = vld [vmem:[%s2660] ss:$36 sm:%s2661]
  %s2663 = scalar_lea.vmem %s0, 1033
  %s2664 = smov 12
  %v2665 = vld [vmem:[%s2663] ss:$-76 sm:%s2664]
  %vm2666 = vcmask 1043458
  %v2667 = vsel %vm2666, %v2665, %v2662
  %s2668 = scalar_lea.vmem %s0, 4294966913
  %s2669 = smov 48
  %v2670 = vld [vmem:[%s2668] ss:$100 sm:%s2669]
  %vm2671 = vcmask 1045508
  %v2672 = vsel %vm2671, %v2670, %v2667
  %s2673 = scalar_lea.vmem %s0, 1257
  %s2674 = smov 192
  %v2675 = vld [vmem:[%s2673] ss:$-172 sm:%s2674]
  %vm2676 = vcmask 1047558
  %v2677 = vsel %vm2676, %v2675, %v2672
  %s2678 = scalar_lea.vmem %s0, 817
  %s2679 = smov 3
  %v2680 = vld [vmem:[%s2678] ss:$-172 sm:%s2679]
  %s2681 = scalar_lea.vmem %s0, 1149
  %s2682 = smov 12
  %v2683 = vld [vmem:[%s2681] ss:$-248 sm:%s2682]
  %vm2684 = vcmask 1043458
  %v2685 = vsel %vm2684, %v2683, %v2680
  %s2686 = scalar_lea.vmem %s0, 1773
  %s2687 = smov 48
  %v2688 = vld [vmem:[%s2686] ss:$-340 sm:%s2687]
  %vm2689 = vcmask 1045508
  %v2690 = vsel %vm2689, %v2688, %v2685
  %s2691 = scalar_lea.vmem %s0, 605
  %s2692 = smov 192
  %v2693 = vld [vmem:[%s2691] ss:$-72 sm:%s2692]
  %vm2694 = vcmask 1047558
  %v2695 = vsel %vm2694, %v2693, %v2690
  %vm2696 = vcmask 261120
  %v2697 = vsel %vm2696, %v2695, %v2677
  %2698 = vrot.lane.b32.xlu0 %v2697, 96
  %v2699 = vpop.permute.xlu0 %2698
  %vm2700 = vcmask 785408
  %s2701 = scalar_lea.vmem %s1, 682
  %2702 = vst.msk [vmem:[%s2701] ss:$35 sm:$0x3] %vm2700, %v2699
  %s2703 = scalar_lea.vmem %s1, 940
  %2704 = vst.msk [vmem:[%s2703] ss:$-63 sm:$0xc] %vm2700, %v2699
  %s2705 = scalar_lea.vmem %s1, 4294966924
  %2706 = vst.msk [vmem:[%s2705] ss:$97 sm:$0x70] %vm2700, %v2699
  %s2707 = scalar_lea.vmem %s1, 44
  %2708 = vst.msk [vmem:[%s2707] sm:$0x80] %vm2700, %v2699
  %vm2709 = vcmask 1048320
  %s2710 = scalar_lea.vmem %s1, 757
  %2711 = vst.msk [vmem:[%s2710] ss:$-159 sm:$0x3] %vm2709, %v2699
  %s2712 = scalar_lea.vmem %s1, 1045
  %2713 = vst.msk [vmem:[%s2712] ss:$-223 sm:$0xc] %vm2709, %v2699
  %s2714 = scalar_lea.vmem %s1, 1653
  %2715 = vst.msk [vmem:[%s2714] ss:$-319 sm:$0x30] %vm2709, %v2699
  %s2716 = scalar_lea.vmem %s1, 533
  %2717 = vst.msk [vmem:[%s2716] ss:$-63 sm:$0xc0] %vm2709, %v2699
  %s2718 = scalar_lea.vmem %s0, 1009
  %s2719 = smov 3
  %v2720 = vld [vmem:[%s2718] ss:$36 sm:%s2719]
  %s2721 = scalar_lea.vmem %s0, 1497
  %s2722 = smov 12
  %v2723 = vld [vmem:[%s2721] ss:$-172 sm:%s2722]
  %vm2724 = vcmask 1043458
  %v2725 = vsel %vm2724, %v2723, %v2720
  %s2726 = scalar_lea.vmem %s0, 4294967089
  %s2727 = smov 48
  %v2728 = vld [vmem:[%s2726] ss:$100 sm:%s2727]
  %vm2729 = vcmask 1045508
  %v2730 = vsel %vm2729, %v2728, %v2725
  %s2731 = scalar_lea.vmem %s0, 4294967097
  %s2732 = smov 192
  %v2733 = vld [vmem:[%s2731] ss:$100 sm:%s2732]
  %vm2734 = vcmask 1047558
  %v2735 = vsel %vm2734, %v2733, %v2730
  %s2736 = scalar_lea.vmem %s0, 893
  %s2737 = smov 3
  %v2738 = vld [vmem:[%s2736] ss:$-68 sm:%s2737]
  %s2739 = scalar_lea.vmem %s0, 1089
  %s2740 = smov 12
  %v2741 = vld [vmem:[%s2739] ss:$-168 sm:%s2740]
  %vm2742 = vcmask 1043458
  %v2743 = vsel %vm2742, %v2741, %v2738
  %s2744 = scalar_lea.vmem %s0, 1905
  %s2745 = smov 48
  %v2746 = vld [vmem:[%s2744] ss:$-348 sm:%s2745]
  %vm2747 = vcmask 1045508
  %v2748 = vsel %vm2747, %v2746, %v2743
  %s2749 = scalar_lea.vmem %s0, 225
  %s2750 = smov 192
  %v2751 = vld [vmem:[%s2749] ss:$8 sm:%s2750]
  %vm2752 = vcmask 1047558
  %v2753 = vsel %vm2752, %v2751, %v2748
  %vm2754 = vcmask 261120
  %v2755 = vsel %vm2754, %v2753, %v2735
  %2756 = vrot.lane.b32.xlu0 %v2755, 96
  %v2757 = vpop.permute.xlu0 %2756
  %vm2758 = vcmask 785408
  %s2759 = scalar_lea.vmem %s1, 938
  %2760 = vst.msk [vmem:[%s2759] ss:$35 sm:$0x3] %vm2758, %v2757
  %s2761 = scalar_lea.vmem %s1, 1388
  %2762 = vst.msk [vmem:[%s2761] ss:$-159 sm:$0xc] %vm2758, %v2757
  %s2763 = scalar_lea.vmem %s1, 4294967084
  %2764 = vst.msk [vmem:[%s2763] ss:$97 sm:$0xf0] %vm2758, %v2757
  %vm2765 = vcmask 1048320
  %s2766 = scalar_lea.vmem %s1, 821
  %2767 = vst.msk [vmem:[%s2766] ss:$-63 sm:$0x7] %vm2765, %v2757
  %s2768 = scalar_lea.vmem %s1, 725
  %2769 = vst.msk [vmem:[%s2768] ss:$-63 sm:$0x18] %vm2765, %v2757
  %s2770 = scalar_lea.vmem %s1, 4294966965
  %2771 = vst.msk [vmem:[%s2770] ss:$97 sm:$0x60] %vm2765, %v2757
  %s2772 = scalar_lea.vmem %s1, 245
  %2773 = vst.msk [vmem:[%s2772] sm:$0x80] %vm2765, %v2757
  %s2774 = scalar_lea.vmem %s0, 1185
  %s2775 = smov 3
  %v2776 = vld [vmem:[%s2774] ss:$36 sm:%s2775]
  %s2777 = scalar_lea.vmem %s0, 1481
  %s2778 = smov 12
  %v2779 = vld [vmem:[%s2777] ss:$-76 sm:%s2778]
  %vm2780 = vcmask 1043458
  %v2781 = vsel %vm2780, %v2779, %v2776
  %s2782 = scalar_lea.vmem %s0, 65
  %s2783 = smov 48
  %v2784 = vld [vmem:[%s2782] ss:$100 sm:%s2783]
  %vm2785 = vcmask 1045508
  %v2786 = vsel %vm2785, %v2784, %v2781
  %s2787 = scalar_lea.vmem %s0, 4294966313
  %s2788 = smov 192
  %v2789 = vld [vmem:[%s2787] ss:$276 sm:%s2788]
  %vm2790 = vcmask 1047558
  %v2791 = vsel %vm2790, %v2789, %v2786
  %s2792 = scalar_lea.vmem %s0, 993
  %s2793 = smov 3
  %v2794 = vld [vmem:[%s2792] ss:$-76 sm:%s2793]
  %s2795 = scalar_lea.vmem %s0, 1421
  %s2796 = smov 12
  %v2797 = vld [vmem:[%s2795] ss:$-248 sm:%s2796]
  %vm2798 = vcmask 1043458
  %v2799 = vsel %vm2798, %v2797, %v2794
  %s2800 = scalar_lea.vmem %s0, 2045
  %s2801 = smov 48
  %v2802 = vld [vmem:[%s2800] ss:$-340 sm:%s2801]
  %vm2803 = vcmask 1045508
  %v2804 = vsel %vm2803, %v2802, %v2799
  %s2805 = scalar_lea.vmem %s0, 2109
  %s2806 = smov 192
  %v2807 = vld [vmem:[%s2805] ss:$-248 sm:%s2806]
  %vm2808 = vcmask 1047558
  %v2809 = vsel %vm2808, %v2807, %v2804
  %vm2810 = vcmask 261120
  %v2811 = vsel %vm2810, %v2809, %v2791
  %2812 = vrot.lane.b32.xlu0 %v2811, 96
  %v2813 = vpop.permute.xlu0 %2812
  %vm2814 = vcmask 785408
  %s2815 = scalar_lea.vmem %s1, 1098
  %2816 = vst.msk [vmem:[%s2815] ss:$35 sm:$0x3] %vm2814, %v2813
  %s2817 = scalar_lea.vmem %s1, 1356
  %2818 = vst.msk [vmem:[%s2817] ss:$-63 sm:$0xc] %vm2814, %v2813
  %s2819 = scalar_lea.vmem %s1, 44
  %2820 = vst.msk [vmem:[%s2819] ss:$97 sm:$0x70] %vm2814, %v2813
  %s2821 = scalar_lea.vmem %s1, 876
  %2822 = vst.msk [vmem:[%s2821] sm:$0x80] %vm2814, %v2813
  %vm2823 = vcmask 1048320
  %s2824 = scalar_lea.vmem %s1, 917
  %2825 = vst.msk [vmem:[%s2824] ss:$-63 sm:$0x3] %vm2823, %v2813
  %s2826 = scalar_lea.vmem %s1, 1301
  %2827 = vst.msk [vmem:[%s2826] ss:$-223 sm:$0xc] %vm2823, %v2813
  %s2828 = scalar_lea.vmem %s1, 1909
  %2829 = vst.msk [vmem:[%s2828] ss:$-319 sm:$0x30] %vm2823, %v2813
  %s2830 = scalar_lea.vmem %s1, 1909
  %2831 = vst.msk [vmem:[%s2830] ss:$-223 sm:$0xc0] %vm2823, %v2813
  %s2832 = scalar_lea.vmem %s0, 641
  %s2833 = smov 3
  %v2834 = vld [vmem:[%s2832] ss:$100 sm:%s2833]
  %s2835 = scalar_lea.vmem %s0, 2225
  %s2836 = smov 12
  %v2837 = vld [vmem:[%s2835] ss:$-688 sm:%s2836]
  %vm2838 = vcmask 1043458
  %v2839 = vsel %vm2838, %v2837, %v2834
  %s2840 = scalar_lea.vmem %s0, 917
  %s2841 = smov 48
  %v2842 = vld [vmem:[%s2840] ss:$-164 sm:%s2841]
  %vm2843 = vcmask 1045508
  %v2844 = vsel %vm2843, %v2842, %v2839
  %s2845 = scalar_lea.vmem %s0, 4294966669
  %s2846 = smov 192
  %v2847 = vld [vmem:[%s2845] ss:$108 sm:%s2846]
  %vm2848 = vcmask 1047558
  %v2849 = vsel %vm2848, %v2847, %v2844
  %s2850 = scalar_lea.vmem %s0, 1165
  %s2851 = smov 3
  %v2852 = vld [vmem:[%s2850] ss:$-164 sm:%s2851]
  %s2853 = scalar_lea.vmem %s0, 1553
  %s2854 = smov 12
  %v2855 = vld [vmem:[%s2853] ss:$-264 sm:%s2854]
  %vm2856 = vcmask 1043458
  %v2857 = vsel %vm2856, %v2855, %v2852
  %s2858 = scalar_lea.vmem %s0, 1841
  %s2859 = smov 48
  %v2860 = vld [vmem:[%s2858] ss:$-264 sm:%s2859]
  %vm2861 = vcmask 1045508
  %v2862 = vsel %vm2861, %v2860, %v2857
  %s2863 = scalar_lea.vmem %s0, 1753
  %s2864 = smov 192
  %v2865 = vld [vmem:[%s2863] ss:$-172 sm:%s2864]
  %vm2866 = vcmask 1047558
  %v2867 = vsel %vm2866, %v2865, %v2862
  %vm2868 = vcmask 261120
  %v2869 = vsel %vm2868, %v2867, %v2849
  %2870 = vrot.lane.b32.xlu0 %v2869, 96
  %v2871 = vpop.permute.xlu0 %2870
  %vm2872 = vcmask 785408
  %s2873 = scalar_lea.vmem %s1, 592
  %2874 = vst.msk [vmem:[%s2873] ss:$97 sm:$0x7] %vm2872, %v2871
  %s2875 = scalar_lea.vmem %s1, 4294967153
  %2876 = vst.msk [vmem:[%s2875] ss:$97 sm:$0x18] %vm2872, %v2871
  %s2877 = scalar_lea.vmem %s1, 401
  %2878 = vst.msk [vmem:[%s2877] ss:$-63 sm:$0x60] %vm2872, %v2871
  %s2879 = scalar_lea.vmem %s1, 113
  %2880 = vst.msk [vmem:[%s2879] sm:$0x80] %vm2872, %v2871
  %vm2881 = vcmask 1048320
  %s2882 = scalar_lea.vmem %s1, 1077
  %2883 = vst.msk [vmem:[%s2882] ss:$-159 sm:$0x3] %vm2881, %v2871
  %s2884 = scalar_lea.vmem %s1, 1461
  %2885 = vst.msk [vmem:[%s2884] ss:$-255 sm:$0xc] %vm2881, %v2871
  %s2886 = scalar_lea.vmem %s1, 1749
  %2887 = vst.msk [vmem:[%s2886] ss:$-255 sm:$0x30] %vm2881, %v2871
  %s2888 = scalar_lea.vmem %s1, 1621
  %2889 = vst.msk [vmem:[%s2888] ss:$-159 sm:$0xc0] %vm2881, %v2871
  %s2890 = scalar_lea.vmem %s0, 913
  %s2891 = smov 3
  %v2892 = vld [vmem:[%s2890] ss:$100 sm:%s2891]
  %s2893 = scalar_lea.vmem %s0, 1119
  %v2894 = vld [vmem:[%s2893] sm:$0x4]
  %vm2895 = vcmask 1042434
  %v2896 = vsel %vm2895, %v2894, %v2892
  %s2897 = scalar_lea.vmem %s0, 1125
  %s2898 = smov 24
  %v2899 = vld [vmem:[%s2897] ss:$-172 sm:%s2898]
  %vm2900 = vcmask 1044483
  %v2901 = vsel %vm2900, %v2899, %v2896
  %s2902 = scalar_lea.vmem %s0, 1229
  %s2903 = smov 96
  %v2904 = vld [vmem:[%s2902] ss:$-172 sm:%s2903]
  %vm2905 = vcmask 1046533
  %v2906 = vsel %vm2905, %v2904, %v2901
  %s2907 = scalar_lea.vmem %s0, 298
  %v2908 = vld [vmem:[%s2907] sm:$0x80]
  %vm2909 = vcmask 1047559
  %v2910 = vsel %vm2909, %v2908, %v2906
  %s2911 = scalar_lea.vmem %s0, 1265
  %s2912 = smov 3
  %v2913 = vld [vmem:[%s2911] ss:$-172 sm:%s2912]
  %s2914 = scalar_lea.vmem %s0, 1597
  %s2915 = smov 12
  %v2916 = vld [vmem:[%s2914] ss:$-248 sm:%s2915]
  %vm2917 = vcmask 1043458
  %v2918 = vsel %vm2917, %v2916, %v2913
  %s2919 = scalar_lea.vmem %s0, 1853
  %s2920 = smov 48
  %v2921 = vld [vmem:[%s2919] ss:$-248 sm:%s2920]
  %vm2922 = vcmask 1045508
  %v2923 = vsel %vm2922, %v2921, %v2918
  %s2924 = scalar_lea.vmem %s0, 3109
  %s2925 = smov 192
  %v2926 = vld [vmem:[%s2924] ss:$-340 sm:%s2925]
  %vm2927 = vcmask 1047558
  %v2928 = vsel %vm2927, %v2926, %v2923
  %vm2929 = vcmask 261120
  %v2930 = vsel %vm2929, %v2928, %v2910
  %2931 = vrot.lane.b32.xlu0 %v2930, 96
  %v2932 = vpop.permute.xlu0 %2931
  %vm2933 = vcmask 785408
  %s2934 = scalar_lea.vmem %s1, 848
  %2935 = vst.msk [vmem:[%s2934] ss:$97 sm:$0x7] %vm2933, %v2932
  %s2936 = scalar_lea.vmem %s1, 1041
  %2937 = vst.msk [vmem:[%s2936] ss:$-159 sm:$0x18] %vm2933, %v2932
  %s2938 = scalar_lea.vmem %s1, 1137
  %2939 = vst.msk [vmem:[%s2938] ss:$-159 sm:$0x60] %vm2933, %v2932
  %s2940 = scalar_lea.vmem %s1, 273
  %2941 = vst.msk [vmem:[%s2940] sm:$0x80] %vm2933, %v2932
  %vm2942 = vcmask 1048320
  %s2943 = scalar_lea.vmem %s1, 1173
  %2944 = vst.msk [vmem:[%s2943] ss:$-159 sm:$0x3] %vm2942, %v2932
  %s2945 = scalar_lea.vmem %s1, 1461
  %2946 = vst.msk [vmem:[%s2945] ss:$-223 sm:$0xc] %vm2942, %v2932
  %s2947 = scalar_lea.vmem %s1, 1685
  %2948 = vst.msk [vmem:[%s2947] ss:$-223 sm:$0x30] %vm2942, %v2932
  %s2949 = scalar_lea.vmem %s1, 2901
  %2950 = vst.msk [vmem:[%s2949] ss:$-319 sm:$0xc0] %vm2942, %v2932
  %s2951 = scalar_lea.vmem %s0, 1089
  %s2952 = smov 3
  %v2953 = vld [vmem:[%s2951] ss:$100 sm:%s2952]
  %s2954 = scalar_lea.vmem %s0, 1777
  %s2955 = smov 12
  %v2956 = vld [vmem:[%s2954] ss:$-240 sm:%s2955]
  %vm2957 = vcmask 1043458
  %v2958 = vsel %vm2957, %v2956, %v2953
  %s2959 = scalar_lea.vmem %s0, 1365
  %s2960 = smov 48
  %v2961 = vld [vmem:[%s2959] ss:$-164 sm:%s2960]
  %vm2962 = vcmask 1045508
  %v2963 = vsel %vm2962, %v2961, %v2958
  %s2964 = scalar_lea.vmem %s0, 4294967117
  %s2965 = smov 192
  %v2966 = vld [vmem:[%s2964] ss:$108 sm:%s2965]
  %vm2967 = vcmask 1047558
  %v2968 = vsel %vm2967, %v2966, %v2963
  %s2969 = scalar_lea.vmem %s0, 1341
  %s2970 = smov 3
  %v2971 = vld [vmem:[%s2969] ss:$-68 sm:%s2970]
  %s2972 = scalar_lea.vmem %s0, 1537
  %s2973 = smov 12
  %v2974 = vld [vmem:[%s2972] ss:$-168 sm:%s2973]
  %vm2975 = vcmask 1043458
  %v2976 = vsel %vm2975, %v2974, %v2971
  %s2977 = scalar_lea.vmem %s0, 1633
  %s2978 = smov 48
  %v2979 = vld [vmem:[%s2977] ss:$-168 sm:%s2978]
  %vm2980 = vcmask 1045508
  %v2981 = vsel %vm2980, %v2979, %v2976
  %s2982 = scalar_lea.vmem %s0, 3257
  %s2983 = smov 192
  %v2984 = vld [vmem:[%s2982] ss:$-348 sm:%s2983]
  %vm2985 = vcmask 1047558
  %v2986 = vsel %vm2985, %v2984, %v2981
  %vm2987 = vcmask 261120
  %v2988 = vsel %vm2987, %v2986, %v2968
  %2989 = vrot.lane.b32.xlu0 %v2988, 96
  %v2990 = vpop.permute.xlu0 %2989
  %vm2991 = vcmask 785408
  %s2992 = scalar_lea.vmem %s1, 1008
  %2993 = vst.msk [vmem:[%s2992] ss:$97 sm:$0x7] %vm2991, %v2990
  %s2994 = scalar_lea.vmem %s1, 1937
  %2995 = vst.msk [vmem:[%s2994] ss:$-319 sm:$0x18] %vm2991, %v2990
  %s2996 = scalar_lea.vmem %s1, 817
  %2997 = vst.msk [vmem:[%s2996] ss:$-63 sm:$0x60] %vm2991, %v2990
  %s2998 = scalar_lea.vmem %s1, 529
  %2999 = vst.msk [vmem:[%s2998] sm:$0x80] %vm2991, %v2990
  %vm3000 = vcmask 1048320
  %s3001 = scalar_lea.vmem %s1, 1237
  %3002 = vst.msk [vmem:[%s3001] ss:$-63 sm:$0x7] %vm3000, %v2990
  %s3003 = scalar_lea.vmem %s1, 1141
  %3004 = vst.msk [vmem:[%s3003] ss:$-63 sm:$0x18] %vm3000, %v2990
  %s3005 = scalar_lea.vmem %s1, 4294966261
  %3006 = vst.msk [vmem:[%s3005] ss:$353 sm:$0x60] %vm3000, %v2990
  %s3007 = scalar_lea.vmem %s1, 757
  %3008 = vst.msk [vmem:[%s3007] sm:$0x80] %vm3000, %v2990
  %s3009 = scalar_lea.vmem %s0, 885
  %s3010 = smov 3
  %v3011 = vld [vmem:[%s3009] ss:$-68 sm:%s3010]
  %s3012 = scalar_lea.vmem %s0, 429
  %s3013 = smov 12
  %v3014 = vld [vmem:[%s3012] ss:$108 sm:%s3013]
  %vm3015 = vcmask 1043458
  %v3016 = vsel %vm3015, %v3014, %v3011
  %s3017 = scalar_lea.vmem %s0, 885
  %s3018 = smov 48
  %v3019 = vld [vmem:[%s3017] ss:$-164 sm:%s3018]
  %vm3020 = vcmask 1045508
  %v3021 = vsel %vm3020, %v3019, %v3016
  %s3022 = scalar_lea.vmem %s0, 4294966813
  %s3023 = smov 192
  %v3024 = vld [vmem:[%s3022] ss:$108 sm:%s3023]
  %vm3025 = vcmask 1047558
  %v3026 = vsel %vm3025, %v3024, %v3021
  %s3027 = scalar_lea.vmem %s0, 1125
  %s3028 = smov 3
  %v3029 = vld [vmem:[%s3027] ss:$8 sm:%s3028]
  %s3030 = scalar_lea.vmem %s0, 913
  %s3031 = smov 12
  %v3032 = vld [vmem:[%s3030] ss:$28 sm:%s3031]
  %vm3033 = vcmask 1043458
  %v3034 = vsel %vm3033, %v3032, %v3029
  %s3035 = scalar_lea.vmem %s0, 1
  %s3036 = smov 48
  %v3037 = vld [vmem:[%s3035] ss:$8 sm:%s3036]
  %vm3038 = vcmask 1045508
  %v3039 = vsel %vm3038, %v3037, %v3034
  %s3040 = scalar_lea.vmem %s0, 4294961029
  %s3041 = smov 192
  %v3042 = vld [vmem:[%s3040] ss:$1068 sm:%s3041]
  %vm3043 = vcmask 1047558
  %v3044 = vsel %vm3043, %v3042, %v3039
  %vm3045 = vcmask 261120
  %v3046 = vsel %vm3045, %v3044, %v3026
  %3047 = vrot.lane.b32.xlu0 %v3046, 96
  %v3048 = vpop.permute.xlu0 %3047
  %vm3049 = vcmask 785408
  %s3050 = scalar_lea.vmem %s1, 821
  %3051 = vst.msk [vmem:[%s3050] ss:$-63 sm:$0x3] %vm3049, %v3048
  %s3052 = scalar_lea.vmem %s1, 405
  %3053 = vst.msk [vmem:[%s3052] ss:$97 sm:$0xc] %vm3049, %v3048
  %s3054 = scalar_lea.vmem %s1, 853
  %3055 = vst.msk [vmem:[%s3054] ss:$-159 sm:$0x30] %vm3049, %v3048
  %s3056 = scalar_lea.vmem %s1, 4294966869
  %3057 = vst.msk [vmem:[%s3056] ss:$97 sm:$0xc0] %vm3049, %v3048
  %vm3058 = vcmask 1048320
  %s3059 = scalar_lea.vmem %s1, 1048
  %3060 = vst.msk [vmem:[%s3059] sm:$0x3] %vm3058, %v3048
  %s3061 = scalar_lea.vmem %s1, 822
  %3062 = vst.msk [vmem:[%s3061] ss:$34 sm:$0xc] %vm3058, %v3048
  %s3063 = scalar_lea.vmem %s1, 25
  %3064 = vst.msk [vmem:[%s3063] sm:$0x30] %vm3058, %v3048
  %s3065 = scalar_lea.vmem %s1, 4294961513
  %3066 = vst.msk [vmem:[%s3065] ss:$985 sm:$0xc0] %vm3058, %v3048
  %s3067 = scalar_lea.vmem %s0, 1157
  %s3068 = smov 3
  %v3069 = vld [vmem:[%s3067] ss:$-164 sm:%s3068]
  %s3070 = scalar_lea.vmem %s0, 701
  %s3071 = smov 12
  %v3072 = vld [vmem:[%s3070] ss:$108 sm:%s3071]
  %vm3073 = vcmask 1043458
  %v3074 = vsel %vm3073, %v3072, %v3069
  %s3075 = scalar_lea.vmem %s0, 677
  %s3076 = smov 48
  %v3077 = vld [vmem:[%s3075] ss:$-68 sm:%s3076]
  %vm3078 = vcmask 1045508
  %v3079 = vsel %vm3078, %v3077, %v3074
  %s3080 = scalar_lea.vmem %s0, 4294967261
  %s3081 = smov 192
  %v3082 = vld [vmem:[%s3080] ss:$108 sm:%s3081]
  %vm3083 = vcmask 1047558
  %v3084 = vsel %vm3083, %v3082, %v3079
  %s3085 = scalar_lea.vmem %s0, 1301
  %s3086 = smov 3
  %v3087 = vld [vmem:[%s3085] ss:$-68 sm:%s3086]
  %s3088 = scalar_lea.vmem %s0, 829
  %s3089 = smov 12
  %v3090 = vld [vmem:[%s3088] ss:$116 sm:%s3089]
  %vm3091 = vcmask 1043458
  %v3092 = vsel %vm3091, %v3090, %v3087
  %s3093 = scalar_lea.vmem %s0, 13
  %s3094 = smov 48
  %v3095 = vld [vmem:[%s3093] ss:$24 sm:%s3094]
  %vm3096 = vcmask 1045508
  %v3097 = vsel %vm3096, %v3095, %v3092
  %s3098 = scalar_lea.vmem %s0, 4294961129
  %s3099 = smov 192
  %v3100 = vld [vmem:[%s3098] ss:$1068 sm:%s3099]
  %vm3101 = vcmask 1047558
  %v3102 = vsel %vm3101, %v3100, %v3097
  %vm3103 = vcmask 261120
  %v3104 = vsel %vm3103, %v3102, %v3084
  %3105 = vrot.lane.b32.xlu0 %v3104, 96
  %v3106 = vpop.permute.xlu0 %3105
  %vm3107 = vcmask 785408
  %s3108 = scalar_lea.vmem %s1, 1077
  %3109 = vst.msk [vmem:[%s3108] ss:$-159 sm:$0x3] %vm3107, %v3106
  %s3110 = scalar_lea.vmem %s1, 661
  %3111 = vst.msk [vmem:[%s3110] ss:$97 sm:$0xc] %vm3107, %v3106
  %s3112 = scalar_lea.vmem %s1, 629
  %3113 = vst.msk [vmem:[%s3112] ss:$-63 sm:$0x30] %vm3107, %v3106
  %s3114 = scalar_lea.vmem %s1, 4294967285
  %3115 = vst.msk [vmem:[%s3114] ss:$97 sm:$0xc0] %vm3107, %v3106
  %vm3116 = vcmask 1048320
  %s3117 = scalar_lea.vmem %s1, 1208
  %3118 = vst.msk [vmem:[%s3117] ss:$-63 sm:$0x3] %vm3116, %v3106
  %s3119 = scalar_lea.vmem %s1, 790
  %3120 = vst.msk [vmem:[%s3119] ss:$98 sm:$0xc] %vm3116, %v3106
  %s3121 = scalar_lea.vmem %s1, 4294967257
  %3122 = vst.msk [vmem:[%s3121] ss:$33 sm:$0x30] %vm3116, %v3106
  %s3123 = scalar_lea.vmem %s1, 4294961603
  %3124 = vst.msk [vmem:[%s3123] ss:$986 sm:$0xc0] %vm3116, %v3106
  %s3125 = scalar_lea.vmem %s0, 1333
  %s3126 = smov 3
  %v3127 = vld [vmem:[%s3125] ss:$-68 sm:%s3126]
  %s3128 = scalar_lea.vmem %s0, 877
  %s3129 = smov 12
  %v3130 = vld [vmem:[%s3128] ss:$108 sm:%s3129]
  %vm3131 = vcmask 1043458
  %v3132 = vsel %vm3131, %v3130, %v3127
  %s3133 = scalar_lea.vmem %s0, 1333
  %s3134 = smov 48
  %v3135 = vld [vmem:[%s3133] ss:$-164 sm:%s3134]
  %vm3136 = vcmask 1045508
  %v3137 = vsel %vm3136, %v3135, %v3132
  %s3138 = scalar_lea.vmem %s0, 413
  %s3139 = smov 192
  %v3140 = vld [vmem:[%s3138] ss:$108 sm:%s3139]
  %vm3141 = vcmask 1047558
  %v3142 = vsel %vm3141, %v3140, %v3137
  %s3143 = scalar_lea.vmem %s0, 1241
  %s3144 = smov 3
  %v3145 = vld [vmem:[%s3143] ss:$28 sm:%s3144]
  %s3146 = scalar_lea.vmem %s0, 193
  %s3147 = smov 12
  %v3148 = vld [vmem:[%s3146] ss:$8 sm:%s3147]
  %vm3149 = vcmask 1043458
  %v3150 = vsel %vm3149, %v3148, %v3145
  %s3151 = scalar_lea.vmem %s0, 313
  %v3152 = vld [vmem:[%s3151] sm:$0x10]
  %vm3153 = vcmask 1044484
  %v3154 = vsel %vm3153, %v3152, %v3150
  %s3155 = scalar_lea.vmem %s0, 741
  %s3156 = smov 96
  %v3157 = vld [vmem:[%s3155] ss:$-72 sm:%s3156]
  %vm3158 = vcmask 1046533
  %v3159 = vsel %vm3158, %v3157, %v3154
  %s3160 = scalar_lea.vmem %s0, 410
  %v3161 = vld [vmem:[%s3160] sm:$0x80]
  %vm3162 = vcmask 1047559
  %v3163 = vsel %vm3162, %v3161, %v3159
  %vm3164 = vcmask 261120
  %v3165 = vsel %vm3164, %v3163, %v3142
  %3166 = vrot.lane.b32.xlu0 %v3165, 96
  %v3167 = vpop.permute.xlu0 %3166
  %vm3168 = vcmask 785408
  %s3169 = scalar_lea.vmem %s1, 1237
  %3170 = vst.msk [vmem:[%s3169] ss:$-63 sm:$0x3] %vm3168, %v3167
  %s3171 = scalar_lea.vmem %s1, 821
  %3172 = vst.msk [vmem:[%s3171] ss:$97 sm:$0xc] %vm3168, %v3167
  %s3173 = scalar_lea.vmem %s1, 1269
  %3174 = vst.msk [vmem:[%s3173] ss:$-159 sm:$0x30] %vm3168, %v3167
  %s3175 = scalar_lea.vmem %s1, 405
  %3176 = vst.msk [vmem:[%s3175] ss:$97 sm:$0xc0] %vm3168, %v3167
  %vm3177 = vcmask 1048320
  %s3178 = scalar_lea.vmem %s1, 1146
  %3179 = vst.msk [vmem:[%s3178] ss:$34 sm:$0x3] %vm3177, %v3167
  %s3180 = scalar_lea.vmem %s1, 187
  %3181 = vst.msk [vmem:[%s3180] sm:$0xc] %vm3177, %v3167
  %s3182 = scalar_lea.vmem %s1, 39
  %3183 = vst.msk [vmem:[%s3182] ss:$62 sm:$0x30] %vm3177, %v3167
  %s3184 = scalar_lea.vmem %s1, 4294967000
  %3185 = vst.msk [vmem:[%s3184] ss:$97 sm:$0xc0] %vm3177, %v3167
  %s3186 = scalar_lea.vmem %s0, 853
  %s3187 = smov 3
  %v3188 = vld [vmem:[%s3186] ss:$-68 sm:%s3187]
  %s3189 = scalar_lea.vmem %s0, 237
  %s3190 = smov 12
  %v3191 = vld [vmem:[%s3189] ss:$-68 sm:%s3190]
  %vm3192 = vcmask 1043458
  %v3193 = vsel %vm3192, %v3191, %v3188
  %s3194 = scalar_lea.vmem %s0, 129
  %v3195 = vld [vmem:[%s3194] sm:$0x10]
  %vm3196 = vcmask 1044484
  %v3197 = vsel %vm3196, %v3195, %v3193
  %s3198 = scalar_lea.vmem %s0, 1945
  %s3199 = smov 96
  %v3200 = vld [vmem:[%s3198] ss:$-164 sm:%s3199]
  %vm3201 = vcmask 1046533
  %v3202 = vsel %vm3201, %v3200, %v3197
  %s3203 = scalar_lea.vmem %s0, 366
  %v3204 = vld [vmem:[%s3203] sm:$0x80]
  %vm3205 = vcmask 1047559
  %v3206 = vsel %vm3205, %v3204, %v3202
  %s3207 = scalar_lea.vmem %s0, 481
  %s3208 = smov 3
  %v3209 = vld [vmem:[%s3207] ss:$8 sm:%s3208]
  %s3210 = scalar_lea.vmem %s0, 587
  %v3211 = vld [vmem:[%s3210] sm:$0x4]
  %vm3212 = vcmask 1042434
  %v3213 = vsel %vm3212, %v3211, %v3209
  %s3214 = scalar_lea.vmem %s0, 485
  %s3215 = smov 24
  %v3216 = vld [vmem:[%s3214] ss:$24 sm:%s3215]
  %vm3217 = vcmask 1044483
  %v3218 = vsel %vm3217, %v3216, %v3213
  %s3219 = scalar_lea.vmem %s0, 684
  %v3220 = vld [vmem:[%s3219] sm:$0x20]
  %vm3221 = vcmask 1045509
  %v3222 = vsel %vm3221, %v3220, %v3218
  %s3223 = scalar_lea.vmem %s0, 609
  %s3224 = smov 192
  %v3225 = vld [vmem:[%s3223] ss:$8 sm:%s3224]
  %vm3226 = vcmask 1047558
  %v3227 = vsel %vm3226, %v3225, %v3222
  %vm3228 = vcmask 261120
  %v3229 = vsel %vm3228, %v3227, %v3206
  %3230 = vrot.lane.b32.xlu0 %v3229, 96
  %v3231 = vpop.permute.xlu0 %3230
  %vm3232 = vcmask 785408
  %s3233 = scalar_lea.vmem %s1, 793
  %3234 = vst.msk [vmem:[%s3233] ss:$-63 sm:$0x3] %vm3232, %v3231
  %s3235 = scalar_lea.vmem %s1, 219
  %3236 = vst.msk [vmem:[%s3235] ss:$-63 sm:$0xc] %vm3232, %v3231
  %s3237 = scalar_lea.vmem %s1, 4294963735
  %3238 = vst.msk [vmem:[%s3237] ss:$922 sm:$0x30] %vm3232, %v3231
  %s3239 = scalar_lea.vmem %s1, 4136
  %3240 = vst.msk [vmem:[%s3239] ss:$-541 sm:$0xc0] %vm3232, %v3231
  %vm3241 = vcmask 1048320
  %s3242 = scalar_lea.vmem %s1, 445
  %3243 = vst.msk [vmem:[%s3242] sm:$0x3] %vm3241, %v3231
  %s3244 = scalar_lea.vmem %s1, 611
  %3245 = vst.msk [vmem:[%s3244] ss:$-34 sm:$0xc] %vm3241, %v3231
  %s3246 = scalar_lea.vmem %s1, 154
  %3247 = vst.msk [vmem:[%s3246] ss:$97 sm:$0x30] %vm3241, %v3231
  %s3248 = scalar_lea.vmem %s1, 599
  %3249 = vst.msk [vmem:[%s3248] sm:$0xc0] %vm3241, %v3231
  %s3250 = scalar_lea.vmem %s0, 1301
  %s3251 = smov 3
  %v3252 = vld [vmem:[%s3250] ss:$-68 sm:%s3251]
  %s3253 = scalar_lea.vmem %s0, 1229
  %s3254 = smov 12
  %v3255 = vld [vmem:[%s3253] ss:$-340 sm:%s3254]
  %vm3256 = vcmask 1043458
  %v3257 = vsel %vm3256, %v3255, %v3252
  %s3258 = scalar_lea.vmem %s0, 305
  %v3259 = vld [vmem:[%s3258] sm:$0x10]
  %vm3260 = vcmask 1044484
  %v3261 = vsel %vm3260, %v3259, %v3257
  %s3262 = scalar_lea.vmem %s0, 2521
  %s3263 = smov 96
  %v3264 = vld [vmem:[%s3262] ss:$-340 sm:%s3263]
  %vm3265 = vcmask 1046533
  %v3266 = vsel %vm3265, %v3264, %v3261
  %s3267 = scalar_lea.vmem %s0, 574
  %v3268 = vld [vmem:[%s3267] sm:$0x80]
  %vm3269 = vcmask 1047559
  %v3270 = vsel %vm3269, %v3268, %v3266
  %s3271 = scalar_lea.vmem %s0, 829
  %s3272 = smov 3
  %v3273 = vld [vmem:[%s3271] ss:$-72 sm:%s3272]
  %s3274 = scalar_lea.vmem %s0, 437
  %s3275 = smov 12
  %v3276 = vld [vmem:[%s3274] ss:$164 sm:%s3275]
  %vm3277 = vcmask 1043458
  %v3278 = vsel %vm3277, %v3276, %v3273
  %s3279 = scalar_lea.vmem %s0, 1225
  %s3280 = smov 48
  %v3281 = vld [vmem:[%s3279] ss:$-72 sm:%s3280]
  %vm3282 = vcmask 1045508
  %v3283 = vsel %vm3282, %v3281, %v3278
  %s3284 = scalar_lea.vmem %s0, 861
  %s3285 = smov 192
  %v3286 = vld [vmem:[%s3284] ss:$24 sm:%s3285]
  %vm3287 = vcmask 1047558
  %v3288 = vsel %vm3287, %v3286, %v3283
  %vm3289 = vcmask 261120
  %v3290 = vsel %vm3289, %v3288, %v3270
  %3291 = vrot.lane.b32.xlu0 %v3290, 96
  %v3292 = vpop.permute.xlu0 %3291
  %vm3293 = vcmask 785408
  %s3294 = scalar_lea.vmem %s1, 1209
  %3295 = vst.msk [vmem:[%s3294] ss:$-63 sm:$0x3] %vm3293, %v3292
  %s3296 = scalar_lea.vmem %s1, 1147
  %3297 = vst.msk [vmem:[%s3296] ss:$-319 sm:$0xc] %vm3293, %v3292
  %s3298 = scalar_lea.vmem %s1, 4294965671
  %3299 = vst.msk [vmem:[%s3298] ss:$478 sm:$0x30] %vm3293, %v3292
  %s3300 = scalar_lea.vmem %s1, 4294967160
  %3301 = vst.msk [vmem:[%s3300] ss:$97 sm:$0xc0] %vm3293, %v3292
  %vm3302 = vcmask 1048320
  %s3303 = scalar_lea.vmem %s1, 765
  %3304 = vst.msk [vmem:[%s3303] ss:$-63 sm:$0x3] %vm3302, %v3292
  %s3305 = scalar_lea.vmem %s1, 387
  %3306 = vst.msk [vmem:[%s3305] ss:$158 sm:$0xc] %vm3302, %v3292
  %s3307 = scalar_lea.vmem %s1, 1114
  %3308 = vst.msk [vmem:[%s3307] ss:$-63 sm:$0x30] %vm3302, %v3292
  %s3309 = scalar_lea.vmem %s1, 727
  %3310 = vst.msk [vmem:[%s3309] ss:$33 sm:$0xc0] %vm3302, %v3292
  %s3311 = scalar_lea.vmem %s0, 997
  %s3312 = smov 3
  %v3313 = vld [vmem:[%s3311] ss:$-340 sm:%s3312]
  %s3314 = scalar_lea.vmem %s0, 755
  %v3315 = vld [vmem:[%s3314] sm:$0x4]
  %vm3316 = vcmask 1042434
  %v3317 = vsel %vm3316, %v3315, %v3313
  %s3318 = scalar_lea.vmem %s0, 2289
  %s3319 = smov 24
  %v3320 = vld [vmem:[%s3318] ss:$-340 sm:%s3319]
  %vm3321 = vcmask 1044483
  %v3322 = vsel %vm3321, %v3320, %v3317
  %s3323 = scalar_lea.vmem %s0, 649
  %s3324 = smov 96
  %v3325 = vld [vmem:[%s3323] ss:$76 sm:%s3324]
  %vm3326 = vcmask 1046533
  %v3327 = vsel %vm3326, %v3325, %v3322
  %s3328 = scalar_lea.vmem %s0, 1198
  %v3329 = vld [vmem:[%s3328] sm:$0x80]
  %vm3330 = vcmask 1047559
  %v3331 = vsel %vm3330, %v3329, %v3327
  %s3332 = scalar_lea.vmem %s0, 1105
  %s3333 = smov 3
  %v3334 = vld [vmem:[%s3332] ss:$8 sm:%s3333]
  %s3335 = scalar_lea.vmem %s0, 557
  %s3336 = smov 12
  %v3337 = vld [vmem:[%s3335] ss:$240 sm:%s3336]
  %vm3338 = vcmask 1043458
  %v3339 = vsel %vm3338, %v3337, %v3334
  %s3340 = scalar_lea.vmem %s0, 1477
  %s3341 = smov 48
  %v3342 = vld [vmem:[%s3340] ss:$-68 sm:%s3341]
  %vm3343 = vcmask 1045508
  %v3344 = vsel %vm3343, %v3342, %v3339
  %s3345 = scalar_lea.vmem %s0, 613
  %s3346 = smov 192
  %v3347 = vld [vmem:[%s3345] ss:$100 sm:%s3346]
  %vm3348 = vcmask 1047558
  %v3349 = vsel %vm3348, %v3347, %v3344
  %vm3350 = vcmask 261120
  %v3351 = vsel %vm3350, %v3349, %v3331
  %3352 = vrot.lane.b32.xlu0 %v3351, 96
  %v3353 = vpop.permute.xlu0 %3352
  %vm3354 = vcmask 785408
  %s3355 = scalar_lea.vmem %s1, 925
  %3356 = vst.msk [vmem:[%s3355] ss:$-319 sm:$0x3] %vm3354, %v3353
  %s3357 = scalar_lea.vmem %s1, 4294967043
  %3358 = vst.msk [vmem:[%s3357] ss:$478 sm:$0xc] %vm3354, %v3353
  %s3359 = scalar_lea.vmem %s1, 474
  %3360 = vst.msk [vmem:[%s3359] ss:$97 sm:$0x30] %vm3354, %v3353
  %s3361 = scalar_lea.vmem %s1, 440
  %3362 = vst.msk [vmem:[%s3361] ss:$97 sm:$0xc0] %vm3354, %v3353
  %vm3363 = vcmask 1048320
  %s3364 = scalar_lea.vmem %s1, 1021
  %3365 = vst.msk [vmem:[%s3364] sm:$0x3] %vm3363, %v3353
  %s3366 = scalar_lea.vmem %s1, 515
  %3367 = vst.msk [vmem:[%s3366] ss:$222 sm:$0xc] %vm3363, %v3353
  %s3368 = scalar_lea.vmem %s1, 1370
  %3369 = vst.msk [vmem:[%s3368] ss:$-63 sm:$0x30] %vm3363, %v3353
  %s3370 = scalar_lea.vmem %s1, 1113
  %3371 = vst.msk [vmem:[%s3370] sm:$0x40] %vm3363, %v3353
  %s3372 = scalar_lea.vmem %s1, 1208
  %3373 = vst.msk [vmem:[%s3372] sm:$0x80] %vm3363, %v3353
  %s3374 = scalar_lea.vmem %s0, 110
  %s3375 = smov 3
  %v3376 = vld [vmem:[%s3374] ss:$-68 sm:%s3375]
  %s3377 = scalar_lea.vmem %s0, 4294967222
  %s3378 = smov 12
  %v3379 = vld [vmem:[%s3377] ss:$108 sm:%s3378]
  %vm3380 = vcmask 1043458
  %v3381 = vsel %vm3380, %v3379, %v3376
  %s3382 = scalar_lea.vmem %s0, 350
  %s3383 = smov 48
  %v3384 = vld [vmem:[%s3382] ss:$-68 sm:%s3383]
  %vm3385 = vcmask 1045508
  %v3386 = vsel %vm3385, %v3384, %v3381
  %s3387 = scalar_lea.vmem %s0, 4294966934
  %s3388 = smov 192
  %v3389 = vld [vmem:[%s3387] ss:$108 sm:%s3388]
  %vm3390 = vcmask 1047558
  %v3391 = vsel %vm3390, %v3389, %v3386
  %s3392 = scalar_lea.vmem %s0, 42
  %s3393 = smov 3
  %v3394 = vld [vmem:[%s3392] ss:$100 sm:%s3393]
  %s3395 = scalar_lea.vmem %s0, 206
  %s3396 = smov 12
  %v3397 = vld [vmem:[%s3395] ss:$-68 sm:%s3396]
  %vm3398 = vcmask 1043458
  %v3399 = vsel %vm3398, %v3397, %v3394
  %s3400 = scalar_lea.vmem %s0, 4294966202
  %s3401 = smov 48
  %v3402 = vld [vmem:[%s3400] ss:$276 sm:%s3401]
  %vm3403 = vcmask 1045508
  %v3404 = vsel %vm3403, %v3402, %v3399
  %s3405 = scalar_lea.vmem %s0, 4294967286
  %s3406 = smov 192
  %v3407 = vld [vmem:[%s3405] ss:$8 sm:%s3406]
  %vm3408 = vcmask 1047558
  %v3409 = vsel %vm3408, %v3407, %v3404
  %vm3410 = vcmask 523264
  %v3411 = vsel %vm3410, %v3409, %v3391
  %3412 = vrot.lane.b32.xlu0 %v3411, 64
  %v3413 = vpop.permute.xlu0 %3412
  %vm3414 = vcmask 261120
  %s3415 = scalar_lea.vmem %s1, 96
  %3416 = vst.msk [vmem:[%s3415] ss:$-63 sm:$0x3] %vm3414, %v3413
  %s3417 = scalar_lea.vmem %s1, 4294967232
  %3418 = vst.msk [vmem:[%s3417] ss:$97 sm:$0xc] %vm3414, %v3413
  %s3419 = scalar_lea.vmem %s1, 320
  %3420 = vst.msk [vmem:[%s3419] ss:$-63 sm:$0x30] %vm3414, %v3413
  %s3421 = scalar_lea.vmem %s1, 4294966976
  %3422 = vst.msk [vmem:[%s3421] ss:$97 sm:$0xc0] %vm3414, %v3413
  %vm3423 = vcmask 1048064
  %s3424 = scalar_lea.vmem %s1, 32
  %3425 = vst.msk [vmem:[%s3424] ss:$97 sm:$0x3] %vm3423, %v3413
  %s3426 = scalar_lea.vmem %s1, 192
  %3427 = vst.msk [vmem:[%s3426] ss:$-63 sm:$0xc] %vm3423, %v3413
  %s3428 = scalar_lea.vmem %s1, 4294966272
  %3429 = vst.msk [vmem:[%s3428] ss:$257 sm:$0x30] %vm3423, %v3413
  %s3430 = scalar_lea.vmem %s1, 32
  %3431 = vst.msk [vmem:[%s3430] sm:$0xc0] %vm3423, %v3413
  %s3432 = scalar_lea.vmem %s0, 382
  %s3433 = smov 3
  %v3434 = vld [vmem:[%s3432] ss:$-164 sm:%s3433]
  %s3435 = scalar_lea.vmem %s0, 102
  %s3436 = smov 12
  %v3437 = vld [vmem:[%s3435] ss:$108 sm:%s3436]
  %vm3438 = vcmask 1043458
  %v3439 = vsel %vm3438, %v3437, %v3434
  %s3440 = scalar_lea.vmem %s0, 1006
  %s3441 = smov 48
  %v3442 = vld [vmem:[%s3440] ss:$-164 sm:%s3441]
  %vm3443 = vcmask 1045508
  %v3444 = vsel %vm3443, %v3442, %v3439
  %s3445 = scalar_lea.vmem %s0, 86
  %s3446 = smov 192
  %v3447 = vld [vmem:[%s3445] ss:$108 sm:%s3446]
  %vm3448 = vcmask 1047558
  %v3449 = vsel %vm3448, %v3447, %v3444
  %s3450 = scalar_lea.vmem %s0, 134
  %s3451 = smov 3
  %v3452 = vld [vmem:[%s3450] ss:$108 sm:%s3451]
  %s3453 = scalar_lea.vmem %s0, 594
  %s3454 = smov 12
  %v3455 = vld [vmem:[%s3453] ss:$-172 sm:%s3454]
  %vm3456 = vcmask 1043458
  %v3457 = vsel %vm3456, %v3455, %v3452
  %s3458 = scalar_lea.vmem %s0, 4294966682
  %s3459 = smov 48
  %v3460 = vld [vmem:[%s3458] ss:$200 sm:%s3459]
  %vm3461 = vcmask 1045508
  %v3462 = vsel %vm3461, %v3460, %v3457
  %s3463 = scalar_lea.vmem %s0, 622
  %s3464 = smov 192
  %v3465 = vld [vmem:[%s3463] ss:$-68 sm:%s3464]
  %vm3466 = vcmask 1047558
  %v3467 = vsel %vm3466, %v3465, %v3462
  %vm3468 = vcmask 523264
  %v3469 = vsel %vm3468, %v3467, %v3449
  %3470 = vrot.lane.b32.xlu0 %v3469, 64
  %v3471 = vpop.permute.xlu0 %3470
  %vm3472 = vcmask 261120
  %s3473 = scalar_lea.vmem %s1, 352
  %3474 = vst.msk [vmem:[%s3473] ss:$-159 sm:$0x3] %vm3472, %v3471
  %s3475 = scalar_lea.vmem %s1, 96
  %3476 = vst.msk [vmem:[%s3475] ss:$97 sm:$0xc] %vm3472, %v3471
  %s3477 = scalar_lea.vmem %s1, 960
  %3478 = vst.msk [vmem:[%s3477] ss:$-159 sm:$0x30] %vm3472, %v3471
  %s3479 = scalar_lea.vmem %s1, 96
  %3480 = vst.msk [vmem:[%s3479] ss:$97 sm:$0xc0] %vm3472, %v3471
  %vm3481 = vcmask 1048064
  %s3482 = scalar_lea.vmem %s1, 128
  %3483 = vst.msk [vmem:[%s3482] ss:$97 sm:$0x3] %vm3481, %v3471
  %s3484 = scalar_lea.vmem %s1, 544
  %3485 = vst.msk [vmem:[%s3484] ss:$-159 sm:$0xc] %vm3481, %v3471
  %s3486 = scalar_lea.vmem %s1, 4294966688
  %3487 = vst.msk [vmem:[%s3486] ss:$193 sm:$0x30] %vm3481, %v3471
  %s3488 = scalar_lea.vmem %s1, 576
  %3489 = vst.msk [vmem:[%s3488] ss:$-63 sm:$0xc0] %vm3481, %v3471
  %s3490 = scalar_lea.vmem %s0, 558
  %s3491 = smov 3
  %v3492 = vld [vmem:[%s3490] ss:$-68 sm:%s3491]
  %s3493 = scalar_lea.vmem %s0, 374
  %s3494 = smov 12
  %v3495 = vld [vmem:[%s3493] ss:$108 sm:%s3494]
  %vm3496 = vcmask 1043458
  %v3497 = vsel %vm3496, %v3495, %v3492
  %s3498 = scalar_lea.vmem %s0, 798
  %s3499 = smov 48
  %v3500 = vld [vmem:[%s3498] ss:$-68 sm:%s3499]
  %vm3501 = vcmask 1045508
  %v3502 = vsel %vm3501, %v3500, %v3497
  %s3503 = scalar_lea.vmem %s0, 534
  %s3504 = smov 192
  %v3505 = vld [vmem:[%s3503] ss:$108 sm:%s3504]
  %vm3506 = vcmask 1047558
  %v3507 = vsel %vm3506, %v3505, %v3502
  %s3508 = scalar_lea.vmem %s0, 218
  %s3509 = smov 3
  %v3510 = vld [vmem:[%s3508] ss:$100 sm:%s3509]
  %s3511 = scalar_lea.vmem %s0, 670
  %s3512 = smov 12
  %v3513 = vld [vmem:[%s3511] ss:$-164 sm:%s3512]
  %vm3514 = vcmask 1043458
  %v3515 = vsel %vm3514, %v3513, %v3510
  %s3516 = scalar_lea.vmem %s0, 4294965750
  %s3517 = smov 48
  %v3518 = vld [vmem:[%s3516] ss:$456 sm:%s3517]
  %vm3519 = vcmask 1045508
  %v3520 = vsel %vm3519, %v3518, %v3515
  %s3521 = scalar_lea.vmem %s0, 1426
  %s3522 = smov 192
  %v3523 = vld [vmem:[%s3521] ss:$-172 sm:%s3522]
  %vm3524 = vcmask 1047558
  %v3525 = vsel %vm3524, %v3523, %v3520
  %vm3526 = vcmask 523264
  %v3527 = vsel %vm3526, %v3525, %v3507
  %3528 = vrot.lane.b32.xlu0 %v3527, 64
  %v3529 = vpop.permute.xlu0 %3528
  %vm3530 = vcmask 261120
  %s3531 = scalar_lea.vmem %s1, 512
  %3532 = vst.msk [vmem:[%s3531] ss:$-63 sm:$0x3] %vm3530, %v3529
  %s3533 = scalar_lea.vmem %s1, 352
  %3534 = vst.msk [vmem:[%s3533] ss:$97 sm:$0xc] %vm3530, %v3529
  %s3535 = scalar_lea.vmem %s1, 736
  %3536 = vst.msk [vmem:[%s3535] ss:$-63 sm:$0x30] %vm3530, %v3529
  %s3537 = scalar_lea.vmem %s1, 512
  %3538 = vst.msk [vmem:[%s3537] ss:$97 sm:$0xc0] %vm3530, %v3529
  %vm3539 = vcmask 1048064
  %s3540 = scalar_lea.vmem %s1, 192
  %3541 = vst.msk [vmem:[%s3540] ss:$97 sm:$0x3] %vm3539, %v3529
  %s3542 = scalar_lea.vmem %s1, 640
  %3543 = vst.msk [vmem:[%s3542] ss:$-159 sm:$0xc] %vm3539, %v3529
  %s3544 = scalar_lea.vmem %s1, 4294965888
  %3545 = vst.msk [vmem:[%s3544] ss:$417 sm:$0x30] %vm3539, %v3529
  %s3546 = scalar_lea.vmem %s1, 1312
  %3547 = vst.msk [vmem:[%s3546] ss:$-159 sm:$0xc0] %vm3539, %v3529
  %s3548 = scalar_lea.vmem %s0, 830
  %s3549 = smov 3
  %v3550 = vld [vmem:[%s3548] ss:$-164 sm:%s3549]
  %s3551 = scalar_lea.vmem %s0, 550
  %s3552 = smov 12
  %v3553 = vld [vmem:[%s3551] ss:$108 sm:%s3552]
  %vm3554 = vcmask 1043458
  %v3555 = vsel %vm3554, %v3553, %v3550
  %s3556 = scalar_lea.vmem %s0, 1454
  %s3557 = smov 48
  %v3558 = vld [vmem:[%s3556] ss:$-164 sm:%s3557]
  %vm3559 = vcmask 1045508
  %v3560 = vsel %vm3559, %v3558, %v3555
  %s3561 = scalar_lea.vmem %s0, 4294966694
  %s3562 = smov 192
  %v3563 = vld [vmem:[%s3561] ss:$108 sm:%s3562]
  %vm3564 = vcmask 1047558
  %v3565 = vsel %vm3564, %v3563, %v3560
  %s3566 = scalar_lea.vmem %s0, 310
  %s3567 = smov 3
  %v3568 = vld [vmem:[%s3566] ss:$108 sm:%s3567]
  %s3569 = scalar_lea.vmem %s0, 578
  %s3570 = smov 12
  %v3571 = vld [vmem:[%s3569] ss:$-76 sm:%s3570]
  %vm3572 = vcmask 1043458
  %v3573 = vsel %vm3572, %v3571, %v3568
  %s3574 = scalar_lea.vmem %s0, 4294966250
  %s3575 = smov 48
  %v3576 = vld [vmem:[%s3574] ss:$376 sm:%s3575]
  %vm3577 = vcmask 1045508
  %v3578 = vsel %vm3577, %v3576, %v3573
  %s3579 = scalar_lea.vmem %s0, 1470
  %s3580 = smov 192
  %v3581 = vld [vmem:[%s3579] ss:$-164 sm:%s3580]
  %vm3582 = vcmask 1047558
  %v3583 = vsel %vm3582, %v3581, %v3578
  %vm3584 = vcmask 523264
  %v3585 = vsel %vm3584, %v3583, %v3565
  %3586 = vrot.lane.b32.xlu0 %v3585, 64
  %v3587 = vpop.permute.xlu0 %3586
  %vm3588 = vcmask 261120
  %s3589 = scalar_lea.vmem %s1, 768
  %3590 = vst.msk [vmem:[%s3589] ss:$-159 sm:$0x3] %vm3588, %v3587
  %s3591 = scalar_lea.vmem %s1, 512
  %3592 = vst.msk [vmem:[%s3591] ss:$97 sm:$0xc] %vm3588, %v3587
  %s3593 = scalar_lea.vmem %s1, 1376
  %3594 = vst.msk [vmem:[%s3593] ss:$-159 sm:$0x30] %vm3588, %v3587
  %s3595 = scalar_lea.vmem %s1, 4294966754
  %3596 = vst.msk [vmem:[%s3595] ss:$97 sm:$0xc0] %vm3588, %v3587
  %vm3597 = vcmask 1048064
  %s3598 = scalar_lea.vmem %s1, 288
  %3599 = vst.msk [vmem:[%s3598] ss:$97 sm:$0x3] %vm3597, %v3587
  %s3600 = scalar_lea.vmem %s1, 512
  %3601 = vst.msk [vmem:[%s3600] ss:$-63 sm:$0xc] %vm3597, %v3587
  %s3602 = scalar_lea.vmem %s1, 4294966304
  %3603 = vst.msk [vmem:[%s3602] ss:$353 sm:$0x30] %vm3597, %v3587
  %s3604 = scalar_lea.vmem %s1, 1408
  %3605 = vst.msk [vmem:[%s3604] ss:$-159 sm:$0xc0] %vm3597, %v3587
  %s3606 = scalar_lea.vmem %s0, 1006
  %s3607 = smov 3
  %v3608 = vld [vmem:[%s3606] ss:$-68 sm:%s3607]
  %s3609 = scalar_lea.vmem %s0, 822
  %s3610 = smov 12
  %v3611 = vld [vmem:[%s3609] ss:$108 sm:%s3610]
  %vm3612 = vcmask 1043458
  %v3613 = vsel %vm3612, %v3611, %v3608
  %s3614 = scalar_lea.vmem %s0, 1246
  %s3615 = smov 48
  %v3616 = vld [vmem:[%s3614] ss:$-68 sm:%s3615]
  %vm3617 = vcmask 1045508
  %v3618 = vsel %vm3617, %v3616, %v3613
  %s3619 = scalar_lea.vmem %s0, 4294966870
  %s3620 = smov 192
  %v3621 = vld [vmem:[%s3619] ss:$108 sm:%s3620]
  %vm3622 = vcmask 1047558
  %v3623 = vsel %vm3622, %v3621, %v3618
  %s3624 = scalar_lea.vmem %s0, 490
  %s3625 = smov 3
  %v3626 = vld [vmem:[%s3624] ss:$100 sm:%s3625]
  %s3627 = scalar_lea.vmem %s0, 654
  %s3628 = smov 12
  %v3629 = vld [vmem:[%s3627] ss:$-68 sm:%s3628]
  %vm3630 = vcmask 1043458
  %v3631 = vsel %vm3630, %v3629, %v3626
  %s3632 = scalar_lea.vmem %s0, 4294965738
  %s3633 = smov 48
  %v3634 = vld [vmem:[%s3632] ss:$548 sm:%s3633]
  %vm3635 = vcmask 1045508
  %v3636 = vsel %vm3635, %v3634, %v3631
  %s3637 = scalar_lea.vmem %s0, 1670
  %s3638 = smov 192
  %v3639 = vld [vmem:[%s3637] ss:$-168 sm:%s3638]
  %vm3640 = vcmask 1047558
  %v3641 = vsel %vm3640, %v3639, %v3636
  %vm3642 = vcmask 523264
  %v3643 = vsel %vm3642, %v3641, %v3623
  %3644 = vrot.lane.b32.xlu0 %v3643, 64
  %v3645 = vpop.permute.xlu0 %3644
  %vm3646 = vcmask 261120
  %s3647 = scalar_lea.vmem %s1, 928
  %3648 = vst.msk [vmem:[%s3647] ss:$-63 sm:$0x3] %vm3646, %v3645
  %s3649 = scalar_lea.vmem %s1, 768
  %3650 = vst.msk [vmem:[%s3649] ss:$97 sm:$0xc] %vm3646, %v3645
  %s3651 = scalar_lea.vmem %s1, 1152
  %3652 = vst.msk [vmem:[%s3651] ss:$-63 sm:$0x30] %vm3646, %v3645
  %s3653 = scalar_lea.vmem %s1, 4294966914
  %3654 = vst.msk [vmem:[%s3653] ss:$97 sm:$0xc0] %vm3646, %v3645
  %vm3655 = vcmask 1048064
  %s3656 = scalar_lea.vmem %s1, 448
  %3657 = vst.msk [vmem:[%s3656] ss:$97 sm:$0x3] %vm3655, %v3645
  %s3658 = scalar_lea.vmem %s1, 608
  %3659 = vst.msk [vmem:[%s3658] ss:$-63 sm:$0xc] %vm3655, %v3645
  %s3660 = scalar_lea.vmem %s1, 4294965824
  %3661 = vst.msk [vmem:[%s3660] ss:$513 sm:$0x30] %vm3655, %v3645
  %s3662 = scalar_lea.vmem %s1, 1568
  %3663 = vst.msk [vmem:[%s3662] ss:$-159 sm:$0xc0] %vm3655, %v3645
  %s3664 = scalar_lea.vmem %s0, 1278
  %s3665 = smov 3
  %v3666 = vld [vmem:[%s3664] ss:$-164 sm:%s3665]
  %s3667 = scalar_lea.vmem %s0, 998
  %s3668 = smov 12
  %v3669 = vld [vmem:[%s3667] ss:$108 sm:%s3668]
  %vm3670 = vcmask 1043458
  %v3671 = vsel %vm3670, %v3669, %v3666
  %s3672 = scalar_lea.vmem %s0, 1902
  %s3673 = smov 48
  %v3674 = vld [vmem:[%s3672] ss:$-164 sm:%s3673]
  %vm3675 = vcmask 1045508
  %v3676 = vsel %vm3675, %v3674, %v3671
  %s3677 = scalar_lea.vmem %s0, 4294967142
  %s3678 = smov 192
  %v3679 = vld [vmem:[%s3677] ss:$108 sm:%s3678]
  %vm3680 = vcmask 1047558
  %v3681 = vsel %vm3680, %v3679, %v3676
  %s3682 = scalar_lea.vmem %s0, 582
  %s3683 = smov 3
  %v3684 = vld [vmem:[%s3682] ss:$108 sm:%s3683]
  %s3685 = scalar_lea.vmem %s0, 1042
  %s3686 = smov 12
  %v3687 = vld [vmem:[%s3685] ss:$-172 sm:%s3686]
  %vm3688 = vcmask 1043458
  %v3689 = vsel %vm3688, %v3687, %v3684
  %s3690 = scalar_lea.vmem %s0, 4294965798
  %s3691 = smov 48
  %v3692 = vld [vmem:[%s3690] ss:$556 sm:%s3691]
  %vm3693 = vcmask 1045508
  %v3694 = vsel %vm3693, %v3692, %v3689
  %s3695 = scalar_lea.vmem %s0, 2330
  %s3696 = smov 192
  %v3697 = vld [vmem:[%s3695] ss:$-248 sm:%s3696]
  %vm3698 = vcmask 1047558
  %v3699 = vsel %vm3698, %v3697, %v3694
  %vm3700 = vcmask 523264
  %v3701 = vsel %vm3700, %v3699, %v3681
  %3702 = vrot.lane.b32.xlu0 %v3701, 64
  %v3703 = vpop.permute.xlu0 %3702
  %vm3704 = vcmask 261120
  %s3705 = scalar_lea.vmem %s1, 1184
  %3706 = vst.msk [vmem:[%s3705] ss:$-159 sm:$0x3] %vm3704, %v3703
  %s3707 = scalar_lea.vmem %s1, 928
  %3708 = vst.msk [vmem:[%s3707] ss:$97 sm:$0xc] %vm3704, %v3703
  %s3709 = scalar_lea.vmem %s1, 1792
  %3710 = vst.msk [vmem:[%s3709] ss:$-159 sm:$0x30] %vm3704, %v3703
  %s3711 = scalar_lea.vmem %s1, 4294967170
  %3712 = vst.msk [vmem:[%s3711] ss:$97 sm:$0xc0] %vm3704, %v3703
  %vm3713 = vcmask 1048064
  %s3714 = scalar_lea.vmem %s1, 544
  %3715 = vst.msk [vmem:[%s3714] ss:$97 sm:$0x3] %vm3713, %v3703
  %s3716 = scalar_lea.vmem %s1, 960
  %3717 = vst.msk [vmem:[%s3716] ss:$-159 sm:$0xc] %vm3713, %v3703
  %s3718 = scalar_lea.vmem %s1, 4294965920
  %3719 = vst.msk [vmem:[%s3718] ss:$513 sm:$0x30] %vm3713, %v3703
  %s3720 = scalar_lea.vmem %s1, 2112
  %3721 = vst.msk [vmem:[%s3720] ss:$-223 sm:$0xc0] %vm3713, %v3703
  %s3722 = scalar_lea.vmem %s0, 670
  %s3723 = smov 3
  %v3724 = vld [vmem:[%s3722] ss:$108 sm:%s3723]
  %s3725 = scalar_lea.vmem %s0, 582
  %s3726 = smov 12
  %v3727 = vld [vmem:[%s3725] ss:$-164 sm:%s3726]
  %vm3728 = vcmask 1043458
  %v3729 = vsel %vm3728, %v3727, %v3724
  %s3730 = scalar_lea.vmem %s0, 4294966878
  %s3731 = smov 48
  %v3732 = vld [vmem:[%s3730] ss:$108 sm:%s3731]
  %vm3733 = vcmask 1045508
  %v3734 = vsel %vm3733, %v3732, %v3729
  %s3735 = scalar_lea.vmem %s0, 2438
  %s3736 = smov 192
  %v3737 = vld [vmem:[%s3735] ss:$-340 sm:%s3736]
  %vm3738 = vcmask 1047558
  %v3739 = vsel %vm3738, %v3737, %v3734
  %s3740 = scalar_lea.vmem %s0, 666
  %s3741 = smov 3
  %v3742 = vld [vmem:[%s3740] ss:$100 sm:%s3741]
  %s3743 = scalar_lea.vmem %s0, 1118
  %s3744 = smov 12
  %v3745 = vld [vmem:[%s3743] ss:$-164 sm:%s3744]
  %vm3746 = vcmask 1043458
  %v3747 = vsel %vm3746, %v3745, %v3742
  %s3748 = scalar_lea.vmem %s0, 794
  %s3749 = smov 48
  %v3750 = vld [vmem:[%s3748] ss:$28 sm:%s3749]
  %vm3751 = vcmask 1045508
  %v3752 = vsel %vm3751, %v3750, %v3747
  %s3753 = scalar_lea.vmem %s0, 3766
  %s3754 = smov 192
  %v3755 = vld [vmem:[%s3753] ss:$-516 sm:%s3754]
  %vm3756 = vcmask 1047558
  %v3757 = vsel %vm3756, %v3755, %v3752
  %vm3758 = vcmask 523264
  %v3759 = vsel %vm3758, %v3757, %v3739
  %3760 = vrot.lane.b32.xlu0 %v3759, 64
  %v3761 = vpop.permute.xlu0 %3760
  %vm3762 = vcmask 261120
  %s3763 = scalar_lea.vmem %s1, 616
  %3764 = vst.msk [vmem:[%s3763] ss:$97 sm:$0x3] %vm3762, %v3761
  %s3765 = scalar_lea.vmem %s1, 552
  %3766 = vst.msk [vmem:[%s3765] ss:$-159 sm:$0xc] %vm3762, %v3761
  %s3767 = scalar_lea.vmem %s1, 4294966920
  %3768 = vst.msk [vmem:[%s3767] ss:$97 sm:$0x30] %vm3762, %v3761
  %s3769 = scalar_lea.vmem %s1, 2280
  %3770 = vst.msk [vmem:[%s3769] ss:$-319 sm:$0xc0] %vm3762, %v3761
  %vm3771 = vcmask 1048064
  %s3772 = scalar_lea.vmem %s1, 608
  %3773 = vst.msk [vmem:[%s3772] ss:$97 sm:$0x3] %vm3771, %v3761
  %s3774 = scalar_lea.vmem %s1, 1056
  %3775 = vst.msk [vmem:[%s3774] ss:$-159 sm:$0xc] %vm3771, %v3761
  %s3776 = scalar_lea.vmem %s1, 700
  %3777 = vst.msk [vmem:[%s3776] ss:$34 sm:$0x30] %vm3771, %v3761
  %s3778 = scalar_lea.vmem %s1, 3489
  %3779 = vst.msk [vmem:[%s3778] ss:$-479 sm:$0xc0] %vm3771, %v3761
  %s3780 = scalar_lea.vmem %s0, 942
  %s3781 = smov 3
  %v3782 = vld [vmem:[%s3780] ss:$108 sm:%s3781]
  %s3783 = scalar_lea.vmem %s0, 566
  %s3784 = smov 12
  %v3785 = vld [vmem:[%s3783] ss:$-68 sm:%s3784]
  %vm3786 = vcmask 1043458
  %v3787 = vsel %vm3786, %v3785, %v3782
  %s3788 = scalar_lea.vmem %s0, 4294967054
  %s3789 = smov 48
  %v3790 = vld [vmem:[%s3788] ss:$108 sm:%s3789]
  %vm3791 = vcmask 1045508
  %v3792 = vsel %vm3791, %v3790, %v3787
  %s3793 = scalar_lea.vmem %s0, 2886
  %s3794 = smov 192
  %v3795 = vld [vmem:[%s3793] ss:$-340 sm:%s3794]
  %vm3796 = vcmask 1047558
  %v3797 = vsel %vm3796, %v3795, %v3792
  %s3798 = scalar_lea.vmem %s0, 758
  %s3799 = smov 3
  %v3800 = vld [vmem:[%s3798] ss:$108 sm:%s3799]
  %s3801 = scalar_lea.vmem %s0, 1026
  %s3802 = smov 12
  %v3803 = vld [vmem:[%s3801] ss:$-76 sm:%s3802]
  %vm3804 = vcmask 1043458
  %v3805 = vsel %vm3804, %v3803, %v3800
  %s3806 = scalar_lea.vmem %s0, 970
  %s3807 = smov 48
  %v3808 = vld [vmem:[%s3806] ss:$28 sm:%s3807]
  %vm3809 = vcmask 1045508
  %v3810 = vsel %vm3809, %v3808, %v3805
  %s3811 = scalar_lea.vmem %s0, 3914
  %s3812 = smov 192
  %v3813 = vld [vmem:[%s3811] ss:$-524 sm:%s3812]
  %vm3814 = vcmask 1047558
  %v3815 = vsel %vm3814, %v3813, %v3810
  %vm3816 = vcmask 523264
  %v3817 = vsel %vm3816, %v3815, %v3797
  %3818 = vrot.lane.b32.xlu0 %v3817, 64
  %v3819 = vpop.permute.xlu0 %3818
  %vm3820 = vcmask 261120
  %s3821 = scalar_lea.vmem %s1, 872
  %3822 = vst.msk [vmem:[%s3821] ss:$97 sm:$0x3] %vm3820, %v3819
  %s3823 = scalar_lea.vmem %s1, 520
  %3824 = vst.msk [vmem:[%s3823] ss:$-63 sm:$0xc] %vm3820, %v3819
  %s3825 = scalar_lea.vmem %s1, 4294967080
  %3826 = vst.msk [vmem:[%s3825] ss:$97 sm:$0x30] %vm3820, %v3819
  %s3827 = scalar_lea.vmem %s1, 2696
  %3828 = vst.msk [vmem:[%s3827] ss:$-319 sm:$0xc0] %vm3820, %v3819
  %vm3829 = vcmask 1048064
  %s3830 = scalar_lea.vmem %s1, 704
  %3831 = vst.msk [vmem:[%s3830] ss:$97 sm:$0x3] %vm3829, %v3819
  %s3832 = scalar_lea.vmem %s1, 928
  %3833 = vst.msk [vmem:[%s3832] ss:$-63 sm:$0xc] %vm3829, %v3819
  %s3834 = scalar_lea.vmem %s1, 860
  %3835 = vst.msk [vmem:[%s3834] ss:$34 sm:$0x30] %vm3829, %v3819
  %s3836 = scalar_lea.vmem %s1, 3585
  %3837 = vst.msk [vmem:[%s3836] ss:$-479 sm:$0xc0] %vm3829, %v3819
  %s3838 = scalar_lea.vmem %s0, 1118
  %s3839 = smov 3
  %v3840 = vld [vmem:[%s3838] ss:$108 sm:%s3839]
  %s3841 = scalar_lea.vmem %s0, 1030
  %s3842 = smov 12
  %v3843 = vld [vmem:[%s3841] ss:$-164 sm:%s3842]
  %vm3844 = vcmask 1043458
  %v3845 = vsel %vm3844, %v3843, %v3840
  %s3846 = scalar_lea.vmem %s0, 30
  %s3847 = smov 48
  %v3848 = vld [vmem:[%s3846] ss:$108 sm:%s3847]
  %vm3849 = vcmask 1045508
  %v3850 = vsel %vm3849, %v3848, %v3845
  %s3851 = scalar_lea.vmem %s0, 3334
  %s3852 = smov 192
  %v3853 = vld [vmem:[%s3851] ss:$-340 sm:%s3852]
  %vm3854 = vcmask 1047558
  %v3855 = vsel %vm3854, %v3853, %v3850
  %s3856 = scalar_lea.vmem %s0, 938
  %s3857 = smov 3
  %v3858 = vld [vmem:[%s3856] ss:$100 sm:%s3857]
  %s3859 = scalar_lea.vmem %s0, 1102
  %s3860 = smov 12
  %v3861 = vld [vmem:[%s3859] ss:$-68 sm:%s3860]
  %vm3862 = vcmask 1043458
  %v3863 = vsel %vm3862, %v3861, %v3858
  %s3864 = scalar_lea.vmem %s0, 710
  %s3865 = smov 48
  %v3866 = vld [vmem:[%s3864] ss:$116 sm:%s3865]
  %vm3867 = vcmask 1045508
  %v3868 = vsel %vm3867, %v3866, %v3863
  %s3869 = scalar_lea.vmem %s0, 4614
  %s3870 = smov 192
  %v3871 = vld [vmem:[%s3869] ss:$-612 sm:%s3870]
  %vm3872 = vcmask 1047558
  %v3873 = vsel %vm3872, %v3871, %v3868
  %vm3874 = vcmask 523264
  %v3875 = vsel %vm3874, %v3873, %v3855
  %3876 = vrot.lane.b32.xlu0 %v3875, 64
  %v3877 = vpop.permute.xlu0 %3876
  %vm3878 = vcmask 261120
  %s3879 = scalar_lea.vmem %s1, 1032
  %3880 = vst.msk [vmem:[%s3879] ss:$97 sm:$0x3] %vm3878, %v3877
  %s3881 = scalar_lea.vmem %s1, 968
  %3882 = vst.msk [vmem:[%s3881] ss:$-159 sm:$0xc] %vm3878, %v3877
  %s3883 = scalar_lea.vmem %s1, 40
  %3884 = vst.msk [vmem:[%s3883] ss:$97 sm:$0x30] %vm3878, %v3877
  %s3885 = scalar_lea.vmem %s1, 3112
  %3886 = vst.msk [vmem:[%s3885] ss:$-319 sm:$0xc0] %vm3878, %v3877
  %vm3887 = vcmask 1048064
  %s3888 = scalar_lea.vmem %s1, 864
  %3889 = vst.msk [vmem:[%s3888] ss:$97 sm:$0x3] %vm3887, %v3877
  %s3890 = scalar_lea.vmem %s1, 1024
  %3891 = vst.msk [vmem:[%s3890] ss:$-63 sm:$0xc] %vm3887, %v3877
  %s3892 = scalar_lea.vmem %s1, 700
  %3893 = vst.msk [vmem:[%s3892] ss:$98 sm:$0x30] %vm3887, %v3877
  %s3894 = scalar_lea.vmem %s1, 4321
  %3895 = vst.msk [vmem:[%s3894] ss:$-575 sm:$0xc0] %vm3887, %v3877
  %s3896 = scalar_lea.vmem %s0, 878
  %s3897 = smov 3
  %v3898 = vld [vmem:[%s3896] ss:$-68 sm:%s3897]
  %s3899 = scalar_lea.vmem %s0, 422
  %s3900 = smov 12
  %v3901 = vld [vmem:[%s3899] ss:$108 sm:%s3900]
  %vm3902 = vcmask 1043458
  %v3903 = vsel %vm3902, %v3901, %v3898
  %s3904 = scalar_lea.vmem %s0, 4294967022
  %s3905 = smov 48
  %v3906 = vld [vmem:[%s3904] ss:$108 sm:%s3905]
  %vm3907 = vcmask 1045508
  %v3908 = vsel %vm3907, %v3906, %v3903
  %s3909 = scalar_lea.vmem %s0, 502
  %s3910 = smov 192
  %v3911 = vld [vmem:[%s3909] ss:$-68 sm:%s3910]
  %vm3912 = vcmask 1047558
  %v3913 = vsel %vm3912, %v3911, %v3908
  %s3914 = scalar_lea.vmem %s0, 1030
  %s3915 = smov 3
  %v3916 = vld [vmem:[%s3914] ss:$108 sm:%s3915]
  %s3917 = scalar_lea.vmem %s0, 1490
  %s3918 = smov 12
  %v3919 = vld [vmem:[%s3917] ss:$-172 sm:%s3918]
  %vm3920 = vcmask 1043458
  %v3921 = vsel %vm3920, %v3919, %v3916
  %s3922 = scalar_lea.vmem %s0, 3522
  %s3923 = smov 48
  %v3924 = vld [vmem:[%s3922] ss:$-620 sm:%s3923]
  %vm3925 = vcmask 1045508
  %v3926 = vsel %vm3925, %v3924, %v3921
  %s3927 = scalar_lea.vmem %s0, 538
  %s3928 = smov 192
  %v3929 = vld [vmem:[%s3927] ss:$-76 sm:%s3928]
  %vm3930 = vcmask 1047558
  %v3931 = vsel %vm3930, %v3929, %v3926
  %vm3932 = vcmask 523264
  %v3933 = vsel %vm3932, %v3931, %v3913
  %3934 = vrot.lane.b32.xlu0 %v3933, 64
  %v3935 = vpop.permute.xlu0 %3934
  %vm3936 = vcmask 261120
  %s3937 = scalar_lea.vmem %s1, 810
  %3938 = vst.msk [vmem:[%s3937] ss:$-63 sm:$0x3] %vm3936, %v3935
  %s3939 = scalar_lea.vmem %s1, 394
  %3940 = vst.msk [vmem:[%s3939] ss:$97 sm:$0xc] %vm3936, %v3935
  %s3941 = scalar_lea.vmem %s1, 4294967052
  %3942 = vst.msk [vmem:[%s3941] ss:$97 sm:$0x30] %vm3936, %v3935
  %s3943 = scalar_lea.vmem %s1, 460
  %3944 = vst.msk [vmem:[%s3943] ss:$-63 sm:$0xc0] %vm3936, %v3935
  %vm3945 = vcmask 1048064
  %s3946 = scalar_lea.vmem %s1, 960
  %3947 = vst.msk [vmem:[%s3946] ss:$97 sm:$0x3] %vm3945, %v3935
  %s3948 = scalar_lea.vmem %s1, 1376
  %3949 = vst.msk [vmem:[%s3948] ss:$-159 sm:$0xc] %vm3945, %v3935
  %s3950 = scalar_lea.vmem %s1, 3267
  %3951 = vst.msk [vmem:[%s3950] ss:$-575 sm:$0x30] %vm3945, %v3935
  %s3952 = scalar_lea.vmem %s1, 451
  %3953 = vst.msk [vmem:[%s3952] ss:$-63 sm:$0xc0] %vm3945, %v3935
  %s3954 = scalar_lea.vmem %s0, 1150
  %s3955 = smov 3
  %v3956 = vld [vmem:[%s3954] ss:$-164 sm:%s3955]
  %s3957 = scalar_lea.vmem %s0, 694
  %s3958 = smov 12
  %v3959 = vld [vmem:[%s3957] ss:$108 sm:%s3958]
  %vm3960 = vcmask 1043458
  %v3961 = vsel %vm3960, %v3959, %v3956
  %s3962 = scalar_lea.vmem %s0, 4294967198
  %s3963 = smov 48
  %v3964 = vld [vmem:[%s3962] ss:$108 sm:%s3963]
  %vm3965 = vcmask 1045508
  %v3966 = vsel %vm3965, %v3964, %v3961
  %s3967 = scalar_lea.vmem %s0, 1350
  %s3968 = smov 192
  %v3969 = vld [vmem:[%s3967] ss:$-164 sm:%s3968]
  %vm3970 = vcmask 1047558
  %v3971 = vsel %vm3970, %v3969, %v3966
  %s3972 = scalar_lea.vmem %s0, 1114
  %s3973 = smov 3
  %v3974 = vld [vmem:[%s3972] ss:$100 sm:%s3973]
  %s3975 = scalar_lea.vmem %s0, 1566
  %s3976 = smov 12
  %v3977 = vld [vmem:[%s3975] ss:$-164 sm:%s3976]
  %vm3978 = vcmask 1043458
  %v3979 = vsel %vm3978, %v3977, %v3974
  %s3980 = scalar_lea.vmem %s0, 3182
  %s3981 = smov 48
  %v3982 = vld [vmem:[%s3980] ss:$-516 sm:%s3981]
  %vm3983 = vcmask 1045508
  %v3984 = vsel %vm3983, %v3982, %v3979
  %s3985 = scalar_lea.vmem %s0, 1238
  %s3986 = smov 192
  %v3987 = vld [vmem:[%s3985] ss:$-164 sm:%s3986]
  %vm3988 = vcmask 1047558
  %v3989 = vsel %vm3988, %v3987, %v3984
  %vm3990 = vcmask 523264
  %v3991 = vsel %vm3990, %v3989, %v3971
  %3992 = vrot.lane.b32.xlu0 %v3991, 64
  %v3993 = vpop.permute.xlu0 %3992
  %vm3994 = vcmask 261120
  %s3995 = scalar_lea.vmem %s1, 1066
  %3996 = vst.msk [vmem:[%s3995] ss:$-159 sm:$0x3] %vm3994, %v3993
  %s3997 = scalar_lea.vmem %s1, 650
  %3998 = vst.msk [vmem:[%s3997] ss:$97 sm:$0xc] %vm3994, %v3993
  %s3999 = scalar_lea.vmem %s1, 4294967212
  %4000 = vst.msk [vmem:[%s3999] ss:$97 sm:$0x30] %vm3994, %v3993
  %s4001 = scalar_lea.vmem %s1, 1292
  %4002 = vst.msk [vmem:[%s4001] ss:$-159 sm:$0xc0] %vm3994, %v3993
  %vm4003 = vcmask 1048064
  %s4004 = scalar_lea.vmem %s1, 1024
  %4005 = vst.msk [vmem:[%s4004] ss:$97 sm:$0x3] %vm4003, %v3993
  %s4006 = scalar_lea.vmem %s1, 1472
  %4007 = vst.msk [vmem:[%s4006] ss:$-159 sm:$0xc] %vm4003, %v3993
  %s4008 = scalar_lea.vmem %s1, 2947
  %4009 = vst.msk [vmem:[%s4008] ss:$-479 sm:$0x30] %vm4003, %v3993
  %s4010 = scalar_lea.vmem %s1, 1187
  %4011 = vst.msk [vmem:[%s4010] ss:$-159 sm:$0xc0] %vm4003, %v3993
  %s4012 = scalar_lea.vmem %s0, 1326
  %s4013 = smov 3
  %v4014 = vld [vmem:[%s4012] ss:$-68 sm:%s4013]
  %s4015 = scalar_lea.vmem %s0, 870
  %s4016 = smov 12
  %v4017 = vld [vmem:[%s4015] ss:$108 sm:%s4016]
  %vm4018 = vcmask 1043458
  %v4019 = vsel %vm4018, %v4017, %v4014
  %s4020 = scalar_lea.vmem %s0, 174
  %s4021 = smov 48
  %v4022 = vld [vmem:[%s4020] ss:$108 sm:%s4021]
  %vm4023 = vcmask 1045508
  %v4024 = vsel %vm4023, %v4022, %v4019
  %s4025 = scalar_lea.vmem %s0, 950
  %s4026 = smov 192
  %v4027 = vld [vmem:[%s4025] ss:$-68 sm:%s4026]
  %vm4028 = vcmask 1047558
  %v4029 = vsel %vm4028, %v4027, %v4024
  %s4030 = scalar_lea.vmem %s0, 1206
  %s4031 = smov 3
  %v4032 = vld [vmem:[%s4030] ss:$108 sm:%s4031]
  %s4033 = scalar_lea.vmem %s0, 1474
  %s4034 = smov 12
  %v4035 = vld [vmem:[%s4033] ss:$-76 sm:%s4034]
  %vm4036 = vcmask 1043458
  %v4037 = vsel %vm4036, %v4035, %v4032
  %s4038 = scalar_lea.vmem %s0, 3314
  %s4039 = smov 48
  %v4040 = vld [vmem:[%s4038] ss:$-524 sm:%s4039]
  %vm4041 = vcmask 1045508
  %v4042 = vsel %vm4041, %v4040, %v4037
  %s4043 = scalar_lea.vmem %s0, 1386
  %s4044 = smov 192
  %v4045 = vld [vmem:[%s4043] ss:$-172 sm:%s4044]
  %vm4046 = vcmask 1047558
  %v4047 = vsel %vm4046, %v4045, %v4042
  %vm4048 = vcmask 523264
  %v4049 = vsel %vm4048, %v4047, %v4029
  %4050 = vrot.lane.b32.xlu0 %v4049, 64
  %v4051 = vpop.permute.xlu0 %4050
  %vm4052 = vcmask 261120
  %s4053 = scalar_lea.vmem %s1, 1226
  %4054 = vst.msk [vmem:[%s4053] ss:$-63 sm:$0x3] %vm4052, %v4051
  %s4055 = scalar_lea.vmem %s1, 810
  %4056 = vst.msk [vmem:[%s4055] ss:$97 sm:$0xc] %vm4052, %v4051
  %s4057 = scalar_lea.vmem %s1, 172
  %4058 = vst.msk [vmem:[%s4057] ss:$97 sm:$0x30] %vm4052, %v4051
  %s4059 = scalar_lea.vmem %s1, 876
  %4060 = vst.msk [vmem:[%s4059] ss:$-63 sm:$0xc0] %vm4052, %v4051
  %vm4061 = vcmask 1048064
  %s4062 = scalar_lea.vmem %s1, 1120
  %4063 = vst.msk [vmem:[%s4062] ss:$97 sm:$0x3] %vm4061, %v4051
  %s4064 = scalar_lea.vmem %s1, 1344
  %4065 = vst.msk [vmem:[%s4064] ss:$-63 sm:$0xc] %vm4061, %v4051
  %s4066 = scalar_lea.vmem %s1, 3043
  %4067 = vst.msk [vmem:[%s4066] ss:$-479 sm:$0x30] %vm4061, %v4051
  %s4068 = scalar_lea.vmem %s1, 1283
  %4069 = vst.msk [vmem:[%s4068] ss:$-159 sm:$0xc0] %vm4061, %v4051
  %s4070 = scalar_lea.vmem %s0, 782
  %s4071 = smov 3
  %v4072 = vld [vmem:[%s4070] ss:$108 sm:%s4071]
  %s4073 = scalar_lea.vmem %s0, 1142
  %s4074 = smov 12
  %v4075 = vld [vmem:[%s4073] ss:$-164 sm:%s4074]
  %vm4076 = vcmask 1043458
  %v4077 = vsel %vm4076, %v4075, %v4072
  %s4078 = scalar_lea.vmem %s0, 4294966990
  %s4079 = smov 48
  %v4080 = vld [vmem:[%s4078] ss:$108 sm:%s4079]
  %vm4081 = vcmask 1045508
  %v4082 = vsel %vm4081, %v4080, %v4077
  %s4083 = scalar_lea.vmem %s0, 4294966710
  %s4084 = smov 192
  %v4085 = vld [vmem:[%s4083] ss:$108 sm:%s4084]
  %vm4086 = vcmask 1047558
  %v4087 = vsel %vm4086, %v4085, %v4082
  %s4088 = scalar_lea.vmem %s0, 778
  %s4089 = smov 3
  %v4090 = vld [vmem:[%s4088] ss:$-348 sm:%s4089]
  %s4091 = scalar_lea.vmem %s0, 1058
  %s4092 = smov 12
  %v4093 = vld [vmem:[%s4091] ss:$-348 sm:%s4092]
  %vm4094 = vcmask 1043458
  %v4095 = vsel %vm4094, %v4093, %v4090
  %s4096 = scalar_lea.vmem %s0, 410
  %s4097 = smov 48
  %v4098 = vld [vmem:[%s4096] ss:$-72 sm:%s4097]
  %vm4099 = vcmask 1045508
  %v4100 = vsel %vm4099, %v4098, %v4095
  %s4101 = scalar_lea.vmem %s0, 4294966754
  %s4102 = smov 192
  %v4103 = vld [vmem:[%s4101] ss:$100 sm:%s4102]
  %vm4104 = vcmask 1047558
  %v4105 = vsel %vm4104, %v4103, %v4100
  %vm4106 = vcmask 523264
  %v4107 = vsel %vm4106, %v4105, %v4087
  %4108 = vrot.lane.b32.xlu0 %v4107, 64
  %v4109 = vpop.permute.xlu0 %4108
  %vm4110 = vcmask 261120
  %s4111 = scalar_lea.vmem %s1, 720
  %4112 = vst.msk [vmem:[%s4111] ss:$97 sm:$0x3] %vm4110, %v4109
  %s4113 = scalar_lea.vmem %s1, 1072
  %4114 = vst.msk [vmem:[%s4113] ss:$-159 sm:$0xc] %vm4110, %v4109
  %s4115 = scalar_lea.vmem %s1, 4294967024
  %4116 = vst.msk [vmem:[%s4115] ss:$97 sm:$0x30] %vm4110, %v4109
  %s4117 = scalar_lea.vmem %s1, 4294966768
  %4118 = vst.msk [vmem:[%s4117] ss:$97 sm:$0xc0] %vm4110, %v4109
  %vm4119 = vcmask 1048064
  %s4120 = scalar_lea.vmem %s1, 712
  %4121 = vst.msk [vmem:[%s4120] ss:$-319 sm:$0x3] %vm4119, %v4109
  %s4122 = scalar_lea.vmem %s1, 968
  %4123 = vst.msk [vmem:[%s4122] ss:$-319 sm:$0xc] %vm4119, %v4109
  %s4124 = scalar_lea.vmem %s1, 360
  %4125 = vst.msk [vmem:[%s4124] ss:$-63 sm:$0x30] %vm4119, %v4109
  %s4126 = scalar_lea.vmem %s1, 4294966760
  %4127 = vst.msk [vmem:[%s4126] ss:$97 sm:$0xc0] %vm4119, %v4109
  %s4128 = scalar_lea.vmem %s0, 1054
  %s4129 = smov 3
  %v4130 = vld [vmem:[%s4128] ss:$108 sm:%s4129]
  %s4131 = scalar_lea.vmem %s0, 1126
  %s4132 = smov 12
  %v4133 = vld [vmem:[%s4131] ss:$-68 sm:%s4132]
  %vm4134 = vcmask 1043458
  %v4135 = vsel %vm4134, %v4133, %v4130
  %s4136 = scalar_lea.vmem %s0, 4294967166
  %s4137 = smov 48
  %v4138 = vld [vmem:[%s4136] ss:$108 sm:%s4137]
  %vm4139 = vcmask 1045508
  %v4140 = vsel %vm4139, %v4138, %v4135
  %s4141 = scalar_lea.vmem %s0, 4294967158
  %s4142 = smov 192
  %v4143 = vld [vmem:[%s4141] ss:$108 sm:%s4142]
  %vm4144 = vcmask 1047558
  %v4145 = vsel %vm4144, %v4143, %v4140
  %s4146 = scalar_lea.vmem %s0, 870
  %s4147 = smov 3
  %v4148 = vld [vmem:[%s4146] ss:$-340 sm:%s4147]
  %s4149 = scalar_lea.vmem %s0, 1134
  %s4150 = smov 12
  %v4151 = vld [vmem:[%s4149] ss:$-340 sm:%s4150]
  %vm4152 = vcmask 1043458
  %v4153 = vsel %vm4152, %v4151, %v4148
  %s4154 = scalar_lea.vmem %s0, 4294967194
  %s4155 = smov 48
  %v4156 = vld [vmem:[%s4154] ss:$100 sm:%s4155]
  %vm4157 = vcmask 1045508
  %v4158 = vsel %vm4157, %v4156, %v4153
  %s4159 = scalar_lea.vmem %s0, 4294966798
  %s4160 = smov 192
  %v4161 = vld [vmem:[%s4159] ss:$108 sm:%s4160]
  %vm4162 = vcmask 1047558
  %v4163 = vsel %vm4162, %v4161, %v4158
  %vm4164 = vcmask 523264
  %v4165 = vsel %vm4164, %v4163, %v4145
  %4166 = vrot.lane.b32.xlu0 %v4165, 64
  %v4167 = vpop.permute.xlu0 %4166
  %vm4168 = vcmask 261120
  %s4169 = scalar_lea.vmem %s1, 976
  %4170 = vst.msk [vmem:[%s4169] ss:$97 sm:$0x3] %vm4168, %v4167
  %s4171 = scalar_lea.vmem %s1, 1040
  %4172 = vst.msk [vmem:[%s4171] ss:$-63 sm:$0xc] %vm4168, %v4167
  %s4173 = scalar_lea.vmem %s1, 4294967184
  %4174 = vst.msk [vmem:[%s4173] ss:$97 sm:$0xf0] %vm4168, %v4167
  %vm4175 = vcmask 1048064
  %s4176 = scalar_lea.vmem %s1, 808
  %4177 = vst.msk [vmem:[%s4176] ss:$-319 sm:$0x3] %vm4175, %v4167
  %s4178 = scalar_lea.vmem %s1, 1064
  %4179 = vst.msk [vmem:[%s4178] ss:$-319 sm:$0xc] %vm4175, %v4167
  %s4180 = scalar_lea.vmem %s1, 4294967176
  %4181 = vst.msk [vmem:[%s4180] ss:$97 sm:$0x30] %vm4175, %v4167
  %s4182 = scalar_lea.vmem %s1, 4294966856
  %4183 = vst.msk [vmem:[%s4182] ss:$97 sm:$0xc0] %vm4175, %v4167
  %s4184 = scalar_lea.vmem %s0, 1230
  %s4185 = smov 3
  %v4186 = vld [vmem:[%s4184] ss:$108 sm:%s4185]
  %s4187 = scalar_lea.vmem %s0, 1590
  %s4188 = smov 12
  %v4189 = vld [vmem:[%s4187] ss:$-164 sm:%s4188]
  %vm4190 = vcmask 1043458
  %v4191 = vsel %vm4190, %v4189, %v4186
  %s4192 = scalar_lea.vmem %s0, 142
  %s4193 = smov 48
  %v4194 = vld [vmem:[%s4192] ss:$108 sm:%s4193]
  %vm4195 = vcmask 1045508
  %v4196 = vsel %vm4195, %v4194, %v4191
  %s4197 = scalar_lea.vmem %s0, 310
  %s4198 = smov 192
  %v4199 = vld [vmem:[%s4197] ss:$108 sm:%s4198]
  %vm4200 = vcmask 1047558
  %v4201 = vsel %vm4200, %v4199, %v4196
  %s4202 = scalar_lea.vmem %s0, 1050
  %s4203 = smov 3
  %v4204 = vld [vmem:[%s4202] ss:$-348 sm:%s4203]
  %s4205 = scalar_lea.vmem %s0, 1234
  %s4206 = smov 12
  %v4207 = vld [vmem:[%s4205] ss:$-348 sm:%s4206]
  %vm4208 = vcmask 1043458
  %v4209 = vsel %vm4208, %v4207, %v4204
  %s4210 = scalar_lea.vmem %s0, 4294967254
  %s4211 = smov 48
  %v4212 = vld [vmem:[%s4210] ss:$108 sm:%s4211]
  %vm4213 = vcmask 1045508
  %v4214 = vsel %vm4213, %v4212, %v4209
  %s4215 = scalar_lea.vmem %s0, 278
  %s4216 = smov 192
  %v4217 = vld [vmem:[%s4215] ss:$8 sm:%s4216]
  %vm4218 = vcmask 1047558
  %v4219 = vsel %vm4218, %v4217, %v4214
  %vm4220 = vcmask 523264
  %v4221 = vsel %vm4220, %v4219, %v4201
  %4222 = vrot.lane.b32.xlu0 %v4221, 64
  %v4223 = vpop.permute.xlu0 %4222
  %vm4224 = vcmask 261120
  %s4225 = scalar_lea.vmem %s1, 1136
  %4226 = vst.msk [vmem:[%s4225] ss:$97 sm:$0x3] %vm4224, %v4223
  %s4227 = scalar_lea.vmem %s1, 1488
  %4228 = vst.msk [vmem:[%s4227] ss:$-159 sm:$0xc] %vm4224, %v4223
  %s4229 = scalar_lea.vmem %s1, 144
  %4230 = vst.msk [vmem:[%s4229] ss:$97 sm:$0x30] %vm4224, %v4223
  %s4231 = scalar_lea.vmem %s1, 304
  %4232 = vst.msk [vmem:[%s4231] ss:$97 sm:$0xc0] %vm4224, %v4223
  %vm4233 = vcmask 1048064
  %s4234 = scalar_lea.vmem %s1, 968
  %4235 = vst.msk [vmem:[%s4234] ss:$-319 sm:$0x3] %vm4233, %v4223
  %s4236 = scalar_lea.vmem %s1, 1128
  %4237 = vst.msk [vmem:[%s4236] ss:$-319 sm:$0xc] %vm4233, %v4223
  %s4238 = scalar_lea.vmem %s1, 4294967272
  %4239 = vst.msk [vmem:[%s4238] ss:$97 sm:$0x30] %vm4233, %v4223
  %s4240 = scalar_lea.vmem %s1, 296
  %4241 = vst.msk [vmem:[%s4240] sm:$0xc0] %vm4233, %v4223
  %s4242 = scalar_lea.vmem %s0, 750
  %s4243 = smov 3
  %v4244 = vld [vmem:[%s4242] ss:$108 sm:%s4243]
  %s4245 = scalar_lea.vmem %s0, 598
  %s4246 = smov 12
  %v4247 = vld [vmem:[%s4245] ss:$-164 sm:%s4246]
  %vm4248 = vcmask 1043458
  %v4249 = vsel %vm4248, %v4247, %v4244
  %s4250 = scalar_lea.vmem %s0, 4294966894
  %s4251 = smov 48
  %v4252 = vld [vmem:[%s4250] ss:$108 sm:%s4251]
  %vm4253 = vcmask 1045508
  %v4254 = vsel %vm4253, %v4252, %v4249
  %s4255 = scalar_lea.vmem %s0, 1222
  %s4256 = smov 192
  %v4257 = vld [vmem:[%s4255] ss:$-164 sm:%s4256]
  %vm4258 = vcmask 1047558
  %v4259 = vsel %vm4258, %v4257, %v4254
  %s4260 = scalar_lea.vmem %s0, 1142
  %s4261 = smov 3
  %v4262 = vld [vmem:[%s4260] ss:$-340 sm:%s4261]
  %s4263 = scalar_lea.vmem %s0, 1310
  %s4264 = smov 12
  %v4265 = vld [vmem:[%s4263] ss:$-340 sm:%s4264]
  %vm4266 = vcmask 1043458
  %v4267 = vsel %vm4266, %v4265, %v4262
  %s4268 = scalar_lea.vmem %s0, 4294966762
  %s4269 = smov 48
  %v4270 = vld [vmem:[%s4268] ss:$276 sm:%s4269]
  %vm4271 = vcmask 1045508
  %v4272 = vsel %vm4271, %v4270, %v4267
  %s4273 = scalar_lea.vmem %s0, 938
  %s4274 = smov 192
  %v4275 = vld [vmem:[%s4273] ss:$-72 sm:%s4274]
  %vm4276 = vcmask 1047558
  %v4277 = vsel %vm4276, %v4275, %v4272
  %vm4278 = vcmask 523264
  %v4279 = vsel %vm4278, %v4277, %v4259
  %4280 = vrot.lane.b32.xlu0 %v4279, 64
  %v4281 = vpop.permute.xlu0 %4280
  %vm4282 = vcmask 261120
  %s4283 = scalar_lea.vmem %s1, 692
  %4284 = vst.msk [vmem:[%s4283] ss:$97 sm:$0x3] %vm4282, %v4281
  %s4285 = scalar_lea.vmem %s1, 566
  %4286 = vst.msk [vmem:[%s4285] ss:$-159 sm:$0xc] %vm4282, %v4281
  %s4287 = scalar_lea.vmem %s1, 4294966934
  %4288 = vst.msk [vmem:[%s4287] ss:$97 sm:$0x70] %vm4282, %v4281
  %s4289 = scalar_lea.vmem %s1, 54
  %4290 = vst.msk [vmem:[%s4289] sm:$0x80] %vm4282, %v4281
  %vm4291 = vcmask 1048064
  %s4292 = scalar_lea.vmem %s1, 1064
  %4293 = vst.msk [vmem:[%s4292] ss:$-319 sm:$0x3] %vm4291, %v4281
  %s4294 = scalar_lea.vmem %s1, 1224
  %4295 = vst.msk [vmem:[%s4294] ss:$-319 sm:$0xc] %vm4291, %v4281
  %s4296 = scalar_lea.vmem %s1, 4294966792
  %4297 = vst.msk [vmem:[%s4296] ss:$257 sm:$0x30] %vm4291, %v4281
  %s4298 = scalar_lea.vmem %s1, 840
  %4299 = vst.msk [vmem:[%s4298] ss:$-63 sm:$0xc0] %vm4291, %v4281
  %s4300 = scalar_lea.vmem %s0, 1022
  %s4301 = smov 3
  %v4302 = vld [vmem:[%s4300] ss:$108 sm:%s4301]
  %s4303 = scalar_lea.vmem %s0, 582
  %s4304 = smov 12
  %v4305 = vld [vmem:[%s4303] ss:$-68 sm:%s4304]
  %vm4306 = vcmask 1043458
  %v4307 = vsel %vm4306, %v4305, %v4302
  %s4308 = scalar_lea.vmem %s0, 4294967070
  %s4309 = smov 48
  %v4310 = vld [vmem:[%s4308] ss:$108 sm:%s4309]
  %vm4311 = vcmask 1045508
  %v4312 = vsel %vm4311, %v4310, %v4307
  %s4313 = scalar_lea.vmem %s0, 822
  %s4314 = smov 192
  %v4315 = vld [vmem:[%s4313] ss:$-68 sm:%s4314]
  %vm4316 = vcmask 1047558
  %v4317 = vsel %vm4316, %v4315, %v4312
  %s4318 = scalar_lea.vmem %s0, 1226
  %s4319 = smov 3
  %v4320 = vld [vmem:[%s4318] ss:$-348 sm:%s4319]
  %s4321 = scalar_lea.vmem %s0, 1506
  %s4322 = smov 12
  %v4323 = vld [vmem:[%s4321] ss:$-348 sm:%s4322]
  %vm4324 = vcmask 1043458
  %v4325 = vsel %vm4324, %v4323, %v4320
  %s4326 = scalar_lea.vmem %s0, 4294967242
  %s4327 = smov 48
  %v4328 = vld [vmem:[%s4326] ss:$200 sm:%s4327]
  %vm4329 = vcmask 1045508
  %v4330 = vsel %vm4329, %v4328, %v4325
  %s4331 = scalar_lea.vmem %s0, 550
  %s4332 = smov 192
  %v4333 = vld [vmem:[%s4331] ss:$8 sm:%s4332]
  %vm4334 = vcmask 1047558
  %v4335 = vsel %vm4334, %v4333, %v4330
  %vm4336 = vcmask 523264
  %v4337 = vsel %vm4336, %v4335, %v4317
  %4338 = vrot.lane.b32.xlu0 %v4337, 64
  %v4339 = vpop.permute.xlu0 %4338
  %vm4340 = vcmask 261120
  %s4341 = scalar_lea.vmem %s1, 948
  %4342 = vst.msk [vmem:[%s4341] ss:$97 sm:$0x3] %vm4340, %v4339
  %s4343 = scalar_lea.vmem %s1, 534
  %4344 = vst.msk [vmem:[%s4343] ss:$-63 sm:$0xc] %vm4340, %v4339
  %s4345 = scalar_lea.vmem %s1, 4294967094
  %4346 = vst.msk [vmem:[%s4345] ss:$97 sm:$0x70] %vm4340, %v4339
  %s4347 = scalar_lea.vmem %s1, 310
  %4348 = vst.msk [vmem:[%s4347] sm:$0x80] %vm4340, %v4339
  %vm4349 = vcmask 1048064
  %s4350 = scalar_lea.vmem %s1, 1128
  %4351 = vst.msk [vmem:[%s4350] ss:$-319 sm:$0x3] %vm4349, %v4339
  %s4352 = scalar_lea.vmem %s1, 1384
  %4353 = vst.msk [vmem:[%s4352] ss:$-319 sm:$0xc] %vm4349, %v4339
  %s4354 = scalar_lea.vmem %s1, 4294967208
  %4355 = vst.msk [vmem:[%s4354] ss:$193 sm:$0x30] %vm4349, %v4339
  %s4356 = scalar_lea.vmem %s1, 552
  %4357 = vst.msk [vmem:[%s4356] sm:$0xc0] %vm4349, %v4339
  %s4358 = scalar_lea.vmem %s0, 1198
  %s4359 = smov 3
  %v4360 = vld [vmem:[%s4358] ss:$108 sm:%s4359]
  %s4361 = scalar_lea.vmem %s0, 1046
  %s4362 = smov 12
  %v4363 = vld [vmem:[%s4361] ss:$-164 sm:%s4362]
  %vm4364 = vcmask 1043458
  %v4365 = vsel %vm4364, %v4363, %v4360
  %s4366 = scalar_lea.vmem %s0, 46
  %s4367 = smov 48
  %v4368 = vld [vmem:[%s4366] ss:$108 sm:%s4367]
  %vm4369 = vcmask 1045508
  %v4370 = vsel %vm4369, %v4368, %v4365
  %s4371 = scalar_lea.vmem %s0, 1670
  %s4372 = smov 192
  %v4373 = vld [vmem:[%s4371] ss:$-164 sm:%s4372]
  %vm4374 = vcmask 1047558
  %v4375 = vsel %vm4374, %v4373, %v4370
  %s4376 = scalar_lea.vmem %s0, 1318
  %s4377 = smov 3
  %v4378 = vld [vmem:[%s4376] ss:$-340 sm:%s4377]
  %s4379 = scalar_lea.vmem %s0, 1582
  %s4380 = smov 12
  %v4381 = vld [vmem:[%s4379] ss:$-340 sm:%s4380]
  %vm4382 = vcmask 1043458
  %v4383 = vsel %vm4382, %v4381, %v4378
  %s4384 = scalar_lea.vmem %s0, 4294966310
  %s4385 = smov 48
  %v4386 = vld [vmem:[%s4384] ss:$456 sm:%s4385]
  %vm4387 = vcmask 1045508
  %v4388 = vsel %vm4387, %v4386, %v4383
  %s4389 = scalar_lea.vmem %s0, 1182
  %s4390 = smov 192
  %v4391 = vld [vmem:[%s4389] ss:$-68 sm:%s4390]
  %vm4392 = vcmask 1047558
  %v4393 = vsel %vm4392, %v4391, %v4388
  %vm4394 = vcmask 523264
  %v4395 = vsel %vm4394, %v4393, %v4375
  %4396 = vrot.lane.b32.xlu0 %v4395, 64
  %v4397 = vpop.permute.xlu0 %4396
  %vm4398 = vcmask 261120
  %s4399 = scalar_lea.vmem %s1, 1108
  %4400 = vst.msk [vmem:[%s4399] ss:$97 sm:$0x3] %vm4398, %v4397
  %s4401 = scalar_lea.vmem %s1, 982
  %4402 = vst.msk [vmem:[%s4401] ss:$-159 sm:$0xc] %vm4398, %v4397
  %s4403 = scalar_lea.vmem %s1, 54
  %4404 = vst.msk [vmem:[%s4403] ss:$97 sm:$0x70] %vm4398, %v4397
  %s4405 = scalar_lea.vmem %s1, 470
  %4406 = vst.msk [vmem:[%s4405] sm:$0x80] %vm4398, %v4397
  %vm4407 = vcmask 1048064
  %s4408 = scalar_lea.vmem %s1, 1224
  %4409 = vst.msk [vmem:[%s4408] ss:$-319 sm:$0x3] %vm4407, %v4397
  %s4410 = scalar_lea.vmem %s1, 1480
  %4411 = vst.msk [vmem:[%s4410] ss:$-319 sm:$0xc] %vm4407, %v4397
  %s4412 = scalar_lea.vmem %s1, 4294966408
  %4413 = vst.msk [vmem:[%s4412] ss:$417 sm:$0x30] %vm4407, %v4397
  %s4414 = scalar_lea.vmem %s1, 1096
  %4415 = vst.msk [vmem:[%s4414] ss:$-63 sm:$0xc0] %vm4407, %v4397
  %s4416 = scalar_lea.vmem %s0, 894
  %s4417 = smov 3
  %v4418 = vld [vmem:[%s4416] ss:$-68 sm:%s4417]
  %s4419 = scalar_lea.vmem %s0, 438
  %s4420 = smov 12
  %v4421 = vld [vmem:[%s4419] ss:$108 sm:%s4420]
  %vm4422 = vcmask 1043458
  %v4423 = vsel %vm4422, %v4421, %v4418
  %s4424 = scalar_lea.vmem %s0, 1134
  %s4425 = smov 48
  %v4426 = vld [vmem:[%s4424] ss:$-68 sm:%s4425]
  %vm4427 = vcmask 1045508
  %v4428 = vsel %vm4427, %v4426, %v4423
  %s4429 = scalar_lea.vmem %s0, 4294966822
  %s4430 = smov 192
  %v4431 = vld [vmem:[%s4429] ss:$108 sm:%s4430]
  %vm4432 = vcmask 1047558
  %v4433 = vsel %vm4432, %v4431, %v4428
  %s4434 = scalar_lea.vmem %s0, 1150
  %s4435 = smov 3
  %v4436 = vld [vmem:[%s4434] ss:$-164 sm:%s4435]
  %s4437 = scalar_lea.vmem %s0, 4294967174
  %s4438 = smov 12
  %v4439 = vld [vmem:[%s4437] ss:$380 sm:%s4438]
  %vm4440 = vcmask 1043458
  %v4441 = vsel %vm4440, %v4439, %v4436
  %s4442 = scalar_lea.vmem %s0, 1642
  %s4443 = smov 48
  %v4444 = vld [vmem:[%s4442] ss:$-172 sm:%s4443]
  %vm4445 = vcmask 1045508
  %v4446 = vsel %vm4445, %v4444, %v4441
  %s4447 = scalar_lea.vmem %s0, 494
  %s4448 = smov 192
  %v4449 = vld [vmem:[%s4447] ss:$-68 sm:%s4448]
  %vm4450 = vcmask 1047558
  %v4451 = vsel %vm4450, %v4449, %v4446
  %vm4452 = vcmask 523264
  %v4453 = vsel %vm4452, %v4451, %v4433
  %4454 = vrot.lane.b32.xlu0 %v4453, 64
  %v4455 = vpop.permute.xlu0 %4454
  %vm4456 = vcmask 261120
  %s4457 = scalar_lea.vmem %s1, 824
  %4458 = vst.msk [vmem:[%s4457] ss:$-63 sm:$0x3] %vm4456, %v4455
  %s4459 = scalar_lea.vmem %s1, 408
  %4460 = vst.msk [vmem:[%s4459] ss:$97 sm:$0x1c] %vm4456, %v4455
  %s4461 = scalar_lea.vmem %s1, 3608
  %4462 = vst.msk [vmem:[%s4461] ss:$-575 sm:$0x60] %vm4456, %v4455
  %s4463 = scalar_lea.vmem %s1, 248
  %4464 = vst.msk [vmem:[%s4463] sm:$0x80] %vm4456, %v4455
  %vm4465 = vcmask 1048064
  %s4466 = scalar_lea.vmem %s1, 1065
  %4467 = vst.msk [vmem:[%s4466] ss:$-159 sm:$0x3] %vm4465, %v4455
  %s4468 = scalar_lea.vmem %s1, 4294967177
  %4469 = vst.msk [vmem:[%s4468] ss:$353 sm:$0xc] %vm4465, %v4455
  %s4470 = scalar_lea.vmem %s1, 1514
  %4471 = vst.msk [vmem:[%s4470] ss:$-159 sm:$0x30] %vm4465, %v4455
  %s4472 = scalar_lea.vmem %s1, 458
  %4473 = vst.msk [vmem:[%s4472] ss:$-63 sm:$0xc0] %vm4465, %v4455
  %s4474 = scalar_lea.vmem %s0, 1166
  %s4475 = smov 3
  %v4476 = vld [vmem:[%s4474] ss:$-164 sm:%s4475]
  %s4477 = scalar_lea.vmem %s0, 710
  %s4478 = smov 12
  %v4479 = vld [vmem:[%s4477] ss:$108 sm:%s4478]
  %vm4480 = vcmask 1043458
  %v4481 = vsel %vm4480, %v4479, %v4476
  %s4482 = scalar_lea.vmem %s0, 1790
  %s4483 = smov 48
  %v4484 = vld [vmem:[%s4482] ss:$-164 sm:%s4483]
  %vm4485 = vcmask 1045508
  %v4486 = vsel %vm4485, %v4484, %v4481
  %s4487 = scalar_lea.vmem %s0, 4294967270
  %s4488 = smov 192
  %v4489 = vld [vmem:[%s4487] ss:$108 sm:%s4488]
  %vm4490 = vcmask 1047558
  %v4491 = vsel %vm4490, %v4489, %v4486
  %s4492 = scalar_lea.vmem %s0, 1250
  %s4493 = smov 3
  %v4494 = vld [vmem:[%s4492] ss:$-172 sm:%s4493]
  %s4495 = scalar_lea.vmem %s0, 4294967122
  %s4496 = smov 12
  %v4497 = vld [vmem:[%s4495] ss:$456 sm:%s4496]
  %vm4498 = vcmask 1043458
  %v4499 = vsel %vm4498, %v4497, %v4494
  %s4500 = scalar_lea.vmem %s0, 1702
  %s4501 = smov 48
  %v4502 = vld [vmem:[%s4500] ss:$-164 sm:%s4501]
  %vm4503 = vcmask 1045508
  %v4504 = vsel %vm4503, %v4502, %v4499
  %s4505 = scalar_lea.vmem %s0, 1298
  %s4506 = smov 192
  %v4507 = vld [vmem:[%s4505] ss:$-172 sm:%s4506]
  %vm4508 = vcmask 1047558
  %v4509 = vsel %vm4508, %v4507, %v4504
  %vm4510 = vcmask 523264
  %v4511 = vsel %vm4510, %v4509, %v4491
  %4512 = vrot.lane.b32.xlu0 %v4511, 64
  %v4513 = vpop.permute.xlu0 %4512
  %vm4514 = vcmask 261120
  %s4515 = scalar_lea.vmem %s1, 1080
  %4516 = vst.msk [vmem:[%s4515] ss:$-159 sm:$0x3] %vm4514, %v4513
  %s4517 = scalar_lea.vmem %s1, 664
  %4518 = vst.msk [vmem:[%s4517] ss:$97 sm:$0x1c] %vm4514, %v4513
  %s4519 = scalar_lea.vmem %s1, 2488
  %4520 = vst.msk [vmem:[%s4519] ss:$-319 sm:$0x60] %vm4514, %v4513
  %s4521 = scalar_lea.vmem %s1, 664
  %4522 = vst.msk [vmem:[%s4521] sm:$0x80] %vm4514, %v4513
  %vm4523 = vcmask 1048064
  %s4524 = scalar_lea.vmem %s1, 1161
  %4525 = vst.msk [vmem:[%s4524] ss:$-159 sm:$0x3] %vm4523, %v4513
  %s4526 = scalar_lea.vmem %s1, 4294967145
  %4527 = vst.msk [vmem:[%s4526] ss:$417 sm:$0xc] %vm4523, %v4513
  %s4528 = scalar_lea.vmem %s1, 1610
  %4529 = vst.msk [vmem:[%s4528] ss:$-159 sm:$0x30] %vm4523, %v4513
  %s4530 = scalar_lea.vmem %s1, 1194
  %4531 = vst.msk [vmem:[%s4530] ss:$-159 sm:$0xc0] %vm4523, %v4513
  %s4532 = scalar_lea.vmem %s0, 1342
  %s4533 = smov 3
  %v4534 = vld [vmem:[%s4532] ss:$-68 sm:%s4533]
  %s4535 = scalar_lea.vmem %s0, 886
  %s4536 = smov 12
  %v4537 = vld [vmem:[%s4535] ss:$108 sm:%s4536]
  %vm4538 = vcmask 1043458
  %v4539 = vsel %vm4538, %v4537, %v4534
  %s4540 = scalar_lea.vmem %s0, 1582
  %s4541 = smov 48
  %v4542 = vld [vmem:[%s4540] ss:$-68 sm:%s4541]
  %vm4543 = vcmask 1045508
  %v4544 = vsel %vm4543, %v4542, %v4539
  %s4545 = scalar_lea.vmem %s0, 422
  %s4546 = smov 192
  %v4547 = vld [vmem:[%s4545] ss:$108 sm:%s4546]
  %vm4548 = vcmask 1047558
  %v4549 = vsel %vm4548, %v4547, %v4544
  %s4550 = scalar_lea.vmem %s0, 1326
  %s4551 = smov 3
  %v4552 = vld [vmem:[%s4550] ss:$-68 sm:%s4551]
  %s4553 = scalar_lea.vmem %s0, 158
  %s4554 = smov 12
  %v4555 = vld [vmem:[%s4553] ss:$376 sm:%s4554]
  %vm4556 = vcmask 1043458
  %v4557 = vsel %vm4556, %v4555, %v4552
  %s4558 = scalar_lea.vmem %s0, 1894
  %s4559 = smov 48
  %v4560 = vld [vmem:[%s4558] ss:$-168 sm:%s4559]
  %vm4561 = vcmask 1045508
  %v4562 = vsel %vm4561, %v4560, %v4557
  %s4563 = scalar_lea.vmem %s0, 1342
  %s4564 = smov 192
  %v4565 = vld [vmem:[%s4563] ss:$-164 sm:%s4564]
  %vm4566 = vcmask 1047558
  %v4567 = vsel %vm4566, %v4565, %v4562
  %vm4568 = vcmask 523264
  %v4569 = vsel %vm4568, %v4567, %v4549
  %4570 = vrot.lane.b32.xlu0 %v4569, 64
  %v4571 = vpop.permute.xlu0 %4570
  %vm4572 = vcmask 261120
  %s4573 = scalar_lea.vmem %s1, 1240
  %4574 = vst.msk [vmem:[%s4573] ss:$-63 sm:$0x3] %vm4572, %v4571
  %s4575 = scalar_lea.vmem %s1, 824
  %4576 = vst.msk [vmem:[%s4575] ss:$97 sm:$0x1c] %vm4572, %v4571
  %s4577 = scalar_lea.vmem %s1, 1944
  %4578 = vst.msk [vmem:[%s4577] ss:$-159 sm:$0x60] %vm4572, %v4571
  %s4579 = scalar_lea.vmem %s1, 1080
  %4580 = vst.msk [vmem:[%s4579] sm:$0x80] %vm4572, %v4571
  %vm4581 = vcmask 1048064
  %s4582 = scalar_lea.vmem %s1, 1225
  %4583 = vst.msk [vmem:[%s4582] ss:$-63 sm:$0x3] %vm4581, %v4571
  %s4584 = scalar_lea.vmem %s1, 137
  %4585 = vst.msk [vmem:[%s4584] ss:$353 sm:$0xc] %vm4581, %v4571
  %s4586 = scalar_lea.vmem %s1, 1770
  %4587 = vst.msk [vmem:[%s4586] ss:$-159 sm:$0x30] %vm4581, %v4571
  %s4588 = scalar_lea.vmem %s1, 1290
  %4589 = vst.msk [vmem:[%s4588] ss:$-159 sm:$0xc0] %vm4581, %v4571
  %s4590 = scalar_lea.vmem %s0, 34
  %s4591 = smov 3
  %v4592 = vld [vmem:[%s4590] ss:$100 sm:%s4591]
  %s4593 = scalar_lea.vmem %s0, 586
  %s4594 = smov 12
  %v4595 = vld [vmem:[%s4593] ss:$-172 sm:%s4594]
  %vm4596 = vcmask 1043458
  %v4597 = vsel %vm4596, %v4595, %v4592
  %s4598 = scalar_lea.vmem %s0, 4294966194
  %s4599 = smov 48
  %v4600 = vld [vmem:[%s4598] ss:$276 sm:%s4599]
  %vm4601 = vcmask 1045508
  %v4602 = vsel %vm4601, %v4600, %v4597
  %s4603 = scalar_lea.vmem %s0, 2474
  %s4604 = smov 192
  %v4605 = vld [vmem:[%s4603] ss:$-348 sm:%s4604]
  %vm4606 = vcmask 1047558
  %v4607 = vsel %vm4606, %v4605, %v4602
  %s4608 = scalar_lea.vmem %s0, 1010
  %s4609 = smov 3
  %v4610 = vld [vmem:[%s4608] ss:$144 sm:%s4609]
  %s4611 = scalar_lea.vmem %s0, 594
  %s4612 = smov 12
  %v4613 = vld [vmem:[%s4611] ss:$-76 sm:%s4612]
  %vm4614 = vcmask 1043458
  %v4615 = vsel %vm4614, %v4613, %v4610
  %s4616 = scalar_lea.vmem %s0, 4294966922
  %s4617 = smov 48
  %v4618 = vld [vmem:[%s4616] ss:$100 sm:%s4617]
  %vm4619 = vcmask 1045508
  %v4620 = vsel %vm4619, %v4618, %v4615
  %s4621 = scalar_lea.vmem %s0, 6
  %s4622 = smov 192
  %v4623 = vld [vmem:[%s4621] ss:$8 sm:%s4622]
  %vm4624 = vcmask 1047558
  %v4625 = vsel %vm4624, %v4623, %v4620
  %vm4626 = vcmask 523264
  %v4627 = vsel %vm4626, %v4625, %v4607
  %4628 = vrot.lane.b32.xlu0 %v4627, 64
  %v4629 = vpop.permute.xlu0 %4628
  %vm4630 = vcmask 523264
  %s4631 = scalar_lea.vmem %s1, 32
  %4632 = vst.msk [vmem:[%s4631] ss:$97 sm:$0x7] %vm4630, %v4629
  %s4633 = scalar_lea.vmem %s1, 256
  %4634 = vst.msk [vmem:[%s4633] ss:$-63 sm:$0x18] %vm4630, %v4629
  %s4635 = scalar_lea.vmem %s1, 4294967072
  %4636 = vst.msk [vmem:[%s4635] ss:$97 sm:$0x60] %vm4630, %v4629
  %s4637 = scalar_lea.vmem %s1, 32
  %4638 = vst.msk [vmem:[%s4637] sm:$0x80] %vm4630, %v4629
  %vm4639 = vcmask 1048064
  %s4640 = scalar_lea.vmem %s1, 939
  %4641 = vst.msk [vmem:[%s4640] ss:$132 sm:$0x3] %vm4639, %v4629
  %s4642 = scalar_lea.vmem %s1, 526
  %4643 = vst.msk [vmem:[%s4642] ss:$-63 sm:$0xc] %vm4639, %v4629
  %s4644 = scalar_lea.vmem %s1, 4294966926
  %4645 = vst.msk [vmem:[%s4644] ss:$97 sm:$0x30] %vm4639, %v4629
  %s4646 = scalar_lea.vmem %s1, 46
  %4647 = vst.msk [vmem:[%s4646] sm:$0xc0] %vm4639, %v4629
  %s4648 = scalar_lea.vmem %s0, 210
  %s4649 = smov 3
  %v4650 = vld [vmem:[%s4648] ss:$100 sm:%s4649]
  %s4651 = scalar_lea.vmem %s0, 570
  %s4652 = smov 12
  %v4653 = vld [vmem:[%s4651] ss:$-76 sm:%s4652]
  %vm4654 = vcmask 1043458
  %v4655 = vsel %vm4654, %v4653, %v4650
  %s4656 = scalar_lea.vmem %s0, 4294965282
  %s4657 = smov 48
  %v4658 = vld [vmem:[%s4656] ss:$548 sm:%s4657]
  %vm4659 = vcmask 1045508
  %v4660 = vsel %vm4659, %v4658, %v4655
  %s4661 = scalar_lea.vmem %s0, 4554
  %s4662 = smov 192
  %v4663 = vld [vmem:[%s4661] ss:$-620 sm:%s4662]
  %vm4664 = vcmask 1047558
  %v4665 = vsel %vm4664, %v4663, %v4660
  %s4666 = scalar_lea.vmem %s0, 1086
  %s4667 = smov 3
  %v4668 = vld [vmem:[%s4666] ss:$144 sm:%s4667]
  %s4669 = scalar_lea.vmem %s0, 670
  %s4670 = smov 12
  %v4671 = vld [vmem:[%s4669] ss:$-68 sm:%s4670]
  %vm4672 = vcmask 1043458
  %v4673 = vsel %vm4672, %v4671, %v4668
  %s4674 = scalar_lea.vmem %s0, 4294966982
  %s4675 = smov 48
  %v4676 = vld [vmem:[%s4674] ss:$108 sm:%s4675]
  %vm4677 = vcmask 1045508
  %v4678 = vsel %vm4677, %v4676, %v4673
  %s4679 = scalar_lea.vmem %s0, 666
  %s4680 = smov 192
  %v4681 = vld [vmem:[%s4679] ss:$-72 sm:%s4680]
  %vm4682 = vcmask 1047558
  %v4683 = vsel %vm4682, %v4681, %v4678
  %vm4684 = vcmask 523264
  %v4685 = vsel %vm4684, %v4683, %v4665
  %4686 = vrot.lane.b32.xlu0 %v4685, 64
  %v4687 = vpop.permute.xlu0 %4686
  %vm4688 = vcmask 523264
  %s4689 = scalar_lea.vmem %s1, 192
  %4690 = vst.msk [vmem:[%s4689] ss:$97 sm:$0x7] %vm4688, %v4687
  %s4691 = scalar_lea.vmem %s1, 800
  %4692 = vst.msk [vmem:[%s4691] ss:$-159 sm:$0x18] %vm4688, %v4687
  %s4693 = scalar_lea.vmem %s1, 192
  %4694 = vst.msk [vmem:[%s4693] ss:$97 sm:$0x60] %vm4688, %v4687
  %s4695 = scalar_lea.vmem %s1, 192
  %4696 = vst.msk [vmem:[%s4695] sm:$0x80] %vm4688, %v4687
  %vm4697 = vcmask 1048064
  %s4698 = scalar_lea.vmem %s1, 1003
  %4699 = vst.msk [vmem:[%s4698] ss:$132 sm:$0x3] %vm4697, %v4687
  %s4700 = scalar_lea.vmem %s1, 622
  %4701 = vst.msk [vmem:[%s4700] ss:$-63 sm:$0xc] %vm4697, %v4687
  %s4702 = scalar_lea.vmem %s1, 4294967022
  %4703 = vst.msk [vmem:[%s4702] ss:$97 sm:$0x30] %vm4697, %v4687
  %s4704 = scalar_lea.vmem %s1, 590
  %4705 = vst.msk [vmem:[%s4704] ss:$-63 sm:$0xc0] %vm4697, %v4687
  %s4706 = scalar_lea.vmem %s0, 482
  %s4707 = smov 3
  %v4708 = vld [vmem:[%s4706] ss:$100 sm:%s4707]
  %s4709 = scalar_lea.vmem %s0, 1034
  %s4710 = smov 12
  %v4711 = vld [vmem:[%s4709] ss:$-172 sm:%s4710]
  %vm4712 = vcmask 1043458
  %v4713 = vsel %vm4712, %v4711, %v4708
  %s4714 = scalar_lea.vmem %s0, 4294964850
  %s4715 = smov 48
  %v4716 = vld [vmem:[%s4714] ss:$724 sm:%s4715]
  %vm4717 = vcmask 1045508
  %v4718 = vsel %vm4717, %v4716, %v4713
  %s4719 = scalar_lea.vmem %s0, 6058
  %s4720 = smov 192
  %v4721 = vld [vmem:[%s4719] ss:$-796 sm:%s4720]
  %vm4722 = vcmask 1047558
  %v4723 = vsel %vm4722, %v4721, %v4718
  %s4724 = scalar_lea.vmem %s0, 1186
  %s4725 = smov 3
  %v4726 = vld [vmem:[%s4724] ss:$144 sm:%s4725]
  %s4727 = scalar_lea.vmem %s0, 1058
  %s4728 = smov 12
  %v4729 = vld [vmem:[%s4727] ss:$-172 sm:%s4728]
  %vm4730 = vcmask 1043458
  %v4731 = vsel %vm4730, %v4729, %v4726
  %s4732 = scalar_lea.vmem %s0, 4294967098
  %s4733 = smov 48
  %v4734 = vld [vmem:[%s4732] ss:$100 sm:%s4733]
  %vm4735 = vcmask 1045508
  %v4736 = vsel %vm4735, %v4734, %v4731
  %s4737 = scalar_lea.vmem %s0, 4294967106
  %s4738 = smov 192
  %v4739 = vld [vmem:[%s4737] ss:$100 sm:%s4738]
  %vm4740 = vcmask 1047558
  %v4741 = vsel %vm4740, %v4739, %v4736
  %vm4742 = vcmask 523264
  %v4743 = vsel %vm4742, %v4741, %v4723
  %4744 = vrot.lane.b32.xlu0 %v4743, 64
  %v4745 = vpop.permute.xlu0 %4744
  %vm4746 = vcmask 523264
  %s4747 = scalar_lea.vmem %s1, 448
  %4748 = vst.msk [vmem:[%s4747] ss:$97 sm:$0x7] %vm4746, %v4745
  %s4749 = scalar_lea.vmem %s1, 672
  %4750 = vst.msk [vmem:[%s4749] ss:$-63 sm:$0x18] %vm4746, %v4745
  %s4751 = scalar_lea.vmem %s1, 608
  %4752 = vst.msk [vmem:[%s4751] ss:$97 sm:$0x60] %vm4746, %v4745
  %s4753 = scalar_lea.vmem %s1, 448
  %4754 = vst.msk [vmem:[%s4753] sm:$0x80] %vm4746, %v4745
  %vm4755 = vcmask 1048064
  %s4756 = scalar_lea.vmem %s1, 1099
  %4757 = vst.msk [vmem:[%s4756] ss:$132 sm:$0x3] %vm4755, %v4745
  %s4758 = scalar_lea.vmem %s1, 974
  %4759 = vst.msk [vmem:[%s4758] ss:$-159 sm:$0xc] %vm4755, %v4745
  %s4760 = scalar_lea.vmem %s1, 4294967086
  %4761 = vst.msk [vmem:[%s4760] ss:$97 sm:$0xf0] %vm4755, %v4745
  %s4762 = scalar_lea.vmem %s0, 658
  %s4763 = smov 3
  %v4764 = vld [vmem:[%s4762] ss:$100 sm:%s4763]
  %s4765 = scalar_lea.vmem %s0, 1018
  %s4766 = smov 12
  %v4767 = vld [vmem:[%s4765] ss:$-76 sm:%s4766]
  %vm4768 = vcmask 1043458
  %v4769 = vsel %vm4768, %v4767, %v4764
  %s4770 = scalar_lea.vmem %s0, 482
  %s4771 = smov 48
  %v4772 = vld [vmem:[%s4770] ss:$36 sm:%s4771]
  %vm4773 = vcmask 1045508
  %v4774 = vsel %vm4773, %v4772, %v4769
  %s4775 = scalar_lea.vmem %s0, 4294966842
  %s4776 = smov 192
  %v4777 = vld [vmem:[%s4775] ss:$100 sm:%s4776]
  %vm4778 = vcmask 1047558
  %v4779 = vsel %vm4778, %v4777, %v4774
  %s4780 = scalar_lea.vmem %s0, 806
  %s4781 = smov 3
  %v4782 = vld [vmem:[%s4780] ss:$-164 sm:%s4781]
  %s4783 = scalar_lea.vmem %s0, 78
  %s4784 = smov 12
  %v4785 = vld [vmem:[%s4783] ss:$108 sm:%s4784]
  %vm4786 = vcmask 1043458
  %v4787 = vsel %vm4786, %v4785, %v4782
  %s4788 = scalar_lea.vmem %s0, 70
  %s4789 = smov 48
  %v4790 = vld [vmem:[%s4788] ss:$108 sm:%s4789]
  %vm4791 = vcmask 1045508
  %v4792 = vsel %vm4791, %v4790, %v4787
  %s4793 = scalar_lea.vmem %s0, 602
  %s4794 = smov 192
  %v4795 = vld [vmem:[%s4793] ss:$-72 sm:%s4794]
  %vm4796 = vcmask 1047558
  %v4797 = vsel %vm4796, %v4795, %v4792
  %vm4798 = vcmask 523264
  %v4799 = vsel %vm4798, %v4797, %v4779
  %4800 = vrot.lane.b32.xlu0 %v4799, 64
  %v4801 = vpop.permute.xlu0 %4800
  %vm4802 = vcmask 523264
  %s4803 = scalar_lea.vmem %s1, 608
  %4804 = vst.msk [vmem:[%s4803] ss:$97 sm:$0x7] %vm4802, %v4801
  %s4805 = scalar_lea.vmem %s1, 1216
  %4806 = vst.msk [vmem:[%s4805] ss:$-159 sm:$0x18] %vm4802, %v4801
  %s4807 = scalar_lea.vmem %s1, 3010
  %4808 = vst.msk [vmem:[%s4807] ss:$-479 sm:$0x60] %vm4802, %v4801
  %s4809 = scalar_lea.vmem %s1, 226
  %4810 = vst.msk [vmem:[%s4809] sm:$0x80] %vm4802, %v4801
  %vm4811 = vcmask 1048064
  %s4812 = scalar_lea.vmem %s1, 752
  %4813 = vst.msk [vmem:[%s4812] ss:$-159 sm:$0x3] %vm4811, %v4801
  %s4814 = scalar_lea.vmem %s1, 80
  %4815 = vst.msk [vmem:[%s4814] ss:$97 sm:$0x3c] %vm4811, %v4801
  %s4816 = scalar_lea.vmem %s1, 528
  %4817 = vst.msk [vmem:[%s4816] ss:$-63 sm:$0xc0] %vm4811, %v4801
  %s4818 = scalar_lea.vmem %s0, 930
  %s4819 = smov 3
  %v4820 = vld [vmem:[%s4818] ss:$100 sm:%s4819]
  %s4821 = scalar_lea.vmem %s0, 1482
  %s4822 = smov 12
  %v4823 = vld [vmem:[%s4821] ss:$-172 sm:%s4822]
  %vm4824 = vcmask 1043458
  %v4825 = vsel %vm4824, %v4823, %v4820
  %s4826 = scalar_lea.vmem %s0, 754
  %s4827 = smov 48
  %v4828 = vld [vmem:[%s4826] ss:$36 sm:%s4827]
  %vm4829 = vcmask 1045508
  %v4830 = vsel %vm4829, %v4828, %v4825
  %s4831 = scalar_lea.vmem %s0, 4294967018
  %s4832 = smov 192
  %v4833 = vld [vmem:[%s4831] ss:$100 sm:%s4832]
  %vm4834 = vcmask 1047558
  %v4835 = vsel %vm4834, %v4833, %v4830
  %s4836 = scalar_lea.vmem %s0, 890
  %s4837 = smov 3
  %v4838 = vld [vmem:[%s4836] ss:$-76 sm:%s4837]
  %s4839 = scalar_lea.vmem %s0, 274
  %s4840 = smov 12
  %v4841 = vld [vmem:[%s4839] ss:$100 sm:%s4840]
  %vm4842 = vcmask 1043458
  %v4843 = vsel %vm4842, %v4841, %v4838
  %s4844 = scalar_lea.vmem %s0, 4294966874
  %s4845 = smov 48
  %v4846 = vld [vmem:[%s4844] ss:$276 sm:%s4845]
  %vm4847 = vcmask 1045508
  %v4848 = vsel %vm4847, %v4846, %v4843
  %s4849 = scalar_lea.vmem %s0, 214
  %s4850 = smov 192
  %v4851 = vld [vmem:[%s4849] ss:$8 sm:%s4850]
  %vm4852 = vcmask 1047558
  %v4853 = vsel %vm4852, %v4851, %v4848
  %vm4854 = vcmask 523264
  %v4855 = vsel %vm4854, %v4853, %v4835
  %4856 = vrot.lane.b32.xlu0 %v4855, 64
  %v4857 = vpop.permute.xlu0 %4856
  %vm4858 = vcmask 523264
  %s4859 = scalar_lea.vmem %s1, 864
  %4860 = vst.msk [vmem:[%s4859] ss:$97 sm:$0x7] %vm4858, %v4857
  %s4861 = scalar_lea.vmem %s1, 1088
  %4862 = vst.msk [vmem:[%s4861] ss:$-63 sm:$0x18] %vm4858, %v4857
  %s4863 = scalar_lea.vmem %s1, 3746
  %4864 = vst.msk [vmem:[%s4863] ss:$-575 sm:$0x60] %vm4858, %v4857
  %s4865 = scalar_lea.vmem %s1, 386
  %4866 = vst.msk [vmem:[%s4865] sm:$0x80] %vm4858, %v4857
  %vm4867 = vcmask 1048064
  %s4868 = scalar_lea.vmem %s1, 816
  %4869 = vst.msk [vmem:[%s4868] ss:$-63 sm:$0x3] %vm4867, %v4857
  %s4870 = scalar_lea.vmem %s1, 240
  %4871 = vst.msk [vmem:[%s4870] ss:$97 sm:$0x1c] %vm4867, %v4857
  %s4872 = scalar_lea.vmem %s1, 4080
  %4873 = vst.msk [vmem:[%s4872] ss:$-639 sm:$0x60] %vm4867, %v4857
  %s4874 = scalar_lea.vmem %s1, 240
  %4875 = vst.msk [vmem:[%s4874] sm:$0x80] %vm4867, %v4857
  %s4876 = scalar_lea.vmem %s0, 1106
  %s4877 = smov 3
  %v4878 = vld [vmem:[%s4876] ss:$100 sm:%s4877]
  %s4879 = scalar_lea.vmem %s0, 1466
  %s4880 = smov 12
  %v4881 = vld [vmem:[%s4879] ss:$-76 sm:%s4880]
  %vm4882 = vcmask 1043458
  %v4883 = vsel %vm4882, %v4881, %v4878
  %s4884 = scalar_lea.vmem %s0, 930
  %s4885 = smov 48
  %v4886 = vld [vmem:[%s4884] ss:$36 sm:%s4885]
  %vm4887 = vcmask 1045508
  %v4888 = vsel %vm4887, %v4886, %v4883
  %s4889 = scalar_lea.vmem %s0, 4294967290
  %s4890 = smov 192
  %v4891 = vld [vmem:[%s4889] ss:$100 sm:%s4890]
  %vm4892 = vcmask 1047558
  %v4893 = vsel %vm4892, %v4891, %v4888
  %s4894 = scalar_lea.vmem %s0, 982
  %s4895 = smov 3
  %v4896 = vld [vmem:[%s4894] ss:$-68 sm:%s4895]
  %s4897 = scalar_lea.vmem %s0, 350
  %s4898 = smov 12
  %v4899 = vld [vmem:[%s4897] ss:$108 sm:%s4898]
  %vm4900 = vcmask 1043458
  %v4901 = vsel %vm4900, %v4899, %v4896
  %s4902 = scalar_lea.vmem %s0, 58
  %s4903 = smov 48
  %v4904 = vld [vmem:[%s4902] ss:$200 sm:%s4903]
  %vm4905 = vcmask 1045508
  %v4906 = vsel %vm4905, %v4904, %v4901
  %s4907 = scalar_lea.vmem %s0, 846
  %s4908 = smov 192
  %v4909 = vld [vmem:[%s4907] ss:$-68 sm:%s4908]
  %vm4910 = vcmask 1047558
  %v4911 = vsel %vm4910, %v4909, %v4906
  %vm4912 = vcmask 523264
  %v4913 = vsel %vm4912, %v4911, %v4893
  %4914 = vrot.lane.b32.xlu0 %v4913, 64
  %v4915 = vpop.permute.xlu0 %4914
  %vm4916 = vcmask 523264
  %s4917 = scalar_lea.vmem %s1, 1024
  %4918 = vst.msk [vmem:[%s4917] ss:$97 sm:$0x7] %vm4916, %v4915
  %s4919 = scalar_lea.vmem %s1, 1632
  %4920 = vst.msk [vmem:[%s4919] ss:$-159 sm:$0x18] %vm4916, %v4915
  %s4921 = scalar_lea.vmem %s1, 3426
  %4922 = vst.msk [vmem:[%s4921] ss:$-479 sm:$0x60] %vm4916, %v4915
  %s4923 = scalar_lea.vmem %s1, 642
  %4924 = vst.msk [vmem:[%s4923] sm:$0x80] %vm4916, %v4915
  %vm4925 = vcmask 1048064
  %s4926 = scalar_lea.vmem %s1, 912
  %4927 = vst.msk [vmem:[%s4926] ss:$-63 sm:$0x3] %vm4925, %v4915
  %s4928 = scalar_lea.vmem %s1, 336
  %4929 = vst.msk [vmem:[%s4928] ss:$97 sm:$0xc] %vm4925, %v4915
  %s4930 = scalar_lea.vmem %s1, 16
  %4931 = vst.msk [vmem:[%s4930] ss:$193 sm:$0x30] %vm4925, %v4915
  %s4932 = scalar_lea.vmem %s1, 784
  %4933 = vst.msk [vmem:[%s4932] ss:$-63 sm:$0xc0] %vm4925, %v4915
  %s4934 = scalar_lea.vmem %s0, 770
  %s4935 = smov 3
  %v4936 = vld [vmem:[%s4934] ss:$100 sm:%s4935]
  %s4937 = scalar_lea.vmem %s0, 234
  %s4938 = smov 12
  %v4939 = vld [vmem:[%s4937] ss:$-76 sm:%s4938]
  %vm4940 = vcmask 1043458
  %v4941 = vsel %vm4940, %v4939, %v4936
  %s4942 = scalar_lea.vmem %s0, 4294966306
  %s4943 = smov 48
  %v4944 = vld [vmem:[%s4942] ss:$276 sm:%s4943]
  %vm4945 = vcmask 1045508
  %v4946 = vsel %vm4945, %v4944, %v4941
  %s4947 = scalar_lea.vmem %s0, 4294966746
  %s4948 = smov 192
  %v4949 = vld [vmem:[%s4947] ss:$100 sm:%s4948]
  %vm4950 = vcmask 1047558
  %v4951 = vsel %vm4950, %v4949, %v4946
  %s4952 = scalar_lea.vmem %s0, 1162
  %s4953 = smov 3
  %v4954 = vld [vmem:[%s4952] ss:$-172 sm:%s4953]
  %s4955 = scalar_lea.vmem %s0, 450
  %s4956 = smov 12
  %v4957 = vld [vmem:[%s4955] ss:$100 sm:%s4956]
  %vm4958 = vcmask 1043458
  %v4959 = vsel %vm4958, %v4957, %v4954
  %s4960 = scalar_lea.vmem %s0, 2278
  %s4961 = smov 48
  %v4962 = vld [vmem:[%s4960] ss:$-332 sm:%s4961]
  %vm4963 = vcmask 1045508
  %v4964 = vsel %vm4963, %v4962, %v4959
  %s4965 = scalar_lea.vmem %s0, 2990
  %s4966 = smov 192
  %v4967 = vld [vmem:[%s4965] ss:$-424 sm:%s4966]
  %vm4968 = vcmask 1047558
  %v4969 = vsel %vm4968, %v4967, %v4964
  %vm4970 = vcmask 523264
  %v4971 = vsel %vm4970, %v4969, %v4951
  %4972 = vrot.lane.b32.xlu0 %v4971, 64
  %v4973 = vpop.permute.xlu0 %4972
  %vm4974 = vcmask 523264
  %s4975 = scalar_lea.vmem %s1, 712
  %4976 = vst.msk [vmem:[%s4975] ss:$97 sm:$0x3] %vm4974, %v4973
  %s4977 = scalar_lea.vmem %s1, 200
  %4978 = vst.msk [vmem:[%s4977] ss:$-63 sm:$0xc] %vm4974, %v4973
  %s4979 = scalar_lea.vmem %s1, 4294966376
  %4980 = vst.msk [vmem:[%s4979] ss:$257 sm:$0x30] %vm4974, %v4973
  %s4981 = scalar_lea.vmem %s1, 4294966760
  %4982 = vst.msk [vmem:[%s4981] ss:$97 sm:$0xc0] %vm4974, %v4973
  %vm4983 = vcmask 1048064
  %s4984 = scalar_lea.vmem %s1, 1072
  %4985 = vst.msk [vmem:[%s4984] ss:$-159 sm:$0x3] %vm4983, %v4973
  %s4986 = scalar_lea.vmem %s1, 400
  %4987 = vst.msk [vmem:[%s4986] ss:$97 sm:$0xc] %vm4983, %v4973
  %s4988 = scalar_lea.vmem %s1, 2156
  %4989 = vst.msk [vmem:[%s4988] ss:$-318 sm:$0x30] %vm4983, %v4973
  %s4990 = scalar_lea.vmem %s1, 2705
  %4991 = vst.msk [vmem:[%s4990] ss:$-383 sm:$0xc0] %vm4983, %v4973
  %s4992 = scalar_lea.vmem %s0, 1042
  %s4993 = smov 3
  %v4994 = vld [vmem:[%s4992] ss:$100 sm:%s4993]
  %s4995 = scalar_lea.vmem %s0, 698
  %s4996 = smov 12
  %v4997 = vld [vmem:[%s4995] ss:$-172 sm:%s4996]
  %vm4998 = vcmask 1043458
  %v4999 = vsel %vm4998, %v4997, %v4994
  %s5000 = scalar_lea.vmem %s0, 4294965394
  %s5001 = smov 48
  %v5002 = vld [vmem:[%s5000] ss:$548 sm:%s5001]
  %vm5003 = vcmask 1045508
  %v5004 = vsel %vm5003, %v5002, %v4999
  %s5005 = scalar_lea.vmem %s0, 1530
  %s5006 = smov 192
  %v5007 = vld [vmem:[%s5005] ss:$-172 sm:%s5006]
  %vm5008 = vcmask 1047558
  %v5009 = vsel %vm5008, %v5007, %v5004
  %s5010 = scalar_lea.vmem %s0, 1254
  %s5011 = smov 3
  %v5012 = vld [vmem:[%s5010] ss:$-164 sm:%s5011]
  %s5013 = scalar_lea.vmem %s0, 526
  %s5014 = smov 12
  %v5015 = vld [vmem:[%s5013] ss:$108 sm:%s5014]
  %vm5016 = vcmask 1043458
  %v5017 = vsel %vm5016, %v5015, %v5012
  %s5018 = scalar_lea.vmem %s0, 2810
  %s5019 = smov 48
  %v5020 = vld [vmem:[%s5018] ss:$-420 sm:%s5019]
  %vm5021 = vcmask 1045508
  %v5022 = vsel %vm5021, %v5020, %v5017
  %s5023 = scalar_lea.vmem %s0, 3186
  %s5024 = smov 192
  %v5025 = vld [vmem:[%s5023] ss:$-440 sm:%s5024]
  %vm5026 = vcmask 1047558
  %v5027 = vsel %vm5026, %v5025, %v5022
  %vm5028 = vcmask 523264
  %v5029 = vsel %vm5028, %v5027, %v5009
  %5030 = vrot.lane.b32.xlu0 %v5029, 64
  %v5031 = vpop.permute.xlu0 %5030
  %vm5032 = vcmask 523264
  %s5033 = scalar_lea.vmem %s1, 968
  %5034 = vst.msk [vmem:[%s5033] ss:$97 sm:$0x3] %vm5032, %v5031
  %s5035 = scalar_lea.vmem %s1, 648
  %5036 = vst.msk [vmem:[%s5035] ss:$-159 sm:$0xc] %vm5032, %v5031
  %s5037 = scalar_lea.vmem %s1, 4294965512
  %5038 = vst.msk [vmem:[%s5037] ss:$513 sm:$0x30] %vm5032, %v5031
  %s5039 = scalar_lea.vmem %s1, 1416
  %5040 = vst.msk [vmem:[%s5039] ss:$-159 sm:$0xc0] %vm5032, %v5031
  %vm5041 = vcmask 1048064
  %s5042 = scalar_lea.vmem %s1, 1168
  %5043 = vst.msk [vmem:[%s5042] ss:$-159 sm:$0x3] %vm5041, %v5031
  %s5044 = scalar_lea.vmem %s1, 496
  %5045 = vst.msk [vmem:[%s5044] ss:$97 sm:$0xc] %vm5041, %v5031
  %s5046 = scalar_lea.vmem %s1, 2572
  %5047 = vst.msk [vmem:[%s5046] ss:$-382 sm:$0x30] %vm5041, %v5031
  %s5048 = scalar_lea.vmem %s1, 2993
  %5049 = vst.msk [vmem:[%s5048] ss:$-415 sm:$0xc0] %vm5041, %v5031
  %s5050 = scalar_lea.vmem %s0, 1218
  %s5051 = smov 3
  %v5052 = vld [vmem:[%s5050] ss:$100 sm:%s5051]
  %s5053 = scalar_lea.vmem %s0, 682
  %s5054 = smov 12
  %v5055 = vld [vmem:[%s5053] ss:$-76 sm:%s5054]
  %vm5056 = vcmask 1043458
  %v5057 = vsel %vm5056, %v5055, %v5052
  %s5058 = scalar_lea.vmem %s0, 4294964962
  %s5059 = smov 48
  %v5060 = vld [vmem:[%s5058] ss:$724 sm:%s5059]
  %vm5061 = vcmask 1045508
  %v5062 = vsel %vm5061, %v5060, %v5057
  %s5063 = scalar_lea.vmem %s0, 3034
  %s5064 = smov 192
  %v5065 = vld [vmem:[%s5063] ss:$-348 sm:%s5064]
  %vm5066 = vcmask 1047558
  %v5067 = vsel %vm5066, %v5065, %v5062
  %s5068 = scalar_lea.vmem %s0, 1338
  %s5069 = smov 3
  %v5070 = vld [vmem:[%s5068] ss:$-76 sm:%s5069]
  %s5071 = scalar_lea.vmem %s0, 722
  %s5072 = smov 12
  %v5073 = vld [vmem:[%s5071] ss:$100 sm:%s5072]
  %vm5074 = vcmask 1043458
  %v5075 = vsel %vm5074, %v5073, %v5070
  %s5076 = scalar_lea.vmem %s0, 2986
  %s5077 = smov 48
  %v5078 = vld [vmem:[%s5076] ss:$-420 sm:%s5077]
  %vm5079 = vcmask 1045508
  %v5080 = vsel %vm5079, %v5078, %v5075
  %s5081 = scalar_lea.vmem %s0, 3838
  %s5082 = smov 192
  %v5083 = vld [vmem:[%s5081] ss:$-520 sm:%s5082]
  %vm5084 = vcmask 1047558
  %v5085 = vsel %vm5084, %v5083, %v5080
  %vm5086 = vcmask 523264
  %v5087 = vsel %vm5086, %v5085, %v5067
  %5088 = vrot.lane.b32.xlu0 %v5087, 64
  %v5089 = vpop.permute.xlu0 %5088
  %vm5090 = vcmask 523264
  %s5091 = scalar_lea.vmem %s1, 1128
  %5092 = vst.msk [vmem:[%s5091] ss:$97 sm:$0x3] %vm5090, %v5089
  %s5093 = scalar_lea.vmem %s1, 616
  %5094 = vst.msk [vmem:[%s5093] ss:$-63 sm:$0xc] %vm5090, %v5089
  %s5095 = scalar_lea.vmem %s1, 4294965128
  %5096 = vst.msk [vmem:[%s5095] ss:$673 sm:$0x30] %vm5090, %v5089
  %s5097 = scalar_lea.vmem %s1, 2792
  %5098 = vst.msk [vmem:[%s5097] ss:$-319 sm:$0xc0] %vm5090, %v5089
  %vm5099 = vcmask 1048064
  %s5100 = scalar_lea.vmem %s1, 1232
  %5101 = vst.msk [vmem:[%s5100] ss:$-63 sm:$0x3] %vm5099, %v5089
  %s5102 = scalar_lea.vmem %s1, 656
  %5103 = vst.msk [vmem:[%s5102] ss:$97 sm:$0xc] %vm5099, %v5089
  %s5104 = scalar_lea.vmem %s1, 2732
  %5105 = vst.msk [vmem:[%s5104] ss:$-382 sm:$0x30] %vm5099, %v5089
  %s5106 = scalar_lea.vmem %s1, 3537
  %5107 = vst.msk [vmem:[%s5106] ss:$-479 sm:$0xc0] %vm5099, %v5089
  %s5108 = scalar_lea.vmem %s0, 802
  %s5109 = smov 3
  %v5110 = vld [vmem:[%s5108] ss:$-172 sm:%s5109]
  %s5111 = scalar_lea.vmem %s0, 666
  %s5112 = smov 12
  %v5113 = vld [vmem:[%s5111] ss:$36 sm:%s5112]
  %vm5114 = vcmask 1043458
  %v5115 = vsel %vm5114, %v5113, %v5110
  %s5116 = scalar_lea.vmem %s0, 946
  %s5117 = smov 48
  %v5118 = vld [vmem:[%s5116] ss:$-172 sm:%s5117]
  %vm5119 = vcmask 1045508
  %v5120 = vsel %vm5119, %v5118, %v5115
  %s5121 = scalar_lea.vmem %s0, 4294966714
  %s5122 = smov 192
  %v5123 = vld [vmem:[%s5121] ss:$100 sm:%s5122]
  %vm5124 = vcmask 1047558
  %v5125 = vsel %vm5124, %v5123, %v5120
  %s5126 = scalar_lea.vmem %s0, 1014
  %s5127 = smov 3
  %v5128 = vld [vmem:[%s5126] ss:$108 sm:%s5127]
  %s5129 = scalar_lea.vmem %s0, 1562
  %s5130 = smov 12
  %v5131 = vld [vmem:[%s5129] ss:$-248 sm:%s5130]
  %vm5132 = vcmask 1043458
  %v5133 = vsel %vm5132, %v5131, %v5128
  %s5134 = scalar_lea.vmem %s0, 1770
  %s5135 = smov 48
  %v5136 = vld [vmem:[%s5134] ss:$-348 sm:%s5135]
  %vm5137 = vcmask 1045508
  %v5138 = vsel %vm5137, %v5136, %v5133
  %s5139 = scalar_lea.vmem %s0, 570
  %s5140 = smov 192
  %v5141 = vld [vmem:[%s5139] ss:$-72 sm:%s5140]
  %vm5142 = vcmask 1047558
  %v5143 = vsel %vm5142, %v5141, %v5138
  %vm5144 = vcmask 523264
  %v5145 = vsel %vm5144, %v5143, %v5125
  %5146 = vrot.lane.b32.xlu0 %v5145, 64
  %v5147 = vpop.permute.xlu0 %5146
  %vm5148 = vcmask 523264
  %s5149 = scalar_lea.vmem %s1, 746
  %5150 = vst.msk [vmem:[%s5149] ss:$-159 sm:$0x3] %vm5148, %v5147
  %s5151 = scalar_lea.vmem %s1, 614
  %5152 = vst.msk [vmem:[%s5151] ss:$35 sm:$0xc] %vm5148, %v5147
  %s5153 = scalar_lea.vmem %s1, 876
  %5154 = vst.msk [vmem:[%s5153] ss:$-159 sm:$0x30] %vm5148, %v5147
  %s5155 = scalar_lea.vmem %s1, 4294966732
  %5156 = vst.msk [vmem:[%s5155] ss:$97 sm:$0xc0] %vm5148, %v5147
  %vm5157 = vcmask 1048064
  %s5158 = scalar_lea.vmem %s1, 946
  %5159 = vst.msk [vmem:[%s5158] ss:$97 sm:$0x3] %vm5157, %v5147
  %s5160 = scalar_lea.vmem %s1, 1428
  %5161 = vst.msk [vmem:[%s5160] ss:$-223 sm:$0xc] %vm5157, %v5147
  %s5162 = scalar_lea.vmem %s1, 1620
  %5163 = vst.msk [vmem:[%s5162] ss:$-319 sm:$0x30] %vm5157, %v5147
  %s5164 = scalar_lea.vmem %s1, 500
  %5165 = vst.msk [vmem:[%s5164] ss:$-63 sm:$0xc0] %vm5157, %v5147
  %s5166 = scalar_lea.vmem %s0, 978
  %s5167 = smov 3
  %v5168 = vld [vmem:[%s5166] ss:$-76 sm:%s5167]
  %s5169 = scalar_lea.vmem %s0, 938
  %s5170 = smov 12
  %v5171 = vld [vmem:[%s5169] ss:$36 sm:%s5170]
  %vm5172 = vcmask 1043458
  %v5173 = vsel %vm5172, %v5171, %v5168
  %s5174 = scalar_lea.vmem %s0, 738
  %s5175 = smov 48
  %v5176 = vld [vmem:[%s5174] ss:$-76 sm:%s5175]
  %vm5177 = vcmask 1045508
  %v5178 = vsel %vm5177, %v5176, %v5173
  %s5179 = scalar_lea.vmem %s0, 4294966890
  %s5180 = smov 192
  %v5181 = vld [vmem:[%s5179] ss:$100 sm:%s5180]
  %vm5182 = vcmask 1047558
  %v5183 = vsel %vm5182, %v5181, %v5178
  %s5184 = scalar_lea.vmem %s0, 1098
  %s5185 = smov 3
  %v5186 = vld [vmem:[%s5184] ss:$100 sm:%s5185]
  %s5187 = scalar_lea.vmem %s0, 1686
  %s5188 = smov 12
  %v5189 = vld [vmem:[%s5187] ss:$-264 sm:%s5188]
  %vm5190 = vcmask 1043458
  %v5191 = vsel %vm5190, %v5189, %v5186
  %s5192 = scalar_lea.vmem %s0, 1830
  %s5193 = smov 48
  %v5194 = vld [vmem:[%s5192] ss:$-340 sm:%s5193]
  %vm5195 = vcmask 1045508
  %v5196 = vsel %vm5195, %v5194, %v5191
  %s5197 = scalar_lea.vmem %s0, 182
  %s5198 = smov 192
  %v5199 = vld [vmem:[%s5197] ss:$8 sm:%s5198]
  %vm5200 = vcmask 1047558
  %v5201 = vsel %vm5200, %v5199, %v5196
  %vm5202 = vcmask 523264
  %v5203 = vsel %vm5202, %v5201, %v5183
  %5204 = vrot.lane.b32.xlu0 %v5203, 64
  %v5205 = vpop.permute.xlu0 %5204
  %vm5206 = vcmask 523264
  %s5207 = scalar_lea.vmem %s1, 906
  %5208 = vst.msk [vmem:[%s5207] ss:$-63 sm:$0x3] %vm5206, %v5205
  %s5209 = scalar_lea.vmem %s1, 870
  %5210 = vst.msk [vmem:[%s5209] ss:$35 sm:$0xc] %vm5206, %v5205
  %s5211 = scalar_lea.vmem %s1, 652
  %5212 = vst.msk [vmem:[%s5211] ss:$-63 sm:$0x30] %vm5206, %v5205
  %s5213 = scalar_lea.vmem %s1, 4294966892
  %5214 = vst.msk [vmem:[%s5213] ss:$97 sm:$0xc0] %vm5206, %v5205
  %vm5215 = vcmask 1048064
  %s5216 = scalar_lea.vmem %s1, 1010
  %5217 = vst.msk [vmem:[%s5216] ss:$97 sm:$0x3] %vm5215, %v5205
  %s5218 = scalar_lea.vmem %s1, 1588
  %5219 = vst.msk [vmem:[%s5218] ss:$-255 sm:$0xc] %vm5215, %v5205
  %s5220 = scalar_lea.vmem %s1, 1716
  %5221 = vst.msk [vmem:[%s5220] ss:$-319 sm:$0x30] %vm5215, %v5205
  %s5222 = scalar_lea.vmem %s1, 212
  %5223 = vst.msk [vmem:[%s5222] sm:$0xc0] %vm5215, %v5205
  %s5224 = scalar_lea.vmem %s0, 1250
  %s5225 = smov 3
  %v5226 = vld [vmem:[%s5224] ss:$-172 sm:%s5225]
  %s5227 = scalar_lea.vmem %s0, 1114
  %s5228 = smov 12
  %v5229 = vld [vmem:[%s5227] ss:$36 sm:%s5228]
  %vm5230 = vcmask 1043458
  %v5231 = vsel %vm5230, %v5229, %v5226
  %s5232 = scalar_lea.vmem %s0, 1394
  %s5233 = smov 48
  %v5234 = vld [vmem:[%s5232] ss:$-172 sm:%s5233]
  %vm5235 = vcmask 1045508
  %v5236 = vsel %vm5235, %v5234, %v5231
  %s5237 = scalar_lea.vmem %s0, 4294967162
  %s5238 = smov 192
  %v5239 = vld [vmem:[%s5237] ss:$100 sm:%s5238]
  %vm5240 = vcmask 1047558
  %v5241 = vsel %vm5240, %v5239, %v5236
  %s5242 = scalar_lea.vmem %s0, 1190
  %s5243 = smov 3
  %v5244 = vld [vmem:[%s5242] ss:$108 sm:%s5243]
  %s5245 = scalar_lea.vmem %s0, 2014
  %s5246 = smov 12
  %v5247 = vld [vmem:[%s5245] ss:$-340 sm:%s5246]
  %vm5248 = vcmask 1043458
  %v5249 = vsel %vm5248, %v5247, %v5244
  %s5250 = scalar_lea.vmem %s0, 1946
  %s5251 = smov 48
  %v5252 = vld [vmem:[%s5250] ss:$-348 sm:%s5251]
  %vm5253 = vcmask 1045508
  %v5254 = vsel %vm5253, %v5252, %v5249
  %s5255 = scalar_lea.vmem %s0, 170
  %s5256 = smov 192
  %v5257 = vld [vmem:[%s5255] ss:$24 sm:%s5256]
  %vm5258 = vcmask 1047558
  %v5259 = vsel %vm5258, %v5257, %v5254
  %vm5260 = vcmask 523264
  %v5261 = vsel %vm5260, %v5259, %v5241
  %5262 = vrot.lane.b32.xlu0 %v5261, 64
  %v5263 = vpop.permute.xlu0 %5262
  %vm5264 = vcmask 523264
  %s5265 = scalar_lea.vmem %s1, 1162
  %5266 = vst.msk [vmem:[%s5265] ss:$-159 sm:$0x3] %vm5264, %v5263
  %s5267 = scalar_lea.vmem %s1, 1030
  %5268 = vst.msk [vmem:[%s5267] ss:$35 sm:$0xc] %vm5264, %v5263
  %s5269 = scalar_lea.vmem %s1, 1292
  %5270 = vst.msk [vmem:[%s5269] ss:$-159 sm:$0x30] %vm5264, %v5263
  %s5271 = scalar_lea.vmem %s1, 4294967148
  %5272 = vst.msk [vmem:[%s5271] ss:$97 sm:$0xc0] %vm5264, %v5263
  %vm5273 = vcmask 1048064
  %s5274 = scalar_lea.vmem %s1, 1106
  %5275 = vst.msk [vmem:[%s5274] ss:$97 sm:$0x3] %vm5273, %v5263
  %s5276 = scalar_lea.vmem %s1, 1876
  %5277 = vst.msk [vmem:[%s5276] ss:$-319 sm:$0xc] %vm5273, %v5263
  %s5278 = scalar_lea.vmem %s1, 1780
  %5279 = vst.msk [vmem:[%s5278] ss:$-319 sm:$0x30] %vm5273, %v5263
  %s5280 = scalar_lea.vmem %s1, 84
  %5281 = vst.msk [vmem:[%s5280] ss:$33 sm:$0xc0] %vm5273, %v5263
  %s5282 = scalar_lea.vmem %s0, 882
  %s5283 = smov 3
  %v5284 = vld [vmem:[%s5282] ss:$-76 sm:%s5283]
  %s5285 = scalar_lea.vmem %s0, 442
  %s5286 = smov 12
  %v5287 = vld [vmem:[%s5285] ss:$100 sm:%s5286]
  %vm5288 = vcmask 1043458
  %v5289 = vsel %vm5288, %v5287, %v5284
  %s5290 = scalar_lea.vmem %s0, 914
  %s5291 = smov 48
  %v5292 = vld [vmem:[%s5290] ss:$-172 sm:%s5291]
  %vm5293 = vcmask 1045508
  %v5294 = vsel %vm5293, %v5292, %v5289
  %s5295 = scalar_lea.vmem %s0, 4294966858
  %s5296 = smov 192
  %v5297 = vld [vmem:[%s5295] ss:$100 sm:%s5296]
  %vm5298 = vcmask 1047558
  %v5299 = vsel %vm5298, %v5297, %v5294
  %s5300 = scalar_lea.vmem %s0, 1166
  %s5301 = smov 3
  %v5302 = vld [vmem:[%s5300] ss:$-520 sm:%s5301]
  %s5303 = scalar_lea.vmem %s0, 106
  %s5304 = smov 12
  %v5305 = vld [vmem:[%s5303] ss:$100 sm:%s5304]
  %vm5306 = vcmask 1043458
  %v5307 = vsel %vm5306, %v5305, %v5302
  %s5308 = scalar_lea.vmem %s0, 1774
  %s5309 = smov 48
  %v5310 = vld [vmem:[%s5308] ss:$-340 sm:%s5309]
  %vm5311 = vcmask 1045508
  %v5312 = vsel %vm5311, %v5310, %v5307
  %s5313 = scalar_lea.vmem %s0, 606
  %s5314 = smov 192
  %v5315 = vld [vmem:[%s5313] ss:$-72 sm:%s5314]
  %vm5316 = vcmask 1047558
  %v5317 = vsel %vm5316, %v5315, %v5312
  %vm5318 = vcmask 523264
  %v5319 = vsel %vm5318, %v5317, %v5299
  %5320 = vrot.lane.b32.xlu0 %v5319, 64
  %v5321 = vpop.permute.xlu0 %5320
  %vm5322 = vcmask 523264
  %s5323 = scalar_lea.vmem %s1, 816
  %5324 = vst.msk [vmem:[%s5323] ss:$-63 sm:$0x3] %vm5322, %v5321
  %s5325 = scalar_lea.vmem %s1, 400
  %5326 = vst.msk [vmem:[%s5325] ss:$97 sm:$0xc] %vm5322, %v5321
  %s5327 = scalar_lea.vmem %s1, 848
  %5328 = vst.msk [vmem:[%s5327] ss:$-159 sm:$0x30] %vm5322, %v5321
  %s5329 = scalar_lea.vmem %s1, 4294966864
  %5330 = vst.msk [vmem:[%s5329] ss:$97 sm:$0xc0] %vm5322, %v5321
  %vm5331 = vcmask 1048064
  %s5332 = scalar_lea.vmem %s1, 1079
  %5333 = vst.msk [vmem:[%s5332] ss:$-479 sm:$0x3] %vm5331, %v5321
  %s5334 = scalar_lea.vmem %s1, 87
  %5335 = vst.msk [vmem:[%s5334] ss:$97 sm:$0xc] %vm5331, %v5321
  %s5336 = scalar_lea.vmem %s1, 1655
  %5337 = vst.msk [vmem:[%s5336] ss:$-319 sm:$0x30] %vm5331, %v5321
  %s5338 = scalar_lea.vmem %s1, 535
  %5339 = vst.msk [vmem:[%s5338] ss:$-63 sm:$0xc0] %vm5331, %v5321
  %s5340 = scalar_lea.vmem %s0, 1154
  %s5341 = smov 3
  %v5342 = vld [vmem:[%s5340] ss:$-172 sm:%s5341]
  %s5343 = scalar_lea.vmem %s0, 714
  %s5344 = smov 12
  %v5345 = vld [vmem:[%s5343] ss:$100 sm:%s5344]
  %vm5346 = vcmask 1043458
  %v5347 = vsel %vm5346, %v5345, %v5342
  %s5348 = scalar_lea.vmem %s0, 2
  %s5349 = smov 48
  %v5350 = vld [vmem:[%s5348] ss:$100 sm:%s5349]
  %vm5351 = vcmask 1045508
  %v5352 = vsel %vm5351, %v5350, %v5347
  %s5353 = scalar_lea.vmem %s0, 1642
  %s5354 = smov 192
  %v5355 = vld [vmem:[%s5353] ss:$-172 sm:%s5354]
  %vm5356 = vcmask 1047558
  %v5357 = vsel %vm5356, %v5355, %v5352
  %s5358 = scalar_lea.vmem %s0, 1266
  %s5359 = smov 3
  %v5360 = vld [vmem:[%s5358] ss:$-440 sm:%s5359]
  %s5361 = scalar_lea.vmem %s0, 262
  %s5362 = smov 12
  %v5363 = vld [vmem:[%s5361] ss:$108 sm:%s5362]
  %vm5364 = vcmask 1043458
  %v5365 = vsel %vm5364, %v5363, %v5360
  %s5366 = scalar_lea.vmem %s0, 1906
  %s5367 = smov 48
  %v5368 = vld [vmem:[%s5366] ss:$-348 sm:%s5367]
  %vm5369 = vcmask 1045508
  %v5370 = vsel %vm5369, %v5368, %v5365
  %s5371 = scalar_lea.vmem %s0, 226
  %s5372 = smov 192
  %v5373 = vld [vmem:[%s5371] ss:$8 sm:%s5372]
  %vm5374 = vcmask 1047558
  %v5375 = vsel %vm5374, %v5373, %v5370
  %vm5376 = vcmask 523264
  %v5377 = vsel %vm5376, %v5375, %v5357
  %5378 = vrot.lane.b32.xlu0 %v5377, 64
  %v5379 = vpop.permute.xlu0 %5378
  %vm5380 = vcmask 523264
  %s5381 = scalar_lea.vmem %s1, 1072
  %5382 = vst.msk [vmem:[%s5381] ss:$-159 sm:$0x3] %vm5380, %v5379
  %s5383 = scalar_lea.vmem %s1, 656
  %5384 = vst.msk [vmem:[%s5383] ss:$97 sm:$0xc] %vm5380, %v5379
  %s5385 = scalar_lea.vmem %s1, 4294967280
  %5386 = vst.msk [vmem:[%s5385] ss:$97 sm:$0x70] %vm5380, %v5379
  %s5387 = scalar_lea.vmem %s1, 400
  %5388 = vst.msk [vmem:[%s5387] sm:$0x80] %vm5380, %v5379
  %vm5389 = vcmask 1048064
  %s5390 = scalar_lea.vmem %s1, 1175
  %5391 = vst.msk [vmem:[%s5390] ss:$-415 sm:$0x3] %vm5389, %v5379
  %s5392 = scalar_lea.vmem %s1, 247
  %5393 = vst.msk [vmem:[%s5392] ss:$97 sm:$0xc] %vm5389, %v5379
  %s5394 = scalar_lea.vmem %s1, 1751
  %5395 = vst.msk [vmem:[%s5394] ss:$-319 sm:$0x30] %vm5389, %v5379
  %s5396 = scalar_lea.vmem %s1, 247
  %5397 = vst.msk [vmem:[%s5396] sm:$0xc0] %vm5389, %v5379
  %s5398 = scalar_lea.vmem %s0, 1330
  %s5399 = smov 3
  %v5400 = vld [vmem:[%s5398] ss:$-76 sm:%s5399]
  %s5401 = scalar_lea.vmem %s0, 890
  %s5402 = smov 12
  %v5403 = vld [vmem:[%s5401] ss:$100 sm:%s5402]
  %vm5404 = vcmask 1043458
  %v5405 = vsel %vm5404, %v5403, %v5400
  %s5406 = scalar_lea.vmem %s0, 4294966866
  %s5407 = smov 48
  %v5408 = vld [vmem:[%s5406] ss:$276 sm:%s5407]
  %vm5409 = vcmask 1045508
  %v5410 = vsel %vm5409, %v5408, %v5405
  %s5411 = scalar_lea.vmem %s0, 3146
  %s5412 = smov 192
  %v5413 = vld [vmem:[%s5411] ss:$-348 sm:%s5412]
  %vm5414 = vcmask 1047558
  %v5415 = vsel %vm5414, %v5413, %v5410
  %s5416 = scalar_lea.vmem %s0, 1342
  %s5417 = smov 3
  %v5418 = vld [vmem:[%s5416] ss:$-424 sm:%s5417]
  %s5419 = scalar_lea.vmem %s0, 378
  %s5420 = smov 12
  %v5421 = vld [vmem:[%s5419] ss:$100 sm:%s5420]
  %vm5422 = vcmask 1043458
  %v5423 = vsel %vm5422, %v5421, %v5418
  %s5424 = scalar_lea.vmem %s0, 2046
  %s5425 = smov 48
  %v5426 = vld [vmem:[%s5424] ss:$-340 sm:%s5425]
  %vm5427 = vcmask 1045508
  %v5428 = vsel %vm5427, %v5426, %v5423
  %s5429 = scalar_lea.vmem %s0, 2110
  %s5430 = smov 192
  %v5431 = vld [vmem:[%s5429] ss:$-248 sm:%s5430]
  %vm5432 = vcmask 1047558
  %v5433 = vsel %vm5432, %v5431, %v5428
  %vm5434 = vcmask 523264
  %v5435 = vsel %vm5434, %v5433, %v5415
  %5436 = vrot.lane.b32.xlu0 %v5435, 64
  %v5437 = vpop.permute.xlu0 %5436
  %vm5438 = vcmask 523264
  %s5439 = scalar_lea.vmem %s1, 1232
  %5440 = vst.msk [vmem:[%s5439] ss:$-63 sm:$0x3] %vm5438, %v5437
  %s5441 = scalar_lea.vmem %s1, 816
  %5442 = vst.msk [vmem:[%s5441] ss:$97 sm:$0xc] %vm5438, %v5437
  %s5443 = scalar_lea.vmem %s1, 4294966896
  %5444 = vst.msk [vmem:[%s5443] ss:$257 sm:$0x30] %vm5438, %v5437
  %s5445 = scalar_lea.vmem %s1, 2896
  %5446 = vst.msk [vmem:[%s5445] ss:$-319 sm:$0xc0] %vm5438, %v5437
  %vm5447 = vcmask 1048064
  %s5448 = scalar_lea.vmem %s1, 1239
  %5449 = vst.msk [vmem:[%s5448] ss:$-383 sm:$0x3] %vm5447, %v5437
  %s5450 = scalar_lea.vmem %s1, 343
  %5451 = vst.msk [vmem:[%s5450] ss:$97 sm:$0xc] %vm5447, %v5437
  %s5452 = scalar_lea.vmem %s1, 1911
  %5453 = vst.msk [vmem:[%s5452] ss:$-319 sm:$0x30] %vm5447, %v5437
  %s5454 = scalar_lea.vmem %s1, 1911
  %5455 = vst.msk [vmem:[%s5454] ss:$-223 sm:$0xc0] %vm5447, %v5437
  %s5456 = scalar_lea.vmem %s0, 850
  %s5457 = smov 3
  %v5458 = vld [vmem:[%s5456] ss:$36 sm:%s5457]
  %s5459 = scalar_lea.vmem %s0, 250
  %s5460 = smov 12
  %v5461 = vld [vmem:[%s5459] ss:$-76 sm:%s5460]
  %vm5462 = vcmask 1043458
  %v5463 = vsel %vm5462, %v5461, %v5458
  %s5464 = scalar_lea.vmem %s0, 4294967026
  %s5465 = smov 48
  %v5466 = vld [vmem:[%s5464] ss:$100 sm:%s5465]
  %vm5467 = vcmask 1045508
  %v5468 = vsel %vm5467, %v5466, %v5463
  %s5469 = scalar_lea.vmem %s0, 4294966762
  %s5470 = smov 192
  %v5471 = vld [vmem:[%s5469] ss:$100 sm:%s5470]
  %vm5472 = vcmask 1047558
  %v5473 = vsel %vm5472, %v5471, %v5468
  %s5474 = scalar_lea.vmem %s0, 1002
  %s5475 = smov 3
  %v5476 = vld [vmem:[%s5474] ss:$-348 sm:%s5475]
  %s5477 = scalar_lea.vmem %s0, 714
  %s5478 = smov 12
  %v5479 = vld [vmem:[%s5477] ss:$24 sm:%s5478]
  %vm5480 = vcmask 1043458
  %v5481 = vsel %vm5480, %v5479, %v5476
  %s5482 = scalar_lea.vmem %s0, 4294967018
  %s5483 = smov 48
  %v5484 = vld [vmem:[%s5482] ss:$200 sm:%s5483]
  %vm5485 = vcmask 1045508
  %v5486 = vsel %vm5485, %v5484, %v5481
  %s5487 = scalar_lea.vmem %s0, 3646
  %s5488 = smov 192
  %v5489 = vld [vmem:[%s5487] ss:$-516 sm:%s5488]
  %vm5490 = vcmask 1047558
  %v5491 = vsel %vm5490, %v5489, %v5486
  %vm5492 = vcmask 523264
  %v5493 = vsel %vm5492, %v5491, %v5473
  %5494 = vrot.lane.b32.xlu0 %v5493, 64
  %v5495 = vpop.permute.xlu0 %5494
  %vm5496 = vcmask 523264
  %s5497 = scalar_lea.vmem %s1, 788
  %5498 = vst.msk [vmem:[%s5497] ss:$35 sm:$0x3] %vm5496, %v5495
  %s5499 = scalar_lea.vmem %s1, 214
  %5500 = vst.msk [vmem:[%s5499] ss:$-63 sm:$0xc] %vm5496, %v5495
  %s5501 = scalar_lea.vmem %s1, 4294967030
  %5502 = vst.msk [vmem:[%s5501] ss:$97 sm:$0x30] %vm5496, %v5495
  %s5503 = scalar_lea.vmem %s1, 4294966774
  %5504 = vst.msk [vmem:[%s5503] ss:$97 sm:$0xc0] %vm5496, %v5495
  %vm5505 = vcmask 1048064
  %s5506 = scalar_lea.vmem %s1, 920
  %5507 = vst.msk [vmem:[%s5506] ss:$-319 sm:$0x3] %vm5505, %v5495
  %s5508 = scalar_lea.vmem %s1, 632
  %5509 = vst.msk [vmem:[%s5508] ss:$33 sm:$0xc] %vm5505, %v5495
  %s5510 = scalar_lea.vmem %s1, 4294967000
  %5511 = vst.msk [vmem:[%s5510] ss:$193 sm:$0x30] %vm5505, %v5495
  %s5512 = scalar_lea.vmem %s1, 3384
  %5513 = vst.msk [vmem:[%s5512] ss:$-479 sm:$0xc0] %vm5505, %v5495
  %s5514 = scalar_lea.vmem %s0, 1122
  %s5515 = smov 3
  %v5516 = vld [vmem:[%s5514] ss:$36 sm:%s5515]
  %s5517 = scalar_lea.vmem %s0, 714
  %s5518 = smov 12
  %v5519 = vld [vmem:[%s5517] ss:$-172 sm:%s5518]
  %vm5520 = vcmask 1043458
  %v5521 = vsel %vm5520, %v5519, %v5516
  %s5522 = scalar_lea.vmem %s0, 4294967202
  %s5523 = smov 48
  %v5524 = vld [vmem:[%s5522] ss:$100 sm:%s5523]
  %vm5525 = vcmask 1045508
  %v5526 = vsel %vm5525, %v5524, %v5521
  %s5527 = scalar_lea.vmem %s0, 4294965978
  %s5528 = smov 192
  %v5529 = vld [vmem:[%s5527] ss:$276 sm:%s5528]
  %vm5530 = vcmask 1047558
  %v5531 = vsel %vm5530, %v5529, %v5526
  %s5532 = scalar_lea.vmem %s0, 1094
  %s5533 = smov 3
  %v5534 = vld [vmem:[%s5532] ss:$-340 sm:%s5533]
  %s5535 = scalar_lea.vmem %s0, 838
  %s5536 = smov 12
  %v5537 = vld [vmem:[%s5535] ss:$8 sm:%s5536]
  %vm5538 = vcmask 1043458
  %v5539 = vsel %vm5538, %v5537, %v5534
  %s5540 = scalar_lea.vmem %s0, 4294966086
  %s5541 = smov 48
  %v5542 = vld [vmem:[%s5540] ss:$456 sm:%s5541]
  %vm5543 = vcmask 1045508
  %v5544 = vsel %vm5543, %v5542, %v5539
  %s5545 = scalar_lea.vmem %s0, 4450
  %s5546 = smov 192
  %v5547 = vld [vmem:[%s5545] ss:$-620 sm:%s5546]
  %vm5548 = vcmask 1047558
  %v5549 = vsel %vm5548, %v5547, %v5544
  %vm5550 = vcmask 523264
  %v5551 = vsel %vm5550, %v5549, %v5531
  %5552 = vrot.lane.b32.xlu0 %v5551, 64
  %v5553 = vpop.permute.xlu0 %5552
  %vm5554 = vcmask 523264
  %s5555 = scalar_lea.vmem %s1, 1044
  %5556 = vst.msk [vmem:[%s5555] ss:$35 sm:$0x3] %vm5554, %v5553
  %s5557 = scalar_lea.vmem %s1, 662
  %5558 = vst.msk [vmem:[%s5557] ss:$-159 sm:$0xc] %vm5554, %v5553
  %s5559 = scalar_lea.vmem %s1, 4294967190
  %5560 = vst.msk [vmem:[%s5559] ss:$97 sm:$0x30] %vm5554, %v5553
  %s5561 = scalar_lea.vmem %s1, 4294966070
  %5562 = vst.msk [vmem:[%s5561] ss:$257 sm:$0xc0] %vm5554, %v5553
  %vm5563 = vcmask 1048064
  %s5564 = scalar_lea.vmem %s1, 1016
  %5565 = vst.msk [vmem:[%s5564] ss:$-319 sm:$0x3] %vm5563, %v5553
  %s5566 = scalar_lea.vmem %s1, 792
  %5567 = vst.msk [vmem:[%s5566] sm:$0xc] %vm5563, %v5553
  %s5568 = scalar_lea.vmem %s1, 4294966200
  %5569 = vst.msk [vmem:[%s5568] ss:$417 sm:$0x30] %vm5563, %v5553
  %s5570 = scalar_lea.vmem %s1, 4120
  %5571 = vst.msk [vmem:[%s5570] ss:$-575 sm:$0xc0] %vm5563, %v5553
  %s5572 = scalar_lea.vmem %s0, 1298
  %s5573 = smov 3
  %v5574 = vld [vmem:[%s5572] ss:$36 sm:%s5573]
  %s5575 = scalar_lea.vmem %s0, 698
  %s5576 = smov 12
  %v5577 = vld [vmem:[%s5575] ss:$-76 sm:%s5576]
  %vm5578 = vcmask 1043458
  %v5579 = vsel %vm5578, %v5577, %v5574
  %s5580 = scalar_lea.vmem %s0, 178
  %s5581 = smov 48
  %v5582 = vld [vmem:[%s5580] ss:$100 sm:%s5581]
  %vm5583 = vcmask 1045508
  %v5584 = vsel %vm5583, %v5582, %v5579
  %s5585 = scalar_lea.vmem %s0, 4294964522
  %s5586 = smov 192
  %v5587 = vld [vmem:[%s5585] ss:$548 sm:%s5586]
  %vm5588 = vcmask 1047558
  %v5589 = vsel %vm5588, %v5587, %v5584
  %s5590 = scalar_lea.vmem %s0, 1274
  %s5591 = smov 3
  %v5592 = vld [vmem:[%s5590] ss:$-348 sm:%s5591]
  %s5593 = scalar_lea.vmem %s0, 1178
  %s5594 = smov 12
  %v5595 = vld [vmem:[%s5593] ss:$-72 sm:%s5594]
  %vm5596 = vcmask 1043458
  %v5597 = vsel %vm5596, %v5595, %v5592
  %s5598 = scalar_lea.vmem %s0, 4294966586
  %s5599 = smov 48
  %v5600 = vld [vmem:[%s5598] ss:$376 sm:%s5599]
  %vm5601 = vcmask 1045508
  %v5602 = vsel %vm5601, %v5600, %v5597
  %s5603 = scalar_lea.vmem %s0, 4494
  %s5604 = smov 192
  %v5605 = vld [vmem:[%s5603] ss:$-612 sm:%s5604]
  %vm5606 = vcmask 1047558
  %v5607 = vsel %vm5606, %v5605, %v5602
  %vm5608 = vcmask 523264
  %v5609 = vsel %vm5608, %v5607, %v5589
  %5610 = vrot.lane.b32.xlu0 %v5609, 64
  %v5611 = vpop.permute.xlu0 %5610
  %vm5612 = vcmask 523264
  %s5613 = scalar_lea.vmem %s1, 1204
  %5614 = vst.msk [vmem:[%s5613] ss:$35 sm:$0x3] %vm5612, %v5611
  %s5615 = scalar_lea.vmem %s1, 630
  %5616 = vst.msk [vmem:[%s5615] ss:$-63 sm:$0xc] %vm5612, %v5611
  %s5617 = scalar_lea.vmem %s1, 150
  %5618 = vst.msk [vmem:[%s5617] ss:$97 sm:$0x30] %vm5612, %v5611
  %s5619 = scalar_lea.vmem %s1, 4294964694
  %5620 = vst.msk [vmem:[%s5619] ss:$513 sm:$0xc0] %vm5612, %v5611
  %vm5621 = vcmask 1048064
  %s5622 = scalar_lea.vmem %s1, 1176
  %5623 = vst.msk [vmem:[%s5622] ss:$-319 sm:$0x3] %vm5621, %v5611
  %s5624 = scalar_lea.vmem %s1, 1080
  %5625 = vst.msk [vmem:[%s5624] ss:$-63 sm:$0xc] %vm5621, %v5611
  %s5626 = scalar_lea.vmem %s1, 4294966616
  %5627 = vst.msk [vmem:[%s5626] ss:$353 sm:$0x30] %vm5621, %v5611
  %s5628 = scalar_lea.vmem %s1, 4216
  %5629 = vst.msk [vmem:[%s5628] ss:$-575 sm:$0xc0] %vm5621, %v5611
  %s5630 = scalar_lea.vmem %s0, 818
  %s5631 = smov 3
  %v5632 = vld [vmem:[%s5630] ss:$-172 sm:%s5631]
  %s5633 = scalar_lea.vmem %s0, 554
  %s5634 = smov 12
  %v5635 = vld [vmem:[%s5633] ss:$100 sm:%s5634]
  %vm5636 = vcmask 1043458
  %v5637 = vsel %vm5636, %v5635, %v5632
  %s5638 = scalar_lea.vmem %s0, 782
  %v5639 = vld [vmem:[%s5638] sm:$0x10]
  %vm5640 = vcmask 1044484
  %v5641 = vsel %vm5640, %v5639, %v5637
  %s5642 = scalar_lea.vmem %s0, 1134
  %s5643 = smov 96
  %v5644 = vld [vmem:[%s5642] ss:$-172 sm:%s5643]
  %vm5645 = vcmask 1046533
  %v5646 = vsel %vm5645, %v5644, %v5641
  %s5647 = scalar_lea.vmem %s0, 987
  %v5648 = vld [vmem:[%s5647] sm:$0x80]
  %vm5649 = vcmask 1047559
  %v5650 = vsel %vm5649, %v5648, %v5646
  %s5651 = scalar_lea.vmem %s0, 1026
  %s5652 = smov 3
  %v5653 = vld [vmem:[%s5651] ss:$100 sm:%s5652]
  %s5654 = scalar_lea.vmem %s0, 1462
  %s5655 = smov 12
  %v5656 = vld [vmem:[%s5654] ss:$-164 sm:%s5655]
  %vm5657 = vcmask 1043458
  %v5658 = vsel %vm5657, %v5656, %v5653
  %s5659 = scalar_lea.vmem %s0, 3462
  %s5660 = smov 48
  %v5661 = vld [vmem:[%s5659] ss:$-616 sm:%s5660]
  %vm5662 = vcmask 1045508
  %v5663 = vsel %vm5662, %v5661, %v5658
  %s5664 = scalar_lea.vmem %s0, 454
  %s5665 = smov 192
  %v5666 = vld [vmem:[%s5664] ss:$108 sm:%s5665]
  %vm5667 = vcmask 1047558
  %v5668 = vsel %vm5667, %v5666, %v5663
  %vm5669 = vcmask 523264
  %v5670 = vsel %vm5669, %v5668, %v5650
  %5671 = vrot.lane.b32.xlu0 %v5670, 64
  %v5672 = vpop.permute.xlu0 %5671
  %vm5673 = vcmask 523264
  %s5674 = scalar_lea.vmem %s1, 760
  %5675 = vst.msk [vmem:[%s5674] ss:$-159 sm:$0x3] %vm5673, %v5672
  %s5676 = scalar_lea.vmem %s1, 504
  %5677 = vst.msk [vmem:[%s5676] ss:$97 sm:$0xc] %vm5673, %v5672
  %s5678 = scalar_lea.vmem %s1, 2644
  %5679 = vst.msk [vmem:[%s5678] ss:$-478 sm:$0x30] %vm5673, %v5672
  %s5680 = scalar_lea.vmem %s1, 4294962441
  %5681 = vst.msk [vmem:[%s5680] ss:$825 sm:$0xc0] %vm5673, %v5672
  %vm5682 = vcmask 1048064
  %s5683 = scalar_lea.vmem %s1, 953
  %5684 = vst.msk [vmem:[%s5683] ss:$97 sm:$0x3] %vm5682, %v5672
  %s5685 = scalar_lea.vmem %s1, 1369
  %5686 = vst.msk [vmem:[%s5685] ss:$-159 sm:$0xc] %vm5682, %v5672
  %s5687 = scalar_lea.vmem %s1, 3226
  %5688 = vst.msk [vmem:[%s5687] ss:$-575 sm:$0x30] %vm5682, %v5672
  %s5689 = scalar_lea.vmem %s1, 435
  %5690 = vst.msk [vmem:[%s5689] ss:$97 sm:$0xc0] %vm5682, %v5672
  %s5691 = scalar_lea.vmem %s0, 1266
  %s5692 = smov 3
  %v5693 = vld [vmem:[%s5691] ss:$-348 sm:%s5692]
  %s5694 = scalar_lea.vmem %s0, 826
  %s5695 = smov 12
  %v5696 = vld [vmem:[%s5694] ss:$100 sm:%s5695]
  %vm5697 = vcmask 1043458
  %v5698 = vsel %vm5697, %v5696, %v5693
  %s5699 = scalar_lea.vmem %s0, 1922
  %s5700 = smov 48
  %v5701 = vld [vmem:[%s5699] ss:$-240 sm:%s5700]
  %vm5702 = vcmask 1045508
  %v5703 = vsel %vm5702, %v5701, %v5698
  %s5704 = scalar_lea.vmem %s0, 4294963350
  %s5705 = smov 192
  %v5706 = vld [vmem:[%s5704] ss:$720 sm:%s5705]
  %vm5707 = vcmask 1047558
  %v5708 = vsel %vm5707, %v5706, %v5703
  %s5709 = scalar_lea.vmem %s0, 1202
  %s5710 = smov 3
  %v5711 = vld [vmem:[%s5709] ss:$100 sm:%s5710]
  %s5712 = scalar_lea.vmem %s0, 1578
  %s5713 = smov 12
  %v5714 = vld [vmem:[%s5712] ss:$-172 sm:%s5713]
  %vm5715 = vcmask 1043458
  %v5716 = vsel %vm5715, %v5714, %v5711
  %s5717 = scalar_lea.vmem %s0, 3962
  %s5718 = smov 48
  %v5719 = vld [vmem:[%s5717] ss:$-696 sm:%s5718]
  %vm5720 = vcmask 1045508
  %v5721 = vsel %vm5720, %v5719, %v5716
  %s5722 = scalar_lea.vmem %s0, 1718
  %s5723 = smov 192
  %v5724 = vld [vmem:[%s5722] ss:$-68 sm:%s5723]
  %vm5725 = vcmask 1047558
  %v5726 = vsel %vm5725, %v5724, %v5721
  %vm5727 = vcmask 523264
  %v5728 = vsel %vm5727, %v5726, %v5708
  %5729 = vrot.lane.b32.xlu0 %v5728, 64
  %v5730 = vpop.permute.xlu0 %5729
  %vm5731 = vcmask 523264
  %s5732 = scalar_lea.vmem %s1, 1176
  %5733 = vst.msk [vmem:[%s5732] ss:$-319 sm:$0x3] %vm5731, %v5730
  %s5734 = scalar_lea.vmem %s1, 760
  %5735 = vst.msk [vmem:[%s5734] ss:$97 sm:$0xc] %vm5731, %v5730
  %s5736 = scalar_lea.vmem %s1, 1780
  %5737 = vst.msk [vmem:[%s5736] ss:$-222 sm:$0x30] %vm5731, %v5730
  %s5738 = scalar_lea.vmem %s1, 4294963651
  %5739 = vst.msk [vmem:[%s5738] ss:$666 sm:$0xc0] %vm5731, %v5730
  %vm5740 = vcmask 1048064
  %s5741 = scalar_lea.vmem %s1, 1113
  %5742 = vst.msk [vmem:[%s5741] ss:$97 sm:$0x3] %vm5740, %v5730
  %s5743 = scalar_lea.vmem %s1, 1465
  %5744 = vst.msk [vmem:[%s5743] ss:$-159 sm:$0xc] %vm5740, %v5730
  %s5745 = scalar_lea.vmem %s1, 3642
  %5746 = vst.msk [vmem:[%s5745] ss:$-639 sm:$0x30] %vm5740, %v5730
  %s5747 = scalar_lea.vmem %s1, 1589
  %5748 = vst.msk [vmem:[%s5747] ss:$-63 sm:$0xc0] %vm5740, %v5730
  %s5749 = scalar_lea.vmem %s0, 1202
  %s5750 = smov 3
  %v5751 = vld [vmem:[%s5749] ss:$100 sm:%s5750]
  %s5752 = scalar_lea.vmem %s0, 1232
  %v5753 = vld [vmem:[%s5752] sm:$0x4]
  %vm5754 = vcmask 1042434
  %v5755 = vsel %vm5754, %v5753, %v5751
  %s5756 = scalar_lea.vmem %s0, 3030
  %s5757 = smov 24
  %v5758 = vld [vmem:[%s5756] ss:$-620 sm:%s5757]
  %vm5759 = vcmask 1044483
  %v5760 = vsel %vm5759, %v5758, %v5755
  %s5761 = scalar_lea.vmem %s0, 4294967238
  %s5762 = smov 96
  %v5763 = vld [vmem:[%s5761] ss:$176 sm:%s5762]
  %vm5764 = vcmask 1046533
  %v5765 = vsel %vm5764, %v5763, %v5760
  %s5766 = scalar_lea.vmem %s0, 1263
  %v5767 = vld [vmem:[%s5766] sm:$0x80]
  %vm5768 = vcmask 1047559
  %v5769 = vsel %vm5768, %v5767, %v5765
  %s5770 = scalar_lea.vmem %s0, 1270
  %s5771 = smov 3
  %v5772 = vld [vmem:[%s5770] ss:$-712 sm:%s5771]
  %s5773 = scalar_lea.vmem %s0, 314
  %s5774 = smov 12
  %v5775 = vld [vmem:[%s5773] ss:$172 sm:%s5774]
  %vm5776 = vcmask 1043458
  %v5777 = vsel %vm5776, %v5775, %v5772
  %s5778 = scalar_lea.vmem %s0, 626
  %s5779 = smov 48
  %v5780 = vld [vmem:[%s5778] ss:$76 sm:%s5779]
  %vm5781 = vcmask 1045508
  %v5782 = vsel %vm5781, %v5780, %v5777
  %s5783 = scalar_lea.vmem %s0, 74
  %s5784 = smov 192
  %v5785 = vld [vmem:[%s5783] ss:$172 sm:%s5784]
  %vm5786 = vcmask 1047558
  %v5787 = vsel %vm5786, %v5785, %v5782
  %vm5788 = vcmask 523264
  %v5789 = vsel %vm5788, %v5787, %v5769
  %5790 = vrot.lane.b32.xlu0 %v5789, 64
  %v5791 = vpop.permute.xlu0 %5790
  %vm5792 = vcmask 523264
  %s5793 = scalar_lea.vmem %s1, 1114
  %5794 = vst.msk [vmem:[%s5793] ss:$97 sm:$0x3] %vm5792, %v5791
  %s5795 = scalar_lea.vmem %s1, 1272
  %5796 = vst.msk [vmem:[%s5795] ss:$-62 sm:$0xc] %vm5792, %v5791
  %s5797 = scalar_lea.vmem %s1, 507
  %5798 = vst.msk [vmem:[%s5797] sm:$0x10] %vm5792, %v5791
  %s5799 = scalar_lea.vmem %s1, 762
  %5800 = vst.msk [vmem:[%s5799] sm:$0x20] %vm5792, %v5791
  %s5801 = scalar_lea.vmem %s1, 921
  %5802 = vst.msk [vmem:[%s5801] sm:$0x40] %vm5792, %v5791
  %s5803 = scalar_lea.vmem %s1, 1176
  %5804 = vst.msk [vmem:[%s5803] sm:$0x80] %vm5792, %v5791
  %vm5805 = vcmask 1048064
  %s5806 = scalar_lea.vmem %s1, 1182
  %5807 = vst.msk [vmem:[%s5806] ss:$-671 sm:$0x3] %vm5805, %v5791
  %s5808 = scalar_lea.vmem %s1, 605
  %5809 = vst.msk [vmem:[%s5808] sm:$0x4] %vm5805, %v5791
  %s5810 = scalar_lea.vmem %s1, 764
  %5811 = vst.msk [vmem:[%s5810] sm:$0x8] %vm5805, %v5791
  %s5812 = scalar_lea.vmem %s1, 859
  %5813 = vst.msk [vmem:[%s5812] sm:$0x10] %vm5805, %v5791
  %s5814 = scalar_lea.vmem %s1, 922
  %5815 = vst.msk [vmem:[%s5814] sm:$0x20] %vm5805, %v5791
  %s5816 = scalar_lea.vmem %s1, 1017
  %5817 = vst.msk [vmem:[%s5816] sm:$0x40] %vm5805, %v5791
  %s5818 = scalar_lea.vmem %s1, 1176
  %5819 = vst.msk [vmem:[%s5818] sm:$0x80] %vm5805, %v5791
  %s5820 = scalar_lea.vmem %s0, 275
  %s5821 = smov 3
  %v5822 = vld [vmem:[%s5820] ss:$-172 sm:%s5821]
  %s5823 = scalar_lea.vmem %s0, 4294967131
  %s5824 = smov 12
  %v5825 = vld [vmem:[%s5823] ss:$100 sm:%s5824]
  %vm5826 = vcmask 1043458
  %v5827 = vsel %vm5826, %v5825, %v5822
  %s5828 = scalar_lea.vmem %s0, 931
  %s5829 = smov 48
  %v5830 = vld [vmem:[%s5828] ss:$-172 sm:%s5829]
  %vm5831 = vcmask 1045508
  %v5832 = vsel %vm5831, %v5830, %v5827
  %s5833 = scalar_lea.vmem %s0, 4294965643
  %s5834 = smov 192
  %v5835 = vld [vmem:[%s5833] ss:$276 sm:%s5834]
  %vm5836 = vcmask 1047558
  %v5837 = vsel %vm5836, %v5835, %v5832
  %s5838 = scalar_lea.vmem %s0, 103
  %s5839 = smov 3
  %v5840 = vld [vmem:[%s5838] ss:$-68 sm:%s5839]
  %s5841 = scalar_lea.vmem %s0, 4294967139
  %s5842 = smov 12
  %v5843 = vld [vmem:[%s5841] ss:$100 sm:%s5842]
  %vm5844 = vcmask 1043458
  %v5845 = vsel %vm5844, %v5843, %v5840
  %s5846 = scalar_lea.vmem %s0, 343
  %s5847 = smov 48
  %v5848 = vld [vmem:[%s5846] ss:$-68 sm:%s5847]
  %vm5849 = vcmask 1045508
  %v5850 = vsel %vm5849, %v5848, %v5845
  %s5851 = scalar_lea.vmem %s0, 4294965651
  %s5852 = smov 192
  %v5853 = vld [vmem:[%s5851] ss:$276 sm:%s5852]
  %vm5854 = vcmask 1047558
  %v5855 = vsel %vm5854, %v5853, %v5850
  %vm5856 = vcmask 785408
  %v5857 = vsel %vm5856, %v5855, %v5837
  %5858 = vrot.lane.b32.xlu0 %v5857, 32
  %v5859 = vpop.permute.xlu0 %5858
  %vm5860 = vcmask 261120
  %s5861 = scalar_lea.vmem %s1, 256
  %5862 = vst.msk [vmem:[%s5861] ss:$-159 sm:$0x3] %vm5860, %v5859
  %s5863 = scalar_lea.vmem %s1, 4294967136
  %5864 = vst.msk [vmem:[%s5863] ss:$97 sm:$0x1c] %vm5860, %v5859
  %s5865 = scalar_lea.vmem %s1, 384
  %5866 = vst.msk [vmem:[%s5865] ss:$-63 sm:$0x60] %vm5860, %v5859
  %s5867 = scalar_lea.vmem %s1, 256
  %5868 = vst.msk [vmem:[%s5867] sm:$0x80] %vm5860, %v5859
  %vm5869 = vcmask 1047808
  %s5870 = scalar_lea.vmem %s1, 96
  %5871 = vst.msk [vmem:[%s5870] ss:$-63 sm:$0x3] %vm5869, %v5859
  %s5872 = scalar_lea.vmem %s1, 4294967136
  %5873 = vst.msk [vmem:[%s5872] ss:$97 sm:$0xc] %vm5869, %v5859
  %s5874 = scalar_lea.vmem %s1, 320
  %5875 = vst.msk [vmem:[%s5874] ss:$-63 sm:$0x30] %vm5869, %v5859
  %s5876 = scalar_lea.vmem %s1, 4294965760
  %5877 = vst.msk [vmem:[%s5876] ss:$257 sm:$0xc0] %vm5869, %v5859
  %s5878 = scalar_lea.vmem %s0, 723
  %s5879 = smov 3
  %v5880 = vld [vmem:[%s5878] ss:$-348 sm:%s5879]
  %s5881 = scalar_lea.vmem %s0, 11
  %s5882 = smov 12
  %v5883 = vld [vmem:[%s5881] ss:$100 sm:%s5882]
  %vm5884 = vcmask 1043458
  %v5885 = vsel %vm5884, %v5883, %v5880
  %s5886 = scalar_lea.vmem %s0, 723
  %s5887 = smov 48
  %v5888 = vld [vmem:[%s5886] ss:$-76 sm:%s5887]
  %vm5889 = vcmask 1045508
  %v5890 = vsel %vm5889, %v5888, %v5885
  %s5891 = scalar_lea.vmem %s0, 4294964187
  %s5892 = smov 192
  %v5893 = vld [vmem:[%s5891] ss:$548 sm:%s5892]
  %vm5894 = vcmask 1047558
  %v5895 = vsel %vm5894, %v5893, %v5890
  %s5896 = scalar_lea.vmem %s0, 283
  %s5897 = smov 3
  %v5898 = vld [vmem:[%s5896] ss:$-172 sm:%s5897]
  %s5899 = scalar_lea.vmem %s0, 4294967215
  %s5900 = smov 12
  %v5901 = vld [vmem:[%s5899] ss:$108 sm:%s5900]
  %vm5902 = vcmask 1043458
  %v5903 = vsel %vm5902, %v5901, %v5898
  %s5904 = scalar_lea.vmem %s0, 939
  %s5905 = smov 48
  %v5906 = vld [vmem:[%s5904] ss:$-172 sm:%s5905]
  %vm5907 = vcmask 1045508
  %v5908 = vsel %vm5907, %v5906, %v5903
  %s5909 = scalar_lea.vmem %s0, 4294966283
  %s5910 = smov 192
  %v5911 = vld [vmem:[%s5909] ss:$200 sm:%s5910]
  %vm5912 = vcmask 1047558
  %v5913 = vsel %vm5912, %v5911, %v5908
  %vm5914 = vcmask 785408
  %v5915 = vsel %vm5914, %v5913, %v5895
  %5916 = vrot.lane.b32.xlu0 %v5915, 32
  %v5917 = vpop.permute.xlu0 %5916
  %vm5918 = vcmask 261120
  %s5919 = scalar_lea.vmem %s1, 672
  %5920 = vst.msk [vmem:[%s5919] ss:$-319 sm:$0x3] %vm5918, %v5917
  %5921 = vst.msk [vmem:[%s1] ss:$97 sm:$0x1c] %vm5918, %v5917
  %s5922 = scalar_lea.vmem %s1, 1120
  %5923 = vst.msk [vmem:[%s5922] ss:$-159 sm:$0x60] %vm5918, %v5917
  %s5924 = scalar_lea.vmem %s1, 672
  %5925 = vst.msk [vmem:[%s5924] sm:$0x80] %vm5918, %v5917
  %vm5926 = vcmask 1047808
  %s5927 = scalar_lea.vmem %s1, 256
  %5928 = vst.msk [vmem:[%s5927] ss:$-159 sm:$0x3] %vm5926, %v5917
  %s5929 = scalar_lea.vmem %s1, 4294967232
  %5930 = vst.msk [vmem:[%s5929] ss:$97 sm:$0xc] %vm5926, %v5917
  %s5931 = scalar_lea.vmem %s1, 864
  %5932 = vst.msk [vmem:[%s5931] ss:$-159 sm:$0x30] %vm5926, %v5917
  %s5933 = scalar_lea.vmem %s1, 4294966304
  %5934 = vst.msk [vmem:[%s5933] ss:$193 sm:$0xc0] %vm5926, %v5917
  %s5935 = scalar_lea.vmem %s0, 1171
  %s5936 = smov 3
  %v5937 = vld [vmem:[%s5935] ss:$-620 sm:%s5936]
  %s5938 = scalar_lea.vmem %s0, 283
  %s5939 = smov 12
  %v5940 = vld [vmem:[%s5938] ss:$100 sm:%s5939]
  %vm5941 = vcmask 1043458
  %v5942 = vsel %vm5941, %v5940, %v5937
  %s5943 = scalar_lea.vmem %s0, 1379
  %s5944 = smov 48
  %v5945 = vld [vmem:[%s5943] ss:$-172 sm:%s5944]
  %vm5946 = vcmask 1045508
  %v5947 = vsel %vm5946, %v5945, %v5942
  %s5948 = scalar_lea.vmem %s0, 4294963403
  %s5949 = smov 192
  %v5950 = vld [vmem:[%s5948] ss:$724 sm:%s5949]
  %vm5951 = vcmask 1047558
  %v5952 = vsel %vm5951, %v5950, %v5947
  %s5953 = scalar_lea.vmem %s0, 375
  %s5954 = smov 3
  %v5955 = vld [vmem:[%s5953] ss:$-164 sm:%s5954]
  %s5956 = scalar_lea.vmem %s0, 19
  %s5957 = smov 12
  %v5958 = vld [vmem:[%s5956] ss:$100 sm:%s5957]
  %vm5959 = vcmask 1043458
  %v5960 = vsel %vm5959, %v5958, %v5955
  %s5961 = scalar_lea.vmem %s0, 999
  %s5962 = smov 48
  %v5963 = vld [vmem:[%s5961] ss:$-164 sm:%s5962]
  %vm5964 = vcmask 1045508
  %v5965 = vsel %vm5964, %v5963, %v5960
  %s5966 = scalar_lea.vmem %s0, 4294964839
  %s5967 = smov 192
  %v5968 = vld [vmem:[%s5966] ss:$456 sm:%s5967]
  %vm5969 = vcmask 1047558
  %v5970 = vsel %vm5969, %v5968, %v5965
  %vm5971 = vcmask 785408
  %v5972 = vsel %vm5971, %v5970, %v5952
  %5973 = vrot.lane.b32.xlu0 %v5972, 32
  %v5974 = vpop.permute.xlu0 %5973
  %vm5975 = vcmask 261120
  %s5976 = scalar_lea.vmem %s1, 1088
  %5977 = vst.msk [vmem:[%s5976] ss:$-575 sm:$0x3] %vm5975, %v5974
  %s5978 = scalar_lea.vmem %s1, 256
  %5979 = vst.msk [vmem:[%s5978] ss:$97 sm:$0x1c] %vm5975, %v5974
  %s5980 = scalar_lea.vmem %s1, 800
  %5981 = vst.msk [vmem:[%s5980] ss:$-63 sm:$0x60] %vm5975, %v5974
  %s5982 = scalar_lea.vmem %s1, 1088
  %5983 = vst.msk [vmem:[%s5982] sm:$0x80] %vm5975, %v5974
  %vm5984 = vcmask 1047808
  %s5985 = scalar_lea.vmem %s1, 352
  %5986 = vst.msk [vmem:[%s5985] ss:$-159 sm:$0x3] %vm5984, %v5974
  %5987 = vst.msk [vmem:[%s1] ss:$97 sm:$0xc] %vm5984, %v5974
  %s5988 = scalar_lea.vmem %s1, 960
  %5989 = vst.msk [vmem:[%s5988] ss:$-159 sm:$0x30] %vm5984, %v5974
  %s5990 = scalar_lea.vmem %s1, 4294965056
  %5991 = vst.msk [vmem:[%s5990] ss:$417 sm:$0xc0] %vm5984, %v5974
  %s5992 = scalar_lea.vmem %s0, 823
  %s5993 = smov 3
  %v5994 = vld [vmem:[%s5992] ss:$-164 sm:%s5993]
  %s5995 = scalar_lea.vmem %s0, 543
  %s5996 = smov 12
  %v5997 = vld [vmem:[%s5995] ss:$108 sm:%s5996]
  %vm5998 = vcmask 1043458
  %v5999 = vsel %vm5998, %v5997, %v5994
  %s6000 = scalar_lea.vmem %s0, 1447
  %s6001 = smov 48
  %v6002 = vld [vmem:[%s6000] ss:$-164 sm:%s6001]
  %vm6003 = vcmask 1045508
  %v6004 = vsel %vm6003, %v6002, %v5999
  %s6005 = scalar_lea.vmem %s0, 2475
  %s6006 = smov 192
  %v6007 = vld [vmem:[%s6005] ss:$-348 sm:%s6006]
  %vm6008 = vcmask 1047558
  %v6009 = vsel %vm6008, %v6007, %v6004
  %s6010 = scalar_lea.vmem %s0, 551
  %s6011 = smov 3
  %v6012 = vld [vmem:[%s6010] ss:$-168 sm:%s6011]
  %s6013 = scalar_lea.vmem %s0, 95
  %s6014 = smov 12
  %v6015 = vld [vmem:[%s6013] ss:$108 sm:%s6014]
  %vm6016 = vcmask 1043458
  %v6017 = vsel %vm6016, %v6015, %v6012
  %s6018 = scalar_lea.vmem %s0, 731
  %s6019 = smov 48
  %v6020 = vld [vmem:[%s6018] ss:$-76 sm:%s6019]
  %vm6021 = vcmask 1045508
  %v6022 = vsel %vm6021, %v6020, %v6017
  %s6023 = scalar_lea.vmem %s0, 4294965499
  %s6024 = smov 192
  %v6025 = vld [vmem:[%s6023] ss:$376 sm:%s6024]
  %vm6026 = vcmask 1047558
  %v6027 = vsel %vm6026, %v6025, %v6022
  %vm6028 = vcmask 785408
  %v6029 = vsel %vm6028, %v6027, %v6009
  %6030 = vrot.lane.b32.xlu0 %v6029, 32
  %v6031 = vpop.permute.xlu0 %6030
  %vm6032 = vcmask 261120
  %s6033 = scalar_lea.vmem %s1, 769
  %6034 = vst.msk [vmem:[%s6033] ss:$-159 sm:$0x3] %vm6032, %v6031
  %s6035 = scalar_lea.vmem %s1, 513
  %6036 = vst.msk [vmem:[%s6035] ss:$97 sm:$0xc] %vm6032, %v6031
  %s6037 = scalar_lea.vmem %s1, 1377
  %6038 = vst.msk [vmem:[%s6037] ss:$-159 sm:$0x30] %vm6032, %v6031
  %s6039 = scalar_lea.vmem %s1, 2274
  %6040 = vst.msk [vmem:[%s6039] ss:$-319 sm:$0xc0] %vm6032, %v6031
  %vm6041 = vcmask 1047808
  %s6042 = scalar_lea.vmem %s1, 512
  %6043 = vst.msk [vmem:[%s6042] ss:$-159 sm:$0x3] %vm6041, %v6031
  %s6044 = scalar_lea.vmem %s1, 96
  %6045 = vst.msk [vmem:[%s6044] ss:$97 sm:$0xc] %vm6041, %v6031
  %s6046 = scalar_lea.vmem %s1, 640
  %6047 = vst.msk [vmem:[%s6046] ss:$-63 sm:$0x30] %vm6041, %v6031
  %s6048 = scalar_lea.vmem %s1, 4294965600
  %6049 = vst.msk [vmem:[%s6048] ss:$353 sm:$0xc0] %vm6041, %v6031
  %s6050 = scalar_lea.vmem %s0, 999
  %s6051 = smov 3
  %v6052 = vld [vmem:[%s6050] ss:$-68 sm:%s6051]
  %s6053 = scalar_lea.vmem %s0, 815
  %s6054 = smov 12
  %v6055 = vld [vmem:[%s6053] ss:$108 sm:%s6054]
  %vm6056 = vcmask 1043458
  %v6057 = vsel %vm6056, %v6055, %v6052
  %s6058 = scalar_lea.vmem %s0, 1239
  %s6059 = smov 48
  %v6060 = vld [vmem:[%s6058] ss:$-68 sm:%s6059]
  %vm6061 = vcmask 1045508
  %v6062 = vsel %vm6061, %v6060, %v6057
  %s6063 = scalar_lea.vmem %s0, 4555
  %s6064 = smov 192
  %v6065 = vld [vmem:[%s6063] ss:$-620 sm:%s6064]
  %vm6066 = vcmask 1047558
  %v6067 = vsel %vm6066, %v6065, %v6062
  %s6068 = scalar_lea.vmem %s0, 731
  %s6069 = smov 3
  %v6070 = vld [vmem:[%s6068] ss:$-248 sm:%s6069]
  %s6071 = scalar_lea.vmem %s0, 291
  %s6072 = smov 12
  %v6073 = vld [vmem:[%s6071] ss:$100 sm:%s6072]
  %vm6074 = vcmask 1043458
  %v6075 = vsel %vm6074, %v6073, %v6070
  %s6076 = scalar_lea.vmem %s0, 791
  %s6077 = smov 48
  %v6078 = vld [vmem:[%s6076] ss:$-68 sm:%s6077]
  %vm6079 = vcmask 1045508
  %v6080 = vsel %vm6079, %v6078, %v6075
  %s6081 = scalar_lea.vmem %s0, 4294964643
  %s6082 = smov 192
  %v6083 = vld [vmem:[%s6081] ss:$548 sm:%s6082]
  %vm6084 = vcmask 1047558
  %v6085 = vsel %vm6084, %v6083, %v6080
  %vm6086 = vcmask 785408
  %v6087 = vsel %vm6086, %v6085, %v6067
  %6088 = vrot.lane.b32.xlu0 %v6087, 32
  %v6089 = vpop.permute.xlu0 %6088
  %vm6090 = vcmask 261120
  %s6091 = scalar_lea.vmem %s1, 929
  %6092 = vst.msk [vmem:[%s6091] ss:$-63 sm:$0x3] %vm6090, %v6089
  %s6093 = scalar_lea.vmem %s1, 769
  %6094 = vst.msk [vmem:[%s6093] ss:$97 sm:$0xc] %vm6090, %v6089
  %s6095 = scalar_lea.vmem %s1, 1153
  %6096 = vst.msk [vmem:[%s6095] ss:$-63 sm:$0x30] %vm6090, %v6089
  %s6097 = scalar_lea.vmem %s1, 4226
  %6098 = vst.msk [vmem:[%s6097] ss:$-575 sm:$0xc0] %vm6090, %v6089
  %vm6099 = vcmask 1047808
  %s6100 = scalar_lea.vmem %s1, 672
  %6101 = vst.msk [vmem:[%s6100] ss:$-223 sm:$0x3] %vm6099, %v6089
  %s6102 = scalar_lea.vmem %s1, 256
  %6103 = vst.msk [vmem:[%s6102] ss:$97 sm:$0xc] %vm6099, %v6089
  %s6104 = scalar_lea.vmem %s1, 736
  %6105 = vst.msk [vmem:[%s6104] ss:$-63 sm:$0x30] %vm6099, %v6089
  %s6106 = scalar_lea.vmem %s1, 4294964800
  %6107 = vst.msk [vmem:[%s6106] ss:$513 sm:$0xc0] %vm6099, %v6089
  %s6108 = scalar_lea.vmem %s0, 1271
  %s6109 = smov 3
  %v6110 = vld [vmem:[%s6108] ss:$-164 sm:%s6109]
  %s6111 = scalar_lea.vmem %s0, 991
  %s6112 = smov 12
  %v6113 = vld [vmem:[%s6111] ss:$108 sm:%s6112]
  %vm6114 = vcmask 1043458
  %v6115 = vsel %vm6114, %v6113, %v6110
  %s6116 = scalar_lea.vmem %s0, 1895
  %s6117 = smov 48
  %v6118 = vld [vmem:[%s6116] ss:$-164 sm:%s6117]
  %vm6119 = vcmask 1045508
  %v6120 = vsel %vm6119, %v6118, %v6115
  %s6121 = scalar_lea.vmem %s0, 6059
  %s6122 = smov 192
  %v6123 = vld [vmem:[%s6121] ss:$-796 sm:%s6122]
  %vm6124 = vcmask 1047558
  %v6125 = vsel %vm6124, %v6123, %v6120
  %s6126 = scalar_lea.vmem %s0, 823
  %s6127 = smov 3
  %v6128 = vld [vmem:[%s6126] ss:$-264 sm:%s6127]
  %s6129 = scalar_lea.vmem %s0, 367
  %s6130 = smov 12
  %v6131 = vld [vmem:[%s6129] ss:$108 sm:%s6130]
  %vm6132 = vcmask 1043458
  %v6133 = vsel %vm6132, %v6131, %v6128
  %s6134 = scalar_lea.vmem %s0, 1387
  %s6135 = smov 48
  %v6136 = vld [vmem:[%s6134] ss:$-172 sm:%s6135]
  %vm6137 = vcmask 1045508
  %v6138 = vsel %vm6137, %v6136, %v6133
  %s6139 = scalar_lea.vmem %s0, 4294964687
  %s6140 = smov 192
  %v6141 = vld [vmem:[%s6139] ss:$556 sm:%s6140]
  %vm6142 = vcmask 1047558
  %v6143 = vsel %vm6142, %v6141, %v6138
  %vm6144 = vcmask 785408
  %v6145 = vsel %vm6144, %v6143, %v6125
  %6146 = vrot.lane.b32.xlu0 %v6145, 32
  %v6147 = vpop.permute.xlu0 %6146
  %vm6148 = vcmask 261120
  %s6149 = scalar_lea.vmem %s1, 1185
  %6150 = vst.msk [vmem:[%s6149] ss:$-159 sm:$0x3] %vm6148, %v6147
  %s6151 = scalar_lea.vmem %s1, 929
  %6152 = vst.msk [vmem:[%s6151] ss:$97 sm:$0xc] %vm6148, %v6147
  %s6153 = scalar_lea.vmem %s1, 1793
  %6154 = vst.msk [vmem:[%s6153] ss:$-159 sm:$0x30] %vm6148, %v6147
  %s6155 = scalar_lea.vmem %s1, 5602
  %6156 = vst.msk [vmem:[%s6155] ss:$-735 sm:$0xc0] %vm6148, %v6147
  %vm6157 = vcmask 1047808
  %s6158 = scalar_lea.vmem %s1, 768
  %6159 = vst.msk [vmem:[%s6158] ss:$-255 sm:$0x3] %vm6157, %v6147
  %s6160 = scalar_lea.vmem %s1, 352
  %6161 = vst.msk [vmem:[%s6160] ss:$97 sm:$0xc] %vm6157, %v6147
  %s6162 = scalar_lea.vmem %s1, 1280
  %6163 = vst.msk [vmem:[%s6162] ss:$-159 sm:$0x30] %vm6157, %v6147
  %s6164 = scalar_lea.vmem %s1, 4294964896
  %6165 = vst.msk [vmem:[%s6164] ss:$513 sm:$0xc0] %vm6157, %v6147
  %s6166 = scalar_lea.vmem %s0, 663
  %s6167 = smov 3
  %v6168 = vld [vmem:[%s6166] ss:$-516 sm:%s6167]
  %s6169 = scalar_lea.vmem %s0, 575
  %s6170 = smov 12
  %v6171 = vld [vmem:[%s6169] ss:$-164 sm:%s6170]
  %vm6172 = vcmask 1043458
  %v6173 = vsel %vm6172, %v6171, %v6168
  %s6174 = scalar_lea.vmem %s0, 4294966871
  %s6175 = smov 48
  %v6176 = vld [vmem:[%s6174] ss:$108 sm:%s6175]
  %vm6177 = vcmask 1045508
  %v6178 = vsel %vm6177, %v6176, %v6173
  %s6179 = scalar_lea.vmem %s0, 2431
  %s6180 = smov 192
  %v6181 = vld [vmem:[%s6179] ss:$-340 sm:%s6180]
  %vm6182 = vcmask 1047558
  %v6183 = vsel %vm6182, %v6181, %v6178
  %s6184 = scalar_lea.vmem %s0, 999
  %s6185 = smov 3
  %v6186 = vld [vmem:[%s6184] ss:$-340 sm:%s6185]
  %s6187 = scalar_lea.vmem %s0, 467
  %s6188 = smov 12
  %v6189 = vld [vmem:[%s6187] ss:$100 sm:%s6188]
  %vm6190 = vcmask 1043458
  %v6191 = vsel %vm6190, %v6189, %v6186
  %s6192 = scalar_lea.vmem %s0, 1447
  %s6193 = smov 48
  %v6194 = vld [vmem:[%s6192] ss:$-164 sm:%s6193]
  %vm6195 = vcmask 1045508
  %v6196 = vsel %vm6195, %v6194, %v6191
  %s6197 = scalar_lea.vmem %s0, 6115
  %s6198 = smov 192
  %v6199 = vld [vmem:[%s6197] ss:$-868 sm:%s6198]
  %vm6200 = vcmask 1047558
  %v6201 = vsel %vm6200, %v6199, %v6196
  %vm6202 = vcmask 785408
  %v6203 = vsel %vm6202, %v6201, %v6183
  %6204 = vrot.lane.b32.xlu0 %v6203, 32
  %v6205 = vpop.permute.xlu0 %6204
  %vm6206 = vcmask 261120
  %s6207 = scalar_lea.vmem %s1, 617
  %6208 = vst.msk [vmem:[%s6207] ss:$-479 sm:$0x3] %vm6206, %v6205
  %s6209 = scalar_lea.vmem %s1, 553
  %6210 = vst.msk [vmem:[%s6209] ss:$-159 sm:$0xc] %vm6206, %v6205
  %s6211 = scalar_lea.vmem %s1, 4294966921
  %6212 = vst.msk [vmem:[%s6211] ss:$97 sm:$0x30] %vm6206, %v6205
  %s6213 = scalar_lea.vmem %s1, 2281
  %6214 = vst.msk [vmem:[%s6213] ss:$-319 sm:$0xc0] %vm6206, %v6205
  %vm6215 = vcmask 1047808
  %s6216 = scalar_lea.vmem %s1, 928
  %6217 = vst.msk [vmem:[%s6216] ss:$-319 sm:$0x3] %vm6215, %v6205
  %s6218 = scalar_lea.vmem %s1, 416
  %6219 = vst.msk [vmem:[%s6218] ss:$97 sm:$0xc] %vm6215, %v6205
  %s6220 = scalar_lea.vmem %s1, 1376
  %6221 = vst.msk [vmem:[%s6220] ss:$-159 sm:$0x30] %vm6215, %v6205
  %s6222 = scalar_lea.vmem %s1, 5626
  %6223 = vst.msk [vmem:[%s6222] ss:$-798 sm:$0xc0] %vm6215, %v6205
  %s6224 = scalar_lea.vmem %s0, 935
  %s6225 = smov 3
  %v6226 = vld [vmem:[%s6224] ss:$-612 sm:%s6225]
  %s6227 = scalar_lea.vmem %s0, 559
  %s6228 = smov 12
  %v6229 = vld [vmem:[%s6227] ss:$-68 sm:%s6228]
  %vm6230 = vcmask 1043458
  %v6231 = vsel %vm6230, %v6229, %v6226
  %s6232 = scalar_lea.vmem %s0, 4294967047
  %s6233 = smov 48
  %v6234 = vld [vmem:[%s6232] ss:$108 sm:%s6233]
  %vm6235 = vcmask 1045508
  %v6236 = vsel %vm6235, %v6234, %v6231
  %s6237 = scalar_lea.vmem %s0, 2879
  %s6238 = smov 192
  %v6239 = vld [vmem:[%s6237] ss:$-340 sm:%s6238]
  %vm6240 = vcmask 1047558
  %v6241 = vsel %vm6240, %v6239, %v6236
  %s6242 = scalar_lea.vmem %s0, 1179
  %s6243 = smov 3
  %v6244 = vld [vmem:[%s6242] ss:$-348 sm:%s6243]
  %s6245 = scalar_lea.vmem %s0, 543
  %s6246 = smov 12
  %v6247 = vld [vmem:[%s6245] ss:$108 sm:%s6246]
  %vm6248 = vcmask 1043458
  %v6249 = vsel %vm6248, %v6247, %v6244
  %s6250 = scalar_lea.vmem %s0, 1179
  %s6251 = smov 48
  %v6252 = vld [vmem:[%s6250] ss:$-76 sm:%s6251]
  %vm6253 = vcmask 1045508
  %v6254 = vsel %vm6253, %v6252, %v6249
  %s6255 = scalar_lea.vmem %s0, 6291
  %s6256 = smov 192
  %v6257 = vld [vmem:[%s6255] ss:$-868 sm:%s6256]
  %vm6258 = vcmask 1047558
  %v6259 = vsel %vm6258, %v6257, %v6254
  %vm6260 = vcmask 785408
  %v6261 = vsel %vm6260, %v6259, %v6241
  %6262 = vrot.lane.b32.xlu0 %v6261, 32
  %v6263 = vpop.permute.xlu0 %6262
  %vm6264 = vcmask 261120
  %s6265 = scalar_lea.vmem %s1, 873
  %6266 = vst.msk [vmem:[%s6265] ss:$-575 sm:$0x3] %vm6264, %v6263
  %s6267 = scalar_lea.vmem %s1, 521
  %6268 = vst.msk [vmem:[%s6267] ss:$-63 sm:$0xc] %vm6264, %v6263
  %s6269 = scalar_lea.vmem %s1, 4294967081
  %6270 = vst.msk [vmem:[%s6269] ss:$97 sm:$0x30] %vm6264, %v6263
  %s6271 = scalar_lea.vmem %s1, 2697
  %6272 = vst.msk [vmem:[%s6271] ss:$-319 sm:$0xc0] %vm6264, %v6263
  %vm6273 = vcmask 1047808
  %s6274 = scalar_lea.vmem %s1, 1088
  %6275 = vst.msk [vmem:[%s6274] ss:$-319 sm:$0x3] %vm6273, %v6263
  %s6276 = scalar_lea.vmem %s1, 512
  %6277 = vst.msk [vmem:[%s6276] ss:$97 sm:$0xc] %vm6273, %v6263
  %s6278 = scalar_lea.vmem %s1, 1056
  %6279 = vst.msk [vmem:[%s6278] ss:$-63 sm:$0x30] %vm6273, %v6263
  %s6280 = scalar_lea.vmem %s1, 5786
  %6281 = vst.msk [vmem:[%s6280] ss:$-798 sm:$0xc0] %vm6273, %v6263
  %s6282 = scalar_lea.vmem %s0, 1111
  %s6283 = smov 3
  %v6284 = vld [vmem:[%s6282] ss:$-516 sm:%s6283]
  %s6285 = scalar_lea.vmem %s0, 1023
  %s6286 = smov 12
  %v6287 = vld [vmem:[%s6285] ss:$-164 sm:%s6286]
  %vm6288 = vcmask 1043458
  %v6289 = vsel %vm6288, %v6287, %v6284
  %s6290 = scalar_lea.vmem %s0, 23
  %s6291 = smov 48
  %v6292 = vld [vmem:[%s6290] ss:$108 sm:%s6291]
  %vm6293 = vcmask 1045508
  %v6294 = vsel %vm6293, %v6292, %v6289
  %s6295 = scalar_lea.vmem %s0, 3327
  %s6296 = smov 192
  %v6297 = vld [vmem:[%s6295] ss:$-340 sm:%s6296]
  %vm6298 = vcmask 1047558
  %v6299 = vsel %vm6298, %v6297, %v6294
  %s6300 = scalar_lea.vmem %s0, 1271
  %s6301 = smov 3
  %v6302 = vld [vmem:[%s6300] ss:$-340 sm:%s6301]
  %s6303 = scalar_lea.vmem %s0, 739
  %s6304 = smov 12
  %v6305 = vld [vmem:[%s6303] ss:$100 sm:%s6304]
  %vm6306 = vcmask 1043458
  %v6307 = vsel %vm6306, %v6305, %v6302
  %s6308 = scalar_lea.vmem %s0, 1239
  %s6309 = smov 48
  %v6310 = vld [vmem:[%s6308] ss:$-68 sm:%s6309]
  %vm6311 = vcmask 1045508
  %v6312 = vsel %vm6311, %v6310, %v6307
  %s6313 = scalar_lea.vmem %s0, 5855
  %s6314 = smov 192
  %v6315 = vld [vmem:[%s6313] ss:$-780 sm:%s6314]
  %vm6316 = vcmask 1047558
  %v6317 = vsel %vm6316, %v6315, %v6312
  %vm6318 = vcmask 785408
  %v6319 = vsel %vm6318, %v6317, %v6299
  %6320 = vrot.lane.b32.xlu0 %v6319, 32
  %v6321 = vpop.permute.xlu0 %6320
  %vm6322 = vcmask 261120
  %s6323 = scalar_lea.vmem %s1, 1033
  %6324 = vst.msk [vmem:[%s6323] ss:$-479 sm:$0x3] %vm6322, %v6321
  %s6325 = scalar_lea.vmem %s1, 969
  %6326 = vst.msk [vmem:[%s6325] ss:$-159 sm:$0xc] %vm6322, %v6321
  %s6327 = scalar_lea.vmem %s1, 41
  %6328 = vst.msk [vmem:[%s6327] ss:$97 sm:$0x30] %vm6322, %v6321
  %s6329 = scalar_lea.vmem %s1, 3113
  %6330 = vst.msk [vmem:[%s6329] ss:$-319 sm:$0xc0] %vm6322, %v6321
  %vm6331 = vcmask 1047808
  %s6332 = scalar_lea.vmem %s1, 1184
  %6333 = vst.msk [vmem:[%s6332] ss:$-319 sm:$0x3] %vm6331, %v6321
  %s6334 = scalar_lea.vmem %s1, 672
  %6335 = vst.msk [vmem:[%s6334] ss:$97 sm:$0xc] %vm6331, %v6321
  %s6336 = scalar_lea.vmem %s1, 1152
  %6337 = vst.msk [vmem:[%s6336] ss:$-63 sm:$0x30] %vm6331, %v6321
  %s6338 = scalar_lea.vmem %s1, 5498
  %6339 = vst.msk [vmem:[%s6338] ss:$-734 sm:$0xc0] %vm6331, %v6321
  %s6340 = scalar_lea.vmem %s0, 771
  %s6341 = smov 3
  %v6342 = vld [vmem:[%s6340] ss:$100 sm:%s6341]
  %s6343 = scalar_lea.vmem %s0, 1147
  %s6344 = smov 12
  %v6345 = vld [vmem:[%s6343] ss:$-172 sm:%s6344]
  %vm6346 = vcmask 1043458
  %v6347 = vsel %vm6346, %v6345, %v6342
  %s6348 = scalar_lea.vmem %s0, 3091
  %s6349 = smov 48
  %v6350 = vld [vmem:[%s6348] ss:$-588 sm:%s6349]
  %vm6351 = vcmask 1045508
  %v6352 = vsel %vm6351, %v6350, %v6347
  %s6353 = scalar_lea.vmem %s0, 1291
  %s6354 = smov 192
  %v6355 = vld [vmem:[%s6353] ss:$-172 sm:%s6354]
  %vm6356 = vcmask 1047558
  %v6357 = vsel %vm6356, %v6355, %v6352
  %s6358 = scalar_lea.vmem %s0, 1007
  %s6359 = smov 3
  %v6360 = vld [vmem:[%s6358] ss:$24 sm:%s6359]
  %s6361 = scalar_lea.vmem %s0, 1123
  %s6362 = smov 12
  %v6363 = vld [vmem:[%s6361] ss:$8 sm:%s6362]
  %vm6364 = vcmask 1043458
  %v6365 = vsel %vm6364, %v6363, %v6360
  %s6366 = scalar_lea.vmem %s0, 2927
  %s6367 = smov 48
  %v6368 = vld [vmem:[%s6366] ss:$-488 sm:%s6367]
  %vm6369 = vcmask 1045508
  %v6370 = vsel %vm6369, %v6368, %v6365
  %s6371 = scalar_lea.vmem %s0, 4294966695
  %s6372 = smov 192
  %v6373 = vld [vmem:[%s6371] ss:$108 sm:%s6372]
  %vm6374 = vcmask 1047558
  %v6375 = vsel %vm6374, %v6373, %v6370
  %vm6376 = vcmask 785408
  %v6377 = vsel %vm6376, %v6375, %v6357
  %6378 = vrot.lane.b32.xlu0 %v6377, 32
  %v6379 = vpop.permute.xlu0 %6378
  %vm6380 = vcmask 261120
  %s6381 = scalar_lea.vmem %s1, 714
  %6382 = vst.msk [vmem:[%s6381] ss:$97 sm:$0x3] %vm6380, %v6379
  %s6383 = scalar_lea.vmem %s1, 1066
  %6384 = vst.msk [vmem:[%s6383] ss:$-159 sm:$0xc] %vm6380, %v6379
  %s6385 = scalar_lea.vmem %s1, 2850
  %6386 = vst.msk [vmem:[%s6385] ss:$-541 sm:$0x30] %vm6380, %v6379
  %s6387 = scalar_lea.vmem %s1, 1196
  %6388 = vst.msk [vmem:[%s6387] ss:$-159 sm:$0xc0] %vm6380, %v6379
  %vm6389 = vcmask 1047808
  %s6390 = scalar_lea.vmem %s1, 929
  %6391 = vst.msk [vmem:[%s6390] ss:$33 sm:$0x3] %vm6389, %v6379
  %s6392 = scalar_lea.vmem %s1, 1057
  %6393 = vst.msk [vmem:[%s6392] sm:$0xc] %vm6389, %v6379
  %s6394 = scalar_lea.vmem %s1, 2681
  %6395 = vst.msk [vmem:[%s6394] ss:$-445 sm:$0x30] %vm6389, %v6379
  %s6396 = scalar_lea.vmem %s1, 4294966755
  %6397 = vst.msk [vmem:[%s6396] ss:$97 sm:$0xc0] %vm6389, %v6379
  %s6398 = scalar_lea.vmem %s0, 1043
  %s6399 = smov 3
  %v6400 = vld [vmem:[%s6398] ss:$100 sm:%s6399]
  %s6401 = scalar_lea.vmem %s0, 1131
  %s6402 = smov 12
  %v6403 = vld [vmem:[%s6401] ss:$-76 sm:%s6402]
  %vm6404 = vcmask 1043458
  %v6405 = vsel %vm6404, %v6403, %v6400
  %s6406 = scalar_lea.vmem %s0, 3747
  %s6407 = smov 48
  %v6408 = vld [vmem:[%s6406] ss:$-684 sm:%s6407]
  %vm6409 = vcmask 1045508
  %v6410 = vsel %vm6409, %v6408, %v6405
  %s6411 = scalar_lea.vmem %s0, 891
  %s6412 = smov 192
  %v6413 = vld [vmem:[%s6411] ss:$-76 sm:%s6412]
  %vm6414 = vcmask 1047558
  %v6415 = vsel %vm6414, %v6413, %v6410
  %s6416 = scalar_lea.vmem %s0, 1107
  %s6417 = smov 3
  %v6418 = vld [vmem:[%s6416] ss:$8 sm:%s6417]
  %s6419 = scalar_lea.vmem %s0, 1167
  %s6420 = smov 12
  %v6421 = vld [vmem:[%s6419] ss:$24 sm:%s6420]
  %vm6422 = vcmask 1043458
  %v6423 = vsel %vm6422, %v6421, %v6418
  %s6424 = scalar_lea.vmem %s0, 2723
  %s6425 = smov 48
  %v6426 = vld [vmem:[%s6424] ss:$-412 sm:%s6425]
  %vm6427 = vcmask 1045508
  %v6428 = vsel %vm6427, %v6426, %v6423
  %s6429 = scalar_lea.vmem %s0, 4294966843
  %s6430 = smov 192
  %v6431 = vld [vmem:[%s6429] ss:$100 sm:%s6430]
  %vm6432 = vcmask 1047558
  %v6433 = vsel %vm6432, %v6431, %v6428
  %vm6434 = vcmask 785408
  %v6435 = vsel %vm6434, %v6433, %v6415
  %6436 = vrot.lane.b32.xlu0 %v6435, 32
  %v6437 = vpop.permute.xlu0 %6436
  %vm6438 = vcmask 261120
  %s6439 = scalar_lea.vmem %s1, 970
  %6440 = vst.msk [vmem:[%s6439] ss:$97 sm:$0x3] %vm6438, %v6437
  %s6441 = scalar_lea.vmem %s1, 1034
  %6442 = vst.msk [vmem:[%s6441] ss:$-63 sm:$0xc] %vm6438, %v6437
  %s6443 = scalar_lea.vmem %s1, 3490
  %6444 = vst.msk [vmem:[%s6443] ss:$-637 sm:$0x30] %vm6438, %v6437
  %s6445 = scalar_lea.vmem %s1, 780
  %6446 = vst.msk [vmem:[%s6445] ss:$-63 sm:$0xc0] %vm6438, %v6437
  %vm6447 = vcmask 1047808
  %s6448 = scalar_lea.vmem %s1, 1025
  %6449 = vst.msk [vmem:[%s6448] sm:$0x3] %vm6447, %v6437
  %s6450 = scalar_lea.vmem %s1, 1057
  %6451 = vst.msk [vmem:[%s6450] ss:$33 sm:$0xc] %vm6447, %v6437
  %s6452 = scalar_lea.vmem %s1, 2521
  %6453 = vst.msk [vmem:[%s6452] ss:$-381 sm:$0x30] %vm6447, %v6437
  %s6454 = scalar_lea.vmem %s1, 4294966851
  %6455 = vst.msk [vmem:[%s6454] ss:$97 sm:$0xc0] %vm6447, %v6437
  %s6456 = scalar_lea.vmem %s0, 1219
  %s6457 = smov 3
  %v6458 = vld [vmem:[%s6456] ss:$100 sm:%s6457]
  %s6459 = scalar_lea.vmem %s0, 1595
  %s6460 = smov 12
  %v6461 = vld [vmem:[%s6459] ss:$-172 sm:%s6460]
  %vm6462 = vcmask 1043458
  %v6463 = vsel %vm6462, %v6461, %v6458
  %s6464 = scalar_lea.vmem %s0, 3539
  %s6465 = smov 48
  %v6466 = vld [vmem:[%s6464] ss:$-588 sm:%s6465]
  %vm6467 = vcmask 1045508
  %v6468 = vsel %vm6467, %v6466, %v6463
  %s6469 = scalar_lea.vmem %s0, 1739
  %s6470 = smov 192
  %v6471 = vld [vmem:[%s6469] ss:$-172 sm:%s6470]
  %vm6472 = vcmask 1047558
  %v6473 = vsel %vm6472, %v6471, %v6468
  %s6474 = scalar_lea.vmem %s0, 1279
  %s6475 = smov 3
  %v6476 = vld [vmem:[%s6474] ss:$-72 sm:%s6475]
  %s6477 = scalar_lea.vmem %s0, 1299
  %s6478 = smov 12
  %v6479 = vld [vmem:[%s6477] ss:$8 sm:%s6478]
  %vm6480 = vcmask 1043458
  %v6481 = vsel %vm6480, %v6479, %v6476
  %s6482 = scalar_lea.vmem %s0, 2863
  %s6483 = smov 48
  %v6484 = vld [vmem:[%s6482] ss:$-404 sm:%s6483]
  %vm6485 = vcmask 1045508
  %v6486 = vsel %vm6485, %v6484, %v6481
  %s6487 = scalar_lea.vmem %s0, 4294966871
  %s6488 = smov 192
  %v6489 = vld [vmem:[%s6487] ss:$108 sm:%s6488]
  %vm6490 = vcmask 1047558
  %v6491 = vsel %vm6490, %v6489, %v6486
  %vm6492 = vcmask 785408
  %v6493 = vsel %vm6492, %v6491, %v6473
  %6494 = vrot.lane.b32.xlu0 %v6493, 32
  %v6495 = vpop.permute.xlu0 %6494
  %vm6496 = vcmask 261120
  %s6497 = scalar_lea.vmem %s1, 1130
  %6498 = vst.msk [vmem:[%s6497] ss:$97 sm:$0x3] %vm6496, %v6495
  %s6499 = scalar_lea.vmem %s1, 1482
  %6500 = vst.msk [vmem:[%s6499] ss:$-159 sm:$0xc] %vm6496, %v6495
  %s6501 = scalar_lea.vmem %s1, 3266
  %6502 = vst.msk [vmem:[%s6501] ss:$-541 sm:$0x30] %vm6496, %v6495
  %s6503 = scalar_lea.vmem %s1, 1612
  %6504 = vst.msk [vmem:[%s6503] ss:$-159 sm:$0xc0] %vm6496, %v6495
  %vm6505 = vcmask 1047808
  %s6506 = scalar_lea.vmem %s1, 1185
  %6507 = vst.msk [vmem:[%s6506] ss:$-63 sm:$0x3] %vm6505, %v6495
  %s6508 = scalar_lea.vmem %s1, 1217
  %6509 = vst.msk [vmem:[%s6508] sm:$0xc] %vm6505, %v6495
  %s6510 = scalar_lea.vmem %s1, 2681
  %6511 = vst.msk [vmem:[%s6510] ss:$-381 sm:$0x30] %vm6505, %v6495
  %s6512 = scalar_lea.vmem %s1, 4294966915
  %6513 = vst.msk [vmem:[%s6512] ss:$97 sm:$0xc0] %vm6505, %v6495
  %s6514 = scalar_lea.vmem %s0, 775
  %s6515 = smov 3
  %v6516 = vld [vmem:[%s6514] ss:$108 sm:%s6515]
  %s6517 = scalar_lea.vmem %s0, 2383
  %s6518 = smov 12
  %v6519 = vld [vmem:[%s6517] ss:$-788 sm:%s6518]
  %vm6520 = vcmask 1043458
  %v6521 = vsel %vm6520, %v6519, %v6516
  %s6522 = scalar_lea.vmem %s0, 4294966983
  %s6523 = smov 48
  %v6524 = vld [vmem:[%s6522] ss:$108 sm:%s6523]
  %vm6525 = vcmask 1045508
  %v6526 = vsel %vm6525, %v6524, %v6521
  %s6527 = scalar_lea.vmem %s0, 4294966703
  %s6528 = smov 192
  %v6529 = vld [vmem:[%s6527] ss:$108 sm:%s6528]
  %vm6530 = vcmask 1047558
  %v6531 = vsel %vm6530, %v6529, %v6526
  %s6532 = scalar_lea.vmem %s0, 935
  %s6533 = smov 3
  %v6534 = vld [vmem:[%s6532] ss:$-612 sm:%s6533]
  %s6535 = scalar_lea.vmem %s0, 1103
  %s6536 = smov 12
  %v6537 = vld [vmem:[%s6535] ss:$-340 sm:%s6536]
  %vm6538 = vcmask 1043458
  %v6539 = vsel %vm6538, %v6537, %v6534
  %s6540 = scalar_lea.vmem %s0, 4294967271
  %s6541 = smov 48
  %v6542 = vld [vmem:[%s6540] ss:$8 sm:%s6541]
  %vm6543 = vcmask 1045508
  %v6544 = vsel %vm6543, %v6542, %v6539
  %s6545 = scalar_lea.vmem %s0, 555
  %s6546 = smov 192
  %v6547 = vld [vmem:[%s6545] ss:$-72 sm:%s6546]
  %vm6548 = vcmask 1047558
  %v6549 = vsel %vm6548, %v6547, %v6544
  %vm6550 = vcmask 785408
  %v6551 = vsel %vm6550, %v6549, %v6531
  %6552 = vrot.lane.b32.xlu0 %v6551, 32
  %v6553 = vpop.permute.xlu0 %6552
  %vm6554 = vcmask 261120
  %s6555 = scalar_lea.vmem %s1, 721
  %6556 = vst.msk [vmem:[%s6555] ss:$97 sm:$0x3] %vm6554, %v6553
  %s6557 = scalar_lea.vmem %s1, 2225
  %6558 = vst.msk [vmem:[%s6557] ss:$-735 sm:$0xc] %vm6554, %v6553
  %s6559 = scalar_lea.vmem %s1, 4294967025
  %6560 = vst.msk [vmem:[%s6559] ss:$97 sm:$0x30] %vm6554, %v6553
  %s6561 = scalar_lea.vmem %s1, 4294966769
  %6562 = vst.msk [vmem:[%s6561] ss:$97 sm:$0xc0] %vm6554, %v6553
  %vm6563 = vcmask 1047808
  %s6564 = scalar_lea.vmem %s1, 872
  %6565 = vst.msk [vmem:[%s6564] ss:$-575 sm:$0x3] %vm6563, %v6553
  %s6566 = scalar_lea.vmem %s1, 1032
  %6567 = vst.msk [vmem:[%s6566] ss:$-319 sm:$0xc] %vm6563, %v6553
  %s6568 = scalar_lea.vmem %s1, 8
  %6569 = vst.msk [vmem:[%s6568] sm:$0x30] %vm6563, %v6553
  %s6570 = scalar_lea.vmem %s1, 488
  %6571 = vst.msk [vmem:[%s6570] ss:$-63 sm:$0xc0] %vm6563, %v6553
  %s6572 = scalar_lea.vmem %s0, 1047
  %s6573 = smov 3
  %v6574 = vld [vmem:[%s6572] ss:$108 sm:%s6573]
  %s6575 = scalar_lea.vmem %s0, 2559
  %s6576 = smov 12
  %v6577 = vld [vmem:[%s6575] ss:$-788 sm:%s6576]
  %vm6578 = vcmask 1043458
  %v6579 = vsel %vm6578, %v6577, %v6574
  %s6580 = scalar_lea.vmem %s0, 4294967159
  %s6581 = smov 48
  %v6582 = vld [vmem:[%s6580] ss:$108 sm:%s6581]
  %vm6583 = vcmask 1045508
  %v6584 = vsel %vm6583, %v6582, %v6579
  %s6585 = scalar_lea.vmem %s0, 4294967151
  %s6586 = smov 192
  %v6587 = vld [vmem:[%s6585] ss:$108 sm:%s6586]
  %vm6588 = vcmask 1047558
  %v6589 = vsel %vm6588, %v6587, %v6584
  %s6590 = scalar_lea.vmem %s0, 1111
  %s6591 = smov 3
  %v6592 = vld [vmem:[%s6590] ss:$-616 sm:%s6591]
  %s6593 = scalar_lea.vmem %s0, 1299
  %s6594 = smov 12
  %v6595 = vld [vmem:[%s6593] ss:$-348 sm:%s6594]
  %vm6596 = vcmask 1043458
  %v6597 = vsel %vm6596, %v6595, %v6592
  %s6598 = scalar_lea.vmem %s0, 4294967291
  %s6599 = smov 48
  %v6600 = vld [vmem:[%s6598] ss:$24 sm:%s6599]
  %vm6601 = vcmask 1045508
  %v6602 = vsel %vm6601, %v6600, %v6597
  %s6603 = scalar_lea.vmem %s0, 4294966995
  %s6604 = smov 192
  %v6605 = vld [vmem:[%s6603] ss:$100 sm:%s6604]
  %vm6606 = vcmask 1047558
  %v6607 = vsel %vm6606, %v6605, %v6602
  %vm6608 = vcmask 785408
  %v6609 = vsel %vm6608, %v6607, %v6589
  %6610 = vrot.lane.b32.xlu0 %v6609, 32
  %v6611 = vpop.permute.xlu0 %6610
  %vm6612 = vcmask 261120
  %s6613 = scalar_lea.vmem %s1, 977
  %6614 = vst.msk [vmem:[%s6613] ss:$97 sm:$0x3] %vm6612, %v6611
  %s6615 = scalar_lea.vmem %s1, 2385
  %6616 = vst.msk [vmem:[%s6615] ss:$-735 sm:$0xc] %vm6612, %v6611
  %s6617 = scalar_lea.vmem %s1, 4294967185
  %6618 = vst.msk [vmem:[%s6617] ss:$97 sm:$0xf0] %vm6612, %v6611
  %vm6619 = vcmask 1047808
  %s6620 = scalar_lea.vmem %s1, 1032
  %6621 = vst.msk [vmem:[%s6620] ss:$-575 sm:$0x3] %vm6619, %v6611
  %s6622 = scalar_lea.vmem %s1, 1192
  %6623 = vst.msk [vmem:[%s6622] ss:$-319 sm:$0xc] %vm6619, %v6611
  %s6624 = scalar_lea.vmem %s1, 4294967240
  %6625 = vst.msk [vmem:[%s6624] ss:$33 sm:$0x30] %vm6619, %v6611
  %s6626 = scalar_lea.vmem %s1, 4294966984
  %6627 = vst.msk [vmem:[%s6626] ss:$97 sm:$0xc0] %vm6619, %v6611
  %s6628 = scalar_lea.vmem %s0, 1223
  %s6629 = smov 3
  %v6630 = vld [vmem:[%s6628] ss:$108 sm:%s6629]
  %s6631 = scalar_lea.vmem %s0, 2831
  %s6632 = smov 12
  %v6633 = vld [vmem:[%s6631] ss:$-788 sm:%s6632]
  %vm6634 = vcmask 1043458
  %v6635 = vsel %vm6634, %v6633, %v6630
  %s6636 = scalar_lea.vmem %s0, 135
  %s6637 = smov 48
  %v6638 = vld [vmem:[%s6636] ss:$108 sm:%s6637]
  %vm6639 = vcmask 1045508
  %v6640 = vsel %vm6639, %v6638, %v6635
  %s6641 = scalar_lea.vmem %s0, 303
  %s6642 = smov 192
  %v6643 = vld [vmem:[%s6641] ss:$108 sm:%s6642]
  %vm6644 = vcmask 1047558
  %v6645 = vsel %vm6644, %v6643, %v6640
  %s6646 = scalar_lea.vmem %s0, 1291
  %s6647 = smov 3
  %v6648 = vld [vmem:[%s6646] ss:$-696 sm:%s6647]
  %s6649 = scalar_lea.vmem %s0, 1375
  %s6650 = smov 12
  %v6651 = vld [vmem:[%s6649] ss:$-340 sm:%s6650]
  %vm6652 = vcmask 1043458
  %v6653 = vsel %vm6652, %v6651, %v6648
  %s6654 = scalar_lea.vmem %s0, 151
  %s6655 = smov 48
  %v6656 = vld [vmem:[%s6654] ss:$8 sm:%s6655]
  %vm6657 = vcmask 1045508
  %v6658 = vsel %vm6657, %v6656, %v6653
  %s6659 = scalar_lea.vmem %s0, 4294967039
  %s6660 = smov 192
  %v6661 = vld [vmem:[%s6659] ss:$108 sm:%s6660]
  %vm6662 = vcmask 1047558
  %v6663 = vsel %vm6662, %v6661, %v6658
  %vm6664 = vcmask 785408
  %v6665 = vsel %vm6664, %v6663, %v6645
  %6666 = vrot.lane.b32.xlu0 %v6665, 32
  %v6667 = vpop.permute.xlu0 %6666
  %vm6668 = vcmask 261120
  %s6669 = scalar_lea.vmem %s1, 1137
  %6670 = vst.msk [vmem:[%s6669] ss:$97 sm:$0x3] %vm6668, %v6667
  %s6671 = scalar_lea.vmem %s1, 2641
  %6672 = vst.msk [vmem:[%s6671] ss:$-735 sm:$0xc] %vm6668, %v6667
  %s6673 = scalar_lea.vmem %s1, 145
  %6674 = vst.msk [vmem:[%s6673] ss:$97 sm:$0x30] %vm6668, %v6667
  %s6675 = scalar_lea.vmem %s1, 305
  %6676 = vst.msk [vmem:[%s6675] ss:$97 sm:$0xc0] %vm6668, %v6667
  %vm6677 = vcmask 1047808
  %s6678 = scalar_lea.vmem %s1, 1192
  %6679 = vst.msk [vmem:[%s6678] ss:$-639 sm:$0x3] %vm6677, %v6667
  %s6680 = scalar_lea.vmem %s1, 1288
  %6681 = vst.msk [vmem:[%s6680] ss:$-319 sm:$0xc] %vm6677, %v6667
  %s6682 = scalar_lea.vmem %s1, 168
  %6683 = vst.msk [vmem:[%s6682] sm:$0x30] %vm6677, %v6667
  %s6684 = scalar_lea.vmem %s1, 4294967080
  %6685 = vst.msk [vmem:[%s6684] ss:$97 sm:$0xc0] %vm6677, %v6667
  %s6686 = scalar_lea.vmem %s0, 643
  %s6687 = smov 3
  %v6688 = vld [vmem:[%s6686] ss:$100 sm:%s6687]
  %s6689 = scalar_lea.vmem %s0, 2027
  %s6690 = smov 12
  %v6691 = vld [vmem:[%s6689] ss:$-588 sm:%s6690]
  %vm6692 = vcmask 1043458
  %v6693 = vsel %vm6692, %v6691, %v6688
  %s6694 = scalar_lea.vmem %s0, 403
  %s6695 = smov 48
  %v6696 = vld [vmem:[%s6694] ss:$-76 sm:%s6695]
  %vm6697 = vcmask 1045508
  %v6698 = vsel %vm6697, %v6696, %v6693
  %s6699 = scalar_lea.vmem %s0, 4294966827
  %s6700 = smov 192
  %v6701 = vld [vmem:[%s6699] ss:$100 sm:%s6700]
  %vm6702 = vcmask 1047558
  %v6703 = vsel %vm6702, %v6701, %v6698
  %s6704 = scalar_lea.vmem %s0, 671
  %s6705 = smov 3
  %v6706 = vld [vmem:[%s6704] ss:$108 sm:%s6705]
  %s6707 = scalar_lea.vmem %s0, 567
  %s6708 = smov 12
  %v6709 = vld [vmem:[%s6707] ss:$-68 sm:%s6708]
  %vm6710 = vcmask 1043458
  %v6711 = vsel %vm6710, %v6709, %v6706
  %s6712 = scalar_lea.vmem %s0, 4294966467
  %s6713 = smov 48
  %v6714 = vld [vmem:[%s6712] ss:$280 sm:%s6713]
  %vm6715 = vcmask 1045508
  %v6716 = vsel %vm6715, %v6714, %v6711
  %s6717 = scalar_lea.vmem %s0, 5575
  %s6718 = smov 192
  %v6719 = vld [vmem:[%s6717] ss:$-788 sm:%s6718]
  %vm6720 = vcmask 1047558
  %v6721 = vsel %vm6720, %v6719, %v6716
  %vm6722 = vcmask 785408
  %v6723 = vsel %vm6722, %v6721, %v6703
  %6724 = vrot.lane.b32.xlu0 %v6723, 32
  %v6725 = vpop.permute.xlu0 %6724
  %vm6726 = vcmask 261120
  %s6727 = scalar_lea.vmem %s1, 596
  %6728 = vst.msk [vmem:[%s6727] ss:$97 sm:$0x7] %vm6726, %v6725
  %s6729 = scalar_lea.vmem %s1, 726
  %6730 = vst.msk [vmem:[%s6729] ss:$-159 sm:$0x18] %vm6726, %v6725
  %s6731 = scalar_lea.vmem %s1, 4294966838
  %6732 = vst.msk [vmem:[%s6731] ss:$97 sm:$0xe0] %vm6726, %v6725
  %vm6733 = vcmask 1047808
  %s6734 = scalar_lea.vmem %s1, 617
  %6735 = vst.msk [vmem:[%s6734] ss:$97 sm:$0x3] %vm6733, %v6725
  %s6736 = scalar_lea.vmem %s1, 521
  %6737 = vst.msk [vmem:[%s6736] ss:$-63 sm:$0x1c] %vm6733, %v6725
  %s6738 = scalar_lea.vmem %s1, 4294966537
  %6739 = vst.msk [vmem:[%s6738] ss:$257 sm:$0x60] %vm6733, %v6725
  %s6740 = scalar_lea.vmem %s1, 41
  %6741 = vst.msk [vmem:[%s6740] sm:$0x80] %vm6733, %v6725
  %s6742 = scalar_lea.vmem %s0, 915
  %s6743 = smov 3
  %v6744 = vld [vmem:[%s6742] ss:$100 sm:%s6743]
  %s6745 = scalar_lea.vmem %s0, 2491
  %s6746 = smov 12
  %v6747 = vld [vmem:[%s6745] ss:$-684 sm:%s6746]
  %vm6748 = vcmask 1043458
  %v6749 = vsel %vm6748, %v6747, %v6744
  %s6750 = scalar_lea.vmem %s0, 1059
  %s6751 = smov 48
  %v6752 = vld [vmem:[%s6750] ss:$-172 sm:%s6751]
  %vm6753 = vcmask 1045508
  %v6754 = vsel %vm6753, %v6752, %v6749
  %s6755 = scalar_lea.vmem %s0, 4294967003
  %s6756 = smov 192
  %v6757 = vld [vmem:[%s6755] ss:$100 sm:%s6756]
  %vm6758 = vcmask 1047558
  %v6759 = vsel %vm6758, %v6757, %v6754
  %s6760 = scalar_lea.vmem %s0, 771
  %s6761 = smov 3
  %v6762 = vld [vmem:[%s6760] ss:$100 sm:%s6761]
  %s6763 = scalar_lea.vmem %s0, 683
  %s6764 = smov 12
  %v6765 = vld [vmem:[%s6763] ss:$-76 sm:%s6764]
  %vm6766 = vcmask 1043458
  %v6767 = vsel %vm6766, %v6765, %v6762
  %s6768 = scalar_lea.vmem %s0, 4294966623
  %s6769 = smov 48
  %v6770 = vld [vmem:[%s6768] ss:$284 sm:%s6769]
  %vm6771 = vcmask 1045508
  %v6772 = vsel %vm6771, %v6770, %v6767
  %s6773 = scalar_lea.vmem %s0, 5723
  %s6774 = smov 192
  %v6775 = vld [vmem:[%s6773] ss:$-796 sm:%s6774]
  %vm6776 = vcmask 1047558
  %v6777 = vsel %vm6776, %v6775, %v6772
  %vm6778 = vcmask 785408
  %v6779 = vsel %vm6778, %v6777, %v6759
  %6780 = vrot.lane.b32.xlu0 %v6779, 32
  %v6781 = vpop.permute.xlu0 %6780
  %vm6782 = vcmask 261120
  %s6783 = scalar_lea.vmem %s1, 852
  %6784 = vst.msk [vmem:[%s6783] ss:$97 sm:$0x7] %vm6782, %v6781
  %s6785 = scalar_lea.vmem %s1, 598
  %6786 = vst.msk [vmem:[%s6785] ss:$-63 sm:$0x18] %vm6782, %v6781
  %s6787 = scalar_lea.vmem %s1, 4294966998
  %6788 = vst.msk [vmem:[%s6787] ss:$97 sm:$0xe0] %vm6782, %v6781
  %vm6789 = vcmask 1047808
  %s6790 = scalar_lea.vmem %s1, 713
  %6791 = vst.msk [vmem:[%s6790] ss:$97 sm:$0x3] %vm6789, %v6781
  %s6792 = scalar_lea.vmem %s1, 617
  %6793 = vst.msk [vmem:[%s6792] ss:$-63 sm:$0xc] %vm6789, %v6781
  %s6794 = scalar_lea.vmem %s1, 4294966697
  %6795 = vst.msk [vmem:[%s6794] ss:$257 sm:$0x30] %vm6789, %v6781
  %s6796 = scalar_lea.vmem %s1, 5289
  %6797 = vst.msk [vmem:[%s6796] ss:$-735 sm:$0xc0] %vm6789, %v6781
  %s6798 = scalar_lea.vmem %s0, 1091
  %s6799 = smov 3
  %v6800 = vld [vmem:[%s6798] ss:$100 sm:%s6799]
  %s6801 = scalar_lea.vmem %s0, 2475
  %s6802 = smov 12
  %v6803 = vld [vmem:[%s6801] ss:$-588 sm:%s6802]
  %vm6804 = vcmask 1043458
  %v6805 = vsel %vm6804, %v6803, %v6800
  %s6806 = scalar_lea.vmem %s0, 851
  %s6807 = smov 48
  %v6808 = vld [vmem:[%s6806] ss:$-76 sm:%s6807]
  %vm6809 = vcmask 1045508
  %v6810 = vsel %vm6809, %v6808, %v6805
  %s6811 = scalar_lea.vmem %s0, 4294967275
  %s6812 = smov 192
  %v6813 = vld [vmem:[%s6811] ss:$100 sm:%s6812]
  %vm6814 = vcmask 1047558
  %v6815 = vsel %vm6814, %v6813, %v6810
  %s6816 = scalar_lea.vmem %s0, 943
  %s6817 = smov 3
  %v6818 = vld [vmem:[%s6816] ss:$108 sm:%s6817]
  %s6819 = scalar_lea.vmem %s0, 1031
  %s6820 = smov 12
  %v6821 = vld [vmem:[%s6819] ss:$-164 sm:%s6820]
  %vm6822 = vcmask 1043458
  %v6823 = vsel %vm6822, %v6821, %v6818
  %s6824 = scalar_lea.vmem %s0, 4294966755
  %s6825 = smov 48
  %v6826 = vld [vmem:[%s6824] ss:$276 sm:%s6825]
  %vm6827 = vcmask 1045508
  %v6828 = vsel %vm6827, %v6826, %v6823
  %s6829 = scalar_lea.vmem %s0, 7103
  %s6830 = smov 192
  %v6831 = vld [vmem:[%s6829] ss:$-968 sm:%s6830]
  %vm6832 = vcmask 1047558
  %v6833 = vsel %vm6832, %v6831, %v6828
  %vm6834 = vcmask 785408
  %v6835 = vsel %vm6834, %v6833, %v6815
  %6836 = vrot.lane.b32.xlu0 %v6835, 32
  %v6837 = vpop.permute.xlu0 %6836
  %vm6838 = vcmask 261120
  %s6839 = scalar_lea.vmem %s1, 1012
  %6840 = vst.msk [vmem:[%s6839] ss:$97 sm:$0x7] %vm6838, %v6837
  %s6841 = scalar_lea.vmem %s1, 1142
  %6842 = vst.msk [vmem:[%s6841] ss:$-159 sm:$0x18] %vm6838, %v6837
  %s6843 = scalar_lea.vmem %s1, 4294967254
  %6844 = vst.msk [vmem:[%s6843] ss:$97 sm:$0xe0] %vm6838, %v6837
  %vm6845 = vcmask 1047808
  %s6846 = scalar_lea.vmem %s1, 873
  %6847 = vst.msk [vmem:[%s6846] ss:$97 sm:$0x3] %vm6845, %v6837
  %s6848 = scalar_lea.vmem %s1, 969
  %6849 = vst.msk [vmem:[%s6848] ss:$-159 sm:$0xc] %vm6845, %v6837
  %s6850 = scalar_lea.vmem %s1, 4294966793
  %6851 = vst.msk [vmem:[%s6850] ss:$257 sm:$0x30] %vm6845, %v6837
  %s6852 = scalar_lea.vmem %s1, 6569
  %6853 = vst.msk [vmem:[%s6852] ss:$-895 sm:$0xc0] %vm6845, %v6837
  %s6854 = scalar_lea.vmem %s0, 887
  %s6855 = smov 3
  %v6856 = vld [vmem:[%s6854] ss:$-68 sm:%s6855]
  %s6857 = scalar_lea.vmem %s0, 431
  %s6858 = smov 12
  %v6859 = vld [vmem:[%s6857] ss:$108 sm:%s6858]
  %vm6860 = vcmask 1043458
  %v6861 = vsel %vm6860, %v6859, %v6856
  %s6862 = scalar_lea.vmem %s0, 4007
  %s6863 = smov 48
  %v6864 = vld [vmem:[%s6862] ss:$-788 sm:%s6863]
  %vm6865 = vcmask 1045508
  %v6866 = vsel %vm6865, %v6864, %v6861
  %s6867 = scalar_lea.vmem %s0, 161
  %v6868 = vld [vmem:[%s6867] sm:$0x40]
  %vm6869 = vcmask 1046534
  %v6870 = vsel %vm6869, %v6868, %v6866
  %s6871 = scalar_lea.vmem %s0, 1152
  %v6872 = vld [vmem:[%s6871] sm:$0x80]
  %vm6873 = vcmask 1047559
  %v6874 = vsel %vm6873, %v6872, %v6870
  %s6875 = scalar_lea.vmem %s0, 1043
  %s6876 = smov 3
  %v6877 = vld [vmem:[%s6875] ss:$100 sm:%s6876]
  %s6878 = scalar_lea.vmem %s0, 1147
  %s6879 = smov 12
  %v6880 = vld [vmem:[%s6878] ss:$-172 sm:%s6879]
  %vm6881 = vcmask 1043458
  %v6882 = vsel %vm6881, %v6880, %v6877
  %s6883 = scalar_lea.vmem %s0, 4294966415
  %s6884 = smov 48
  %v6885 = vld [vmem:[%s6883] ss:$380 sm:%s6884]
  %vm6886 = vcmask 1045508
  %v6887 = vsel %vm6886, %v6885, %v6882
  %s6888 = scalar_lea.vmem %s0, 2595
  %s6889 = smov 192
  %v6890 = vld [vmem:[%s6888] ss:$-348 sm:%s6889]
  %vm6891 = vcmask 1047558
  %v6892 = vsel %vm6891, %v6890, %v6887
  %vm6893 = vcmask 785408
  %v6894 = vsel %vm6893, %v6892, %v6874
  %6895 = vrot.lane.b32.xlu0 %v6894, 32
  %v6896 = vpop.permute.xlu0 %6895
  %vm6897 = vcmask 261120
  %s6898 = scalar_lea.vmem %s1, 825
  %6899 = vst.msk [vmem:[%s6898] ss:$-63 sm:$0x3] %vm6897, %v6896
  %s6900 = scalar_lea.vmem %s1, 409
  %6901 = vst.msk [vmem:[%s6900] ss:$97 sm:$0x1c] %vm6897, %v6896
  %s6902 = scalar_lea.vmem %s1, 4294966873
  %6903 = vst.msk [vmem:[%s6902] ss:$97 sm:$0x60] %vm6897, %v6896
  %s6904 = scalar_lea.vmem %s1, 1074
  %6905 = vst.msk [vmem:[%s6904] sm:$0x80] %vm6897, %v6896
  %vm6906 = vcmask 1047808
  %s6907 = scalar_lea.vmem %s1, 969
  %6908 = vst.msk [vmem:[%s6907] ss:$97 sm:$0x3] %vm6906, %v6896
  %s6909 = scalar_lea.vmem %s1, 1065
  %6910 = vst.msk [vmem:[%s6909] ss:$-159 sm:$0xc] %vm6906, %v6896
  %s6911 = scalar_lea.vmem %s1, 4294966473
  %6912 = vst.msk [vmem:[%s6911] ss:$353 sm:$0x30] %vm6906, %v6896
  %s6913 = scalar_lea.vmem %s1, 2378
  %6914 = vst.msk [vmem:[%s6913] ss:$-319 sm:$0xc0] %vm6906, %v6896
  %s6915 = scalar_lea.vmem %s0, 1335
  %s6916 = smov 3
  %v6917 = vld [vmem:[%s6915] ss:$-340 sm:%s6916]
  %s6918 = scalar_lea.vmem %s0, 703
  %s6919 = smov 12
  %v6920 = vld [vmem:[%s6918] ss:$108 sm:%s6919]
  %vm6921 = vcmask 1043458
  %v6922 = vsel %vm6921, %v6920, %v6917
  %s6923 = scalar_lea.vmem %s0, 4279
  %s6924 = smov 48
  %v6925 = vld [vmem:[%s6923] ss:$-788 sm:%s6924]
  %vm6926 = vcmask 1045508
  %v6927 = vsel %vm6926, %v6925, %v6922
  %s6928 = scalar_lea.vmem %s0, 4294963999
  %s6929 = smov 192
  %v6930 = vld [vmem:[%s6928] ss:$652 sm:%s6929]
  %vm6931 = vcmask 1047558
  %v6932 = vsel %vm6931, %v6930, %v6927
  %s6933 = scalar_lea.vmem %s0, 1119
  %s6934 = smov 3
  %v6935 = vld [vmem:[%s6933] ss:$108 sm:%s6934]
  %s6936 = scalar_lea.vmem %s0, 1015
  %s6937 = smov 12
  %v6938 = vld [vmem:[%s6936] ss:$-68 sm:%s6937]
  %vm6939 = vcmask 1043458
  %v6940 = vsel %vm6939, %v6938, %v6935
  %s6941 = scalar_lea.vmem %s0, 4294966211
  %s6942 = smov 48
  %v6943 = vld [vmem:[%s6941] ss:$456 sm:%s6942]
  %vm6944 = vcmask 1045508
  %v6945 = vsel %vm6944, %v6943, %v6940
  %s6946 = scalar_lea.vmem %s0, 2639
  %s6947 = smov 192
  %v6948 = vld [vmem:[%s6946] ss:$-340 sm:%s6947]
  %vm6949 = vcmask 1047558
  %v6950 = vsel %vm6949, %v6948, %v6945
  %vm6951 = vcmask 785408
  %v6952 = vsel %vm6951, %v6950, %v6932
  %6953 = vrot.lane.b32.xlu0 %v6952, 32
  %v6954 = vpop.permute.xlu0 %6953
  %vm6955 = vcmask 261120
  %s6956 = scalar_lea.vmem %s1, 1241
  %6957 = vst.msk [vmem:[%s6956] ss:$-319 sm:$0x3] %vm6955, %v6954
  %s6958 = scalar_lea.vmem %s1, 665
  %6959 = vst.msk [vmem:[%s6958] ss:$97 sm:$0x1c] %vm6955, %v6954
  %s6960 = scalar_lea.vmem %s1, 4294966329
  %6961 = vst.msk [vmem:[%s6960] ss:$257 sm:$0x60] %vm6955, %v6954
  %s6962 = scalar_lea.vmem %s1, 1171
  %6963 = vst.msk [vmem:[%s6962] sm:$0x80] %vm6955, %v6954
  %vm6964 = vcmask 1047808
  %s6965 = scalar_lea.vmem %s1, 1033
  %6966 = vst.msk [vmem:[%s6965] ss:$97 sm:$0x3] %vm6964, %v6954
  %s6967 = scalar_lea.vmem %s1, 937
  %6968 = vst.msk [vmem:[%s6967] ss:$-63 sm:$0x1c] %vm6964, %v6954
  %s6969 = scalar_lea.vmem %s1, 3812
  %6970 = vst.msk [vmem:[%s6969] ss:$-542 sm:$0x60] %vm6964, %v6954
  %s6971 = scalar_lea.vmem %s1, 234
  %6972 = vst.msk [vmem:[%s6971] sm:$0x80] %vm6964, %v6954
  %s6973 = scalar_lea.vmem %s0, 1095
  %s6974 = smov 3
  %v6975 = vld [vmem:[%s6973] ss:$108 sm:%s6974]
  %s6976 = scalar_lea.vmem %s0, 2879
  %s6977 = smov 12
  %v6978 = vld [vmem:[%s6976] ss:$-788 sm:%s6977]
  %vm6979 = vcmask 1043458
  %v6980 = vsel %vm6979, %v6978, %v6975
  %s6981 = scalar_lea.vmem %s0, 2167
  %s6982 = smov 48
  %v6983 = vld [vmem:[%s6981] ss:$-276 sm:%s6982]
  %vm6984 = vcmask 1045508
  %v6985 = vsel %vm6984, %v6983, %v6980
  %s6986 = scalar_lea.vmem %s0, 4294966627
  %s6987 = smov 192
  %v6988 = vld [vmem:[%s6986] ss:$272 sm:%s6987]
  %vm6989 = vcmask 1047558
  %v6990 = vsel %vm6989, %v6988, %v6985
  %s6991 = scalar_lea.vmem %s0, 1219
  %s6992 = smov 3
  %v6993 = vld [vmem:[%s6991] ss:$100 sm:%s6992]
  %s6994 = scalar_lea.vmem %s0, 1131
  %s6995 = smov 12
  %v6996 = vld [vmem:[%s6994] ss:$-76 sm:%s6995]
  %vm6997 = vcmask 1043458
  %v6998 = vsel %vm6997, %v6996, %v6993
  %s6999 = scalar_lea.vmem %s0, 4294966703
  %s7000 = smov 48
  %v7001 = vld [vmem:[%s6999] ss:$376 sm:%s7000]
  %vm7002 = vcmask 1045508
  %v7003 = vsel %vm7002, %v7001, %v6998
  %s7004 = scalar_lea.vmem %s0, 3415
  %s7005 = smov 192
  %v7006 = vld [vmem:[%s7004] ss:$-440 sm:%s7005]
  %vm7007 = vcmask 1047558
  %v7008 = vsel %vm7007, %v7006, %v7003
  %vm7009 = vcmask 785408
  %v7010 = vsel %vm7009, %v7008, %v6990
  %7011 = vrot.lane.b32.xlu0 %v7010, 32
  %v7012 = vpop.permute.xlu0 %7011
  %vm7013 = vcmask 261120
  %s7014 = scalar_lea.vmem %s1, 1019
  %7015 = vst.msk [vmem:[%s7014] ss:$97 sm:$0x7] %vm7013, %v7012
  %s7016 = scalar_lea.vmem %s1, 4294966235
  %7017 = vst.msk [vmem:[%s7016] ss:$513 sm:$0x18] %vm7013, %v7012
  %s7018 = scalar_lea.vmem %s1, 729
  %7019 = vst.msk [vmem:[%s7018] sm:$0x20] %vm7013, %v7012
  %s7020 = scalar_lea.vmem %s1, 888
  %7021 = vst.msk [vmem:[%s7020] sm:$0x40] %vm7013, %v7012
  %s7022 = scalar_lea.vmem %s1, 1143
  %7023 = vst.msk [vmem:[%s7022] sm:$0x80] %vm7013, %v7012
  %vm7024 = vcmask 1047808
  %s7025 = scalar_lea.vmem %s1, 1129
  %7026 = vst.msk [vmem:[%s7025] ss:$97 sm:$0x3] %vm7024, %v7012
  %s7027 = scalar_lea.vmem %s1, 1033
  %7028 = vst.msk [vmem:[%s7027] ss:$-63 sm:$0xc] %vm7024, %v7012
  %s7029 = scalar_lea.vmem %s1, 4294966729
  %7030 = vst.msk [vmem:[%s7029] ss:$353 sm:$0x30] %vm7024, %v7012
  %s7031 = scalar_lea.vmem %s1, 3210
  %7032 = vst.msk [vmem:[%s7031] ss:$-415 sm:$0xc0] %vm7024, %v7012
  %s7033 = scalar_lea.vmem %s0, 1151
  %s7034 = smov 3
  %v7035 = vld [vmem:[%s7033] ss:$-164 sm:%s7034]
  %s7036 = scalar_lea.vmem %s0, 1123
  %s7037 = smov 12
  %v7038 = vld [vmem:[%s7036] ss:$-56 sm:%s7037]
  %vm7039 = vcmask 1043458
  %v7040 = vsel %vm7039, %v7038, %v7035
  %s7041 = scalar_lea.vmem %s0, 1827
  %s7042 = smov 48
  %v7043 = vld [vmem:[%s7041] ss:$-348 sm:%s7042]
  %vm7044 = vcmask 1045508
  %v7045 = vsel %vm7044, %v7043, %v7040
  %s7046 = scalar_lea.vmem %s0, 4294967267
  %s7047 = smov 192
  %v7048 = vld [vmem:[%s7046] ss:$8 sm:%s7047]
  %vm7049 = vcmask 1047558
  %v7050 = vsel %vm7049, %v7048, %v7045
  %7051 = vrot.lane.b32.xlu0 %v7050, 32
  %v7052 = vpop.permute.xlu0 %7051
  %vm7053 = vcmask 1047808
  %s7054 = scalar_lea.vmem %s1, 1067
  %7055 = vst.msk [vmem:[%s7054] ss:$-159 sm:$0x3] %vm7053, %v7052
  %s7056 = scalar_lea.vmem %s1, 1063
  %7057 = vst.msk [vmem:[%s7056] ss:$-61 sm:$0xc] %vm7053, %v7052
  %s7058 = scalar_lea.vmem %s1, 1677
  %7059 = vst.msk [vmem:[%s7058] ss:$-319 sm:$0x30] %vm7053, %v7052
  %s7060 = scalar_lea.vmem %s1, 13
  %7061 = vst.msk [vmem:[%s7060] sm:$0xc0] %vm7053, %v7052
  %s7062 = scalar_lea.vmem %s0, 1251
  %s7063 = smov 3
  %v7064 = vld [vmem:[%s7062] ss:$-172 sm:%s7063]
  %s7065 = scalar_lea.vmem %s0, 1167
  %s7066 = smov 12
  %v7067 = vld [vmem:[%s7065] ss:$-40 sm:%s7066]
  %vm7068 = vcmask 1043458
  %v7069 = vsel %vm7068, %v7067, %v7064
  %s7070 = scalar_lea.vmem %s0, 1967
  %s7071 = smov 48
  %v7072 = vld [vmem:[%s7070] ss:$-340 sm:%s7071]
  %vm7073 = vcmask 1045508
  %v7074 = vsel %vm7073, %v7072, %v7069
  %s7075 = scalar_lea.vmem %s0, 4294967247
  %s7076 = smov 192
  %v7077 = vld [vmem:[%s7075] ss:$24 sm:%s7076]
  %vm7078 = vcmask 1047558
  %v7079 = vsel %vm7078, %v7077, %v7074
  %7080 = vrot.lane.b32.xlu0 %v7079, 32
  %v7081 = vpop.permute.xlu0 %7080
  %vm7082 = vcmask 1047808
  %s7083 = scalar_lea.vmem %s1, 1163
  %7084 = vst.msk [vmem:[%s7083] ss:$-159 sm:$0x3] %vm7082, %v7081
  %s7085 = scalar_lea.vmem %s1, 1063
  %7086 = vst.msk [vmem:[%s7085] ss:$-29 sm:$0xc] %vm7082, %v7081
  %s7087 = scalar_lea.vmem %s1, 1837
  %7088 = vst.msk [vmem:[%s7087] ss:$-319 sm:$0x30] %vm7082, %v7081
  %s7089 = scalar_lea.vmem %s1, 4294967181
  %7090 = vst.msk [vmem:[%s7089] ss:$33 sm:$0xc0] %vm7082, %v7081
  %s7091 = scalar_lea.vmem %s0, 1327
  %s7092 = smov 3
  %v7093 = vld [vmem:[%s7091] ss:$-68 sm:%s7092]
  %s7094 = scalar_lea.vmem %s0, 1115
  %s7095 = smov 12
  %v7096 = vld [vmem:[%s7094] ss:$36 sm:%s7095]
  %vm7097 = vcmask 1043458
  %v7098 = vsel %vm7097, %v7096, %v7093
  %s7099 = scalar_lea.vmem %s0, 2099
  %s7100 = smov 48
  %v7101 = vld [vmem:[%s7099] ss:$-348 sm:%s7100]
  %vm7102 = vcmask 1045508
  %v7103 = vsel %vm7102, %v7101, %v7098
  %s7104 = scalar_lea.vmem %s0, 147
  %s7105 = smov 192
  %v7106 = vld [vmem:[%s7104] ss:$8 sm:%s7105]
  %vm7107 = vcmask 1047558
  %v7108 = vsel %vm7107, %v7106, %v7103
  %7109 = vrot.lane.b32.xlu0 %v7108, 32
  %v7110 = vpop.permute.xlu0 %7109
  %vm7111 = vcmask 1047808
  %s7112 = scalar_lea.vmem %s1, 1227
  %7113 = vst.msk [vmem:[%s7112] ss:$-63 sm:$0x7] %vm7111, %v7110
  %s7114 = scalar_lea.vmem %s1, 2573
  %7115 = vst.msk [vmem:[%s7114] ss:$-479 sm:$0x18] %vm7111, %v7110
  %s7116 = scalar_lea.vmem %s1, 1133
  %7117 = vst.msk [vmem:[%s7116] ss:$-159 sm:$0x60] %vm7111, %v7110
  %s7118 = scalar_lea.vmem %s1, 173
  %7119 = vst.msk [vmem:[%s7118] sm:$0x80] %vm7111, %v7110
  %s7120 = scalar_lea.vmem %s0, 783
  %s7121 = smov 3
  %v7122 = vld [vmem:[%s7120] ss:$-340 sm:%s7121]
  %s7123 = scalar_lea.vmem %s0, 511
  %s7124 = smov 12
  %v7125 = vld [vmem:[%s7123] ss:$-72 sm:%s7124]
  %vm7126 = vcmask 1043458
  %v7127 = vsel %vm7126, %v7125, %v7122
  %s7128 = scalar_lea.vmem %s0, 415
  %s7129 = smov 48
  %v7130 = vld [vmem:[%s7128] ss:$-72 sm:%s7129]
  %vm7131 = vcmask 1045508
  %v7132 = vsel %vm7131, %v7130, %v7127
  %s7133 = scalar_lea.vmem %s0, 4294966711
  %s7134 = smov 192
  %v7135 = vld [vmem:[%s7133] ss:$108 sm:%s7134]
  %vm7136 = vcmask 1047558
  %v7137 = vsel %vm7136, %v7135, %v7132
  %7138 = vrot.lane.b32.xlu0 %v7137, 32
  %v7139 = vpop.permute.xlu0 %7138
  %vm7140 = vcmask 1047808
  %s7141 = scalar_lea.vmem %s1, 721
  %7142 = vst.msk [vmem:[%s7141] ss:$-319 sm:$0x3] %vm7140, %v7139
  %s7143 = scalar_lea.vmem %s1, 465
  %7144 = vst.msk [vmem:[%s7143] ss:$-63 sm:$0xc] %vm7140, %v7139
  %s7145 = scalar_lea.vmem %s1, 369
  %7146 = vst.msk [vmem:[%s7145] ss:$-63 sm:$0x30] %vm7140, %v7139
  %s7147 = scalar_lea.vmem %s1, 4294966769
  %7148 = vst.msk [vmem:[%s7147] ss:$97 sm:$0xc0] %vm7140, %v7139
  %s7149 = scalar_lea.vmem %s0, 883
  %s7150 = smov 3
  %v7151 = vld [vmem:[%s7149] ss:$-348 sm:%s7150]
  %s7152 = scalar_lea.vmem %s0, 451
  %s7153 = smov 12
  %v7154 = vld [vmem:[%s7152] ss:$8 sm:%s7153]
  %vm7155 = vcmask 1043458
  %v7156 = vsel %vm7155, %v7154, %v7151
  %s7157 = scalar_lea.vmem %s0, 195
  %s7158 = smov 48
  %v7159 = vld [vmem:[%s7157] ss:$8 sm:%s7158]
  %vm7160 = vcmask 1045508
  %v7161 = vsel %vm7160, %v7159, %v7156
  %s7162 = scalar_lea.vmem %s0, 4294966859
  %s7163 = smov 192
  %v7164 = vld [vmem:[%s7162] ss:$100 sm:%s7163]
  %vm7165 = vcmask 1047558
  %v7166 = vsel %vm7165, %v7164, %v7161
  %7167 = vrot.lane.b32.xlu0 %v7166, 32
  %v7168 = vpop.permute.xlu0 %7167
  %vm7169 = vcmask 1047808
  %s7170 = scalar_lea.vmem %s1, 817
  %7171 = vst.msk [vmem:[%s7170] ss:$-319 sm:$0x3] %vm7169, %v7168
  %s7172 = scalar_lea.vmem %s1, 433
  %7173 = vst.msk [vmem:[%s7172] sm:$0xc] %vm7169, %v7168
  %s7174 = scalar_lea.vmem %s1, 209
  %7175 = vst.msk [vmem:[%s7174] sm:$0x30] %vm7169, %v7168
  %s7176 = scalar_lea.vmem %s1, 4294966865
  %7177 = vst.msk [vmem:[%s7176] ss:$97 sm:$0xc0] %vm7169, %v7168
  %s7178 = scalar_lea.vmem %s0, 1055
  %s7179 = smov 3
  %v7180 = vld [vmem:[%s7178] ss:$-340 sm:%s7179]
  %s7181 = scalar_lea.vmem %s0, 495
  %s7182 = smov 12
  %v7183 = vld [vmem:[%s7181] ss:$24 sm:%s7182]
  %vm7184 = vcmask 1043458
  %v7185 = vsel %vm7184, %v7183, %v7180
  %s7186 = scalar_lea.vmem %s0, 4294967167
  %s7187 = smov 48
  %v7188 = vld [vmem:[%s7186] ss:$108 sm:%s7187]
  %vm7189 = vcmask 1045508
  %v7190 = vsel %vm7189, %v7188, %v7185
  %s7191 = scalar_lea.vmem %s0, 943
  %s7192 = smov 192
  %v7193 = vld [vmem:[%s7191] ss:$-72 sm:%s7192]
  %vm7194 = vcmask 1047558
  %v7195 = vsel %vm7194, %v7193, %v7190
  %7196 = vrot.lane.b32.xlu0 %v7195, 32
  %v7197 = vpop.permute.xlu0 %7196
  %vm7198 = vcmask 1047808
  %s7199 = scalar_lea.vmem %s1, 977
  %7200 = vst.msk [vmem:[%s7199] ss:$-319 sm:$0x3] %vm7198, %v7197
  %s7201 = scalar_lea.vmem %s1, 433
  %7202 = vst.msk [vmem:[%s7201] ss:$33 sm:$0xc] %vm7198, %v7197
  %s7203 = scalar_lea.vmem %s1, 4294967185
  %7204 = vst.msk [vmem:[%s7203] ss:$97 sm:$0x70] %vm7198, %v7197
  %s7205 = scalar_lea.vmem %s1, 401
  %7206 = vst.msk [vmem:[%s7205] sm:$0x80] %vm7198, %v7197
  %s7207 = scalar_lea.vmem %s0, 1155
  %s7208 = smov 3
  %v7209 = vld [vmem:[%s7207] ss:$-348 sm:%s7208]
  %s7210 = scalar_lea.vmem %s0, 627
  %s7211 = smov 12
  %v7212 = vld [vmem:[%s7210] ss:$8 sm:%s7211]
  %vm7213 = vcmask 1043458
  %v7214 = vsel %vm7213, %v7212, %v7209
  %s7215 = scalar_lea.vmem %s0, 3
  %s7216 = smov 48
  %v7217 = vld [vmem:[%s7215] ss:$100 sm:%s7216]
  %vm7218 = vcmask 1045508
  %v7219 = vsel %vm7218, %v7217, %v7214
  %s7220 = scalar_lea.vmem %s0, 563
  %s7221 = smov 192
  %v7222 = vld [vmem:[%s7220] ss:$8 sm:%s7221]
  %vm7223 = vcmask 1047558
  %v7224 = vsel %vm7223, %v7222, %v7219
  %7225 = vrot.lane.b32.xlu0 %v7224, 32
  %v7226 = vpop.permute.xlu0 %7225
  %vm7227 = vcmask 1047808
  %s7228 = scalar_lea.vmem %s1, 1073
  %7229 = vst.msk [vmem:[%s7228] ss:$-319 sm:$0x3] %vm7227, %v7226
  %s7230 = scalar_lea.vmem %s1, 593
  %7231 = vst.msk [vmem:[%s7230] sm:$0xc] %vm7227, %v7226
  %s7232 = scalar_lea.vmem %s1, 4294967281
  %7233 = vst.msk [vmem:[%s7232] ss:$97 sm:$0x70] %vm7227, %v7226
  %s7234 = scalar_lea.vmem %s1, 561
  %7235 = vst.msk [vmem:[%s7234] sm:$0x80] %vm7227, %v7226
  %s7236 = scalar_lea.vmem %s0, 1231
  %s7237 = smov 3
  %v7238 = vld [vmem:[%s7236] ss:$-340 sm:%s7237]
  %s7239 = scalar_lea.vmem %s0, 959
  %s7240 = smov 12
  %v7241 = vld [vmem:[%s7239] ss:$-72 sm:%s7240]
  %vm7242 = vcmask 1043458
  %v7243 = vsel %vm7242, %v7241, %v7238
  %s7244 = scalar_lea.vmem %s0, 143
  %s7245 = smov 48
  %v7246 = vld [vmem:[%s7244] ss:$108 sm:%s7245]
  %vm7247 = vcmask 1045508
  %v7248 = vsel %vm7247, %v7246, %v7243
  %s7249 = scalar_lea.vmem %s0, 2447
  %s7250 = smov 192
  %v7251 = vld [vmem:[%s7249] ss:$-248 sm:%s7250]
  %vm7252 = vcmask 1047558
  %v7253 = vsel %vm7252, %v7251, %v7248
  %7254 = vrot.lane.b32.xlu0 %v7253, 32
  %v7255 = vpop.permute.xlu0 %7254
  %vm7256 = vcmask 1047808
  %s7257 = scalar_lea.vmem %s1, 1137
  %7258 = vst.msk [vmem:[%s7257] ss:$-319 sm:$0x3] %vm7256, %v7255
  %s7259 = scalar_lea.vmem %s1, 881
  %7260 = vst.msk [vmem:[%s7259] ss:$-63 sm:$0xc] %vm7256, %v7255
  %s7261 = scalar_lea.vmem %s1, 145
  %7262 = vst.msk [vmem:[%s7261] ss:$97 sm:$0x30] %vm7256, %v7255
  %s7263 = scalar_lea.vmem %s1, 2225
  %7264 = vst.msk [vmem:[%s7263] ss:$-223 sm:$0xc0] %vm7256, %v7255
  %s7265 = scalar_lea.vmem %s0, 1331
  %s7266 = smov 3
  %v7267 = vld [vmem:[%s7265] ss:$-348 sm:%s7266]
  %s7268 = scalar_lea.vmem %s0, 899
  %s7269 = smov 12
  %v7270 = vld [vmem:[%s7268] ss:$8 sm:%s7269]
  %vm7271 = vcmask 1043458
  %v7272 = vsel %vm7271, %v7270, %v7267
  %s7273 = scalar_lea.vmem %s0, 4294967235
  %s7274 = smov 48
  %v7275 = vld [vmem:[%s7273] ss:$184 sm:%s7274]
  %vm7276 = vcmask 1045508
  %v7277 = vsel %vm7276, %v7275, %v7272
  %s7278 = scalar_lea.vmem %s0, 2091
  %s7279 = smov 192
  %v7280 = vld [vmem:[%s7278] ss:$-172 sm:%s7279]
  %vm7281 = vcmask 1047558
  %v7282 = vsel %vm7281, %v7280, %v7277
  %7283 = vrot.lane.b32.xlu0 %v7282, 32
  %v7284 = vpop.permute.xlu0 %7283
  %vm7285 = vcmask 1047808
  %s7286 = scalar_lea.vmem %s1, 1233
  %7287 = vst.msk [vmem:[%s7286] ss:$-319 sm:$0x3] %vm7285, %v7284
  %s7288 = scalar_lea.vmem %s1, 849
  %7289 = vst.msk [vmem:[%s7288] sm:$0xc] %vm7285, %v7284
  %s7290 = scalar_lea.vmem %s1, 4294967281
  %7291 = vst.msk [vmem:[%s7290] ss:$161 sm:$0x30] %vm7285, %v7284
  %s7292 = scalar_lea.vmem %s1, 1937
  %7293 = vst.msk [vmem:[%s7292] ss:$-159 sm:$0xc0] %vm7285, %v7284
  %s7294 = scalar_lea.vmem %s0, 1163
  %s7295 = smov 3
  %v7296 = vld [vmem:[%s7294] ss:$-172 sm:%s7295]
  %s7297 = scalar_lea.vmem %s0, 1543
  %s7298 = smov 12
  %v7299 = vld [vmem:[%s7297] ss:$-264 sm:%s7298]
  %vm7300 = vcmask 1043458
  %v7301 = vsel %vm7300, %v7299, %v7296
  %s7302 = scalar_lea.vmem %s0, 487
  %s7303 = smov 48
  %v7304 = vld [vmem:[%s7302] ss:$116 sm:%s7303]
  %vm7305 = vcmask 1045508
  %v7306 = vsel %vm7305, %v7304, %v7301
  %s7307 = scalar_lea.vmem %s0, 555
  %s7308 = smov 192
  %v7309 = vld [vmem:[%s7307] ss:$-76 sm:%s7308]
  %vm7310 = vcmask 1047558
  %v7311 = vsel %vm7310, %v7309, %v7306
  %7312 = vrot.lane.b32.xlu0 %v7311, 32
  %v7313 = vpop.permute.xlu0 %7312
  %vm7314 = vcmask 1047808
  %s7315 = scalar_lea.vmem %s1, 1074
  %7316 = vst.msk [vmem:[%s7315] ss:$-159 sm:$0x3] %vm7314, %v7313
  %s7317 = scalar_lea.vmem %s1, 1458
  %7318 = vst.msk [vmem:[%s7317] ss:$-255 sm:$0xc] %vm7314, %v7313
  %s7319 = scalar_lea.vmem %s1, 494
  %7320 = vst.msk [vmem:[%s7319] ss:$98 sm:$0x30] %vm7314, %v7313
  %s7321 = scalar_lea.vmem %s1, 467
  %7322 = vst.msk [vmem:[%s7321] ss:$-63 sm:$0xc0] %vm7314, %v7313
  %s7323 = scalar_lea.vmem %s0, 1255
  %s7324 = smov 3
  %v7325 = vld [vmem:[%s7323] ss:$-164 sm:%s7324]
  %s7326 = scalar_lea.vmem %s0, 1595
  %s7327 = smov 12
  %v7328 = vld [vmem:[%s7326] ss:$-248 sm:%s7327]
  %vm7329 = vcmask 1043458
  %v7330 = vsel %vm7329, %v7328, %v7325
  %s7331 = scalar_lea.vmem %s0, 1019
  %s7332 = smov 48
  %v7333 = vld [vmem:[%s7331] ss:$28 sm:%s7332]
  %vm7334 = vcmask 1045508
  %v7335 = vsel %vm7334, %v7333, %v7330
  %s7336 = scalar_lea.vmem %s0, 1255
  %s7337 = smov 192
  %v7338 = vld [vmem:[%s7336] ss:$-164 sm:%s7337]
  %vm7339 = vcmask 1047558
  %v7340 = vsel %vm7339, %v7338, %v7335
  %7341 = vrot.lane.b32.xlu0 %v7340, 32
  %v7342 = vpop.permute.xlu0 %7341
  %vm7343 = vcmask 1047808
  %s7344 = scalar_lea.vmem %s1, 1170
  %7345 = vst.msk [vmem:[%s7344] ss:$-159 sm:$0x3] %vm7343, %v7342
  %s7346 = scalar_lea.vmem %s1, 1458
  %7347 = vst.msk [vmem:[%s7346] ss:$-223 sm:$0xc] %vm7343, %v7342
  %s7348 = scalar_lea.vmem %s1, 910
  %7349 = vst.msk [vmem:[%s7348] ss:$34 sm:$0x30] %vm7343, %v7342
  %s7350 = scalar_lea.vmem %s1, 1203
  %7351 = vst.msk [vmem:[%s7350] ss:$-159 sm:$0xc0] %vm7343, %v7342
  %s7352 = scalar_lea.vmem %s0, 1339
  %s7353 = smov 3
  %v7354 = vld [vmem:[%s7352] ss:$-76 sm:%s7353]
  %s7355 = scalar_lea.vmem %s0, 1527
  %s7356 = smov 12
  %v7357 = vld [vmem:[%s7355] ss:$-168 sm:%s7356]
  %vm7358 = vcmask 1043458
  %v7359 = vsel %vm7358, %v7357, %v7354
  %s7360 = scalar_lea.vmem %s0, 1195
  %s7361 = smov 48
  %v7362 = vld [vmem:[%s7360] ss:$28 sm:%s7361]
  %vm7363 = vcmask 1045508
  %v7364 = vsel %vm7363, %v7362, %v7359
  %s7365 = scalar_lea.vmem %s0, 1403
  %s7366 = smov 192
  %v7367 = vld [vmem:[%s7365] ss:$-172 sm:%s7366]
  %vm7368 = vcmask 1047558
  %v7369 = vsel %vm7368, %v7367, %v7364
  %7370 = vrot.lane.b32.xlu0 %v7369, 32
  %v7371 = vpop.permute.xlu0 %7370
  %vm7372 = vcmask 1047808
  %s7373 = scalar_lea.vmem %s1, 1234
  %7374 = vst.msk [vmem:[%s7373] ss:$-63 sm:$0x7] %vm7372, %v7371
  %s7375 = scalar_lea.vmem %s1, 178
  %7376 = vst.msk [vmem:[%s7375] ss:$257 sm:$0x18] %vm7372, %v7371
  %s7377 = scalar_lea.vmem %s1, 5715
  %7378 = vst.msk [vmem:[%s7377] ss:$-895 sm:$0x60] %vm7372, %v7371
  %s7379 = scalar_lea.vmem %s1, 179
  %7380 = vst.msk [vmem:[%s7379] sm:$0x80] %vm7372, %v7371
  %s7381 = scalar_lea.vmem %s0, 1123
  %s7382 = smov 3
  %v7383 = vld [vmem:[%s7381] ss:$-676 sm:%s7382]
  %s7384 = scalar_lea.vmem %s0, 1075
  %s7385 = smov 12
  %v7386 = vld [vmem:[%s7384] ss:$-348 sm:%s7385]
  %vm7387 = vcmask 1043458
  %v7388 = vsel %vm7387, %v7386, %v7383
  %s7389 = scalar_lea.vmem %s0, 427
  %s7390 = smov 48
  %v7391 = vld [vmem:[%s7389] ss:$-72 sm:%s7390]
  %vm7392 = vcmask 1045508
  %v7393 = vsel %vm7392, %v7391, %v7388
  %s7394 = scalar_lea.vmem %s0, 4294966771
  %s7395 = smov 192
  %v7396 = vld [vmem:[%s7394] ss:$100 sm:%s7395]
  %vm7397 = vcmask 1047558
  %v7398 = vsel %vm7397, %v7396, %v7393
  %7399 = vrot.lane.b32.xlu0 %v7398, 32
  %v7400 = vpop.permute.xlu0 %7399
  %vm7401 = vcmask 1047808
  %s7402 = scalar_lea.vmem %s1, 1045
  %7403 = vst.msk [vmem:[%s7402] ss:$-636 sm:$0x3] %vm7401, %v7400
  %s7404 = scalar_lea.vmem %s1, 984
  %7405 = vst.msk [vmem:[%s7404] ss:$-319 sm:$0xc] %vm7401, %v7400
  %s7406 = scalar_lea.vmem %s1, 376
  %7407 = vst.msk [vmem:[%s7406] ss:$-63 sm:$0x30] %vm7401, %v7400
  %s7408 = scalar_lea.vmem %s1, 4294966776
  %7409 = vst.msk [vmem:[%s7408] ss:$97 sm:$0xc0] %vm7401, %v7400
  %s7410 = scalar_lea.vmem %s0, 1199
  %s7411 = smov 3
  %v7412 = vld [vmem:[%s7410] ss:$-652 sm:%s7411]
  %s7413 = scalar_lea.vmem %s0, 1151
  %s7414 = smov 12
  %v7415 = vld [vmem:[%s7413] ss:$-340 sm:%s7414]
  %vm7416 = vcmask 1043458
  %v7417 = vsel %vm7416, %v7415, %v7412
  %s7418 = scalar_lea.vmem %s0, 199
  %s7419 = smov 48
  %v7420 = vld [vmem:[%s7418] ss:$8 sm:%s7419]
  %vm7421 = vcmask 1045508
  %v7422 = vsel %vm7421, %v7420, %v7417
  %s7423 = scalar_lea.vmem %s0, 4294966815
  %s7424 = smov 192
  %v7425 = vld [vmem:[%s7423] ss:$108 sm:%s7424]
  %vm7426 = vcmask 1047558
  %v7427 = vsel %vm7426, %v7425, %v7422
  %7428 = vrot.lane.b32.xlu0 %v7427, 32
  %v7429 = vpop.permute.xlu0 %7428
  %vm7430 = vcmask 1047808
  %s7431 = scalar_lea.vmem %s1, 1109
  %7432 = vst.msk [vmem:[%s7431] ss:$-604 sm:$0x3] %vm7430, %v7429
  %s7433 = scalar_lea.vmem %s1, 1080
  %7434 = vst.msk [vmem:[%s7433] ss:$-319 sm:$0xc] %vm7430, %v7429
  %s7435 = scalar_lea.vmem %s1, 216
  %7436 = vst.msk [vmem:[%s7435] sm:$0x30] %vm7430, %v7429
  %s7437 = scalar_lea.vmem %s1, 4294966872
  %7438 = vst.msk [vmem:[%s7437] ss:$97 sm:$0xc0] %vm7430, %v7429
  %s7439 = scalar_lea.vmem %s0, 1299
  %s7440 = smov 3
  %v7441 = vld [vmem:[%s7439] ss:$-580 sm:%s7440]
  %s7442 = scalar_lea.vmem %s0, 1251
  %s7443 = smov 12
  %v7444 = vld [vmem:[%s7442] ss:$-348 sm:%s7443]
  %vm7445 = vcmask 1043458
  %v7446 = vsel %vm7445, %v7444, %v7441
  %s7447 = scalar_lea.vmem %s0, 219
  %s7448 = smov 48
  %v7449 = vld [vmem:[%s7447] ss:$24 sm:%s7448]
  %vm7450 = vcmask 1045508
  %v7451 = vsel %vm7450, %v7449, %v7446
  %s7452 = scalar_lea.vmem %s0, 4294965987
  %s7453 = smov 192
  %v7454 = vld [vmem:[%s7452] ss:$276 sm:%s7453]
  %vm7455 = vcmask 1047558
  %v7456 = vsel %vm7455, %v7454, %v7451
  %7457 = vrot.lane.b32.xlu0 %v7456, 32
  %v7458 = vpop.permute.xlu0 %7457
  %vm7459 = vcmask 1047808
  %s7460 = scalar_lea.vmem %s1, 1205
  %7461 = vst.msk [vmem:[%s7460] ss:$-540 sm:$0x3] %vm7459, %v7458
  %s7462 = scalar_lea.vmem %s1, 1144
  %7463 = vst.msk [vmem:[%s7462] ss:$-319 sm:$0xc] %vm7459, %v7458
  %s7464 = scalar_lea.vmem %s1, 152
  %7465 = vst.msk [vmem:[%s7464] ss:$33 sm:$0x30] %vm7459, %v7458
  %s7466 = scalar_lea.vmem %s1, 4294966072
  %7467 = vst.msk [vmem:[%s7466] ss:$257 sm:$0xc0] %vm7459, %v7458
  %s7468 = scalar_lea.vmem %s0, 819
  %s7469 = smov 3
  %v7470 = vld [vmem:[%s7468] ss:$-172 sm:%s7469]
  %s7471 = scalar_lea.vmem %s0, 107
  %s7472 = smov 12
  %v7473 = vld [vmem:[%s7471] ss:$100 sm:%s7472]
  %vm7474 = vcmask 1043458
  %v7475 = vsel %vm7474, %v7473, %v7470
  %s7476 = scalar_lea.vmem %s0, 4294967279
  %s7477 = smov 48
  %v7478 = vld [vmem:[%s7476] ss:$108 sm:%s7477]
  %vm7479 = vcmask 1045508
  %v7480 = vsel %vm7479, %v7478, %v7475
  %s7481 = scalar_lea.vmem %s0, 4294966987
  %s7482 = smov 192
  %v7483 = vld [vmem:[%s7481] ss:$172 sm:%s7482]
  %vm7484 = vcmask 1047558
  %v7485 = vsel %vm7484, %v7483, %v7480
  %7486 = vrot.lane.b32.xlu0 %v7485, 32
  %v7487 = vpop.permute.xlu0 %7486
  %vm7488 = vcmask 1047808
  %s7489 = scalar_lea.vmem %s1, 761
  %7490 = vst.msk [vmem:[%s7489] ss:$-159 sm:$0x3] %vm7488, %v7487
  %s7491 = scalar_lea.vmem %s1, 89
  %7492 = vst.msk [vmem:[%s7491] ss:$97 sm:$0xc] %vm7488, %v7487
  %s7493 = scalar_lea.vmem %s1, 4294967289
  %7494 = vst.msk [vmem:[%s7493] ss:$97 sm:$0x30] %vm7488, %v7487
  %s7495 = scalar_lea.vmem %s1, 4294967043
  %7496 = vst.msk [vmem:[%s7495] ss:$154 sm:$0xc0] %vm7488, %v7487
  %s7497 = scalar_lea.vmem %s0, 995
  %s7498 = smov 3
  %v7499 = vld [vmem:[%s7497] ss:$-168 sm:%s7498]
  %s7500 = scalar_lea.vmem %s0, 263
  %s7501 = smov 12
  %v7502 = vld [vmem:[%s7500] ss:$108 sm:%s7501]
  %vm7503 = vcmask 1043458
  %v7504 = vsel %vm7503, %v7502, %v7499
  %s7505 = scalar_lea.vmem %s0, 115
  %s7506 = smov 48
  %v7507 = vld [vmem:[%s7505] ss:$100 sm:%s7506]
  %vm7508 = vcmask 1045508
  %v7509 = vsel %vm7508, %v7507, %v7504
  %s7510 = scalar_lea.vmem %s0, 1065
  %v7511 = vld [vmem:[%s7510] sm:$0x40]
  %vm7512 = vcmask 1046534
  %v7513 = vsel %vm7512, %v7511, %v7509
  %s7514 = scalar_lea.vmem %s0, 1160
  %v7515 = vld [vmem:[%s7514] sm:$0x80]
  %vm7516 = vcmask 1047559
  %v7517 = vsel %vm7516, %v7515, %v7513
  %7518 = vrot.lane.b32.xlu0 %v7517, 32
  %v7519 = vpop.permute.xlu0 %7518
  %vm7520 = vcmask 1047808
  %s7521 = scalar_lea.vmem %s1, 921
  %7522 = vst.msk [vmem:[%s7521] ss:$-159 sm:$0x3] %vm7520, %v7519
  %s7523 = scalar_lea.vmem %s1, 249
  %7524 = vst.msk [vmem:[%s7523] ss:$97 sm:$0xc] %vm7520, %v7519
  %s7525 = scalar_lea.vmem %s1, 89
  %7526 = vst.msk [vmem:[%s7525] ss:$97 sm:$0x30] %vm7520, %v7519
  %s7527 = scalar_lea.vmem %s1, 451
  %7528 = vst.msk [vmem:[%s7527] ss:$90 sm:$0xc0] %vm7520, %v7519
  %s7529 = scalar_lea.vmem %s0, 1267
  %s7530 = smov 3
  %v7531 = vld [vmem:[%s7529] ss:$-348 sm:%s7530]
  %s7532 = scalar_lea.vmem %s0, 379
  %s7533 = smov 12
  %v7534 = vld [vmem:[%s7532] ss:$100 sm:%s7533]
  %vm7535 = vcmask 1043458
  %v7536 = vsel %vm7535, %v7534, %v7531
  %s7537 = scalar_lea.vmem %s0, 255
  %s7538 = smov 48
  %v7539 = vld [vmem:[%s7537] ss:$108 sm:%s7538]
  %vm7540 = vcmask 1045508
  %v7541 = vsel %vm7540, %v7539, %v7536
  %s7542 = scalar_lea.vmem %s0, 139
  %s7543 = smov 192
  %v7544 = vld [vmem:[%s7542] ss:$172 sm:%s7543]
  %vm7545 = vcmask 1047558
  %v7546 = vsel %vm7545, %v7544, %v7541
  %7547 = vrot.lane.b32.xlu0 %v7546, 32
  %v7548 = vpop.permute.xlu0 %7547
  %vm7549 = vcmask 1047808
  %s7550 = scalar_lea.vmem %s1, 1177
  %7551 = vst.msk [vmem:[%s7550] ss:$-319 sm:$0x7] %vm7549, %v7548
  %s7552 = scalar_lea.vmem %s1, 633
  %7553 = vst.msk [vmem:[%s7552] sm:$0x18] %vm7549, %v7548
  %s7554 = scalar_lea.vmem %s1, 4294966265
  %7555 = vst.msk [vmem:[%s7554] ss:$353 sm:$0x60] %vm7549, %v7548
  %s7556 = scalar_lea.vmem %s1, 1234
  %7557 = vst.msk [vmem:[%s7556] sm:$0x80] %vm7549, %v7548
  %s7558 = scalar_lea.vmem %s0, 1003
  %s7559 = smov 3
  %v7560 = vld [vmem:[%s7558] ss:$-348 sm:%s7559]
  %s7561 = scalar_lea.vmem %s0, 715
  %s7562 = smov 12
  %v7563 = vld [vmem:[%s7561] ss:$24 sm:%s7562]
  %vm7564 = vcmask 1043458
  %v7565 = vsel %vm7564, %v7563, %v7560
  %s7566 = scalar_lea.vmem %s0, 475
  %s7567 = smov 48
  %v7568 = vld [vmem:[%s7566] ss:$124 sm:%s7567]
  %vm7569 = vcmask 1045508
  %v7570 = vsel %vm7569, %v7568, %v7565
  %s7571 = scalar_lea.vmem %s0, 155
  %s7572 = smov 192
  %v7573 = vld [vmem:[%s7571] ss:$100 sm:%s7572]
  %vm7574 = vcmask 1047558
  %v7575 = vsel %vm7574, %v7573, %v7570
  %7576 = vrot.lane.b32.xlu0 %v7575, 32
  %v7577 = vpop.permute.xlu0 %7576
  %vm7578 = vcmask 1047808
  %s7579 = scalar_lea.vmem %s1, 922
  %7580 = vst.msk [vmem:[%s7579] ss:$-319 sm:$0x3] %vm7578, %v7577
  %s7581 = scalar_lea.vmem %s1, 634
  %7582 = vst.msk [vmem:[%s7581] ss:$33 sm:$0xc] %vm7578, %v7577
  %s7583 = scalar_lea.vmem %s1, 398
  %7584 = vst.msk [vmem:[%s7583] ss:$124 sm:$0x30] %vm7578, %v7577
  %s7585 = scalar_lea.vmem %s1, 117
  %7586 = vst.msk [vmem:[%s7585] ss:$97 sm:$0xc0] %vm7578, %v7577
  %s7587 = scalar_lea.vmem %s0, 1275
  %s7588 = smov 3
  %v7589 = vld [vmem:[%s7587] ss:$-348 sm:%s7588]
  %s7590 = scalar_lea.vmem %s0, 1379
  %s7591 = smov 12
  %v7592 = vld [vmem:[%s7590] ss:$-172 sm:%s7591]
  %vm7593 = vcmask 1043458
  %v7594 = vsel %vm7593, %v7592, %v7589
  %s7595 = scalar_lea.vmem %s0, 1207
  %s7596 = smov 48
  %v7597 = vld [vmem:[%s7595] ss:$-36 sm:%s7596]
  %vm7598 = vcmask 1045508
  %v7599 = vsel %vm7598, %v7597, %v7594
  %s7600 = scalar_lea.vmem %s0, 2111
  %s7601 = smov 192
  %v7602 = vld [vmem:[%s7600] ss:$-164 sm:%s7601]
  %vm7603 = vcmask 1047558
  %v7604 = vsel %vm7603, %v7602, %v7599
  %7605 = vrot.lane.b32.xlu0 %v7604, 32
  %v7606 = vpop.permute.xlu0 %7605
  %vm7607 = vcmask 1047808
  %s7608 = scalar_lea.vmem %s1, 1178
  %7609 = vst.msk [vmem:[%s7608] ss:$-319 sm:$0x3] %vm7607, %v7606
  %s7610 = scalar_lea.vmem %s1, 1274
  %7611 = vst.msk [vmem:[%s7610] ss:$-159 sm:$0xc] %vm7607, %v7606
  %s7612 = scalar_lea.vmem %s1, 1130
  %7613 = vst.msk [vmem:[%s7612] ss:$-35 sm:$0x30] %vm7607, %v7606
  %s7614 = scalar_lea.vmem %s1, 2006
  %7615 = vst.msk [vmem:[%s7614] ss:$-159 sm:$0xc0] %vm7607, %v7606
  %s7616 = scalar_lea.vmem %s0, 1103
  %s7617 = smov 3
  %v7618 = vld [vmem:[%s7616] ss:$108 sm:%s7617]
  %s7619 = scalar_lea.vmem %s0, 919
  %s7620 = smov 12
  %v7621 = vld [vmem:[%s7619] ss:$108 sm:%s7620]
  %vm7622 = vcmask 1043458
  %v7623 = vsel %vm7622, %v7621, %v7618
  %s7624 = scalar_lea.vmem %s0, 803
  %s7625 = smov 48
  %v7626 = vld [vmem:[%s7624] ss:$100 sm:%s7625]
  %vm7627 = vcmask 1045508
  %v7628 = vsel %vm7627, %v7626, %v7623
  %s7629 = scalar_lea.vmem %s0, 779
  %s7630 = smov 192
  %v7631 = vld [vmem:[%s7629] ss:$76 sm:%s7630]
  %vm7632 = vcmask 1047558
  %v7633 = vsel %vm7632, %v7631, %v7628
  %7634 = vrot.lane.b32.xlu0 %v7633, 32
  %v7635 = vpop.permute.xlu0 %7634
  %vm7636 = vcmask 1047808
  %s7637 = scalar_lea.vmem %s1, 1019
  %7638 = vst.msk [vmem:[%s7637] ss:$97 sm:$0x3] %vm7636, %v7635
  %s7639 = scalar_lea.vmem %s1, 859
  %7640 = vst.msk [vmem:[%s7639] ss:$97 sm:$0xc] %vm7636, %v7635
  %s7641 = scalar_lea.vmem %s1, 727
  %7642 = vst.msk [vmem:[%s7641] ss:$97 sm:$0x30] %vm7636, %v7635
  %s7643 = scalar_lea.vmem %s1, 1143
  %7644 = vst.msk [vmem:[%s7643] sm:$0x40] %vm7636, %v7635
  %s7645 = scalar_lea.vmem %s1, 1206
  %7646 = vst.msk [vmem:[%s7645] sm:$0x80] %vm7636, %v7635

// kernel: partial_quant_forward.1
$region0: #{partial_quant_forward.1}
  #allocation0 [shape = 'u32[]', space=smem, size = 0x4, offset = 0x4, fixed_abs, tag = 'smem constant byte address 0x4 - core index']
  #allocation1 [shape = 'u32[144,128]{1,0:T(1,128)}', space=vmem, size = 0x12000, scoped, tag = 'internal scratch']
  #allocation2 [shape = 'f32[1,1]{1,0:T(1,128)}', space=vmem, size = 0x200, scoped, tag = 'scratch operand']
  #allocation3 [shape = 'f32[1,1]{1,0:T(1,128)}', space=vmem, size = 0x200, scoped, tag = 'scratch operand']
  #allocation4 [shape = 'f32[1,1]{1,0:T(1,128)}', space=vmem, size = 0x200, scoped, tag = 'scratch operand']
  %s0 = inlined_call_operand.vmem [shape: f32[7], index: 0, kind: input, shape index: {}]
  %s1 = inlined_call_operand.vmem [shape: f32[3,4,98,128], index: 1, kind: input, shape index: {}]
  %s2 = inlined_call_operand.vmem [shape: f32[4,98,128], index: 2, kind: input, shape index: {}]
  %s3 = inlined_call_operand.hbm [shape: f32[1,1], index: 3, kind: output, shape index: {}]
  %s4 = sld [smem:[#allocation0]]
  $region95: #{partial_quant_forward.1} parent=0
    _
  %s6 = ssub.s32 1, %s4
  %s7 = scalar_select 0, %s6, %s4
  $region1: #{partial_quant_forward.1} parent=0
    #allocation5 [shape = 'u8[512]{0}', space=smem, size = 0x200, scoped, tag = 'input window, operand 0, single buffered']
    #allocation6 [shape = 's32[2]{0}', space=sflag, size = 0x8, scoped, tag = 'scoped memory for partial_quant_forward.1']
    #allocation7 [shape = 's32[2]{0}', space=sflag, size = 0x8, scoped, tag = 'scoped memory for partial_quant_forward.1']
    #allocation8 [shape = 'u8[319488]{0}', space=vmem, size = 0x4e000, scoped, tag = 'input window, operand 1']
    #allocation9 [shape = 'u8[512]{0}', space=vmem, size = 0x400, scoped, tag = 'output window, operand 0, single buffered']
    %8 = vsyncpa [#allocation7], 0
    %9 = vsyncpa [#allocation6], 0
    loop: start=0, step=1, limit=6
    $region2: #{partial_quant_forward.1} parent=1 // loop_pre_header
      _
    $region3: #{partial_quant_forward.1} parent=1 // loop_header
      %s11 = sphi 0, %s15
      %p12 = scmp.ge.s32.totalorder %s11, 6
      %s19 = sphi 0, %s19
      %s21 = sphi 0, %s19
      %s22 = sphi 0, %s21
      %s36 = sphi 0, %s22
      %s42 = sphi 0, %s44
      %s45 = sphi 0, %s42
      %s46 = sphi 0, %s45
      %s62 = sphi 0, %s46
      %s68 = sphi 0, %s70
      %s71 = sphi 0, %s68
      %s72 = sphi 0, %s71
      %s88 = sphi 0, %s72
      %s92 = sphi 0, %s92
      %s94 = sphi 0, %s92
      %s95 = sphi 0, %s94
      %s109 = sphi 0, %s95
    $region4: #{partial_quant_forward.1} parent=1 // loop_header_branch
      %14 = sbr.rel (%p12) target = $region8
    $region5: #{partial_quant_forward.1} parent=1 // loop_body
      %s16 = ssub.s32 %s11, 1
      %s17 = ssub.s32 %s11, 2
      %s18 = sadd.s32 %s11, 1
      %s20 = sadd.s32 %s19, 1
      %p23 = scmp.eq.s32.totalorder %s11, 3
      %p24 = scmp.ne.s32.totalorder %s19, %s21
      %p25 = scmp.eq.s32.totalorder %s11, 0
      %p26 = por %p24, %p25
      %p27 = scmp.ne.s32.totalorder %s19, %s21
      %p28 = scmp.eq.s32.totalorder %s16, 3
      %p29 = por %p27, %p28
      %p30 = scmp.ne.s32.totalorder %s21, %s22
      %p31 = scmp.eq.s32.totalorder %s16, 0
      %p32 = por %p30, %p31
      %p33 = scmp.ne.s32.totalorder %s21, %s22
      %p34 = scmp.eq.s32.totalorder %s17, 3
      %p35 = por %p33, %p34
      %p37 = scmp.ne.s32.totalorder %s22, %s36
      %p38 = scmp.eq.s32.totalorder %s17, 0
      %p39 = por %p37, %p38
      %s40 = ssub.s32 %s11, %s18
      %p41 = scmp.eq.s32.totalorder %s40, 0
      %s43 = sadd.s32 %s42, 1
      %s44 = scalar_select %p41, %s42, %s43
      %p47 = pneg %p41
      %p48 = scmp.eq.s32.totalorder %s11, 3
      %p49 = por %p47, %p48
      %p50 = scmp.ne.s32.totalorder %s42, %s45
      %p51 = scmp.eq.s32.totalorder %s11, 0
      %p52 = por %p50, %p51
      %p53 = scmp.ne.s32.totalorder %s42, %s45
      %p54 = scmp.eq.s32.totalorder %s16, 3
      %p55 = por %p53, %p54
      %p56 = scmp.ne.s32.totalorder %s45, %s46
      %p57 = scmp.eq.s32.totalorder %s16, 0
      %p58 = por %p56, %p57
      %p59 = scmp.ne.s32.totalorder %s45, %s46
      %p60 = scmp.eq.s32.totalorder %s17, 3
      %p61 = por %p59, %p60
      %p63 = scmp.ne.s32.totalorder %s46, %s62
      %p64 = scmp.eq.s32.totalorder %s17, 0
      %p65 = por %p63, %p64
      %s66 = ssub.s32 %s11, %s18
      %p67 = scmp.eq.s32.totalorder %s66, 0
      %s69 = sadd.s32 %s68, 1
      %s70 = scalar_select %p67, %s68, %s69
      %p73 = pneg %p67
      %p74 = scmp.eq.s32.totalorder %s11, 3
      %p75 = por %p73, %p74
      %p76 = scmp.ne.s32.totalorder %s68, %s71
      %p77 = scmp.eq.s32.totalorder %s11, 0
      %p78 = por %p76, %p77
      %p79 = scmp.ne.s32.totalorder %s68, %s71
      %p80 = scmp.eq.s32.totalorder %s16, 3
      %p81 = por %p79, %p80
      %p82 = scmp.ne.s32.totalorder %s71, %s72
      %p83 = scmp.eq.s32.totalorder %s16, 0
      %p84 = por %p82, %p83
      %p85 = scmp.ne.s32.totalorder %s71, %s72
      %p86 = scmp.eq.s32.totalorder %s17, 3
      %p87 = por %p85, %p86
      %p89 = scmp.ne.s32.totalorder %s72, %s88
      %p90 = scmp.eq.s32.totalorder %s17, 0
      %p91 = por %p89, %p90
      %s93 = sadd.s32 %s92, 1
      %p96 = scmp.eq.s32.totalorder %s11, 3
      %p97 = scmp.ne.s32.totalorder %s92, %s94
      %p98 = scmp.eq.s32.totalorder %s11, 0
      %p99 = por %p97, %p98
      %p100 = scmp.ne.s32.totalorder %s92, %s94
      %p101 = scmp.eq.s32.totalorder %s16, 3
      %p102 = por %p100, %p101
      %p103 = scmp.ne.s32.totalorder %s94, %s95
      %p104 = scmp.eq.s32.totalorder %s16, 0
      %p105 = por %p103, %p104
      %p106 = scmp.ne.s32.totalorder %s94, %s95
      %p107 = scmp.eq.s32.totalorder %s17, 3
      %p108 = por %p106, %p107
      %p110 = scmp.ne.s32.totalorder %s95, %s109
      %p111 = scmp.eq.s32.totalorder %s17, 0
      %p112 = por %p110, %p111
      %p113 = scmp.le.s32.totalorder 1, %s11
      %p114 = scmp.lt.s32.totalorder %s11, 5
      %p115 = pnand %p113, %p114
      %p116 = pneg %p115
      // Predicated region
      $region9: #{partial_quant_forward.1} parent=5 // pred_check
        _
      $region10: #{partial_quant_forward.1} parent=5 // pred_check_branch
        %118 = sbr.rel (%p115) target = $region12
      $region11: #{partial_quant_forward.1} parent=5 // pred_region
        %s119 = ssub.s32 %s11, 1
        // Predicated region
        $region13: #{partial_quant_forward.1} parent=11 // pred_check
          %p120 = pneg %p32
        $region14: #{partial_quant_forward.1} parent=11 // pred_check_branch
          %122 = sbr.rel (%p120) target = $region16
        $region15: #{partial_quant_forward.1} parent=11 // pred_region
          %s124 = ssub.s32 16, 16
          %125 = vsyncadd [#allocation7], %s124
          %s127 = sshll.u32 %s0, 4
          %s128 = int_to_ptr.vmem [resolvable:$true] %s127
          %130 = dma.vmem_to_smem %s128, 16, [#allocation5], [#allocation7]
        $region16: #{partial_quant_forward.1} parent=11 // pred_fallthru
          _
      $region12: #{partial_quant_forward.1} parent=5 // pred_fallthru
        _
      %p131 = scmp.lt.s32.totalorder %s11, 4
      // Predicated region
      $region17: #{partial_quant_forward.1} parent=5 // pred_check
        %p132 = pneg %p131
      $region18: #{partial_quant_forward.1} parent=5 // pred_check_branch
        %134 = sbr.rel (%p132) target = $region20
      $region19: #{partial_quant_forward.1} parent=5 // pred_region
        // Predicated region
        $region21: #{partial_quant_forward.1} parent=19 // pred_check
          %p135 = pneg %p52
        $region22: #{partial_quant_forward.1} parent=19 // pred_check_branch
          %137 = sbr.rel (%p135) target = $region24
        $region23: #{partial_quant_forward.1} parent=19 // pred_region
          %s138 = sand.u32 %s42, 1
          %s139 = sand.u32 %s42, 1
          %s140 = smul.addr %s139, 312
          %s141 = scalar_lea.vmem [#allocation8], %s140
          %s142 = smul.addr %s11, 13
          %s143 = smul.addr %s142, 8
          %s144 = scalar_lea.vmem %s1, %s143
          // Predicated region
          $region25: #{partial_quant_forward.1} parent=23 // pred_check
            _
          $region26: #{partial_quant_forward.1} parent=23 // pred_check_branch
            %146 = sbr.rel (0) target = $region28
          $region27: #{partial_quant_forward.1} parent=23 // pred_region
            // Predicated region
            $region29: #{partial_quant_forward.1} parent=27 // pred_check
              _
            $region30: #{partial_quant_forward.1} parent=27 // pred_check_branch
              %148 = sbr.rel (0) target = $region32
            $region31: #{partial_quant_forward.1} parent=27 // pred_region
              // Predicated region
              $region44: #{partial_quant_forward.1} parent=31 // pred_check
                _
              $region45: #{partial_quant_forward.1} parent=31 // pred_check_branch
                %240 = sbr.rel (0) target = $region47
              $region46: #{partial_quant_forward.1} parent=31 // pred_region
                loop: start=0, step=1, limit=1
                $region48: #{partial_quant_forward.1} parent=46 // loop_pre_header
                  _
                $region49: #{partial_quant_forward.1} parent=46 // loop_header
                  %s242 = sphi 0, %s246
                  %p243 = scmp.ge.s32.totalorder %s242, 1
                  %s247 = sphi %s144, %s144
                  %s248 = sphi %s141, %s141
                $region50: #{partial_quant_forward.1} parent=46 // loop_header_branch
                  %245 = sbr.rel (%p243) target = $region54
                $region51: #{partial_quant_forward.1} parent=46 // loop_body
                  %v249 = vld [vmem:[%s247] sm:$0xff]
                  %250 = vst [vmem:[%s248] sm:$0xff] %v249
                  %v251 = vld [vmem:[%s247 + $0x8] sm:$0xff]
                  %252 = vst [vmem:[%s248 + $0x8] sm:$0xff] %v251
                  %v253 = vld [vmem:[%s247 + $0x10] sm:$0xff]
                  %254 = vst [vmem:[%s248 + $0x10] sm:$0xff] %v253
                  %v255 = vld [vmem:[%s247 + $0x18] sm:$0xff]
                  %256 = vst [vmem:[%s248 + $0x18] sm:$0xff] %v255
                  %v257 = vld [vmem:[%s247 + $0x20] sm:$0xff]
                  %258 = vst [vmem:[%s248 + $0x20] sm:$0xff] %v257
                  %v259 = vld [vmem:[%s247 + $0x28] sm:$0xff]
                  %260 = vst [vmem:[%s248 + $0x28] sm:$0xff] %v259
                  %v261 = vld [vmem:[%s247 + $0x30] sm:$0xff]
                  %262 = vst [vmem:[%s248 + $0x30] sm:$0xff] %v261
                  %v263 = vld [vmem:[%s247 + $0x38] sm:$0xff]
                  %264 = vst [vmem:[%s248 + $0x38] sm:$0xff] %v263
                  %v265 = vld [vmem:[%s247 + $0x40] sm:$0xff]
                  %266 = vst [vmem:[%s248 + $0x40] sm:$0xff] %v265
                  %v267 = vld [vmem:[%s247 + $0x48] sm:$0xff]
                  %268 = vst [vmem:[%s248 + $0x48] sm:$0xff] %v267
                  %v269 = vld [vmem:[%s247 + $0x50] sm:$0xff]
                  %270 = vst [vmem:[%s248 + $0x50] sm:$0xff] %v269
                  %v271 = vld [vmem:[%s247 + $0x58] sm:$0xff]
                  %272 = vst [vmem:[%s248 + $0x58] sm:$0xff] %v271
                  %v273 = vld [vmem:[%s247 + $0x60] sm:$0xff]
                  %274 = vst [vmem:[%s248 + $0x60] sm:$0xff] %v273
                  %v275 = vld [vmem:[%s247 + $0x1a0] sm:$0xff]
                  %276 = vst [vmem:[%s248 + $0x68] sm:$0xff] %v275
                  %v277 = vld [vmem:[%s247 + $0x1a8] sm:$0xff]
                  %278 = vst [vmem:[%s248 + $0x70] sm:$0xff] %v277
                  %v279 = vld [vmem:[%s247 + $0x1b0] sm:$0xff]
                  %280 = vst [vmem:[%s248 + $0x78] sm:$0xff] %v279
                  %v281 = vld [vmem:[%s247 + $0x1b8] sm:$0xff]
                  %282 = vst [vmem:[%s248 + $0x80] sm:$0xff] %v281
                  %v283 = vld [vmem:[%s247 + $0x1c0] sm:$0xff]
                  %284 = vst [vmem:[%s248 + $0x88] sm:$0xff] %v283
                  %v285 = vld [vmem:[%s247 + $0x1c8] sm:$0xff]
                  %286 = vst [vmem:[%s248 + $0x90] sm:$0xff] %v285
                  %v287 = vld [vmem:[%s247 + $0x1d0] sm:$0xff]
                  %288 = vst [vmem:[%s248 + $0x98] sm:$0xff] %v287
                  %v289 = vld [vmem:[%s247 + $0x1d8] sm:$0xff]
                  %290 = vst [vmem:[%s248 + $0xa0] sm:$0xff] %v289
                  %v291 = vld [vmem:[%s247 + $0x1e0] sm:$0xff]
                  %292 = vst [vmem:[%s248 + $0xa8] sm:$0xff] %v291
                  %v293 = vld [vmem:[%s247 + $0x1e8] sm:$0xff]
                  %294 = vst [vmem:[%s248 + $0xb0] sm:$0xff] %v293
                  %v295 = vld [vmem:[%s247 + $0x1f0] sm:$0xff]
                  %296 = vst [vmem:[%s248 + $0xb8] sm:$0xff] %v295
                  %v297 = vld [vmem:[%s247 + $0x1f8] sm:$0xff]
                  %298 = vst [vmem:[%s248 + $0xc0] sm:$0xff] %v297
                  %v299 = vld [vmem:[%s247 + $0x200] sm:$0xff]
                  %300 = vst [vmem:[%s248 + $0xc8] sm:$0xff] %v299
                  %v301 = vld [vmem:[%s247 + $0x340] sm:$0xff]
                  %302 = vst [vmem:[%s248 + $0xd0] sm:$0xff] %v301
                  %v303 = vld [vmem:[%s247 + $0x348] sm:$0xff]
                  %304 = vst [vmem:[%s248 + $0xd8] sm:$0xff] %v303
                  %v305 = vld [vmem:[%s247 + $0x350] sm:$0xff]
                  %306 = vst [vmem:[%s248 + $0xe0] sm:$0xff] %v305
                  %v307 = vld [vmem:[%s247 + $0x358] sm:$0xff]
                  %308 = vst [vmem:[%s248 + $0xe8] sm:$0xff] %v307
                  %v309 = vld [vmem:[%s247 + $0x360] sm:$0xff]
                  %310 = vst [vmem:[%s248 + $0xf0] sm:$0xff] %v309
                  %v311 = vld [vmem:[%s247 + $0x368] sm:$0xff]
                  %312 = vst [vmem:[%s248 + $0xf8] sm:$0xff] %v311
                  %v313 = vld [vmem:[%s247 + $0x370] sm:$0xff]
                  %314 = vst [vmem:[%s248 + $0x100] sm:$0xff] %v313
                  %v315 = vld [vmem:[%s247 + $0x378] sm:$0xff]
                  %316 = vst [vmem:[%s248 + $0x108] sm:$0xff] %v315
                  %v317 = vld [vmem:[%s247 + $0x380] sm:$0xff]
                  %318 = vst [vmem:[%s248 + $0x110] sm:$0xff] %v317
                  %v319 = vld [vmem:[%s247 + $0x388] sm:$0xff]
                  %320 = vst [vmem:[%s248 + $0x118] sm:$0xff] %v319
                  %v321 = vld [vmem:[%s247 + $0x390] sm:$0xff]
                  %322 = vst [vmem:[%s248 + $0x120] sm:$0xff] %v321
                  %v323 = vld [vmem:[%s247 + $0x398] sm:$0xff]
                  %324 = vst [vmem:[%s248 + $0x128] sm:$0xff] %v323
                  %v325 = vld [vmem:[%s247 + $0x3a0] sm:$0xff]
                  %326 = vst [vmem:[%s248 + $0x130] sm:$0xff] %v325
                $region52: #{partial_quant_forward.1} parent=46 // loop_footer
                  %s246 = sadd.s32 1, %s242
                $region53: #{partial_quant_forward.1} parent=46 // loop_footer_branch
                  %241 = sbr.rel target = $region49
                $region54: #{partial_quant_forward.1} parent=46 // loop_exit
                  _
              $region47: #{partial_quant_forward.1} parent=31 // pred_fallthru
                _
              // Predicated region
              $region55: #{partial_quant_forward.1} parent=31 // pred_check
                _
              $region56: #{partial_quant_forward.1} parent=31 // pred_check_branch
                %328 = sbr.rel target = $region58
              $region57: #{partial_quant_forward.1} parent=31 // pred_region
                _
              $region58: #{partial_quant_forward.1} parent=31 // pred_fallthru
                _
            $region32: #{partial_quant_forward.1} parent=27 // pred_fallthru
              _
            // Predicated region
            $region33: #{partial_quant_forward.1} parent=27 // pred_check
              _
            $region34: #{partial_quant_forward.1} parent=27 // pred_check_branch
              %150 = sbr.rel target = $region36
            $region35: #{partial_quant_forward.1} parent=27 // pred_region
              %s152 = ssub.s32 256, 1
              loop: start=0, step=1, limit=1
              $region37: #{partial_quant_forward.1} parent=35 // loop_pre_header
                _
              $region38: #{partial_quant_forward.1} parent=35 // loop_header
                %s154 = sphi 0, %s158
                %p155 = scmp.ge.s32.totalorder %s154, 1
                %s159 = sphi %s144, %s144
                %s160 = sphi %s141, %s141
              $region39: #{partial_quant_forward.1} parent=35 // loop_header_branch
                %157 = sbr.rel (%p155) target = $region43
              $region40: #{partial_quant_forward.1} parent=35 // loop_body
                %v161 = vld [vmem:[%s159] sm:%s152]
                %162 = vst [vmem:[%s160] sm:%s152] %v161
                %v163 = vld [vmem:[%s159 + $0x8] sm:%s152]
                %164 = vst [vmem:[%s160 + $0x8] sm:%s152] %v163
                %v165 = vld [vmem:[%s159 + $0x10] sm:%s152]
                %166 = vst [vmem:[%s160 + $0x10] sm:%s152] %v165
                %v167 = vld [vmem:[%s159 + $0x18] sm:%s152]
                %168 = vst [vmem:[%s160 + $0x18] sm:%s152] %v167
                %v169 = vld [vmem:[%s159 + $0x20] sm:%s152]
                %170 = vst [vmem:[%s160 + $0x20] sm:%s152] %v169
                %v171 = vld [vmem:[%s159 + $0x28] sm:%s152]
                %172 = vst [vmem:[%s160 + $0x28] sm:%s152] %v171
                %v173 = vld [vmem:[%s159 + $0x30] sm:%s152]
                %174 = vst [vmem:[%s160 + $0x30] sm:%s152] %v173
                %v175 = vld [vmem:[%s159 + $0x38] sm:%s152]
                %176 = vst [vmem:[%s160 + $0x38] sm:%s152] %v175
                %v177 = vld [vmem:[%s159 + $0x40] sm:%s152]
                %178 = vst [vmem:[%s160 + $0x40] sm:%s152] %v177
                %v179 = vld [vmem:[%s159 + $0x48] sm:%s152]
                %180 = vst [vmem:[%s160 + $0x48] sm:%s152] %v179
                %v181 = vld [vmem:[%s159 + $0x50] sm:%s152]
                %182 = vst [vmem:[%s160 + $0x50] sm:%s152] %v181
                %v183 = vld [vmem:[%s159 + $0x58] sm:%s152]
                %184 = vst [vmem:[%s160 + $0x58] sm:%s152] %v183
                %v185 = vld [vmem:[%s159 + $0x60] sm:%s152]
                %186 = vst [vmem:[%s160 + $0x60] sm:%s152] %v185
                %v187 = vld [vmem:[%s159 + $0x1a0] sm:%s152]
                %188 = vst [vmem:[%s160 + $0x68] sm:%s152] %v187
                %v189 = vld [vmem:[%s159 + $0x1a8] sm:%s152]
                %190 = vst [vmem:[%s160 + $0x70] sm:%s152] %v189
                %v191 = vld [vmem:[%s159 + $0x1b0] sm:%s152]
                %192 = vst [vmem:[%s160 + $0x78] sm:%s152] %v191
                %v193 = vld [vmem:[%s159 + $0x1b8] sm:%s152]
                %194 = vst [vmem:[%s160 + $0x80] sm:%s152] %v193
                %v195 = vld [vmem:[%s159 + $0x1c0] sm:%s152]
                %196 = vst [vmem:[%s160 + $0x88] sm:%s152] %v195
                %v197 = vld [vmem:[%s159 + $0x1c8] sm:%s152]
                %198 = vst [vmem:[%s160 + $0x90] sm:%s152] %v197
                %v199 = vld [vmem:[%s159 + $0x1d0] sm:%s152]
                %200 = vst [vmem:[%s160 + $0x98] sm:%s152] %v199
                %v201 = vld [vmem:[%s159 + $0x1d8] sm:%s152]
                %202 = vst [vmem:[%s160 + $0xa0] sm:%s152] %v201
                %v203 = vld [vmem:[%s159 + $0x1e0] sm:%s152]
                %204 = vst [vmem:[%s160 + $0xa8] sm:%s152] %v203
                %v205 = vld [vmem:[%s159 + $0x1e8] sm:%s152]
                %206 = vst [vmem:[%s160 + $0xb0] sm:%s152] %v205
                %v207 = vld [vmem:[%s159 + $0x1f0] sm:%s152]
                %208 = vst [vmem:[%s160 + $0xb8] sm:%s152] %v207
                %v209 = vld [vmem:[%s159 + $0x1f8] sm:%s152]
                %210 = vst [vmem:[%s160 + $0xc0] sm:%s152] %v209
                %v211 = vld [vmem:[%s159 + $0x200] sm:%s152]
                %212 = vst [vmem:[%s160 + $0xc8] sm:%s152] %v211
                %v213 = vld [vmem:[%s159 + $0x340] sm:%s152]
                %214 = vst [vmem:[%s160 + $0xd0] sm:%s152] %v213
                %v215 = vld [vmem:[%s159 + $0x348] sm:%s152]
                %216 = vst [vmem:[%s160 + $0xd8] sm:%s152] %v215
                %v217 = vld [vmem:[%s159 + $0x350] sm:%s152]
                %218 = vst [vmem:[%s160 + $0xe0] sm:%s152] %v217
                %v219 = vld [vmem:[%s159 + $0x358] sm:%s152]
                %220 = vst [vmem:[%s160 + $0xe8] sm:%s152] %v219
                %v221 = vld [vmem:[%s159 + $0x360] sm:%s152]
                %222 = vst [vmem:[%s160 + $0xf0] sm:%s152] %v221
                %v223 = vld [vmem:[%s159 + $0x368] sm:%s152]
                %224 = vst [vmem:[%s160 + $0xf8] sm:%s152] %v223
                %v225 = vld [vmem:[%s159 + $0x370] sm:%s152]
                %226 = vst [vmem:[%s160 + $0x100] sm:%s152] %v225
                %v227 = vld [vmem:[%s159 + $0x378] sm:%s152]
                %228 = vst [vmem:[%s160 + $0x108] sm:%s152] %v227
                %v229 = vld [vmem:[%s159 + $0x380] sm:%s152]
                %230 = vst [vmem:[%s160 + $0x110] sm:%s152] %v229
                %v231 = vld [vmem:[%s159 + $0x388] sm:%s152]
                %232 = vst [vmem:[%s160 + $0x118] sm:%s152] %v231
                %v233 = vld [vmem:[%s159 + $0x390] sm:%s152]
                %234 = vst [vmem:[%s160 + $0x120] sm:%s152] %v233
                %v235 = vld [vmem:[%s159 + $0x398] sm:%s152]
                %236 = vst [vmem:[%s160 + $0x128] sm:%s152] %v235
                %v237 = vld [vmem:[%s159 + $0x3a0] sm:%s152]
                %238 = vst [vmem:[%s160 + $0x130] sm:%s152] %v237
              $region41: #{partial_quant_forward.1} parent=35 // loop_footer
                %s158 = sadd.s32 1, %s154
              $region42: #{partial_quant_forward.1} parent=35 // loop_footer_branch
                %153 = sbr.rel target = $region38
              $region43: #{partial_quant_forward.1} parent=35 // loop_exit
                _
            $region36: #{partial_quant_forward.1} parent=27 // pred_fallthru
              _
          $region28: #{partial_quant_forward.1} parent=23 // pred_fallthru
            _
          %329 = vnop
        $region24: #{partial_quant_forward.1} parent=19 // pred_fallthru
          _
        // Predicated region
        $region59: #{partial_quant_forward.1} parent=19 // pred_check
          %p330 = pneg %p78
        $region60: #{partial_quant_forward.1} parent=19 // pred_check_branch
          %332 = sbr.rel (%p330) target = $region62
        $region61: #{partial_quant_forward.1} parent=19 // pred_region
          %p333 = scmp.lt.s32.totalorder %s11, 3
          %s334 = scalar_select %p333, %s11, 3
          %s335 = smul.addr %s334, 13
          %s336 = smul.addr %s335, 8
          %s337 = scalar_lea.vmem %s2, %s336
        $region62: #{partial_quant_forward.1} parent=19 // pred_fallthru
          _
      $region20: #{partial_quant_forward.1} parent=5 // pred_fallthru
        _
      %p338 = scmp.le.s32.totalorder 1, %s11
      %p339 = scmp.lt.s32.totalorder %s11, 5
      %p340 = pnand %p338, %p339
      %p341 = pneg %p340
      // Predicated region
      $region63: #{partial_quant_forward.1} parent=5 // pred_check
        _
      $region64: #{partial_quant_forward.1} parent=5 // pred_check_branch
        %343 = sbr.rel (%p340) target = $region66
      $region65: #{partial_quant_forward.1} parent=5 // pred_region
        %s344 = ssub.s32 %s11, 1
        // Predicated region
        $region67: #{partial_quant_forward.1} parent=65 // pred_check
          %p345 = pneg %p32
        $region68: #{partial_quant_forward.1} parent=65 // pred_check_branch
          %347 = sbr.rel (%p345) target = $region70
        $region69: #{partial_quant_forward.1} parent=65 // pred_region
          %348 = dma.done [#allocation7], 16
        $region70: #{partial_quant_forward.1} parent=65 // pred_fallthru
          _
        %s349 = sand.u32 %s45, 1
        %s350 = sand.u32 %s45, 1
        %s351 = smul.addr %s350, 312
        %s352 = scalar_lea.vmem [#allocation8], %s351
        // Predicated region
        $region71: #{partial_quant_forward.1} parent=65 // pred_check
          %p353 = pneg %p58
        $region72: #{partial_quant_forward.1} parent=65 // pred_check_branch
          %355 = sbr.rel (%p353) target = $region74
        $region73: #{partial_quant_forward.1} parent=65 // pred_region
          _
        $region74: #{partial_quant_forward.1} parent=65 // pred_fallthru
          _
        %356 = sfence
        %p357 = pneg %p32
        %p358 = pneg %p29
        %s359 = sand.u32 %s45, 1
        %s360 = sand.u32 %s45, 1
        %s361 = smul.addr %s360, 312
        %s362 = scalar_lea.vmem [#allocation8], %s361
        %p363 = pneg %p58
        %p364 = pneg %p55
        %p365 = scmp.lt.s32.totalorder %s16, 3
        %s366 = scalar_select %p365, %s16, 3
        %s367 = smul.addr %s366, 13
        %s368 = smul.addr %s367, 8
        %s369 = scalar_lea.vmem %s2, %s368
        %p370 = pneg %p84
        %p371 = pneg %p81
        %p372 = pneg %p105
        %p373 = pneg %p102
        %p374 = scmp.lt.s32.totalorder %s16, 3
        %s375 = scalar_select %p374, %s16, 3
        %s376 = smul.addr %s375, 13
        %s377 = smul.addr %s376, 8
        %s378 = scalar_lea.vmem %s2, %s377
        %p379 = scmp.eq.s32.totalorder %s16, 0
        // Predicated region
        $region75: #{partial_quant_forward.1} parent=65 // pred_check
          %p380 = pneg %p379
        $region76: #{partial_quant_forward.1} parent=65 // pred_check_branch
          %382 = sbr.rel (%p380) target = $region78
        $region77: #{partial_quant_forward.1} parent=65 // pred_region
          %vm383 = vcmask 0
          %384 = vst.msk [vmem:[#allocation2] sm:$0x1] %vm383, 0.0
          %385 = vst.msk [vmem:[#allocation3] sm:$0x1] %vm383, 0.0
          %386 = vst.msk [vmem:[#allocation4] sm:$0x1] %vm383, 0.0
        $region78: #{partial_quant_forward.1} parent=65 // pred_fallthru
          _
        %s387 = sld [smem:[#allocation5]]
        %s388 = sld [smem:[#allocation5 + $0x1]]
        %s389 = sld [smem:[#allocation5 + $0x2]]
        %s390 = sld [smem:[#allocation5 + $0x3]]
        %s391 = sld [smem:[#allocation5 + $0x4]]
        %v392 = vld [vmem:[%s352] sm:$0xff]
        %v393 = vld [vmem:[%s352 + $0x8] sm:$0xff]
        %v394 = vld [vmem:[%s352 + $0x10] sm:$0xff]
        %v395 = vld [vmem:[%s352 + $0x18] sm:$0xff]
        %v396 = vld [vmem:[%s352 + $0x20] sm:$0xff]
        %v397 = vld [vmem:[%s352 + $0x28] sm:$0xff]
        %v398 = vld [vmem:[%s352 + $0x30] sm:$0xff]
        %v399 = vld [vmem:[%s352 + $0x38] sm:$0xff]
        %v400 = vld [vmem:[%s352 + $0x40] sm:$0xff]
        %v401 = vld [vmem:[%s352 + $0x48] sm:$0xff]
        %v402 = vld [vmem:[%s352 + $0x50] sm:$0xff]
        %v403 = vld [vmem:[%s352 + $0x58] sm:$0xff]
        %v404 = vld [vmem:[%s352 + $0x60] sm:$0x3]
        %s405 = scalar_lea.vmem %s352, 104 [#allocation8]
        %v406 = vld [vmem:[%s405] sm:$0xff]
        %v407 = vld [vmem:[%s405 + $0x8] sm:$0xff]
        %v408 = vld [vmem:[%s405 + $0x10] sm:$0xff]
        %v409 = vld [vmem:[%s405 + $0x18] sm:$0xff]
        %v410 = vld [vmem:[%s405 + $0x20] sm:$0xff]
        %v411 = vld [vmem:[%s405 + $0x28] sm:$0xff]
        %v412 = vld [vmem:[%s405 + $0x30] sm:$0xff]
        %v413 = vld [vmem:[%s405 + $0x38] sm:$0xff]
        %v414 = vld [vmem:[%s405 + $0x40] sm:$0xff]
        %v415 = vld [vmem:[%s405 + $0x48] sm:$0xff]
        %v416 = vld [vmem:[%s405 + $0x50] sm:$0xff]
        %v417 = vld [vmem:[%s405 + $0x58] sm:$0xff]
        %v418 = vld [vmem:[%s405 + $0x60] sm:$0x3]
        %s419 = scalar_lea.vmem %s352, 208 [#allocation8]
        %v420 = vld [vmem:[%s419] sm:$0xff]
        %v421 = vld [vmem:[%s419 + $0x8] sm:$0xff]
        %v422 = vld [vmem:[%s419 + $0x10] sm:$0xff]
        %v423 = vld [vmem:[%s419 + $0x18] sm:$0xff]
        %v424 = vld [vmem:[%s419 + $0x20] sm:$0xff]
        %v425 = vld [vmem:[%s419 + $0x28] sm:$0xff]
        %v426 = vld [vmem:[%s419 + $0x30] sm:$0xff]
        %v427 = vld [vmem:[%s419 + $0x38] sm:$0xff]
        %v428 = vld [vmem:[%s419 + $0x40] sm:$0xff]
        %v429 = vld [vmem:[%s419 + $0x48] sm:$0xff]
        %v430 = vld [vmem:[%s419 + $0x50] sm:$0xff]
        %v431 = vld [vmem:[%s419 + $0x58] sm:$0xff]
        %v432 = vld [vmem:[%s419 + $0x60] sm:$0x3]
        %v433 = vstv %s387
        %v434 = vmul.f32 %v392, %v433
        %v435 = vmul.f32 %v393, %v433
        %v436 = vmul.f32 %v394, %v433
        %v437 = vmul.f32 %v395, %v433
        %v438 = vmul.f32 %v396, %v433
        %v439 = vmul.f32 %v397, %v433
        %v440 = vmul.f32 %v398, %v433
        %v441 = vmul.f32 %v399, %v433
        %v442 = vmul.f32 %v400, %v433
        %v443 = vmul.f32 %v401, %v433
        %v444 = vmul.f32 %v402, %v433
        %v445 = vmul.f32 %v403, %v433
        %v446 = vmul.f32 %v404, %v433
        %v447 = vstv %s388
        %v448 = vmul.f32 %v406, %v447
        %v449 = vmul.f32 %v407, %v447
        %v450 = vmul.f32 %v408, %v447
        %v451 = vmul.f32 %v409, %v447
        %v452 = vmul.f32 %v410, %v447
        %v453 = vmul.f32 %v411, %v447
        %v454 = vmul.f32 %v412, %v447
        %v455 = vmul.f32 %v413, %v447
        %v456 = vmul.f32 %v414, %v447
        %v457 = vmul.f32 %v415, %v447
        %v458 = vmul.f32 %v416, %v447
        %v459 = vmul.f32 %v417, %v447
        %v460 = vmul.f32 %v418, %v447
        %v461 = vadd.f32 %v434, %v448
        %v462 = vadd.f32 %v435, %v449
        %v463 = vadd.f32 %v436, %v450
        %v464 = vadd.f32 %v437, %v451
        %v465 = vadd.f32 %v438, %v452
        %v466 = vadd.f32 %v439, %v453
        %v467 = vadd.f32 %v440, %v454
        %v468 = vadd.f32 %v441, %v455
        %v469 = vadd.f32 %v442, %v456
        %v470 = vadd.f32 %v443, %v457
        %v471 = vadd.f32 %v444, %v458
        %v472 = vadd.f32 %v445, %v459
        %v473 = vadd.f32 %v446, %v460
        %v474 = vstv %s389
        %v475 = vmul.f32 %v420, %v474
        %v476 = vmul.f32 %v421, %v474
        %v477 = vmul.f32 %v422, %v474
        %v478 = vmul.f32 %v423, %v474
        %v479 = vmul.f32 %v424, %v474
        %v480 = vmul.f32 %v425, %v474
        %v481 = vmul.f32 %v426, %v474
        %v482 = vmul.f32 %v427, %v474
        %v483 = vmul.f32 %v428, %v474
        %v484 = vmul.f32 %v429, %v474
        %v485 = vmul.f32 %v430, %v474
        %v486 = vmul.f32 %v431, %v474
        %v487 = vmul.f32 %v432, %v474
        %v488 = vadd.f32 %v461, %v475
        %v489 = vadd.f32 %v462, %v476
        %v490 = vadd.f32 %v463, %v477
        %v491 = vadd.f32 %v464, %v478
        %v492 = vadd.f32 %v465, %v479
        %v493 = vadd.f32 %v466, %v480
        %v494 = vadd.f32 %v467, %v481
        %v495 = vadd.f32 %v468, %v482
        %v496 = vadd.f32 %v469, %v483
        %v497 = vadd.f32 %v470, %v484
        %v498 = vadd.f32 %v471, %v485
        %v499 = vadd.f32 %v472, %v486
        %v500 = vadd.f32 %v473, %v487
        %v501 = vstv %s390
        %v502 = vadd.f32 %v488, %v501
        %v503 = vadd.f32 %v489, %v501
        %v504 = vadd.f32 %v490, %v501
        %v505 = vadd.f32 %v491, %v501
        %v506 = vadd.f32 %v492, %v501
        %v507 = vadd.f32 %v493, %v501
        %v508 = vadd.f32 %v494, %v501
        %v509 = vadd.f32 %v495, %v501
        %v510 = vadd.f32 %v496, %v501
        %v511 = vadd.f32 %v497, %v501
        %v512 = vadd.f32 %v498, %v501
        %v513 = vadd.f32 %v499, %v501
        %v514 = vadd.f32 %v500, %v501
        %v515 = vmax.f32 %v502, 0.0
        %v516 = vmax.f32 %v503, 0.0
        %v517 = vmax.f32 %v504, 0.0
        %v518 = vmax.f32 %v505, 0.0
        %v519 = vmax.f32 %v506, 0.0
        %v520 = vmax.f32 %v507, 0.0
        %v521 = vmax.f32 %v508, 0.0
        %v522 = vmax.f32 %v509, 0.0
        %v523 = vmax.f32 %v510, 0.0
        %v524 = vmax.f32 %v511, 0.0
        %v525 = vmax.f32 %v512, 0.0
        %v526 = vmax.f32 %v513, 0.0
        %v527 = vmax.f32 %v514, 0.0
        %v528 = vstv %s391
        %v529 = vmul.f32 %v515, %v528
        %v530 = vmul.f32 %v516, %v528
        %v531 = vmul.f32 %v517, %v528
        %v532 = vmul.f32 %v518, %v528
        %v533 = vmul.f32 %v519, %v528
        %v534 = vmul.f32 %v520, %v528
        %v535 = vmul.f32 %v521, %v528
        %v536 = vmul.f32 %v522, %v528
        %v537 = vmul.f32 %v523, %v528
        %v538 = vmul.f32 %v524, %v528
        %v539 = vmul.f32 %v525, %v528
        %v540 = vmul.f32 %v526, %v528
        %v541 = vmul.f32 %v527, %v528
        %v542 = vld [vmem:[%s378] sm:$0xff]
        %v543 = vld [vmem:[%s378 + $0x8] sm:$0xff]
        %v544 = vld [vmem:[%s378 + $0x10] sm:$0xff]
        %v545 = vld [vmem:[%s378 + $0x18] sm:$0xff]
        %v546 = vld [vmem:[%s378 + $0x20] sm:$0xff]
        %v547 = vld [vmem:[%s378 + $0x28] sm:$0xff]
        %v548 = vld [vmem:[%s378 + $0x30] sm:$0xff]
        %v549 = vld [vmem:[%s378 + $0x38] sm:$0xff]
        %v550 = vld [vmem:[%s378 + $0x40] sm:$0xff]
        %v551 = vld [vmem:[%s378 + $0x48] sm:$0xff]
        %v552 = vld [vmem:[%s378 + $0x50] sm:$0xff]
        %v553 = vld [vmem:[%s378 + $0x58] sm:$0xff]
        %v554 = vld [vmem:[%s378 + $0x60] sm:$0x3]
        %v555 = vld [vmem:[#allocation2] sm:$0x1]
        %v556 = vadd.f32 %v529, %v530
        %v557 = vadd.f32 %v556, %v531
        %v558 = vadd.f32 %v557, %v532
        %v559 = vadd.f32 %v558, %v533
        %v560 = vadd.f32 %v559, %v534
        %v561 = vadd.f32 %v560, %v535
        %v562 = vadd.f32 %v561, %v536
        %v563 = vadd.f32 %v562, %v537
        %v564 = vadd.f32 %v563, %v538
        %v565 = vadd.f32 %v564, %v539
        %v566 = vadd.f32 %v565, %v540
        %vm567 = vcmask 1041408
        %v568 = vsel %vm567, %v541, 0.0
        %v569 = vadd.f32 %v566, %v568
        %570 = vadd.xlane.f32.xlu0 %v569
        %v571 = vpop.xlane.xlu0 %570
        %v572 = vrot.slane %v571, 4
        %v573 = vadd.f32 %v571, %v572
        %v574 = vrot.slane %v573, 2
        %v575 = vadd.f32 %v573, %v574
        %v576 = vrot.slane %v575, 1
        %v577 = vadd.f32 %v575, %v576
        %s578 = vtos %v577
        %v579 = vstv %s578
        %v580 = vadd.f32 %v555, %v579
        %vm581 = vcmask 0
        %582 = vst.msk [vmem:[#allocation2] sm:$0x1] %vm581, %v580
        %v583 = vld [vmem:[#allocation3] sm:$0x1]
        %v584 = vmul.f32 %v529, %v529
        %v585 = vmul.f32 %v530, %v530
        %v586 = vmul.f32 %v531, %v531
        %v587 = vmul.f32 %v532, %v532
        %v588 = vmul.f32 %v533, %v533
        %v589 = vmul.f32 %v534, %v534
        %v590 = vmul.f32 %v535, %v535
        %v591 = vmul.f32 %v536, %v536
        %v592 = vmul.f32 %v537, %v537
        %v593 = vmul.f32 %v538, %v538
        %v594 = vmul.f32 %v539, %v539
        %v595 = vmul.f32 %v540, %v540
        %v596 = vmul.f32 %v541, %v541
        %v597 = vadd.f32 %v584, %v585
        %v598 = vadd.f32 %v597, %v586
        %v599 = vadd.f32 %v598, %v587
        %v600 = vadd.f32 %v599, %v588
        %v601 = vadd.f32 %v600, %v589
        %v602 = vadd.f32 %v601, %v590
        %v603 = vadd.f32 %v602, %v591
        %v604 = vadd.f32 %v603, %v592
        %v605 = vadd.f32 %v604, %v593
        %v606 = vadd.f32 %v605, %v594
        %v607 = vadd.f32 %v606, %v595
        %v608 = vsel %vm567, %v596, 0.0
        %v609 = vadd.f32 %v607, %v608
        %610 = vadd.xlane.f32.xlu0 %v609
        %v611 = vpop.xlane.xlu0 %610
        %v612 = vrot.slane %v611, 4
        %v613 = vadd.f32 %v611, %v612
        %v614 = vrot.slane %v613, 2
        %v615 = vadd.f32 %v613, %v614
        %v616 = vrot.slane %v615, 1
        %v617 = vadd.f32 %v615, %v616
        %s618 = vtos %v617
        %v619 = vstv %s618
        %v620 = vadd.f32 %v583, %v619
        %621 = vst.msk [vmem:[#allocation3] sm:$0x1] %vm581, %v620
        %v622 = vld [vmem:[#allocation4] sm:$0x1]
        %v623 = vmul.f32 %v529, %v542
        %v624 = vmul.f32 %v530, %v543
        %v625 = vmul.f32 %v531, %v544
        %v626 = vmul.f32 %v532, %v545
        %v627 = vmul.f32 %v533, %v546
        %v628 = vmul.f32 %v534, %v547
        %v629 = vmul.f32 %v535, %v548
        %v630 = vmul.f32 %v536, %v549
        %v631 = vmul.f32 %v537, %v550
        %v632 = vmul.f32 %v538, %v551
        %v633 = vmul.f32 %v539, %v552
        %v634 = vmul.f32 %v540, %v553
        %v635 = vmul.f32 %v541, %v554
        %v636 = vadd.f32 %v623, %v624
        %v637 = vadd.f32 %v636, %v625
        %v638 = vadd.f32 %v637, %v626
        %v639 = vadd.f32 %v638, %v627
        %v640 = vadd.f32 %v639, %v628
        %v641 = vadd.f32 %v640, %v629
        %v642 = vadd.f32 %v641, %v630
        %v643 = vadd.f32 %v642, %v631
        %v644 = vadd.f32 %v643, %v632
        %v645 = vadd.f32 %v644, %v633
        %v646 = vadd.f32 %v645, %v634
        %v647 = vsel %vm567, %v635, 0.0
        %v648 = vadd.f32 %v646, %v647
        %649 = vadd.xlane.f32.xlu0 %v648
        %v650 = vpop.xlane.xlu0 %649
        %v651 = vrot.slane %v650, 4
        %v652 = vadd.f32 %v650, %v651
        %v653 = vrot.slane %v652, 2
        %v654 = vadd.f32 %v652, %v653
        %v655 = vrot.slane %v654, 1
        %v656 = vadd.f32 %v654, %v655
        %s657 = vtos %v656
        %v658 = vstv %s657
        %v659 = vadd.f32 %v622, %v658
        %660 = vst.msk [vmem:[#allocation4] sm:$0x1] %vm581, %v659
        %p661 = scmp.eq.s32.totalorder %s16, 3
        // Predicated region
        $region79: #{partial_quant_forward.1} parent=65 // pred_check
          %p662 = pneg %p661
        $region80: #{partial_quant_forward.1} parent=65 // pred_check_branch
          %664 = sbr.rel (%p662) target = $region82
        $region81: #{partial_quant_forward.1} parent=65 // pred_region
          %s665 = sld [smem:[#allocation5 + $0x5]]
          %s666 = sld [smem:[#allocation5 + $0x6]]
          %v667 = vld [vmem:[#allocation2] sm:$0x1]
          %v668 = vmul.f32 %v667, 1.9929847e-05
          %v669 = vld [vmem:[#allocation3] sm:$0x1]
          %v670 = vmul.f32 %v669, 1.9929847e-05
          %v671 = vmul.f32 %v668, %v668
          %v672 = vsub.f32 %v670, %v671
          %v673 = vmax.f32 %v672, 0.0
          %v674 = vadd.f32 %v673, 1e-05
          %v675 = vrsqrt.pop %v674
          %v676 = vld [vmem:[#allocation4] sm:$0x1]
          %v677 = vstv %s665
          %v678 = vmul.f32 %v668, %v677
          %v679 = vsub.f32 %v676, %v678
          %v680 = vmul.f32 %v675, %v679
          %v681 = vstv %s666
          %v682 = vadd.f32 %v680, %v681
          %683 = vst.msk [vmem:[#allocation9] sm:$0x1] %vm581, %v682
        $region82: #{partial_quant_forward.1} parent=65 // pred_fallthru
          _
        // Predicated region
        $region83: #{partial_quant_forward.1} parent=65 // pred_check
          %p684 = pneg %p102
        $region84: #{partial_quant_forward.1} parent=65 // pred_check_branch
          %686 = sbr.rel (%p684) target = $region86
        $region85: #{partial_quant_forward.1} parent=65 // pred_region
          %s688 = ssub.s32 16, 16
          %689 = vsyncadd [#allocation6], %s688
          %s691 = sshll.u32 [#allocation9], 4
          %s692 = int_to_ptr.vmem [resolvable:$true] %s691
          %694 = dma.vmem_to_hbm [thread:$0]  %s692, 16, %s3, [#allocation6]
        $region86: #{partial_quant_forward.1} parent=65 // pred_fallthru
          _
        // Predicated region
        $region87: #{partial_quant_forward.1} parent=65 // pred_check
          %p695 = pneg %p102
        $region88: #{partial_quant_forward.1} parent=65 // pred_check_branch
          %697 = sbr.rel (%p695) target = $region90
        $region89: #{partial_quant_forward.1} parent=65 // pred_region
          %698 = dma.done [#allocation6], 16
        $region90: #{partial_quant_forward.1} parent=65 // pred_fallthru
          _
      $region66: #{partial_quant_forward.1} parent=5 // pred_fallthru
        _
      %p699 = scmp.le.s32.totalorder 2, %s11
      // Predicated region
      $region91: #{partial_quant_forward.1} parent=5 // pred_check
        %p700 = pneg %p699
      $region92: #{partial_quant_forward.1} parent=5 // pred_check_branch
        %702 = sbr.rel (%p700) target = $region94
      $region93: #{partial_quant_forward.1} parent=5 // pred_region
        %s703 = ssub.s32 %s11, 2
      $region94: #{partial_quant_forward.1} parent=5 // pred_fallthru
        _
    $region6: #{partial_quant_forward.1} parent=1 // loop_footer
      %s15 = sadd.s32 1, %s11
    $region7: #{partial_quant_forward.1} parent=1 // loop_footer_branch
      %10 = sbr.rel target = $region3
    $region8: #{partial_quant_forward.1} parent=1 // loop_exit
      _
    %704 = vsyncpa [#allocation6], 1
    %s705 = scalar_lea.sflag [#allocation6], 1
    %706 = vsyncpa %s705, 1
    %707 = vsyncpa [#allocation7], 1
    %s708 = scalar_lea.sflag [#allocation7], 1
    %709 = vsyncpa %s708, 1

</llo_original>
